<compile_context>
chip_gen: v6e
topology: v6e:2x2x1
jax: 0.10.0
libtpu: 0.0.40
codegen_flags: <defaults>
</compile_context>

<pallas_src>
import math

import jax
import jax.numpy as jnp
from jax.experimental import pallas as pl
from jax.experimental.pallas import tpu as pltpu

F32 = jnp.float32
BF16 = jnp.bfloat16
D_MODEL = 128
H = D_MODEL // 2                # 64  (conv out channels / LSTM hidden)
N_HEADS = 8
HEAD_DIM = D_MODEL // N_HEADS   # 16
TECH_F = 20
PRICE_F = 4
EMB = D_MODEL // 4              # 32
Q_HID = 256
LN_EPS = 1e-5


def _mm(a, b):
    """MXU matmul: bf16 operands, f32 accumulation."""
    return jnp.dot(a.astype(BF16), b, preferred_element_type=F32)


def _ln(y, g, b):
    m = jnp.mean(y, axis=-1, keepdims=True)
    v = jnp.mean((y - m) ** 2, axis=-1, keepdims=True)
    return (y - m) * jax.lax.rsqrt(v + LN_EPS) * g + b


# ----------------------------------------------------------------------------
# One fused kernel per batch tile.
# ----------------------------------------------------------------------------
def critic_kernel(tech_ref, price_ref, vol_ref, act_ref,
                  cw_ref, cb_ref,
                  wih_ref, whh_ref, lb_ref,
                  pw_ref, pb_ref, vw_ref, vb_ref,
                  wqkv_ref, bqkv_ref, wo_ref, bo_ref, lng_ref, lnb_ref,
                  qw1s_ref, qw1a_ref, qb1_ref,
                  qg1_ref, qbe1_ref, qw2_ref, qb2_ref,
                  qg2_ref, qbe2_ref, qw3_ref, qb3_ref,
                  q_ref, lstm_ref):
    B, L, _ = tech_ref.shape
    BL = B * L

    # ---- Conv1d(k=3, padding=1) + ReLU: taps stacked on the output dim of one
    # matmul; time shifts done with sublane rolls (XLU) + a one-row mask.
    taps = _mm(tech_ref[...].reshape(BL, TECH_F), cw_ref[...])          # [BL, 3H]
    t_idx = jax.lax.broadcasted_iota(jnp.int32, (B, L, H), 1).reshape(BL, H)
    y0 = jnp.where(t_idx == 0, 0.0,
                   pltpu.roll(taps[:, 0:H], shift=1, axis=0))           # x[t-1] tap
    y1 = taps[:, H:2 * H]                                               # x[t]   tap
    y2 = jnp.where(t_idx == L - 1, 0.0,
                   pltpu.roll(taps[:, 2 * H:3 * H], shift=BL - 1, axis=0))  # x[t+1]
    conv = jnp.maximum(y0 + y1 + y2 + cb_ref[...], 0.0)                 # [BL, H]

    # ---- forward LSTM; gate columns packed (i, f, o, g) so one sigmoid covers a
    # contiguous [B, 3H] slice and one tanh the trailing [B, H].  Hidden states
    # go straight into VMEM scratch (no unrolled concatenate).
    # TODO(synk): hold whh in MXU weight registers across the L steps with
    # pltpu.matmul_push_rhs / matmul_acc_lhs to drop per-step weight pushes.
    gates_x = (_mm(conv, wih_ref[...]) + lb_ref[...]).reshape(B, L, 4 * H)
    whh = whh_ref[...]
    h = jnp.zeros((B, H), F32)
    c = jnp.zeros((B, H), F32)
    for t in range(L):
        gates = gates_x[:, t, :] + _mm(h, whh)
        sig = jax.nn.sigmoid(gates[:, 0:3 * H])
        i_g, f_g, o_g = sig[:, 0:H], sig[:, H:2 * H], sig[:, 2 * H:3 * H]
        g_g = jnp.tanh(gates[:, 3 * H:4 * H])
        c = f_g * c + i_g * g_g
        h = o_g * jnp.tanh(c)
        lstm_ref[:, t, :] = h
    lstm_out = lstm_ref[...].reshape(BL, H)                             # [BL, 64]

    # ---- price / volume embeddings + ReLU
    pe = jnp.maximum(
        _mm(price_ref[...].reshape(BL, PRICE_F), pw_ref[...]) + pb_ref[...], 0.0)
    ve = jnp.maximum(vol_ref[...].reshape(BL, 1) * vw_ref[...] + vb_ref[...], 0.0)

    # ---- combined sequence stays resident (lane-dense 64 + 32 + 32 = 128)
    xf = jnp.concatenate([lstm_out, pe, ve], axis=-1)                   # [BL, 128]

    # ---- 3 self-attention layers: fused QKV projection, one batched score
    # contraction + one batched context contraction per layer (batch = heads*B).
    scale = 1.0 / math.sqrt(HEAD_DIM)

    def split_heads(x2d):        # [BL, D_MODEL] -> [(h*B + b), L, HEAD_DIM]
        return jnp.concatenate(
            [x2d[:, hh * HEAD_DIM:(hh + 1) * HEAD_DIM].reshape(B, L, HEAD_DIM)
             for hh in range(N_HEADS)], axis=0)

    for layer in range(3):
        qkv = (_mm(xf, wqkv_ref[layer]) + bqkv_ref[layer]).astype(BF16)  # [BL, 384]
        qh = split_heads(qkv[:, 0:D_MODEL])
        kh = split_heads(qkv[:, D_MODEL:2 * D_MODEL])
        vh = split_heads(qkv[:, 2 * D_MODEL:3 * D_MODEL])
        s = jnp.einsum('xqd,xkd->xqk', qh, kh,
                       preferred_element_type=F32) * scale              # [HB, L, L]
        s = s - jnp.max(s, axis=-1, keepdims=True)
        p = jnp.exp(s)
        p = p * pl.reciprocal(jnp.sum(p, axis=-1, keepdims=True), approx=True)
        ctx = jnp.einsum('xqk,xkd->xqd', p.astype(BF16), vh,
                         preferred_element_type=F32)                    # [HB, L, hd]
        ctx = jnp.concatenate(
            [ctx[hh * B:(hh + 1) * B].reshape(BL, HEAD_DIM)
             for hh in range(N_HEADS)], axis=-1)                        # [BL, 128]
        o = _mm(ctx, wo_ref[layer]) + bo_ref[layer]
        xf = _ln(xf + o, lng_ref[layer], lnb_ref[layer])                # dropout=id

    # ---- mean pool over time + twin Q heads (layer 1 fused across critics,
    # layers 2/3 batched over the critic axis).
    pooled = jnp.mean(xf.reshape(B, L, D_MODEL), axis=1)                # [B, 128]
    h1_cat = (_mm(pooled, qw1s_ref[...]) + _mm(act_ref[...], qw1a_ref[...])
              + qb1_ref[...])                                           # [B, 512]
    h1 = jnp.stack([h1_cat[:, 0:Q_HID], h1_cat[:, Q_HID:2 * Q_HID]], axis=0)
    h1 = jnp.maximum(_ln(h1, qg1_ref[...], qbe1_ref[...]), 0.0)         # [2, B, 256]
    h2 = jnp.einsum('nbh,nhd->nbd', h1.astype(BF16), qw2_ref[...],
                    preferred_element_type=F32) + qb2_ref[...]
    h2 = jnp.maximum(_ln(h2, qg2_ref[...], qbe2_ref[...]), 0.0)         # [2, B, 128]
    qn = jnp.einsum('nbh,nhd->nbd', h2.astype(BF16), qw3_ref[...],
                    preferred_element_type=F32) + qb3_ref[...]          # [2, B, 1]
    q_ref[...] = jnp.concatenate([qn[0], qn[1]], axis=-1)               # single store


# ----------------------------------------------------------------------------
# Parameter init (deterministic, PyTorch-like uniform fan-in scaling), pre-packed:
# weights transposed to [in, out], matmul weights stored in bf16, conv taps /
# QKV / twin layer-1 weights concatenated for fused matmuls.
# LSTM gate column order is (i, f, o, g); when porting real PyTorch weights,
# permute from PyTorch's (i, f, g, o) at load time.
# ----------------------------------------------------------------------------
def init_params(key, action_dim):
    ks = iter(jax.random.split(key, 64))

    def unif(shape, bound):
        return jax.random.uniform(next(ks), shape, F32, -bound, bound)

    def lin(in_dim, out_dim):
        bnd = 1.0 / math.sqrt(in_dim)
        return unif((in_dim, out_dim), bnd), unif((1, out_dim), bnd)

    p = {}
    cb = 1.0 / math.sqrt(TECH_F * 3)
    p["conv_w"] = jnp.concatenate([unif((TECH_F, H), cb) for _ in range(3)],
                                  axis=1).astype(BF16)              # [20, 192]
    p["conv_b"] = unif((1, H), cb)

    lb = 1.0 / math.sqrt(H)
    p["lstm_wih"] = unif((H, 4 * H), lb).astype(BF16)               # cols (i,f,o,g)
    p["lstm_whh"] = unif((H, 4 * H), lb).astype(BF16)
    p["lstm_b"] = unif((1, 4 * H), lb) + unif((1, 4 * H), lb)       # b_ih + b_hh

    pw, pb = lin(PRICE_F, EMB)
    p["price_w"], p["price_b"] = pw.astype(BF16), pb
    vw, vb = lin(1, EMB)
    p["vol_w"], p["vol_b"] = vw, vb          # used as elementwise broadcast (f32)

    wqkv, bqkv, wo, bo, gs, bs = [], [], [], [], [], []
    for _ in range(3):
        wq, bq = lin(D_MODEL, D_MODEL)
        wk, bk = lin(D_MODEL, D_MODEL)
        wv, bv = lin(D_MODEL, D_MODEL)
        wol, bol = lin(D_MODEL, D_MODEL)
        wqkv.append(jnp.concatenate([wq, wk, wv], axis=1))
        bqkv.append(jnp.concatenate([bq, bk, bv], axis=1))
        wo.append(wol); bo.append(bol)
        gs.append(jnp.ones((1, D_MODEL), F32))
        bs.append(jnp.zeros((1, D_MODEL), F32))
    p["attn_wqkv"] = jnp.stack(wqkv).astype(BF16)                   # [3, 128, 384]
    p["attn_bqkv"] = jnp.stack(bqkv)
    p["attn_wo"] = jnp.stack(wo).astype(BF16)                       # [3, 128, 128]
    p["attn_bo"] = jnp.stack(bo)
    p["attn_g"] = jnp.stack(gs)
    p["attn_b"] = jnp.stack(bs)

    w1s, w1a, b1 = [], [], []
    g1, be1, w2, b2, g2, be2, w3, b3 = [], [], [], [], [], [], [], []
    for _ in range(2):                                               # twin critics
        w1, bb1 = lin(D_MODEL + action_dim, Q_HID)
        w2n, b2n = lin(Q_HID, D_MODEL)
        w3n, b3n = lin(D_MODEL, 1)
        w1s.append(w1[:D_MODEL]); w1a.append(w1[D_MODEL:]); b1.append(bb1)
        g1.append(jnp.ones((1, Q_HID), F32)); be1.append(jnp.zeros((1, Q_HID), F32))
        w2.append(w2n); b2.append(b2n)
        g2.append(jnp.ones((1, D_MODEL), F32)); be2.append(jnp.zeros((1, D_MODEL), F32))
        w3.append(w3n); b3.append(b3n)
    p["q_w1s"] = jnp.concatenate(w1s, axis=1).astype(BF16)          # [128, 512]
    p["q_w1a"] = jnp.concatenate(w1a, axis=1).astype(BF16)          # [A, 512]
    p["q_b1"] = jnp.concatenate(b1, axis=1)                         # [1, 512]
    p["q_g1"] = jnp.stack(g1); p["q_be1"] = jnp.stack(be1)          # [2, 1, 256]
    p["q_w2"] = jnp.stack(w2).astype(BF16)                          # [2, 256, 128]
    p["q_b2"] = jnp.stack(b2)                                       # [2, 1, 128]
    p["q_g2"] = jnp.stack(g2); p["q_be2"] = jnp.stack(be2)          # [2, 1, 128]
    p["q_w3"] = jnp.stack(w3).astype(BF16)                          # [2, 128, 1]
    p["q_b3"] = jnp.stack(b3)                                       # [2, 1, 1]
    return p


WEIGHT_KEYS = ("conv_w", "conv_b", "lstm_wih", "lstm_whh", "lstm_b",
               "price_w", "price_b", "vol_w", "vol_b",
               "attn_wqkv", "attn_bqkv", "attn_wo", "attn_bo", "attn_g", "attn_b",
               "q_w1s", "q_w1a", "q_b1", "q_g1", "q_be1",
               "q_w2", "q_b2", "q_g2", "q_be2", "q_w3", "q_b3")


def _w_spec(shape):
    nd = len(shape)
    return pl.BlockSpec(shape, lambda i, _nd=nd: (0,) * _nd)


def _pick_b_tile(B, L):
    # Target >=256 rows per tile (B_tile*L) for MXU row fill on v6e/v7x where
    # possible; fall back to the whole batch for small/odd batch sizes.
    cands = []
    big = (256 // max(L, 1)) // 8 * 8
    if big >= 8:
        cands.append(big)
    cands += [32, 16, 8]
    for cand in cands:
        if cand >= 8 and B % cand == 0:
            return cand
    return B


# ----------------------------------------------------------------------------
# Full Critic forward (fundamental_data=None path) — grid over batch tiles.
# ----------------------------------------------------------------------------
def critic_forward(params, technical_data, price_data, volume_data, action,
                   b_tile=None):
    B, L, _ = technical_data.shape
    A = action.shape[-1]
    if b_tile is None:
        b_tile = _pick_b_tile(B, L)
    assert B % b_tile == 0
    vol = volume_data[..., None]                                    # unsqueeze(-1)
    weights = [params[k] for k in WEIGHT_KEYS]
    in_specs = [
        pl.BlockSpec((b_tile, L, TECH_F), lambda i: (i, 0, 0)),
        pl.BlockSpec((b_tile, L, PRICE_F), lambda i: (i, 0, 0)),
        pl.BlockSpec((b_tile, L, 1), lambda i: (i, 0, 0)),
        pl.BlockSpec((b_tile, A), lambda i: (i, 0)),
    ] + [_w_spec(w.shape) for w in weights]
    # TODO(synk): weights could be single-buffered (pipeline_mode=pl.Buffered(1));
    # their constant index_map already avoids refetching the same block per step.
    q = pl.pallas_call(
        critic_kernel,
        grid=(B // b_tile,),
        in_specs=in_specs,
        out_specs=pl.BlockSpec((b_tile, 2), lambda i: (i, 0)),
        out_shape=jax.ShapeDtypeStruct((B, 2), F32),
        scratch_shapes=[pltpu.VMEM((b_tile, L, H), F32)],
        compiler_params=pltpu.CompilerParams(
            dimension_semantics=("parallel",),
            vmem_limit_bytes=32 * 1024 * 1024),
    )(technical_data, price_data, vol, action, *weights)
    return q[:, 0:1], q[:, 1:2]


if __name__ == "__main__":
    B, L, A = 2, 8, 4
    key = jax.random.PRNGKey(0)
    k_tech, k_price, k_vol, k_act, k_par = jax.random.split(key, 5)
    technical = jax.random.normal(k_tech, (B, L, TECH_F), F32)
    price = jax.random.normal(k_price, (B, L, PRICE_F), F32)
    volume = jax.random.normal(k_vol, (B, L), F32)
    action = jax.random.normal(k_act, (B, A), F32)

    params = init_params(k_par, A)
    q1, q2 = critic_forward(params, technical, price, volume, action)
    jax.block_until_ready((q1, q2))
    assert q1.shape == (B, 1) and q2.shape == (B, 1)
    assert bool(jnp.isfinite(q1).all()) and bool(jnp.isfinite(q2).all())
    print("KERNEL_OK")
</pallas_src>

<mosaic_0001>
module attributes {stable_mosaic.version = 11 : i64} {
  func.func @critic_kernel(%arg0: i32, %arg1: memref<2x8x20xf32, #tpu.memory_space<vmem>>, %arg2: memref<2x8x4xf32, #tpu.memory_space<vmem>>, %arg3: memref<2x8x1xf32, #tpu.memory_space<vmem>>, %arg4: memref<2x4xf32, #tpu.memory_space<vmem>>, %arg5: memref<20x192xbf16, #tpu.memory_space<vmem>>, %arg6: memref<1x64xf32, #tpu.memory_space<vmem>>, %arg7: memref<64x256xbf16, #tpu.memory_space<vmem>>, %arg8: memref<64x256xbf16, #tpu.memory_space<vmem>>, %arg9: memref<1x256xf32, #tpu.memory_space<vmem>>, %arg10: memref<4x32xbf16, #tpu.memory_space<vmem>>, %arg11: memref<1x32xf32, #tpu.memory_space<vmem>>, %arg12: memref<1x32xf32, #tpu.memory_space<vmem>>, %arg13: memref<1x32xf32, #tpu.memory_space<vmem>>, %arg14: memref<3x128x384xbf16, #tpu.memory_space<vmem>>, %arg15: memref<3x1x384xf32, #tpu.memory_space<vmem>>, %arg16: memref<3x128x128xbf16, #tpu.memory_space<vmem>>, %arg17: memref<3x1x128xf32, #tpu.memory_space<vmem>>, %arg18: memref<3x1x128xf32, #tpu.memory_space<vmem>>, %arg19: memref<3x1x128xf32, #tpu.memory_space<vmem>>, %arg20: memref<128x512xbf16, #tpu.memory_space<vmem>>, %arg21: memref<4x512xbf16, #tpu.memory_space<vmem>>, %arg22: memref<1x512xf32, #tpu.memory_space<vmem>>, %arg23: memref<2x1x256xf32, #tpu.memory_space<vmem>>, %arg24: memref<2x1x256xf32, #tpu.memory_space<vmem>>, %arg25: memref<2x256x128xbf16, #tpu.memory_space<vmem>>, %arg26: memref<2x1x128xf32, #tpu.memory_space<vmem>>, %arg27: memref<2x1x128xf32, #tpu.memory_space<vmem>>, %arg28: memref<2x1x128xf32, #tpu.memory_space<vmem>>, %arg29: memref<2x128x1xbf16, #tpu.memory_space<vmem>>, %arg30: memref<2x1x1xf32, #tpu.memory_space<vmem>>, %arg31: memref<2x2xf32, #tpu.memory_space<vmem>>, %arg32: memref<2x8x64xf32, #tpu.memory_space<vmem>>) attributes {dimension_semantics = [#tpu.dimension_semantics<parallel>], iteration_bounds = array<i64: 1>, scalar_prefetch = 0 : i64, scratch_operands = 1 : i64, tpu.core_type = #tpu.core_type<tc>, window_params = [{transform_indices = @transform_0, window_bounds = array<i64: 2, 8, 20>}, {transform_indices = @transform_1, window_bounds = array<i64: 2, 8, 4>}, {transform_indices = @transform_2, window_bounds = array<i64: 2, 8, 1>}, {transform_indices = @transform_3, window_bounds = array<i64: 2, 4>}, {pipeline_mode = #tpu.pipeline_mode<synchronous>, transform_indices = @transform_4, window_bounds = array<i64: 20, 192>}, {pipeline_mode = #tpu.pipeline_mode<synchronous>, transform_indices = @transform_5, window_bounds = array<i64: 1, 64>}, {pipeline_mode = #tpu.pipeline_mode<synchronous>, transform_indices = @transform_6, window_bounds = array<i64: 64, 256>}, {pipeline_mode = #tpu.pipeline_mode<synchronous>, transform_indices = @transform_7, window_bounds = array<i64: 64, 256>}, {pipeline_mode = #tpu.pipeline_mode<synchronous>, transform_indices = @transform_8, window_bounds = array<i64: 1, 256>}, {pipeline_mode = #tpu.pipeline_mode<synchronous>, transform_indices = @transform_9, window_bounds = array<i64: 4, 32>}, {pipeline_mode = #tpu.pipeline_mode<synchronous>, transform_indices = @transform_10, window_bounds = array<i64: 1, 32>}, {pipeline_mode = #tpu.pipeline_mode<synchronous>, transform_indices = @transform_11, window_bounds = array<i64: 1, 32>}, {pipeline_mode = #tpu.pipeline_mode<synchronous>, transform_indices = @transform_12, window_bounds = array<i64: 1, 32>}, {pipeline_mode = #tpu.pipeline_mode<synchronous>, transform_indices = @transform_13, window_bounds = array<i64: 3, 128, 384>}, {pipeline_mode = #tpu.pipeline_mode<synchronous>, transform_indices = @transform_14, window_bounds = array<i64: 3, 1, 384>}, {pipeline_mode = #tpu.pipeline_mode<synchronous>, transform_indices = @transform_15, window_bounds = array<i64: 3, 128, 128>}, {pipeline_mode = #tpu.pipeline_mode<synchronous>, transform_indices = @transform_16, window_bounds = array<i64: 3, 1, 128>}, {pipeline_mode = #tpu.pipeline_mode<synchronous>, transform_indices = @transform_17, window_bounds = array<i64: 3, 1, 128>}, {pipeline_mode = #tpu.pipeline_mode<synchronous>, transform_indices = @transform_18, window_bounds = array<i64: 3, 1, 128>}, {pipeline_mode = #tpu.pipeline_mode<synchronous>, transform_indices = @transform_19, window_bounds = array<i64: 128, 512>}, {pipeline_mode = #tpu.pipeline_mode<synchronous>, transform_indices = @transform_20, window_bounds = array<i64: 4, 512>}, {pipeline_mode = #tpu.pipeline_mode<synchronous>, transform_indices = @transform_21, window_bounds = array<i64: 1, 512>}, {pipeline_mode = #tpu.pipeline_mode<synchronous>, transform_indices = @transform_22, window_bounds = array<i64: 2, 1, 256>}, {pipeline_mode = #tpu.pipeline_mode<synchronous>, transform_indices = @transform_23, window_bounds = array<i64: 2, 1, 256>}, {pipeline_mode = #tpu.pipeline_mode<synchronous>, transform_indices = @transform_24, window_bounds = array<i64: 2, 256, 128>}, {pipeline_mode = #tpu.pipeline_mode<synchronous>, transform_indices = @transform_25, window_bounds = array<i64: 2, 1, 128>}, {pipeline_mode = #tpu.pipeline_mode<synchronous>, transform_indices = @transform_26, window_bounds = array<i64: 2, 1, 128>}, {pipeline_mode = #tpu.pipeline_mode<synchronous>, transform_indices = @transform_27, window_bounds = array<i64: 2, 1, 128>}, {pipeline_mode = #tpu.pipeline_mode<synchronous>, transform_indices = @transform_28, window_bounds = array<i64: 2, 128, 1>}, {pipeline_mode = #tpu.pipeline_mode<synchronous>, transform_indices = @transform_29, window_bounds = array<i64: 2, 1, 1>}, {transform_indices = @transform_30, window_bounds = array<i64: 2, 2>}]} {
    %c0 = arith.constant 0 : index
    %c0_0 = arith.constant 0 : index
    %c0_1 = arith.constant 0 : index
    %0 = vector.load %arg1[%c0, %c0_0, %c0_1] : memref<2x8x20xf32, #tpu.memory_space<vmem>>, vector<2x8x20xf32>
    %1 = vector.shape_cast %0 : vector<2x8x20xf32> to vector<16x20xf32>
    %c0_2 = arith.constant 0 : index
    %c0_3 = arith.constant 0 : index
    %2 = vector.load %arg5[%c0_2, %c0_3] : memref<20x192xbf16, #tpu.memory_space<vmem>>, vector<20x192xbf16>
    %3 = arith.truncf %1 : vector<16x20xf32> to vector<16x20xbf16>
    %cst = arith.constant dense<0.000000e+00> : vector<16x192xf32>
    %4 = tpu.matmul %3, %2, %cst {dimension_numbers = #tpu.dot_dimension_numbers<[1], [0], [0], [1], [0, 0, 1, 1], [], []>} : vector<16x20xbf16>, vector<20x192xbf16>, vector<16x192xf32> -> vector<16x192xf32>
    %5 = tpu.iota {dimensions = array<i32: 1>} : vector<2x8x64xi32>
    %6 = vector.shape_cast %5 : vector<2x8x64xi32> to vector<16x64xi32>
    %c0_i32 = arith.constant 0 : i32
    %7 = vector.broadcast %c0_i32 : i32 to vector<16x64xi32>
    %8 = arith.cmpi eq, %6, %7 : vector<16x64xi32>
    %9 = vector.extract_strided_slice %4 {offsets = [0, 0], sizes = [16, 64], strides = [1, 1]} : vector<16x192xf32> to vector<16x64xf32>
    %c1_i32 = arith.constant 1 : i32
    %10 = tpu.dynamic_rotate %9 by %c1_i32 dim 0 : vector<16x64xf32>, i32 -> vector<16x64xf32>
    %cst_4 = arith.constant 0.000000e+00 : f32
    %11 = vector.broadcast %cst_4 : f32 to vector<16x64xf32>
    %12 = arith.select %8, %11, %10 : vector<16x64xi1>, vector<16x64xf32>
    %13 = vector.extract_strided_slice %4 {offsets = [0, 64], sizes = [16, 64], strides = [1, 1]} : vector<16x192xf32> to vector<16x64xf32>
    %c7_i32 = arith.constant 7 : i32
    %14 = vector.broadcast %c7_i32 : i32 to vector<16x64xi32>
    %15 = arith.cmpi eq, %6, %14 : vector<16x64xi32>
    %16 = vector.extract_strided_slice %4 {offsets = [0, 128], sizes = [16, 64], strides = [1, 1]} : vector<16x192xf32> to vector<16x64xf32>
    %c15_i32 = arith.constant 15 : i32
    %17 = tpu.dynamic_rotate %16 by %c15_i32 dim 0 : vector<16x64xf32>, i32 -> vector<16x64xf32>
    %cst_5 = arith.constant 0.000000e+00 : f32
    %18 = vector.broadcast %cst_5 : f32 to vector<16x64xf32>
    %19 = arith.select %15, %18, %17 : vector<16x64xi1>, vector<16x64xf32>
    %20 = arith.addf %12, %13 : vector<16x64xf32>
    %21 = arith.addf %20, %19 : vector<16x64xf32>
    %c0_6 = arith.constant 0 : index
    %c0_7 = arith.constant 0 : index
    %22 = vector.load %arg6[%c0_6, %c0_7] : memref<1x64xf32, #tpu.memory_space<vmem>>, vector<1x64xf32>
    %23 = vector.broadcast %22 : vector<1x64xf32> to vector<16x64xf32>
    %24 = arith.addf %21, %23 : vector<16x64xf32>
    %cst_8 = arith.constant 0.000000e+00 : f32
    %25 = vector.broadcast %cst_8 : f32 to vector<16x64xf32>
    %26 = arith.maximumf %24, %25 : vector<16x64xf32>
    %c0_9 = arith.constant 0 : index
    %c0_10 = arith.constant 0 : index
    %27 = vector.load %arg7[%c0_9, %c0_10] : memref<64x256xbf16, #tpu.memory_space<vmem>>, vector<64x256xbf16>
    %28 = arith.truncf %26 : vector<16x64xf32> to vector<16x64xbf16>
    %cst_11 = arith.constant dense<0.000000e+00> : vector<16x256xf32>
    %29 = tpu.matmul %28, %27, %cst_11 {dimension_numbers = #tpu.dot_dimension_numbers<[1], [0], [0], [1], [0, 0, 1, 1], [], []>} : vector<16x64xbf16>, vector<64x256xbf16>, vector<16x256xf32> -> vector<16x256xf32>
    %c0_12 = arith.constant 0 : index
    %c0_13 = arith.constant 0 : index
    %30 = vector.load %arg9[%c0_12, %c0_13] : memref<1x256xf32, #tpu.memory_space<vmem>>, vector<1x256xf32>
    %31 = vector.broadcast %30 : vector<1x256xf32> to vector<16x256xf32>
    %32 = arith.addf %29, %31 : vector<16x256xf32>
    %33 = vector.shape_cast %32 : vector<16x256xf32> to vector<2x8x256xf32>
    %c0_14 = arith.constant 0 : index
    %c0_15 = arith.constant 0 : index
    %34 = vector.load %arg8[%c0_14, %c0_15] : memref<64x256xbf16, #tpu.memory_space<vmem>>, vector<64x256xbf16>
    %cst_16 = arith.constant 0.000000e+00 : f32
    %35 = vector.broadcast %cst_16 : f32 to vector<2x64xf32>
    %cst_17 = arith.constant 0.000000e+00 : f32
    %36 = vector.broadcast %cst_17 : f32 to vector<2x64xf32>
    %37 = vector.extract_strided_slice %33 {offsets = [0, 0, 0], sizes = [2, 1, 256], strides = [1, 1, 1]} : vector<2x8x256xf32> to vector<2x1x256xf32>
    %38 = vector.shape_cast %37 : vector<2x1x256xf32> to vector<2x256xf32>
    %39 = arith.truncf %35 : vector<2x64xf32> to vector<2x64xbf16>
    %cst_18 = arith.constant dense<0.000000e+00> : vector<2x256xf32>
    %40 = tpu.matmul %39, %34, %cst_18 {dimension_numbers = #tpu.dot_dimension_numbers<[1], [0], [0], [1], [0, 0, 1, 1], [], []>} : vector<2x64xbf16>, vector<64x256xbf16>, vector<2x256xf32> -> vector<2x256xf32>
    %41 = arith.addf %38, %40 : vector<2x256xf32>
    %42 = vector.extract_strided_slice %41 {offsets = [0, 0], sizes = [2, 192], strides = [1, 1]} : vector<2x256xf32> to vector<2x192xf32>
    %43 = arith.negf %42 : vector<2x192xf32>
    %44 = math.exp %43 : vector<2x192xf32>
    %cst_19 = arith.constant 1.000000e+00 : f32
    %45 = vector.broadcast %cst_19 : f32 to vector<2x192xf32>
    %46 = arith.addf %45, %44 : vector<2x192xf32>
    %47 = arith.divf %45, %46 : vector<2x192xf32>
    %48 = vector.extract_strided_slice %47 {offsets = [0, 0], sizes = [2, 64], strides = [1, 1]} : vector<2x192xf32> to vector<2x64xf32>
    %49 = vector.extract_strided_slice %47 {offsets = [0, 64], sizes = [2, 64], strides = [1, 1]} : vector<2x192xf32> to vector<2x64xf32>
    %50 = vector.extract_strided_slice %47 {offsets = [0, 128], sizes = [2, 64], strides = [1, 1]} : vector<2x192xf32> to vector<2x64xf32>
    %51 = vector.extract_strided_slice %41 {offsets = [0, 192], sizes = [2, 64], strides = [1, 1]} : vector<2x256xf32> to vector<2x64xf32>
    %52 = math.tanh %51 : vector<2x64xf32>
    %53 = arith.mulf %49, %36 : vector<2x64xf32>
    %54 = arith.mulf %48, %52 : vector<2x64xf32>
    %55 = arith.addf %53, %54 : vector<2x64xf32>
    %56 = math.tanh %55 : vector<2x64xf32>
    %57 = arith.mulf %50, %56 : vector<2x64xf32>
    %c0_20 = arith.constant 0 : index
    %c0_21 = arith.constant 0 : index
    %c0_22 = arith.constant 0 : index
    %58 = vector.load %arg32[%c0_20, %c0_21, %c0_22] : memref<2x8x64xf32, #tpu.memory_space<vmem>>, vector<2x1x64xf32>
    %59 = vector.shape_cast %58 : vector<2x1x64xf32> to vector<2x64xf32>
    %60 = vector.shape_cast %57 : vector<2x64xf32> to vector<2x1x64xf32>
    tpu.vector_store %arg32[%c0_20, %c0_21, %c0_22], %60 {strides = array<i32>} : memref<2x8x64xf32, #tpu.memory_space<vmem>>, vector<2x1x64xf32>,
    %61 = vector.extract_strided_slice %33 {offsets = [0, 1, 0], sizes = [2, 1, 256], strides = [1, 1, 1]} : vector<2x8x256xf32> to vector<2x1x256xf32>
    %62 = vector.shape_cast %61 : vector<2x1x256xf32> to vector<2x256xf32>
    %63 = arith.truncf %57 : vector<2x64xf32> to vector<2x64xbf16>
    %cst_23 = arith.constant dense<0.000000e+00> : vector<2x256xf32>
    %64 = tpu.matmul %63, %34, %cst_23 {dimension_numbers = #tpu.dot_dimension_numbers<[1], [0], [0], [1], [0, 0, 1, 1], [], []>} : vector<2x64xbf16>, vector<64x256xbf16>, vector<2x256xf32> -> vector<2x256xf32>
    %65 = arith.addf %62, %64 : vector<2x256xf32>
    %66 = vector.extract_strided_slice %65 {offsets = [0, 0], sizes = [2, 192], strides = [1, 1]} : vector<2x256xf32> to vector<2x192xf32>
    %67 = arith.negf %66 : vector<2x192xf32>
    %68 = math.exp %67 : vector<2x192xf32>
    %cst_24 = arith.constant 1.000000e+00 : f32
    %69 = vector.broadcast %cst_24 : f32 to vector<2x192xf32>
    %70 = arith.addf %69, %68 : vector<2x192xf32>
    %71 = arith.divf %69, %70 : vector<2x192xf32>
    %72 = vector.extract_strided_slice %71 {offsets = [0, 0], sizes = [2, 64], strides = [1, 1]} : vector<2x192xf32> to vector<2x64xf32>
    %73 = vector.extract_strided_slice %71 {offsets = [0, 64], sizes = [2, 64], strides = [1, 1]} : vector<2x192xf32> to vector<2x64xf32>
    %74 = vector.extract_strided_slice %71 {offsets = [0, 128], sizes = [2, 64], strides = [1, 1]} : vector<2x192xf32> to vector<2x64xf32>
    %75 = vector.extract_strided_slice %65 {offsets = [0, 192], sizes = [2, 64], strides = [1, 1]} : vector<2x256xf32> to vector<2x64xf32>
    %76 = math.tanh %75 : vector<2x64xf32>
    %77 = arith.mulf %73, %55 : vector<2x64xf32>
    %78 = arith.mulf %72, %76 : vector<2x64xf32>
    %79 = arith.addf %77, %78 : vector<2x64xf32>
    %80 = math.tanh %79 : vector<2x64xf32>
    %81 = arith.mulf %74, %80 : vector<2x64xf32>
    %c0_25 = arith.constant 0 : index
    %c1 = arith.constant 1 : index
    %c0_26 = arith.constant 0 : index
    %82 = vector.load %arg32[%c0_25, %c1, %c0_26] : memref<2x8x64xf32, #tpu.memory_space<vmem>>, vector<2x1x64xf32>
    %83 = vector.shape_cast %82 : vector<2x1x64xf32> to vector<2x64xf32>
    %84 = vector.shape_cast %81 : vector<2x64xf32> to vector<2x1x64xf32>
    tpu.vector_store %arg32[%c0_25, %c1, %c0_26], %84 {strides = array<i32>} : memref<2x8x64xf32, #tpu.memory_space<vmem>>, vector<2x1x64xf32>,
    %85 = vector.extract_strided_slice %33 {offsets = [0, 2, 0], sizes = [2, 1, 256], strides = [1, 1, 1]} : vector<2x8x256xf32> to vector<2x1x256xf32>
    %86 = vector.shape_cast %85 : vector<2x1x256xf32> to vector<2x256xf32>
    %87 = arith.truncf %81 : vector<2x64xf32> to vector<2x64xbf16>
    %cst_27 = arith.constant dense<0.000000e+00> : vector<2x256xf32>
    %88 = tpu.matmul %87, %34, %cst_27 {dimension_numbers = #tpu.dot_dimension_numbers<[1], [0], [0], [1], [0, 0, 1, 1], [], []>} : vector<2x64xbf16>, vector<64x256xbf16>, vector<2x256xf32> -> vector<2x256xf32>
    %89 = arith.addf %86, %88 : vector<2x256xf32>
    %90 = vector.extract_strided_slice %89 {offsets = [0, 0], sizes = [2, 192], strides = [1, 1]} : vector<2x256xf32> to vector<2x192xf32>
    %91 = arith.negf %90 : vector<2x192xf32>
    %92 = math.exp %91 : vector<2x192xf32>
    %cst_28 = arith.constant 1.000000e+00 : f32
    %93 = vector.broadcast %cst_28 : f32 to vector<2x192xf32>
    %94 = arith.addf %93, %92 : vector<2x192xf32>
    %95 = arith.divf %93, %94 : vector<2x192xf32>
    %96 = vector.extract_strided_slice %95 {offsets = [0, 0], sizes = [2, 64], strides = [1, 1]} : vector<2x192xf32> to vector<2x64xf32>
    %97 = vector.extract_strided_slice %95 {offsets = [0, 64], sizes = [2, 64], strides = [1, 1]} : vector<2x192xf32> to vector<2x64xf32>
    %98 = vector.extract_strided_slice %95 {offsets = [0, 128], sizes = [2, 64], strides = [1, 1]} : vector<2x192xf32> to vector<2x64xf32>
    %99 = vector.extract_strided_slice %89 {offsets = [0, 192], sizes = [2, 64], strides = [1, 1]} : vector<2x256xf32> to vector<2x64xf32>
    %100 = math.tanh %99 : vector<2x64xf32>
    %101 = arith.mulf %97, %79 : vector<2x64xf32>
    %102 = arith.mulf %96, %100 : vector<2x64xf32>
    %103 = arith.addf %101, %102 : vector<2x64xf32>
    %104 = math.tanh %103 : vector<2x64xf32>
    %105 = arith.mulf %98, %104 : vector<2x64xf32>
    %c0_29 = arith.constant 0 : index
    %c2 = arith.constant 2 : index
    %c0_30 = arith.constant 0 : index
    %106 = vector.load %arg32[%c0_29, %c2, %c0_30] : memref<2x8x64xf32, #tpu.memory_space<vmem>>, vector<2x1x64xf32>
    %107 = vector.shape_cast %106 : vector<2x1x64xf32> to vector<2x64xf32>
    %108 = vector.shape_cast %105 : vector<2x64xf32> to vector<2x1x64xf32>
    tpu.vector_store %arg32[%c0_29, %c2, %c0_30], %108 {strides = array<i32>} : memref<2x8x64xf32, #tpu.memory_space<vmem>>, vector<2x1x64xf32>,
    %109 = vector.extract_strided_slice %33 {offsets = [0, 3, 0], sizes = [2, 1, 256], strides = [1, 1, 1]} : vector<2x8x256xf32> to vector<2x1x256xf32>
    %110 = vector.shape_cast %109 : vector<2x1x256xf32> to vector<2x256xf32>
    %111 = arith.truncf %105 : vector<2x64xf32> to vector<2x64xbf16>
    %cst_31 = arith.constant dense<0.000000e+00> : vector<2x256xf32>
    %112 = tpu.matmul %111, %34, %cst_31 {dimension_numbers = #tpu.dot_dimension_numbers<[1], [0], [0], [1], [0, 0, 1, 1], [], []>} : vector<2x64xbf16>, vector<64x256xbf16>, vector<2x256xf32> -> vector<2x256xf32>
    %113 = arith.addf %110, %112 : vector<2x256xf32>
    %114 = vector.extract_strided_slice %113 {offsets = [0, 0], sizes = [2, 192], strides = [1, 1]} : vector<2x256xf32> to vector<2x192xf32>
    %115 = arith.negf %114 : vector<2x192xf32>
    %116 = math.exp %115 : vector<2x192xf32>
    %cst_32 = arith.constant 1.000000e+00 : f32
    %117 = vector.broadcast %cst_32 : f32 to vector<2x192xf32>
    %118 = arith.addf %117, %116 : vector<2x192xf32>
    %119 = arith.divf %117, %118 : vector<2x192xf32>
    %120 = vector.extract_strided_slice %119 {offsets = [0, 0], sizes = [2, 64], strides = [1, 1]} : vector<2x192xf32> to vector<2x64xf32>
    %121 = vector.extract_strided_slice %119 {offsets = [0, 64], sizes = [2, 64], strides = [1, 1]} : vector<2x192xf32> to vector<2x64xf32>
    %122 = vector.extract_strided_slice %119 {offsets = [0, 128], sizes = [2, 64], strides = [1, 1]} : vector<2x192xf32> to vector<2x64xf32>
    %123 = vector.extract_strided_slice %113 {offsets = [0, 192], sizes = [2, 64], strides = [1, 1]} : vector<2x256xf32> to vector<2x64xf32>
    %124 = math.tanh %123 : vector<2x64xf32>
    %125 = arith.mulf %121, %103 : vector<2x64xf32>
    %126 = arith.mulf %120, %124 : vector<2x64xf32>
    %127 = arith.addf %125, %126 : vector<2x64xf32>
    %128 = math.tanh %127 : vector<2x64xf32>
    %129 = arith.mulf %122, %128 : vector<2x64xf32>
    %c0_33 = arith.constant 0 : index
    %c3 = arith.constant 3 : index
    %c0_34 = arith.constant 0 : index
    %130 = vector.load %arg32[%c0_33, %c3, %c0_34] : memref<2x8x64xf32, #tpu.memory_space<vmem>>, vector<2x1x64xf32>
    %131 = vector.shape_cast %130 : vector<2x1x64xf32> to vector<2x64xf32>
    %132 = vector.shape_cast %129 : vector<2x64xf32> to vector<2x1x64xf32>
    tpu.vector_store %arg32[%c0_33, %c3, %c0_34], %132 {strides = array<i32>} : memref<2x8x64xf32, #tpu.memory_space<vmem>>, vector<2x1x64xf32>,
    %133 = vector.extract_strided_slice %33 {offsets = [0, 4, 0], sizes = [2, 1, 256], strides = [1, 1, 1]} : vector<2x8x256xf32> to vector<2x1x256xf32>
    %134 = vector.shape_cast %133 : vector<2x1x256xf32> to vector<2x256xf32>
    %135 = arith.truncf %129 : vector<2x64xf32> to vector<2x64xbf16>
    %cst_35 = arith.constant dense<0.000000e+00> : vector<2x256xf32>
    %136 = tpu.matmul %135, %34, %cst_35 {dimension_numbers = #tpu.dot_dimension_numbers<[1], [0], [0], [1], [0, 0, 1, 1], [], []>} : vector<2x64xbf16>, vector<64x256xbf16>, vector<2x256xf32> -> vector<2x256xf32>
    %137 = arith.addf %134, %136 : vector<2x256xf32>
    %138 = vector.extract_strided_slice %137 {offsets = [0, 0], sizes = [2, 192], strides = [1, 1]} : vector<2x256xf32> to vector<2x192xf32>
    %139 = arith.negf %138 : vector<2x192xf32>
    %140 = math.exp %139 : vector<2x192xf32>
    %cst_36 = arith.constant 1.000000e+00 : f32
    %141 = vector.broadcast %cst_36 : f32 to vector<2x192xf32>
    %142 = arith.addf %141, %140 : vector<2x192xf32>
    %143 = arith.divf %141, %142 : vector<2x192xf32>
    %144 = vector.extract_strided_slice %143 {offsets = [0, 0], sizes = [2, 64], strides = [1, 1]} : vector<2x192xf32> to vector<2x64xf32>
    %145 = vector.extract_strided_slice %143 {offsets = [0, 64], sizes = [2, 64], strides = [1, 1]} : vector<2x192xf32> to vector<2x64xf32>
    %146 = vector.extract_strided_slice %143 {offsets = [0, 128], sizes = [2, 64], strides = [1, 1]} : vector<2x192xf32> to vector<2x64xf32>
    %147 = vector.extract_strided_slice %137 {offsets = [0, 192], sizes = [2, 64], strides = [1, 1]} : vector<2x256xf32> to vector<2x64xf32>
    %148 = math.tanh %147 : vector<2x64xf32>
    %149 = arith.mulf %145, %127 : vector<2x64xf32>
    %150 = arith.mulf %144, %148 : vector<2x64xf32>
    %151 = arith.addf %149, %150 : vector<2x64xf32>
    %152 = math.tanh %151 : vector<2x64xf32>
    %153 = arith.mulf %146, %152 : vector<2x64xf32>
    %c0_37 = arith.constant 0 : index
    %c4 = arith.constant 4 : index
    %c0_38 = arith.constant 0 : index
    %154 = vector.load %arg32[%c0_37, %c4, %c0_38] : memref<2x8x64xf32, #tpu.memory_space<vmem>>, vector<2x1x64xf32>
    %155 = vector.shape_cast %154 : vector<2x1x64xf32> to vector<2x64xf32>
    %156 = vector.shape_cast %153 : vector<2x64xf32> to vector<2x1x64xf32>
    tpu.vector_store %arg32[%c0_37, %c4, %c0_38], %156 {strides = array<i32>} : memref<2x8x64xf32, #tpu.memory_space<vmem>>, vector<2x1x64xf32>,
    %157 = vector.extract_strided_slice %33 {offsets = [0, 5, 0], sizes = [2, 1, 256], strides = [1, 1, 1]} : vector<2x8x256xf32> to vector<2x1x256xf32>
    %158 = vector.shape_cast %157 : vector<2x1x256xf32> to vector<2x256xf32>
    %159 = arith.truncf %153 : vector<2x64xf32> to vector<2x64xbf16>
    %cst_39 = arith.constant dense<0.000000e+00> : vector<2x256xf32>
    %160 = tpu.matmul %159, %34, %cst_39 {dimension_numbers = #tpu.dot_dimension_numbers<[1], [0], [0], [1], [0, 0, 1, 1], [], []>} : vector<2x64xbf16>, vector<64x256xbf16>, vector<2x256xf32> -> vector<2x256xf32>
    %161 = arith.addf %158, %160 : vector<2x256xf32>
    %162 = vector.extract_strided_slice %161 {offsets = [0, 0], sizes = [2, 192], strides = [1, 1]} : vector<2x256xf32> to vector<2x192xf32>
    %163 = arith.negf %162 : vector<2x192xf32>
    %164 = math.exp %163 : vector<2x192xf32>
    %cst_40 = arith.constant 1.000000e+00 : f32
    %165 = vector.broadcast %cst_40 : f32 to vector<2x192xf32>
    %166 = arith.addf %165, %164 : vector<2x192xf32>
    %167 = arith.divf %165, %166 : vector<2x192xf32>
    %168 = vector.extract_strided_slice %167 {offsets = [0, 0], sizes = [2, 64], strides = [1, 1]} : vector<2x192xf32> to vector<2x64xf32>
    %169 = vector.extract_strided_slice %167 {offsets = [0, 64], sizes = [2, 64], strides = [1, 1]} : vector<2x192xf32> to vector<2x64xf32>
    %170 = vector.extract_strided_slice %167 {offsets = [0, 128], sizes = [2, 64], strides = [1, 1]} : vector<2x192xf32> to vector<2x64xf32>
    %171 = vector.extract_strided_slice %161 {offsets = [0, 192], sizes = [2, 64], strides = [1, 1]} : vector<2x256xf32> to vector<2x64xf32>
    %172 = math.tanh %171 : vector<2x64xf32>
    %173 = arith.mulf %169, %151 : vector<2x64xf32>
    %174 = arith.mulf %168, %172 : vector<2x64xf32>
    %175 = arith.addf %173, %174 : vector<2x64xf32>
    %176 = math.tanh %175 : vector<2x64xf32>
    %177 = arith.mulf %170, %176 : vector<2x64xf32>
    %c0_41 = arith.constant 0 : index
    %c5 = arith.constant 5 : index
    %c0_42 = arith.constant 0 : index
    %178 = vector.load %arg32[%c0_41, %c5, %c0_42] : memref<2x8x64xf32, #tpu.memory_space<vmem>>, vector<2x1x64xf32>
    %179 = vector.shape_cast %178 : vector<2x1x64xf32> to vector<2x64xf32>
    %180 = vector.shape_cast %177 : vector<2x64xf32> to vector<2x1x64xf32>
    tpu.vector_store %arg32[%c0_41, %c5, %c0_42], %180 {strides = array<i32>} : memref<2x8x64xf32, #tpu.memory_space<vmem>>, vector<2x1x64xf32>,
    %181 = vector.extract_strided_slice %33 {offsets = [0, 6, 0], sizes = [2, 1, 256], strides = [1, 1, 1]} : vector<2x8x256xf32> to vector<2x1x256xf32>
    %182 = vector.shape_cast %181 : vector<2x1x256xf32> to vector<2x256xf32>
    %183 = arith.truncf %177 : vector<2x64xf32> to vector<2x64xbf16>
    %cst_43 = arith.constant dense<0.000000e+00> : vector<2x256xf32>
    %184 = tpu.matmul %183, %34, %cst_43 {dimension_numbers = #tpu.dot_dimension_numbers<[1], [0], [0], [1], [0, 0, 1, 1], [], []>} : vector<2x64xbf16>, vector<64x256xbf16>, vector<2x256xf32> -> vector<2x256xf32>
    %185 = arith.addf %182, %184 : vector<2x256xf32>
    %186 = vector.extract_strided_slice %185 {offsets = [0, 0], sizes = [2, 192], strides = [1, 1]} : vector<2x256xf32> to vector<2x192xf32>
    %187 = arith.negf %186 : vector<2x192xf32>
    %188 = math.exp %187 : vector<2x192xf32>
    %cst_44 = arith.constant 1.000000e+00 : f32
    %189 = vector.broadcast %cst_44 : f32 to vector<2x192xf32>
    %190 = arith.addf %189, %188 : vector<2x192xf32>
    %191 = arith.divf %189, %190 : vector<2x192xf32>
    %192 = vector.extract_strided_slice %191 {offsets = [0, 0], sizes = [2, 64], strides = [1, 1]} : vector<2x192xf32> to vector<2x64xf32>
    %193 = vector.extract_strided_slice %191 {offsets = [0, 64], sizes = [2, 64], strides = [1, 1]} : vector<2x192xf32> to vector<2x64xf32>
    %194 = vector.extract_strided_slice %191 {offsets = [0, 128], sizes = [2, 64], strides = [1, 1]} : vector<2x192xf32> to vector<2x64xf32>
    %195 = vector.extract_strided_slice %185 {offsets = [0, 192], sizes = [2, 64], strides = [1, 1]} : vector<2x256xf32> to vector<2x64xf32>
    %196 = math.tanh %195 : vector<2x64xf32>
    %197 = arith.mulf %193, %175 : vector<2x64xf32>
    %198 = arith.mulf %192, %196 : vector<2x64xf32>
    %199 = arith.addf %197, %198 : vector<2x64xf32>
    %200 = math.tanh %199 : vector<2x64xf32>
    %201 = arith.mulf %194, %200 : vector<2x64xf32>
    %c0_45 = arith.constant 0 : index
    %c6 = arith.constant 6 : index
    %c0_46 = arith.constant 0 : index
    %202 = vector.load %arg32[%c0_45, %c6, %c0_46] : memref<2x8x64xf32, #tpu.memory_space<vmem>>, vector<2x1x64xf32>
    %203 = vector.shape_cast %202 : vector<2x1x64xf32> to vector<2x64xf32>
    %204 = vector.shape_cast %201 : vector<2x64xf32> to vector<2x1x64xf32>
    tpu.vector_store %arg32[%c0_45, %c6, %c0_46], %204 {strides = array<i32>} : memref<2x8x64xf32, #tpu.memory_space<vmem>>, vector<2x1x64xf32>,
    %205 = vector.extract_strided_slice %33 {offsets = [0, 7, 0], sizes = [2, 1, 256], strides = [1, 1, 1]} : vector<2x8x256xf32> to vector<2x1x256xf32>
    %206 = vector.shape_cast %205 : vector<2x1x256xf32> to vector<2x256xf32>
    %207 = arith.truncf %201 : vector<2x64xf32> to vector<2x64xbf16>
    %cst_47 = arith.constant dense<0.000000e+00> : vector<2x256xf32>
    %208 = tpu.matmul %207, %34, %cst_47 {dimension_numbers = #tpu.dot_dimension_numbers<[1], [0], [0], [1], [0, 0, 1, 1], [], []>} : vector<2x64xbf16>, vector<64x256xbf16>, vector<2x256xf32> -> vector<2x256xf32>
    %209 = arith.addf %206, %208 : vector<2x256xf32>
    %210 = vector.extract_strided_slice %209 {offsets = [0, 0], sizes = [2, 192], strides = [1, 1]} : vector<2x256xf32> to vector<2x192xf32>
    %211 = arith.negf %210 : vector<2x192xf32>
    %212 = math.exp %211 : vector<2x192xf32>
    %cst_48 = arith.constant 1.000000e+00 : f32
    %213 = vector.broadcast %cst_48 : f32 to vector<2x192xf32>
    %214 = arith.addf %213, %212 : vector<2x192xf32>
    %215 = arith.divf %213, %214 : vector<2x192xf32>
    %216 = vector.extract_strided_slice %215 {offsets = [0, 0], sizes = [2, 64], strides = [1, 1]} : vector<2x192xf32> to vector<2x64xf32>
    %217 = vector.extract_strided_slice %215 {offsets = [0, 64], sizes = [2, 64], strides = [1, 1]} : vector<2x192xf32> to vector<2x64xf32>
    %218 = vector.extract_strided_slice %215 {offsets = [0, 128], sizes = [2, 64], strides = [1, 1]} : vector<2x192xf32> to vector<2x64xf32>
    %219 = vector.extract_strided_slice %209 {offsets = [0, 192], sizes = [2, 64], strides = [1, 1]} : vector<2x256xf32> to vector<2x64xf32>
    %220 = math.tanh %219 : vector<2x64xf32>
    %221 = arith.mulf %217, %199 : vector<2x64xf32>
    %222 = arith.mulf %216, %220 : vector<2x64xf32>
    %223 = arith.addf %221, %222 : vector<2x64xf32>
    %224 = math.tanh %223 : vector<2x64xf32>
    %225 = arith.mulf %218, %224 : vector<2x64xf32>
    %c0_49 = arith.constant 0 : index
    %c7 = arith.constant 7 : index
    %c0_50 = arith.constant 0 : index
    %226 = vector.load %arg32[%c0_49, %c7, %c0_50] : memref<2x8x64xf32, #tpu.memory_space<vmem>>, vector<2x1x64xf32>
    %227 = vector.shape_cast %226 : vector<2x1x64xf32> to vector<2x64xf32>
    %228 = vector.shape_cast %225 : vector<2x64xf32> to vector<2x1x64xf32>
    tpu.vector_store %arg32[%c0_49, %c7, %c0_50], %228 {strides = array<i32>} : memref<2x8x64xf32, #tpu.memory_space<vmem>>, vector<2x1x64xf32>,
    %c0_51 = arith.constant 0 : index
    %c0_52 = arith.constant 0 : index
    %c0_53 = arith.constant 0 : index
    %229 = vector.load %arg32[%c0_51, %c0_52, %c0_53] : memref<2x8x64xf32, #tpu.memory_space<vmem>>, vector<2x8x64xf32>
    %230 = vector.shape_cast %229 : vector<2x8x64xf32> to vector<16x64xf32>
    %c0_54 = arith.constant 0 : index
    %c0_55 = arith.constant 0 : index
    %c0_56 = arith.constant 0 : index
    %231 = vector.load %arg2[%c0_54, %c0_55, %c0_56] : memref<2x8x4xf32, #tpu.memory_space<vmem>>, vector<2x8x4xf32>
    %232 = vector.shape_cast %231 : vector<2x8x4xf32> to vector<16x4xf32>
    %c0_57 = arith.constant 0 : index
    %c0_58 = arith.constant 0 : index
    %233 = vector.load %arg10[%c0_57, %c0_58] : memref<4x32xbf16, #tpu.memory_space<vmem>>, vector<4x32xbf16>
    %234 = arith.truncf %232 : vector<16x4xf32> to vector<16x4xbf16>
    %cst_59 = arith.constant dense<0.000000e+00> : vector<16x32xf32>
    %235 = tpu.matmul %234, %233, %cst_59 {dimension_numbers = #tpu.dot_dimension_numbers<[1], [0], [0], [1], [0, 0, 1, 1], [], []>} : vector<16x4xbf16>, vector<4x32xbf16>, vector<16x32xf32> -> vector<16x32xf32>
    %c0_60 = arith.constant 0 : index
    %c0_61 = arith.constant 0 : index
    %236 = vector.load %arg11[%c0_60, %c0_61] : memref<1x32xf32, #tpu.memory_space<vmem>>, vector<1x32xf32>
    %237 = vector.broadcast %236 : vector<1x32xf32> to vector<16x32xf32>
    %238 = arith.addf %235, %237 : vector<16x32xf32>
    %cst_62 = arith.constant 0.000000e+00 : f32
    %239 = vector.broadcast %cst_62 : f32 to vector<16x32xf32>
    %240 = arith.maximumf %238, %239 : vector<16x32xf32>
    %c0_63 = arith.constant 0 : index
    %c0_64 = arith.constant 0 : index
    %c0_65 = arith.constant 0 : index
    %241 = vector.load %arg3[%c0_63, %c0_64, %c0_65] : memref<2x8x1xf32, #tpu.memory_space<vmem>>, vector<2x8x1xf32>
    %242 = vector.shape_cast %241 : vector<2x8x1xf32> to vector<16x1xf32>
    %c0_66 = arith.constant 0 : index
    %c0_67 = arith.constant 0 : index
    %243 = vector.load %arg12[%c0_66, %c0_67] : memref<1x32xf32, #tpu.memory_space<vmem>>, vector<1x32xf32>
    %244 = vector.broadcast %242 : vector<16x1xf32> to vector<16x32xf32>
    %245 = vector.broadcast %243 : vector<1x32xf32> to vector<16x32xf32>
    %246 = arith.mulf %244, %245 : vector<16x32xf32>
    %c0_68 = arith.constant 0 : index
    %c0_69 = arith.constant 0 : index
    %247 = vector.load %arg13[%c0_68, %c0_69] : memref<1x32xf32, #tpu.memory_space<vmem>>, vector<1x32xf32>
    %248 = vector.broadcast %247 : vector<1x32xf32> to vector<16x32xf32>
    %249 = arith.addf %246, %248 : vector<16x32xf32>
    %cst_70 = arith.constant 0.000000e+00 : f32
    %250 = vector.broadcast %cst_70 : f32 to vector<16x32xf32>
    %251 = arith.maximumf %249, %250 : vector<16x32xf32>
    %252 = tpu.concatenate %230, %240, %251 in 1 : vector<16x64xf32>, vector<16x32xf32>, vector<16x32xf32> -> vector<16x128xf32>
    %c0_71 = arith.constant 0 : index
    %c0_72 = arith.constant 0 : index
    %c0_73 = arith.constant 0 : index
    %253 = vector.load %arg14[%c0_71, %c0_72, %c0_73] : memref<3x128x384xbf16, #tpu.memory_space<vmem>>, vector<1x128x384xbf16>
    %254 = vector.shape_cast %253 : vector<1x128x384xbf16> to vector<128x384xbf16>
    %255 = arith.truncf %252 : vector<16x128xf32> to vector<16x128xbf16>
    %cst_74 = arith.constant dense<0.000000e+00> : vector<16x384xf32>
    %256 = tpu.matmul %255, %254, %cst_74 {dimension_numbers = #tpu.dot_dimension_numbers<[1], [0], [0], [1], [0, 0, 1, 1], [], []>} : vector<16x128xbf16>, vector<128x384xbf16>, vector<16x384xf32> -> vector<16x384xf32>
    %c0_75 = arith.constant 0 : index
    %c0_76 = arith.constant 0 : index
    %c0_77 = arith.constant 0 : index
    %257 = vector.load %arg15[%c0_75, %c0_76, %c0_77] : memref<3x1x384xf32, #tpu.memory_space<vmem>>, vector<1x1x384xf32>
    %258 = vector.shape_cast %257 : vector<1x1x384xf32> to vector<1x384xf32>
    %259 = vector.broadcast %258 : vector<1x384xf32> to vector<16x384xf32>
    %260 = arith.addf %256, %259 : vector<16x384xf32>
    %261 = arith.truncf %260 : vector<16x384xf32> to vector<16x384xbf16>
    %262 = vector.extract_strided_slice %261 {offsets = [0, 0], sizes = [16, 128], strides = [1, 1]} : vector<16x384xbf16> to vector<16x128xbf16>
    %263 = vector.extract_strided_slice %262 {offsets = [0, 0], sizes = [16, 16], strides = [1, 1]} : vector<16x128xbf16> to vector<16x16xbf16>
    %264 = vector.shape_cast %263 : vector<16x16xbf16> to vector<2x8x16xbf16>
    %265 = vector.extract_strided_slice %262 {offsets = [0, 16], sizes = [16, 16], strides = [1, 1]} : vector<16x128xbf16> to vector<16x16xbf16>
    %266 = vector.shape_cast %265 : vector<16x16xbf16> to vector<2x8x16xbf16>
    %267 = vector.extract_strided_slice %262 {offsets = [0, 32], sizes = [16, 16], strides = [1, 1]} : vector<16x128xbf16> to vector<16x16xbf16>
    %268 = vector.shape_cast %267 : vector<16x16xbf16> to vector<2x8x16xbf16>
    %269 = vector.extract_strided_slice %262 {offsets = [0, 48], sizes = [16, 16], strides = [1, 1]} : vector<16x128xbf16> to vector<16x16xbf16>
    %270 = vector.shape_cast %269 : vector<16x16xbf16> to vector<2x8x16xbf16>
    %271 = vector.extract_strided_slice %262 {offsets = [0, 64], sizes = [16, 16], strides = [1, 1]} : vector<16x128xbf16> to vector<16x16xbf16>
    %272 = vector.shape_cast %271 : vector<16x16xbf16> to vector<2x8x16xbf16>
    %273 = vector.extract_strided_slice %262 {offsets = [0, 80], sizes = [16, 16], strides = [1, 1]} : vector<16x128xbf16> to vector<16x16xbf16>
    %274 = vector.shape_cast %273 : vector<16x16xbf16> to vector<2x8x16xbf16>
    %275 = vector.extract_strided_slice %262 {offsets = [0, 96], sizes = [16, 16], strides = [1, 1]} : vector<16x128xbf16> to vector<16x16xbf16>
    %276 = vector.shape_cast %275 : vector<16x16xbf16> to vector<2x8x16xbf16>
    %277 = vector.extract_strided_slice %262 {offsets = [0, 112], sizes = [16, 16], strides = [1, 1]} : vector<16x128xbf16> to vector<16x16xbf16>
    %278 = vector.shape_cast %277 : vector<16x16xbf16> to vector<2x8x16xbf16>
    %279 = tpu.concatenate %264, %266, %268, %270, %272, %274, %276, %278 in 0 : vector<2x8x16xbf16>, vector<2x8x16xbf16>, vector<2x8x16xbf16>, vector<2x8x16xbf16>, vector<2x8x16xbf16>, vector<2x8x16xbf16>, vector<2x8x16xbf16>, vector<2x8x16xbf16> -> vector<16x8x16xbf16>
    %280 = vector.extract_strided_slice %261 {offsets = [0, 128], sizes = [16, 128], strides = [1, 1]} : vector<16x384xbf16> to vector<16x128xbf16>
    %281 = vector.extract_strided_slice %280 {offsets = [0, 0], sizes = [16, 16], strides = [1, 1]} : vector<16x128xbf16> to vector<16x16xbf16>
    %282 = vector.shape_cast %281 : vector<16x16xbf16> to vector<2x8x16xbf16>
    %283 = vector.extract_strided_slice %280 {offsets = [0, 16], sizes = [16, 16], strides = [1, 1]} : vector<16x128xbf16> to vector<16x16xbf16>
    %284 = vector.shape_cast %283 : vector<16x16xbf16> to vector<2x8x16xbf16>
    %285 = vector.extract_strided_slice %280 {offsets = [0, 32], sizes = [16, 16], strides = [1, 1]} : vector<16x128xbf16> to vector<16x16xbf16>
    %286 = vector.shape_cast %285 : vector<16x16xbf16> to vector<2x8x16xbf16>
    %287 = vector.extract_strided_slice %280 {offsets = [0, 48], sizes = [16, 16], strides = [1, 1]} : vector<16x128xbf16> to vector<16x16xbf16>
    %288 = vector.shape_cast %287 : vector<16x16xbf16> to vector<2x8x16xbf16>
    %289 = vector.extract_strided_slice %280 {offsets = [0, 64], sizes = [16, 16], strides = [1, 1]} : vector<16x128xbf16> to vector<16x16xbf16>
    %290 = vector.shape_cast %289 : vector<16x16xbf16> to vector<2x8x16xbf16>
    %291 = vector.extract_strided_slice %280 {offsets = [0, 80], sizes = [16, 16], strides = [1, 1]} : vector<16x128xbf16> to vector<16x16xbf16>
    %292 = vector.shape_cast %291 : vector<16x16xbf16> to vector<2x8x16xbf16>
    %293 = vector.extract_strided_slice %280 {offsets = [0, 96], sizes = [16, 16], strides = [1, 1]} : vector<16x128xbf16> to vector<16x16xbf16>
    %294 = vector.shape_cast %293 : vector<16x16xbf16> to vector<2x8x16xbf16>
    %295 = vector.extract_strided_slice %280 {offsets = [0, 112], sizes = [16, 16], strides = [1, 1]} : vector<16x128xbf16> to vector<16x16xbf16>
    %296 = vector.shape_cast %295 : vector<16x16xbf16> to vector<2x8x16xbf16>
    %297 = tpu.concatenate %282, %284, %286, %288, %290, %292, %294, %296 in 0 : vector<2x8x16xbf16>, vector<2x8x16xbf16>, vector<2x8x16xbf16>, vector<2x8x16xbf16>, vector<2x8x16xbf16>, vector<2x8x16xbf16>, vector<2x8x16xbf16>, vector<2x8x16xbf16> -> vector<16x8x16xbf16>
    %298 = vector.extract_strided_slice %261 {offsets = [0, 256], sizes = [16, 128], strides = [1, 1]} : vector<16x384xbf16> to vector<16x128xbf16>
    %299 = vector.extract_strided_slice %298 {offsets = [0, 0], sizes = [16, 16], strides = [1, 1]} : vector<16x128xbf16> to vector<16x16xbf16>
    %300 = vector.shape_cast %299 : vector<16x16xbf16> to vector<2x8x16xbf16>
    %301 = vector.extract_strided_slice %298 {offsets = [0, 16], sizes = [16, 16], strides = [1, 1]} : vector<16x128xbf16> to vector<16x16xbf16>
    %302 = vector.shape_cast %301 : vector<16x16xbf16> to vector<2x8x16xbf16>
    %303 = vector.extract_strided_slice %298 {offsets = [0, 32], sizes = [16, 16], strides = [1, 1]} : vector<16x128xbf16> to vector<16x16xbf16>
    %304 = vector.shape_cast %303 : vector<16x16xbf16> to vector<2x8x16xbf16>
    %305 = vector.extract_strided_slice %298 {offsets = [0, 48], sizes = [16, 16], strides = [1, 1]} : vector<16x128xbf16> to vector<16x16xbf16>
    %306 = vector.shape_cast %305 : vector<16x16xbf16> to vector<2x8x16xbf16>
    %307 = vector.extract_strided_slice %298 {offsets = [0, 64], sizes = [16, 16], strides = [1, 1]} : vector<16x128xbf16> to vector<16x16xbf16>
    %308 = vector.shape_cast %307 : vector<16x16xbf16> to vector<2x8x16xbf16>
    %309 = vector.extract_strided_slice %298 {offsets = [0, 80], sizes = [16, 16], strides = [1, 1]} : vector<16x128xbf16> to vector<16x16xbf16>
    %310 = vector.shape_cast %309 : vector<16x16xbf16> to vector<2x8x16xbf16>
    %311 = vector.extract_strided_slice %298 {offsets = [0, 96], sizes = [16, 16], strides = [1, 1]} : vector<16x128xbf16> to vector<16x16xbf16>
    %312 = vector.shape_cast %311 : vector<16x16xbf16> to vector<2x8x16xbf16>
    %313 = vector.extract_strided_slice %298 {offsets = [0, 112], sizes = [16, 16], strides = [1, 1]} : vector<16x128xbf16> to vector<16x16xbf16>
    %314 = vector.shape_cast %313 : vector<16x16xbf16> to vector<2x8x16xbf16>
    %315 = tpu.concatenate %300, %302, %304, %306, %308, %310, %312, %314 in 0 : vector<2x8x16xbf16>, vector<2x8x16xbf16>, vector<2x8x16xbf16>, vector<2x8x16xbf16>, vector<2x8x16xbf16>, vector<2x8x16xbf16>, vector<2x8x16xbf16>, vector<2x8x16xbf16> -> vector<16x8x16xbf16>
    "tpu.trace_start"() <{level = 10 : i32, message = "xqd,xkd->xqk"}> : () -> ()
    %cst_78 = arith.constant dense<0.000000e+00> : vector<16x8x8xf32>
    %316 = tpu.matmul %279, %297, %cst_78 {dimension_numbers = #tpu.dot_dimension_numbers<[2], [2], [1], [1], [0, 0, 0, 1, 1, 1], [0], [0]>} : vector<16x8x16xbf16>, vector<16x8x16xbf16>, vector<16x8x8xf32> -> vector<16x8x8xf32>
    "tpu.trace_stop"() : () -> ()
    %cst_79 = arith.constant 2.500000e-01 : f32
    %317 = vector.broadcast %cst_79 : f32 to vector<16x8x8xf32>
    %318 = arith.mulf %316, %317 : vector<16x8x8xf32>
    %cst_80 = arith.constant dense<0xFF800000> : vector<16x8xf32>
    %319 = vector.multi_reduction <maximumf>, %318, %cst_80 [2] : vector<16x8x8xf32> to vector<16x8xf32>
    %320 = vector.shape_cast %319 : vector<16x8xf32> to vector<16x8x1xf32>
    %321 = vector.broadcast %320 : vector<16x8x1xf32> to vector<16x8x8xf32>
    %322 = arith.subf %318, %321 : vector<16x8x8xf32>
    %323 = math.exp %322 : vector<16x8x8xf32>
    %cst_81 = arith.constant dense<0.000000e+00> : vector<16x8xf32>
    %324 = vector.multi_reduction <add>, %323, %cst_81 [2] : vector<16x8x8xf32> to vector<16x8xf32>
    %325 = vector.shape_cast %324 : vector<16x8xf32> to vector<16x8x1xf32>
    %326 = tpu.reciprocal %325 {approx = true} : vector<16x8x1xf32> -> vector<16x8x1xf32>
    %327 = vector.broadcast %326 : vector<16x8x1xf32> to vector<16x8x8xf32>
    %328 = arith.mulf %323, %327 : vector<16x8x8xf32>
    %329 = arith.truncf %328 : vector<16x8x8xf32> to vector<16x8x8xbf16>
    "tpu.trace_start"() <{level = 10 : i32, message = "xqk,xkd->xqd"}> : () -> ()
    %cst_82 = arith.constant dense<0.000000e+00> : vector<16x8x16xf32>
    %330 = tpu.matmul %329, %315, %cst_82 {dimension_numbers = #tpu.dot_dimension_numbers<[2], [1], [1], [2], [0, 0, 0, 1, 1, 2], [0], [0]>} : vector<16x8x8xbf16>, vector<16x8x16xbf16>, vector<16x8x16xf32> -> vector<16x8x16xf32>
    "tpu.trace_stop"() : () -> ()
    %331 = vector.extract_strided_slice %330 {offsets = [0, 0, 0], sizes = [2, 8, 16], strides = [1, 1, 1]} : vector<16x8x16xf32> to vector<2x8x16xf32>
    %332 = vector.shape_cast %331 : vector<2x8x16xf32> to vector<16x16xf32>
    %333 = vector.extract_strided_slice %330 {offsets = [2, 0, 0], sizes = [2, 8, 16], strides = [1, 1, 1]} : vector<16x8x16xf32> to vector<2x8x16xf32>
    %334 = vector.shape_cast %333 : vector<2x8x16xf32> to vector<16x16xf32>
    %335 = vector.extract_strided_slice %330 {offsets = [4, 0, 0], sizes = [2, 8, 16], strides = [1, 1, 1]} : vector<16x8x16xf32> to vector<2x8x16xf32>
    %336 = vector.shape_cast %335 : vector<2x8x16xf32> to vector<16x16xf32>
    %337 = vector.extract_strided_slice %330 {offsets = [6, 0, 0], sizes = [2, 8, 16], strides = [1, 1, 1]} : vector<16x8x16xf32> to vector<2x8x16xf32>
    %338 = vector.shape_cast %337 : vector<2x8x16xf32> to vector<16x16xf32>
    %339 = vector.extract_strided_slice %330 {offsets = [8, 0, 0], sizes = [2, 8, 16], strides = [1, 1, 1]} : vector<16x8x16xf32> to vector<2x8x16xf32>
    %340 = vector.shape_cast %339 : vector<2x8x16xf32> to vector<16x16xf32>
    %341 = vector.extract_strided_slice %330 {offsets = [10, 0, 0], sizes = [2, 8, 16], strides = [1, 1, 1]} : vector<16x8x16xf32> to vector<2x8x16xf32>
    %342 = vector.shape_cast %341 : vector<2x8x16xf32> to vector<16x16xf32>
    %343 = vector.extract_strided_slice %330 {offsets = [12, 0, 0], sizes = [2, 8, 16], strides = [1, 1, 1]} : vector<16x8x16xf32> to vector<2x8x16xf32>
    %344 = vector.shape_cast %343 : vector<2x8x16xf32> to vector<16x16xf32>
    %345 = vector.extract_strided_slice %330 {offsets = [14, 0, 0], sizes = [2, 8, 16], strides = [1, 1, 1]} : vector<16x8x16xf32> to vector<2x8x16xf32>
    %346 = vector.shape_cast %345 : vector<2x8x16xf32> to vector<16x16xf32>
    %347 = tpu.concatenate %332, %334, %336, %338, %340, %342, %344, %346 in 1 : vector<16x16xf32>, vector<16x16xf32>, vector<16x16xf32>, vector<16x16xf32>, vector<16x16xf32>, vector<16x16xf32>, vector<16x16xf32>, vector<16x16xf32> -> vector<16x128xf32>
    %c0_83 = arith.constant 0 : index
    %c0_84 = arith.constant 0 : index
    %c0_85 = arith.constant 0 : index
    %348 = vector.load %arg16[%c0_83, %c0_84, %c0_85] : memref<3x128x128xbf16, #tpu.memory_space<vmem>>, vector<1x128x128xbf16>
    %349 = vector.shape_cast %348 : vector<1x128x128xbf16> to vector<128x128xbf16>
    %350 = arith.truncf %347 : vector<16x128xf32> to vector<16x128xbf16>
    %cst_86 = arith.constant dense<0.000000e+00> : vector<16x128xf32>
    %351 = tpu.matmul %350, %349, %cst_86 {dimension_numbers = #tpu.dot_dimension_numbers<[1], [0], [0], [1], [0, 0, 1, 1], [], []>} : vector<16x128xbf16>, vector<128x128xbf16>, vector<16x128xf32> -> vector<16x128xf32>
    %c0_87 = arith.constant 0 : index
    %c0_88 = arith.constant 0 : index
    %c0_89 = arith.constant 0 : index
    %352 = vector.load %arg17[%c0_87, %c0_88, %c0_89] : memref<3x1x128xf32, #tpu.memory_space<vmem>>, vector<1x1x128xf32>
    %353 = vector.shape_cast %352 : vector<1x1x128xf32> to vector<1x128xf32>
    %354 = vector.broadcast %353 : vector<1x128xf32> to vector<16x128xf32>
    %355 = arith.addf %351, %354 : vector<16x128xf32>
    %356 = arith.addf %252, %355 : vector<16x128xf32>
    %c0_90 = arith.constant 0 : index
    %c0_91 = arith.constant 0 : index
    %c0_92 = arith.constant 0 : index
    %357 = vector.load %arg18[%c0_90, %c0_91, %c0_92] : memref<3x1x128xf32, #tpu.memory_space<vmem>>, vector<1x1x128xf32>
    %358 = vector.shape_cast %357 : vector<1x1x128xf32> to vector<1x128xf32>
    %c0_93 = arith.constant 0 : index
    %c0_94 = arith.constant 0 : index
    %c0_95 = arith.constant 0 : index
    %359 = vector.load %arg19[%c0_93, %c0_94, %c0_95] : memref<3x1x128xf32, #tpu.memory_space<vmem>>, vector<1x1x128xf32>
    %360 = vector.shape_cast %359 : vector<1x1x128xf32> to vector<1x128xf32>
    %cst_96 = arith.constant dense<0.000000e+00> : vector<16xf32>
    %361 = vector.multi_reduction <add>, %356, %cst_96 [1] : vector<16x128xf32> to vector<16xf32>
    %362 = vector.shape_cast %361 : vector<16xf32> to vector<16x1xf32>
    %cst_97 = arith.constant 1.280000e+02 : f32
    %363 = vector.broadcast %cst_97 : f32 to vector<16x1xf32>
    %364 = arith.divf %362, %363 : vector<16x1xf32>
    %365 = vector.broadcast %364 : vector<16x1xf32> to vector<16x128xf32>
    %366 = arith.subf %356, %365 : vector<16x128xf32>
    %367 = arith.mulf %366, %366 : vector<16x128xf32>
    %cst_98 = arith.constant dense<0.000000e+00> : vector<16xf32>
    %368 = vector.multi_reduction <add>, %367, %cst_98 [1] : vector<16x128xf32> to vector<16xf32>
    %369 = vector.shape_cast %368 : vector<16xf32> to vector<16x1xf32>
    %cst_99 = arith.constant 1.280000e+02 : f32
    %370 = vector.broadcast %cst_99 : f32 to vector<16x1xf32>
    %371 = arith.divf %369, %370 : vector<16x1xf32>
    %372 = vector.broadcast %364 : vector<16x1xf32> to vector<16x128xf32>
    %373 = arith.subf %356, %372 : vector<16x128xf32>
    %cst_100 = arith.constant 9.99999974E-6 : f32
    %374 = vector.broadcast %cst_100 : f32 to vector<16x1xf32>
    %375 = arith.addf %371, %374 : vector<16x1xf32>
    %376 = math.rsqrt %375 : vector<16x1xf32>
    %377 = vector.broadcast %376 : vector<16x1xf32> to vector<16x128xf32>
    %378 = arith.mulf %373, %377 : vector<16x128xf32>
    %379 = vector.broadcast %358 : vector<1x128xf32> to vector<16x128xf32>
    %380 = arith.mulf %378, %379 : vector<16x128xf32>
    %381 = vector.broadcast %360 : vector<1x128xf32> to vector<16x128xf32>
    %382 = arith.addf %380, %381 : vector<16x128xf32>
    %c1_101 = arith.constant 1 : index
    %c0_102 = arith.constant 0 : index
    %c0_103 = arith.constant 0 : index
    %383 = vector.load %arg14[%c1_101, %c0_102, %c0_103] : memref<3x128x384xbf16, #tpu.memory_space<vmem>>, vector<1x128x384xbf16>
    %384 = vector.shape_cast %383 : vector<1x128x384xbf16> to vector<128x384xbf16>
    %385 = arith.truncf %382 : vector<16x128xf32> to vector<16x128xbf16>
    %cst_104 = arith.constant dense<0.000000e+00> : vector<16x384xf32>
    %386 = tpu.matmul %385, %384, %cst_104 {dimension_numbers = #tpu.dot_dimension_numbers<[1], [0], [0], [1], [0, 0, 1, 1], [], []>} : vector<16x128xbf16>, vector<128x384xbf16>, vector<16x384xf32> -> vector<16x384xf32>
    %c1_105 = arith.constant 1 : index
    %c0_106 = arith.constant 0 : index
    %c0_107 = arith.constant 0 : index
    %387 = vector.load %arg15[%c1_105, %c0_106, %c0_107] : memref<3x1x384xf32, #tpu.memory_space<vmem>>, vector<1x1x384xf32>
    %388 = vector.shape_cast %387 : vector<1x1x384xf32> to vector<1x384xf32>
    %389 = vector.broadcast %388 : vector<1x384xf32> to vector<16x384xf32>
    %390 = arith.addf %386, %389 : vector<16x384xf32>
    %391 = arith.truncf %390 : vector<16x384xf32> to vector<16x384xbf16>
    %392 = vector.extract_strided_slice %391 {offsets = [0, 0], sizes = [16, 128], strides = [1, 1]} : vector<16x384xbf16> to vector<16x128xbf16>
    %393 = vector.extract_strided_slice %392 {offsets = [0, 0], sizes = [16, 16], strides = [1, 1]} : vector<16x128xbf16> to vector<16x16xbf16>
    %394 = vector.shape_cast %393 : vector<16x16xbf16> to vector<2x8x16xbf16>
    %395 = vector.extract_strided_slice %392 {offsets = [0, 16], sizes = [16, 16], strides = [1, 1]} : vector<16x128xbf16> to vector<16x16xbf16>
    %396 = vector.shape_cast %395 : vector<16x16xbf16> to vector<2x8x16xbf16>
    %397 = vector.extract_strided_slice %392 {offsets = [0, 32], sizes = [16, 16], strides = [1, 1]} : vector<16x128xbf16> to vector<16x16xbf16>
    %398 = vector.shape_cast %397 : vector<16x16xbf16> to vector<2x8x16xbf16>
    %399 = vector.extract_strided_slice %392 {offsets = [0, 48], sizes = [16, 16], strides = [1, 1]} : vector<16x128xbf16> to vector<16x16xbf16>
    %400 = vector.shape_cast %399 : vector<16x16xbf16> to vector<2x8x16xbf16>
    %401 = vector.extract_strided_slice %392 {offsets = [0, 64], sizes = [16, 16], strides = [1, 1]} : vector<16x128xbf16> to vector<16x16xbf16>
    %402 = vector.shape_cast %401 : vector<16x16xbf16> to vector<2x8x16xbf16>
    %403 = vector.extract_strided_slice %392 {offsets = [0, 80], sizes = [16, 16], strides = [1, 1]} : vector<16x128xbf16> to vector<16x16xbf16>
    %404 = vector.shape_cast %403 : vector<16x16xbf16> to vector<2x8x16xbf16>
    %405 = vector.extract_strided_slice %392 {offsets = [0, 96], sizes = [16, 16], strides = [1, 1]} : vector<16x128xbf16> to vector<16x16xbf16>
    %406 = vector.shape_cast %405 : vector<16x16xbf16> to vector<2x8x16xbf16>
    %407 = vector.extract_strided_slice %392 {offsets = [0, 112], sizes = [16, 16], strides = [1, 1]} : vector<16x128xbf16> to vector<16x16xbf16>
    %408 = vector.shape_cast %407 : vector<16x16xbf16> to vector<2x8x16xbf16>
    %409 = tpu.concatenate %394, %396, %398, %400, %402, %404, %406, %408 in 0 : vector<2x8x16xbf16>, vector<2x8x16xbf16>, vector<2x8x16xbf16>, vector<2x8x16xbf16>, vector<2x8x16xbf16>, vector<2x8x16xbf16>, vector<2x8x16xbf16>, vector<2x8x16xbf16> -> vector<16x8x16xbf16>
    %410 = vector.extract_strided_slice %391 {offsets = [0, 128], sizes = [16, 128], strides = [1, 1]} : vector<16x384xbf16> to vector<16x128xbf16>
    %411 = vector.extract_strided_slice %410 {offsets = [0, 0], sizes = [16, 16], strides = [1, 1]} : vector<16x128xbf16> to vector<16x16xbf16>
    %412 = vector.shape_cast %411 : vector<16x16xbf16> to vector<2x8x16xbf16>
    %413 = vector.extract_strided_slice %410 {offsets = [0, 16], sizes = [16, 16], strides = [1, 1]} : vector<16x128xbf16> to vector<16x16xbf16>
    %414 = vector.shape_cast %413 : vector<16x16xbf16> to vector<2x8x16xbf16>
    %415 = vector.extract_strided_slice %410 {offsets = [0, 32], sizes = [16, 16], strides = [1, 1]} : vector<16x128xbf16> to vector<16x16xbf16>
    %416 = vector.shape_cast %415 : vector<16x16xbf16> to vector<2x8x16xbf16>
    %417 = vector.extract_strided_slice %410 {offsets = [0, 48], sizes = [16, 16], strides = [1, 1]} : vector<16x128xbf16> to vector<16x16xbf16>
    %418 = vector.shape_cast %417 : vector<16x16xbf16> to vector<2x8x16xbf16>
    %419 = vector.extract_strided_slice %410 {offsets = [0, 64], sizes = [16, 16], strides = [1, 1]} : vector<16x128xbf16> to vector<16x16xbf16>
    %420 = vector.shape_cast %419 : vector<16x16xbf16> to vector<2x8x16xbf16>
    %421 = vector.extract_strided_slice %410 {offsets = [0, 80], sizes = [16, 16], strides = [1, 1]} : vector<16x128xbf16> to vector<16x16xbf16>
    %422 = vector.shape_cast %421 : vector<16x16xbf16> to vector<2x8x16xbf16>
    %423 = vector.extract_strided_slice %410 {offsets = [0, 96], sizes = [16, 16], strides = [1, 1]} : vector<16x128xbf16> to vector<16x16xbf16>
    %424 = vector.shape_cast %423 : vector<16x16xbf16> to vector<2x8x16xbf16>
    %425 = vector.extract_strided_slice %410 {offsets = [0, 112], sizes = [16, 16], strides = [1, 1]} : vector<16x128xbf16> to vector<16x16xbf16>
    %426 = vector.shape_cast %425 : vector<16x16xbf16> to vector<2x8x16xbf16>
    %427 = tpu.concatenate %412, %414, %416, %418, %420, %422, %424, %426 in 0 : vector<2x8x16xbf16>, vector<2x8x16xbf16>, vector<2x8x16xbf16>, vector<2x8x16xbf16>, vector<2x8x16xbf16>, vector<2x8x16xbf16>, vector<2x8x16xbf16>, vector<2x8x16xbf16> -> vector<16x8x16xbf16>
    %428 = vector.extract_strided_slice %391 {offsets = [0, 256], sizes = [16, 128], strides = [1, 1]} : vector<16x384xbf16> to vector<16x128xbf16>
    %429 = vector.extract_strided_slice %428 {offsets = [0, 0], sizes = [16, 16], strides = [1, 1]} : vector<16x128xbf16> to vector<16x16xbf16>
    %430 = vector.shape_cast %429 : vector<16x16xbf16> to vector<2x8x16xbf16>
    %431 = vector.extract_strided_slice %428 {offsets = [0, 16], sizes = [16, 16], strides = [1, 1]} : vector<16x128xbf16> to vector<16x16xbf16>
    %432 = vector.shape_cast %431 : vector<16x16xbf16> to vector<2x8x16xbf16>
    %433 = vector.extract_strided_slice %428 {offsets = [0, 32], sizes = [16, 16], strides = [1, 1]} : vector<16x128xbf16> to vector<16x16xbf16>
    %434 = vector.shape_cast %433 : vector<16x16xbf16> to vector<2x8x16xbf16>
    %435 = vector.extract_strided_slice %428 {offsets = [0, 48], sizes = [16, 16], strides = [1, 1]} : vector<16x128xbf16> to vector<16x16xbf16>
    %436 = vector.shape_cast %435 : vector<16x16xbf16> to vector<2x8x16xbf16>
    %437 = vector.extract_strided_slice %428 {offsets = [0, 64], sizes = [16, 16], strides = [1, 1]} : vector<16x128xbf16> to vector<16x16xbf16>
    %438 = vector.shape_cast %437 : vector<16x16xbf16> to vector<2x8x16xbf16>
    %439 = vector.extract_strided_slice %428 {offsets = [0, 80], sizes = [16, 16], strides = [1, 1]} : vector<16x128xbf16> to vector<16x16xbf16>
    %440 = vector.shape_cast %439 : vector<16x16xbf16> to vector<2x8x16xbf16>
    %441 = vector.extract_strided_slice %428 {offsets = [0, 96], sizes = [16, 16], strides = [1, 1]} : vector<16x128xbf16> to vector<16x16xbf16>
    %442 = vector.shape_cast %441 : vector<16x16xbf16> to vector<2x8x16xbf16>
    %443 = vector.extract_strided_slice %428 {offsets = [0, 112], sizes = [16, 16], strides = [1, 1]} : vector<16x128xbf16> to vector<16x16xbf16>
    %444 = vector.shape_cast %443 : vector<16x16xbf16> to vector<2x8x16xbf16>
    %445 = tpu.concatenate %430, %432, %434, %436, %438, %440, %442, %444 in 0 : vector<2x8x16xbf16>, vector<2x8x16xbf16>, vector<2x8x16xbf16>, vector<2x8x16xbf16>, vector<2x8x16xbf16>, vector<2x8x16xbf16>, vector<2x8x16xbf16>, vector<2x8x16xbf16> -> vector<16x8x16xbf16>
    "tpu.trace_start"() <{level = 10 : i32, message = "xqd,xkd->xqk"}> : () -> ()
    %cst_108 = arith.constant dense<0.000000e+00> : vector<16x8x8xf32>
    %446 = tpu.matmul %409, %427, %cst_108 {dimension_numbers = #tpu.dot_dimension_numbers<[2], [2], [1], [1], [0, 0, 0, 1, 1, 1], [0], [0]>} : vector<16x8x16xbf16>, vector<16x8x16xbf16>, vector<16x8x8xf32> -> vector<16x8x8xf32>
    "tpu.trace_stop"() : () -> ()
    %cst_109 = arith.constant 2.500000e-01 : f32
    %447 = vector.broadcast %cst_109 : f32 to vector<16x8x8xf32>
    %448 = arith.mulf %446, %447 : vector<16x8x8xf32>
    %cst_110 = arith.constant dense<0xFF800000> : vector<16x8xf32>
    %449 = vector.multi_reduction <maximumf>, %448, %cst_110 [2] : vector<16x8x8xf32> to vector<16x8xf32>
    %450 = vector.shape_cast %449 : vector<16x8xf32> to vector<16x8x1xf32>
    %451 = vector.broadcast %450 : vector<16x8x1xf32> to vector<16x8x8xf32>
    %452 = arith.subf %448, %451 : vector<16x8x8xf32>
    %453 = math.exp %452 : vector<16x8x8xf32>
    %cst_111 = arith.constant dense<0.000000e+00> : vector<16x8xf32>
    %454 = vector.multi_reduction <add>, %453, %cst_111 [2] : vector<16x8x8xf32> to vector<16x8xf32>
    %455 = vector.shape_cast %454 : vector<16x8xf32> to vector<16x8x1xf32>
    %456 = tpu.reciprocal %455 {approx = true} : vector<16x8x1xf32> -> vector<16x8x1xf32>
    %457 = vector.broadcast %456 : vector<16x8x1xf32> to vector<16x8x8xf32>
    %458 = arith.mulf %453, %457 : vector<16x8x8xf32>
    %459 = arith.truncf %458 : vector<16x8x8xf32> to vector<16x8x8xbf16>
    "tpu.trace_start"() <{level = 10 : i32, message = "xqk,xkd->xqd"}> : () -> ()
    %cst_112 = arith.constant dense<0.000000e+00> : vector<16x8x16xf32>
    %460 = tpu.matmul %459, %445, %cst_112 {dimension_numbers = #tpu.dot_dimension_numbers<[2], [1], [1], [2], [0, 0, 0, 1, 1, 2], [0], [0]>} : vector<16x8x8xbf16>, vector<16x8x16xbf16>, vector<16x8x16xf32> -> vector<16x8x16xf32>
    "tpu.trace_stop"() : () -> ()
    %461 = vector.extract_strided_slice %460 {offsets = [0, 0, 0], sizes = [2, 8, 16], strides = [1, 1, 1]} : vector<16x8x16xf32> to vector<2x8x16xf32>
    %462 = vector.shape_cast %461 : vector<2x8x16xf32> to vector<16x16xf32>
    %463 = vector.extract_strided_slice %460 {offsets = [2, 0, 0], sizes = [2, 8, 16], strides = [1, 1, 1]} : vector<16x8x16xf32> to vector<2x8x16xf32>
    %464 = vector.shape_cast %463 : vector<2x8x16xf32> to vector<16x16xf32>
    %465 = vector.extract_strided_slice %460 {offsets = [4, 0, 0], sizes = [2, 8, 16], strides = [1, 1, 1]} : vector<16x8x16xf32> to vector<2x8x16xf32>
    %466 = vector.shape_cast %465 : vector<2x8x16xf32> to vector<16x16xf32>
    %467 = vector.extract_strided_slice %460 {offsets = [6, 0, 0], sizes = [2, 8, 16], strides = [1, 1, 1]} : vector<16x8x16xf32> to vector<2x8x16xf32>
    %468 = vector.shape_cast %467 : vector<2x8x16xf32> to vector<16x16xf32>
    %469 = vector.extract_strided_slice %460 {offsets = [8, 0, 0], sizes = [2, 8, 16], strides = [1, 1, 1]} : vector<16x8x16xf32> to vector<2x8x16xf32>
    %470 = vector.shape_cast %469 : vector<2x8x16xf32> to vector<16x16xf32>
    %471 = vector.extract_strided_slice %460 {offsets = [10, 0, 0], sizes = [2, 8, 16], strides = [1, 1, 1]} : vector<16x8x16xf32> to vector<2x8x16xf32>
    %472 = vector.shape_cast %471 : vector<2x8x16xf32> to vector<16x16xf32>
    %473 = vector.extract_strided_slice %460 {offsets = [12, 0, 0], sizes = [2, 8, 16], strides = [1, 1, 1]} : vector<16x8x16xf32> to vector<2x8x16xf32>
    %474 = vector.shape_cast %473 : vector<2x8x16xf32> to vector<16x16xf32>
    %475 = vector.extract_strided_slice %460 {offsets = [14, 0, 0], sizes = [2, 8, 16], strides = [1, 1, 1]} : vector<16x8x16xf32> to vector<2x8x16xf32>
    %476 = vector.shape_cast %475 : vector<2x8x16xf32> to vector<16x16xf32>
    %477 = tpu.concatenate %462, %464, %466, %468, %470, %472, %474, %476 in 1 : vector<16x16xf32>, vector<16x16xf32>, vector<16x16xf32>, vector<16x16xf32>, vector<16x16xf32>, vector<16x16xf32>, vector<16x16xf32>, vector<16x16xf32> -> vector<16x128xf32>
    %c1_113 = arith.constant 1 : index
    %c0_114 = arith.constant 0 : index
    %c0_115 = arith.constant 0 : index
    %478 = vector.load %arg16[%c1_113, %c0_114, %c0_115] : memref<3x128x128xbf16, #tpu.memory_space<vmem>>, vector<1x128x128xbf16>
    %479 = vector.shape_cast %478 : vector<1x128x128xbf16> to vector<128x128xbf16>
    %480 = arith.truncf %477 : vector<16x128xf32> to vector<16x128xbf16>
    %cst_116 = arith.constant dense<0.000000e+00> : vector<16x128xf32>
    %481 = tpu.matmul %480, %479, %cst_116 {dimension_numbers = #tpu.dot_dimension_numbers<[1], [0], [0], [1], [0, 0, 1, 1], [], []>} : vector<16x128xbf16>, vector<128x128xbf16>, vector<16x128xf32> -> vector<16x128xf32>
    %c1_117 = arith.constant 1 : index
    %c0_118 = arith.constant 0 : index
    %c0_119 = arith.constant 0 : index
    %482 = vector.load %arg17[%c1_117, %c0_118, %c0_119] : memref<3x1x128xf32, #tpu.memory_space<vmem>>, vector<1x1x128xf32>
    %483 = vector.shape_cast %482 : vector<1x1x128xf32> to vector<1x128xf32>
    %484 = vector.broadcast %483 : vector<1x128xf32> to vector<16x128xf32>
    %485 = arith.addf %481, %484 : vector<16x128xf32>
    %486 = arith.addf %382, %485 : vector<16x128xf32>
    %c1_120 = arith.constant 1 : index
    %c0_121 = arith.constant 0 : index
    %c0_122 = arith.constant 0 : index
    %487 = vector.load %arg18[%c1_120, %c0_121, %c0_122] : memref<3x1x128xf32, #tpu.memory_space<vmem>>, vector<1x1x128xf32>
    %488 = vector.shape_cast %487 : vector<1x1x128xf32> to vector<1x128xf32>
    %c1_123 = arith.constant 1 : index
    %c0_124 = arith.constant 0 : index
    %c0_125 = arith.constant 0 : index
    %489 = vector.load %arg19[%c1_123, %c0_124, %c0_125] : memref<3x1x128xf32, #tpu.memory_space<vmem>>, vector<1x1x128xf32>
    %490 = vector.shape_cast %489 : vector<1x1x128xf32> to vector<1x128xf32>
    %cst_126 = arith.constant dense<0.000000e+00> : vector<16xf32>
    %491 = vector.multi_reduction <add>, %486, %cst_126 [1] : vector<16x128xf32> to vector<16xf32>
    %492 = vector.shape_cast %491 : vector<16xf32> to vector<16x1xf32>
    %cst_127 = arith.constant 1.280000e+02 : f32
    %493 = vector.broadcast %cst_127 : f32 to vector<16x1xf32>
    %494 = arith.divf %492, %493 : vector<16x1xf32>
    %495 = vector.broadcast %494 : vector<16x1xf32> to vector<16x128xf32>
    %496 = arith.subf %486, %495 : vector<16x128xf32>
    %497 = arith.mulf %496, %496 : vector<16x128xf32>
    %cst_128 = arith.constant dense<0.000000e+00> : vector<16xf32>
    %498 = vector.multi_reduction <add>, %497, %cst_128 [1] : vector<16x128xf32> to vector<16xf32>
    %499 = vector.shape_cast %498 : vector<16xf32> to vector<16x1xf32>
    %cst_129 = arith.constant 1.280000e+02 : f32
    %500 = vector.broadcast %cst_129 : f32 to vector<16x1xf32>
    %501 = arith.divf %499, %500 : vector<16x1xf32>
    %502 = vector.broadcast %494 : vector<16x1xf32> to vector<16x128xf32>
    %503 = arith.subf %486, %502 : vector<16x128xf32>
    %cst_130 = arith.constant 9.99999974E-6 : f32
    %504 = vector.broadcast %cst_130 : f32 to vector<16x1xf32>
    %505 = arith.addf %501, %504 : vector<16x1xf32>
    %506 = math.rsqrt %505 : vector<16x1xf32>
    %507 = vector.broadcast %506 : vector<16x1xf32> to vector<16x128xf32>
    %508 = arith.mulf %503, %507 : vector<16x128xf32>
    %509 = vector.broadcast %488 : vector<1x128xf32> to vector<16x128xf32>
    %510 = arith.mulf %508, %509 : vector<16x128xf32>
    %511 = vector.broadcast %490 : vector<1x128xf32> to vector<16x128xf32>
    %512 = arith.addf %510, %511 : vector<16x128xf32>
    %c2_131 = arith.constant 2 : index
    %c0_132 = arith.constant 0 : index
    %c0_133 = arith.constant 0 : index
    %513 = vector.load %arg14[%c2_131, %c0_132, %c0_133] : memref<3x128x384xbf16, #tpu.memory_space<vmem>>, vector<1x128x384xbf16>
    %514 = vector.shape_cast %513 : vector<1x128x384xbf16> to vector<128x384xbf16>
    %515 = arith.truncf %512 : vector<16x128xf32> to vector<16x128xbf16>
    %cst_134 = arith.constant dense<0.000000e+00> : vector<16x384xf32>
    %516 = tpu.matmul %515, %514, %cst_134 {dimension_numbers = #tpu.dot_dimension_numbers<[1], [0], [0], [1], [0, 0, 1, 1], [], []>} : vector<16x128xbf16>, vector<128x384xbf16>, vector<16x384xf32> -> vector<16x384xf32>
    %c2_135 = arith.constant 2 : index
    %c0_136 = arith.constant 0 : index
    %c0_137 = arith.constant 0 : index
    %517 = vector.load %arg15[%c2_135, %c0_136, %c0_137] : memref<3x1x384xf32, #tpu.memory_space<vmem>>, vector<1x1x384xf32>
    %518 = vector.shape_cast %517 : vector<1x1x384xf32> to vector<1x384xf32>
    %519 = vector.broadcast %518 : vector<1x384xf32> to vector<16x384xf32>
    %520 = arith.addf %516, %519 : vector<16x384xf32>
    %521 = arith.truncf %520 : vector<16x384xf32> to vector<16x384xbf16>
    %522 = vector.extract_strided_slice %521 {offsets = [0, 0], sizes = [16, 128], strides = [1, 1]} : vector<16x384xbf16> to vector<16x128xbf16>
    %523 = vector.extract_strided_slice %522 {offsets = [0, 0], sizes = [16, 16], strides = [1, 1]} : vector<16x128xbf16> to vector<16x16xbf16>
    %524 = vector.shape_cast %523 : vector<16x16xbf16> to vector<2x8x16xbf16>
    %525 = vector.extract_strided_slice %522 {offsets = [0, 16], sizes = [16, 16], strides = [1, 1]} : vector<16x128xbf16> to vector<16x16xbf16>
    %526 = vector.shape_cast %525 : vector<16x16xbf16> to vector<2x8x16xbf16>
    %527 = vector.extract_strided_slice %522 {offsets = [0, 32], sizes = [16, 16], strides = [1, 1]} : vector<16x128xbf16> to vector<16x16xbf16>
    %528 = vector.shape_cast %527 : vector<16x16xbf16> to vector<2x8x16xbf16>
    %529 = vector.extract_strided_slice %522 {offsets = [0, 48], sizes = [16, 16], strides = [1, 1]} : vector<16x128xbf16> to vector<16x16xbf16>
    %530 = vector.shape_cast %529 : vector<16x16xbf16> to vector<2x8x16xbf16>
    %531 = vector.extract_strided_slice %522 {offsets = [0, 64], sizes = [16, 16], strides = [1, 1]} : vector<16x128xbf16> to vector<16x16xbf16>
    %532 = vector.shape_cast %531 : vector<16x16xbf16> to vector<2x8x16xbf16>
    %533 = vector.extract_strided_slice %522 {offsets = [0, 80], sizes = [16, 16], strides = [1, 1]} : vector<16x128xbf16> to vector<16x16xbf16>
    %534 = vector.shape_cast %533 : vector<16x16xbf16> to vector<2x8x16xbf16>
    %535 = vector.extract_strided_slice %522 {offsets = [0, 96], sizes = [16, 16], strides = [1, 1]} : vector<16x128xbf16> to vector<16x16xbf16>
    %536 = vector.shape_cast %535 : vector<16x16xbf16> to vector<2x8x16xbf16>
    %537 = vector.extract_strided_slice %522 {offsets = [0, 112], sizes = [16, 16], strides = [1, 1]} : vector<16x128xbf16> to vector<16x16xbf16>
    %538 = vector.shape_cast %537 : vector<16x16xbf16> to vector<2x8x16xbf16>
    %539 = tpu.concatenate %524, %526, %528, %530, %532, %534, %536, %538 in 0 : vector<2x8x16xbf16>, vector<2x8x16xbf16>, vector<2x8x16xbf16>, vector<2x8x16xbf16>, vector<2x8x16xbf16>, vector<2x8x16xbf16>, vector<2x8x16xbf16>, vector<2x8x16xbf16> -> vector<16x8x16xbf16>
    %540 = vector.extract_strided_slice %521 {offsets = [0, 128], sizes = [16, 128], strides = [1, 1]} : vector<16x384xbf16> to vector<16x128xbf16>
    %541 = vector.extract_strided_slice %540 {offsets = [0, 0], sizes = [16, 16], strides = [1, 1]} : vector<16x128xbf16> to vector<16x16xbf16>
    %542 = vector.shape_cast %541 : vector<16x16xbf16> to vector<2x8x16xbf16>
    %543 = vector.extract_strided_slice %540 {offsets = [0, 16], sizes = [16, 16], strides = [1, 1]} : vector<16x128xbf16> to vector<16x16xbf16>
    %544 = vector.shape_cast %543 : vector<16x16xbf16> to vector<2x8x16xbf16>
    %545 = vector.extract_strided_slice %540 {offsets = [0, 32], sizes = [16, 16], strides = [1, 1]} : vector<16x128xbf16> to vector<16x16xbf16>
    %546 = vector.shape_cast %545 : vector<16x16xbf16> to vector<2x8x16xbf16>
    %547 = vector.extract_strided_slice %540 {offsets = [0, 48], sizes = [16, 16], strides = [1, 1]} : vector<16x128xbf16> to vector<16x16xbf16>
    %548 = vector.shape_cast %547 : vector<16x16xbf16> to vector<2x8x16xbf16>
    %549 = vector.extract_strided_slice %540 {offsets = [0, 64], sizes = [16, 16], strides = [1, 1]} : vector<16x128xbf16> to vector<16x16xbf16>
    %550 = vector.shape_cast %549 : vector<16x16xbf16> to vector<2x8x16xbf16>
    %551 = vector.extract_strided_slice %540 {offsets = [0, 80], sizes = [16, 16], strides = [1, 1]} : vector<16x128xbf16> to vector<16x16xbf16>
    %552 = vector.shape_cast %551 : vector<16x16xbf16> to vector<2x8x16xbf16>
    %553 = vector.extract_strided_slice %540 {offsets = [0, 96], sizes = [16, 16], strides = [1, 1]} : vector<16x128xbf16> to vector<16x16xbf16>
    %554 = vector.shape_cast %553 : vector<16x16xbf16> to vector<2x8x16xbf16>
    %555 = vector.extract_strided_slice %540 {offsets = [0, 112], sizes = [16, 16], strides = [1, 1]} : vector<16x128xbf16> to vector<16x16xbf16>
    %556 = vector.shape_cast %555 : vector<16x16xbf16> to vector<2x8x16xbf16>
    %557 = tpu.concatenate %542, %544, %546, %548, %550, %552, %554, %556 in 0 : vector<2x8x16xbf16>, vector<2x8x16xbf16>, vector<2x8x16xbf16>, vector<2x8x16xbf16>, vector<2x8x16xbf16>, vector<2x8x16xbf16>, vector<2x8x16xbf16>, vector<2x8x16xbf16> -> vector<16x8x16xbf16>
    %558 = vector.extract_strided_slice %521 {offsets = [0, 256], sizes = [16, 128], strides = [1, 1]} : vector<16x384xbf16> to vector<16x128xbf16>
    %559 = vector.extract_strided_slice %558 {offsets = [0, 0], sizes = [16, 16], strides = [1, 1]} : vector<16x128xbf16> to vector<16x16xbf16>
    %560 = vector.shape_cast %559 : vector<16x16xbf16> to vector<2x8x16xbf16>
    %561 = vector.extract_strided_slice %558 {offsets = [0, 16], sizes = [16, 16], strides = [1, 1]} : vector<16x128xbf16> to vector<16x16xbf16>
    %562 = vector.shape_cast %561 : vector<16x16xbf16> to vector<2x8x16xbf16>
    %563 = vector.extract_strided_slice %558 {offsets = [0, 32], sizes = [16, 16], strides = [1, 1]} : vector<16x128xbf16> to vector<16x16xbf16>
    %564 = vector.shape_cast %563 : vector<16x16xbf16> to vector<2x8x16xbf16>
    %565 = vector.extract_strided_slice %558 {offsets = [0, 48], sizes = [16, 16], strides = [1, 1]} : vector<16x128xbf16> to vector<16x16xbf16>
    %566 = vector.shape_cast %565 : vector<16x16xbf16> to vector<2x8x16xbf16>
    %567 = vector.extract_strided_slice %558 {offsets = [0, 64], sizes = [16, 16], strides = [1, 1]} : vector<16x128xbf16> to vector<16x16xbf16>
    %568 = vector.shape_cast %567 : vector<16x16xbf16> to vector<2x8x16xbf16>
    %569 = vector.extract_strided_slice %558 {offsets = [0, 80], sizes = [16, 16], strides = [1, 1]} : vector<16x128xbf16> to vector<16x16xbf16>
    %570 = vector.shape_cast %569 : vector<16x16xbf16> to vector<2x8x16xbf16>
    %571 = vector.extract_strided_slice %558 {offsets = [0, 96], sizes = [16, 16], strides = [1, 1]} : vector<16x128xbf16> to vector<16x16xbf16>
    %572 = vector.shape_cast %571 : vector<16x16xbf16> to vector<2x8x16xbf16>
    %573 = vector.extract_strided_slice %558 {offsets = [0, 112], sizes = [16, 16], strides = [1, 1]} : vector<16x128xbf16> to vector<16x16xbf16>
    %574 = vector.shape_cast %573 : vector<16x16xbf16> to vector<2x8x16xbf16>
    %575 = tpu.concatenate %560, %562, %564, %566, %568, %570, %572, %574 in 0 : vector<2x8x16xbf16>, vector<2x8x16xbf16>, vector<2x8x16xbf16>, vector<2x8x16xbf16>, vector<2x8x16xbf16>, vector<2x8x16xbf16>, vector<2x8x16xbf16>, vector<2x8x16xbf16> -> vector<16x8x16xbf16>
    "tpu.trace_start"() <{level = 10 : i32, message = "xqd,xkd->xqk"}> : () -> ()
    %cst_138 = arith.constant dense<0.000000e+00> : vector<16x8x8xf32>
    %576 = tpu.matmul %539, %557, %cst_138 {dimension_numbers = #tpu.dot_dimension_numbers<[2], [2], [1], [1], [0, 0, 0, 1, 1, 1], [0], [0]>} : vector<16x8x16xbf16>, vector<16x8x16xbf16>, vector<16x8x8xf32> -> vector<16x8x8xf32>
    "tpu.trace_stop"() : () -> ()
    %cst_139 = arith.constant 2.500000e-01 : f32
    %577 = vector.broadcast %cst_139 : f32 to vector<16x8x8xf32>
    %578 = arith.mulf %576, %577 : vector<16x8x8xf32>
    %cst_140 = arith.constant dense<0xFF800000> : vector<16x8xf32>
    %579 = vector.multi_reduction <maximumf>, %578, %cst_140 [2] : vector<16x8x8xf32> to vector<16x8xf32>
    %580 = vector.shape_cast %579 : vector<16x8xf32> to vector<16x8x1xf32>
    %581 = vector.broadcast %580 : vector<16x8x1xf32> to vector<16x8x8xf32>
    %582 = arith.subf %578, %581 : vector<16x8x8xf32>
    %583 = math.exp %582 : vector<16x8x8xf32>
    %cst_141 = arith.constant dense<0.000000e+00> : vector<16x8xf32>
    %584 = vector.multi_reduction <add>, %583, %cst_141 [2] : vector<16x8x8xf32> to vector<16x8xf32>
    %585 = vector.shape_cast %584 : vector<16x8xf32> to vector<16x8x1xf32>
    %586 = tpu.reciprocal %585 {approx = true} : vector<16x8x1xf32> -> vector<16x8x1xf32>
    %587 = vector.broadcast %586 : vector<16x8x1xf32> to vector<16x8x8xf32>
    %588 = arith.mulf %583, %587 : vector<16x8x8xf32>
    %589 = arith.truncf %588 : vector<16x8x8xf32> to vector<16x8x8xbf16>
    "tpu.trace_start"() <{level = 10 : i32, message = "xqk,xkd->xqd"}> : () -> ()
    %cst_142 = arith.constant dense<0.000000e+00> : vector<16x8x16xf32>
    %590 = tpu.matmul %589, %575, %cst_142 {dimension_numbers = #tpu.dot_dimension_numbers<[2], [1], [1], [2], [0, 0, 0, 1, 1, 2], [0], [0]>} : vector<16x8x8xbf16>, vector<16x8x16xbf16>, vector<16x8x16xf32> -> vector<16x8x16xf32>
    "tpu.trace_stop"() : () -> ()
    %591 = vector.extract_strided_slice %590 {offsets = [0, 0, 0], sizes = [2, 8, 16], strides = [1, 1, 1]} : vector<16x8x16xf32> to vector<2x8x16xf32>
    %592 = vector.shape_cast %591 : vector<2x8x16xf32> to vector<16x16xf32>
    %593 = vector.extract_strided_slice %590 {offsets = [2, 0, 0], sizes = [2, 8, 16], strides = [1, 1, 1]} : vector<16x8x16xf32> to vector<2x8x16xf32>
    %594 = vector.shape_cast %593 : vector<2x8x16xf32> to vector<16x16xf32>
    %595 = vector.extract_strided_slice %590 {offsets = [4, 0, 0], sizes = [2, 8, 16], strides = [1, 1, 1]} : vector<16x8x16xf32> to vector<2x8x16xf32>
    %596 = vector.shape_cast %595 : vector<2x8x16xf32> to vector<16x16xf32>
    %597 = vector.extract_strided_slice %590 {offsets = [6, 0, 0], sizes = [2, 8, 16], strides = [1, 1, 1]} : vector<16x8x16xf32> to vector<2x8x16xf32>
    %598 = vector.shape_cast %597 : vector<2x8x16xf32> to vector<16x16xf32>
    %599 = vector.extract_strided_slice %590 {offsets = [8, 0, 0], sizes = [2, 8, 16], strides = [1, 1, 1]} : vector<16x8x16xf32> to vector<2x8x16xf32>
    %600 = vector.shape_cast %599 : vector<2x8x16xf32> to vector<16x16xf32>
    %601 = vector.extract_strided_slice %590 {offsets = [10, 0, 0], sizes = [2, 8, 16], strides = [1, 1, 1]} : vector<16x8x16xf32> to vector<2x8x16xf32>
    %602 = vector.shape_cast %601 : vector<2x8x16xf32> to vector<16x16xf32>
    %603 = vector.extract_strided_slice %590 {offsets = [12, 0, 0], sizes = [2, 8, 16], strides = [1, 1, 1]} : vector<16x8x16xf32> to vector<2x8x16xf32>
    %604 = vector.shape_cast %603 : vector<2x8x16xf32> to vector<16x16xf32>
    %605 = vector.extract_strided_slice %590 {offsets = [14, 0, 0], sizes = [2, 8, 16], strides = [1, 1, 1]} : vector<16x8x16xf32> to vector<2x8x16xf32>
    %606 = vector.shape_cast %605 : vector<2x8x16xf32> to vector<16x16xf32>
    %607 = tpu.concatenate %592, %594, %596, %598, %600, %602, %604, %606 in 1 : vector<16x16xf32>, vector<16x16xf32>, vector<16x16xf32>, vector<16x16xf32>, vector<16x16xf32>, vector<16x16xf32>, vector<16x16xf32>, vector<16x16xf32> -> vector<16x128xf32>
    %c2_143 = arith.constant 2 : index
    %c0_144 = arith.constant 0 : index
    %c0_145 = arith.constant 0 : index
    %608 = vector.load %arg16[%c2_143, %c0_144, %c0_145] : memref<3x128x128xbf16, #tpu.memory_space<vmem>>, vector<1x128x128xbf16>
    %609 = vector.shape_cast %608 : vector<1x128x128xbf16> to vector<128x128xbf16>
    %610 = arith.truncf %607 : vector<16x128xf32> to vector<16x128xbf16>
    %cst_146 = arith.constant dense<0.000000e+00> : vector<16x128xf32>
    %611 = tpu.matmul %610, %609, %cst_146 {dimension_numbers = #tpu.dot_dimension_numbers<[1], [0], [0], [1], [0, 0, 1, 1], [], []>} : vector<16x128xbf16>, vector<128x128xbf16>, vector<16x128xf32> -> vector<16x128xf32>
    %c2_147 = arith.constant 2 : index
    %c0_148 = arith.constant 0 : index
    %c0_149 = arith.constant 0 : index
    %612 = vector.load %arg17[%c2_147, %c0_148, %c0_149] : memref<3x1x128xf32, #tpu.memory_space<vmem>>, vector<1x1x128xf32>
    %613 = vector.shape_cast %612 : vector<1x1x128xf32> to vector<1x128xf32>
    %614 = vector.broadcast %613 : vector<1x128xf32> to vector<16x128xf32>
    %615 = arith.addf %611, %614 : vector<16x128xf32>
    %616 = arith.addf %512, %615 : vector<16x128xf32>
    %c2_150 = arith.constant 2 : index
    %c0_151 = arith.constant 0 : index
    %c0_152 = arith.constant 0 : index
    %617 = vector.load %arg18[%c2_150, %c0_151, %c0_152] : memref<3x1x128xf32, #tpu.memory_space<vmem>>, vector<1x1x128xf32>
    %618 = vector.shape_cast %617 : vector<1x1x128xf32> to vector<1x128xf32>
    %c2_153 = arith.constant 2 : index
    %c0_154 = arith.constant 0 : index
    %c0_155 = arith.constant 0 : index
    %619 = vector.load %arg19[%c2_153, %c0_154, %c0_155] : memref<3x1x128xf32, #tpu.memory_space<vmem>>, vector<1x1x128xf32>
    %620 = vector.shape_cast %619 : vector<1x1x128xf32> to vector<1x128xf32>
    %cst_156 = arith.constant dense<0.000000e+00> : vector<16xf32>
    %621 = vector.multi_reduction <add>, %616, %cst_156 [1] : vector<16x128xf32> to vector<16xf32>
    %622 = vector.shape_cast %621 : vector<16xf32> to vector<16x1xf32>
    %cst_157 = arith.constant 1.280000e+02 : f32
    %623 = vector.broadcast %cst_157 : f32 to vector<16x1xf32>
    %624 = arith.divf %622, %623 : vector<16x1xf32>
    %625 = vector.broadcast %624 : vector<16x1xf32> to vector<16x128xf32>
    %626 = arith.subf %616, %625 : vector<16x128xf32>
    %627 = arith.mulf %626, %626 : vector<16x128xf32>
    %cst_158 = arith.constant dense<0.000000e+00> : vector<16xf32>
    %628 = vector.multi_reduction <add>, %627, %cst_158 [1] : vector<16x128xf32> to vector<16xf32>
    %629 = vector.shape_cast %628 : vector<16xf32> to vector<16x1xf32>
    %cst_159 = arith.constant 1.280000e+02 : f32
    %630 = vector.broadcast %cst_159 : f32 to vector<16x1xf32>
    %631 = arith.divf %629, %630 : vector<16x1xf32>
    %632 = vector.broadcast %624 : vector<16x1xf32> to vector<16x128xf32>
    %633 = arith.subf %616, %632 : vector<16x128xf32>
    %cst_160 = arith.constant 9.99999974E-6 : f32
    %634 = vector.broadcast %cst_160 : f32 to vector<16x1xf32>
    %635 = arith.addf %631, %634 : vector<16x1xf32>
    %636 = math.rsqrt %635 : vector<16x1xf32>
    %637 = vector.broadcast %636 : vector<16x1xf32> to vector<16x128xf32>
    %638 = arith.mulf %633, %637 : vector<16x128xf32>
    %639 = vector.broadcast %618 : vector<1x128xf32> to vector<16x128xf32>
    %640 = arith.mulf %638, %639 : vector<16x128xf32>
    %641 = vector.broadcast %620 : vector<1x128xf32> to vector<16x128xf32>
    %642 = arith.addf %640, %641 : vector<16x128xf32>
    %643 = vector.shape_cast %642 : vector<16x128xf32> to vector<2x8x128xf32>
    %cst_161 = arith.constant dense<0.000000e+00> : vector<2x128xf32>
    %644 = vector.multi_reduction <add>, %643, %cst_161 [1] : vector<2x8x128xf32> to vector<2x128xf32>
    %cst_162 = arith.constant 8.000000e+00 : f32
    %645 = vector.broadcast %cst_162 : f32 to vector<2x128xf32>
    %646 = arith.divf %644, %645 : vector<2x128xf32>
    %c0_163 = arith.constant 0 : index
    %c0_164 = arith.constant 0 : index
    %647 = vector.load %arg20[%c0_163, %c0_164] : memref<128x512xbf16, #tpu.memory_space<vmem>>, vector<128x512xbf16>
    %648 = arith.truncf %646 : vector<2x128xf32> to vector<2x128xbf16>
    %cst_165 = arith.constant dense<0.000000e+00> : vector<2x512xf32>
    %649 = tpu.matmul %648, %647, %cst_165 {dimension_numbers = #tpu.dot_dimension_numbers<[1], [0], [0], [1], [0, 0, 1, 1], [], []>} : vector<2x128xbf16>, vector<128x512xbf16>, vector<2x512xf32> -> vector<2x512xf32>
    %c0_166 = arith.constant 0 : index
    %c0_167 = arith.constant 0 : index
    %650 = vector.load %arg4[%c0_166, %c0_167] : memref<2x4xf32, #tpu.memory_space<vmem>>, vector<2x4xf32>
    %c0_168 = arith.constant 0 : index
    %c0_169 = arith.constant 0 : index
    %651 = vector.load %arg21[%c0_168, %c0_169] : memref<4x512xbf16, #tpu.memory_space<vmem>>, vector<4x512xbf16>
    %652 = arith.truncf %650 : vector<2x4xf32> to vector<2x4xbf16>
    %cst_170 = arith.constant dense<0.000000e+00> : vector<2x512xf32>
    %653 = tpu.matmul %652, %651, %cst_170 {dimension_numbers = #tpu.dot_dimension_numbers<[1], [0], [0], [1], [0, 0, 1, 1], [], []>} : vector<2x4xbf16>, vector<4x512xbf16>, vector<2x512xf32> -> vector<2x512xf32>
    %654 = arith.addf %649, %653 : vector<2x512xf32>
    %c0_171 = arith.constant 0 : index
    %c0_172 = arith.constant 0 : index
    %655 = vector.load %arg22[%c0_171, %c0_172] : memref<1x512xf32, #tpu.memory_space<vmem>>, vector<1x512xf32>
    %656 = vector.broadcast %655 : vector<1x512xf32> to vector<2x512xf32>
    %657 = arith.addf %654, %656 : vector<2x512xf32>
    %658 = vector.extract_strided_slice %657 {offsets = [0, 0], sizes = [2, 256], strides = [1, 1]} : vector<2x512xf32> to vector<2x256xf32>
    %659 = vector.extract_strided_slice %657 {offsets = [0, 256], sizes = [2, 256], strides = [1, 1]} : vector<2x512xf32> to vector<2x256xf32>
    %660 = vector.shape_cast %658 : vector<2x256xf32> to vector<1x2x256xf32>
    %661 = vector.shape_cast %659 : vector<2x256xf32> to vector<1x2x256xf32>
    %662 = tpu.concatenate %660, %661 in 0 : vector<1x2x256xf32>, vector<1x2x256xf32> -> vector<2x2x256xf32>
    %c0_173 = arith.constant 0 : index
    %c0_174 = arith.constant 0 : index
    %c0_175 = arith.constant 0 : index
    %663 = vector.load %arg23[%c0_173, %c0_174, %c0_175] : memref<2x1x256xf32, #tpu.memory_space<vmem>>, vector<2x1x256xf32>
    %c0_176 = arith.constant 0 : index
    %c0_177 = arith.constant 0 : index
    %c0_178 = arith.constant 0 : index
    %664 = vector.load %arg24[%c0_176, %c0_177, %c0_178] : memref<2x1x256xf32, #tpu.memory_space<vmem>>, vector<2x1x256xf32>
    %cst_179 = arith.constant dense<0.000000e+00> : vector<2x2xf32>
    %665 = vector.multi_reduction <add>, %662, %cst_179 [2] : vector<2x2x256xf32> to vector<2x2xf32>
    %666 = vector.shape_cast %665 : vector<2x2xf32> to vector<2x2x1xf32>
    %cst_180 = arith.constant 2.560000e+02 : f32
    %667 = vector.broadcast %cst_180 : f32 to vector<2x2x1xf32>
    %668 = arith.divf %666, %667 : vector<2x2x1xf32>
    %669 = vector.broadcast %668 : vector<2x2x1xf32> to vector<2x2x256xf32>
    %670 = arith.subf %662, %669 : vector<2x2x256xf32>
    %671 = arith.mulf %670, %670 : vector<2x2x256xf32>
    %cst_181 = arith.constant dense<0.000000e+00> : vector<2x2xf32>
    %672 = vector.multi_reduction <add>, %671, %cst_181 [2] : vector<2x2x256xf32> to vector<2x2xf32>
    %673 = vector.shape_cast %672 : vector<2x2xf32> to vector<2x2x1xf32>
    %cst_182 = arith.constant 2.560000e+02 : f32
    %674 = vector.broadcast %cst_182 : f32 to vector<2x2x1xf32>
    %675 = arith.divf %673, %674 : vector<2x2x1xf32>
    %676 = vector.broadcast %668 : vector<2x2x1xf32> to vector<2x2x256xf32>
    %677 = arith.subf %662, %676 : vector<2x2x256xf32>
    %cst_183 = arith.constant 9.99999974E-6 : f32
    %678 = vector.broadcast %cst_183 : f32 to vector<2x2x1xf32>
    %679 = arith.addf %675, %678 : vector<2x2x1xf32>
    %680 = math.rsqrt %679 : vector<2x2x1xf32>
    %681 = vector.broadcast %680 : vector<2x2x1xf32> to vector<2x2x256xf32>
    %682 = arith.mulf %677, %681 : vector<2x2x256xf32>
    %683 = vector.broadcast %663 : vector<2x1x256xf32> to vector<2x2x256xf32>
    %684 = arith.mulf %682, %683 : vector<2x2x256xf32>
    %685 = vector.broadcast %664 : vector<2x1x256xf32> to vector<2x2x256xf32>
    %686 = arith.addf %684, %685 : vector<2x2x256xf32>
    %cst_184 = arith.constant 0.000000e+00 : f32
    %687 = vector.broadcast %cst_184 : f32 to vector<2x2x256xf32>
    %688 = arith.maximumf %686, %687 : vector<2x2x256xf32>
    %689 = arith.truncf %688 : vector<2x2x256xf32> to vector<2x2x256xbf16>
    %c0_185 = arith.constant 0 : index
    %c0_186 = arith.constant 0 : index
    %c0_187 = arith.constant 0 : index
    %690 = vector.load %arg25[%c0_185, %c0_186, %c0_187] : memref<2x256x128xbf16, #tpu.memory_space<vmem>>, vector<2x256x128xbf16>
    "tpu.trace_start"() <{level = 10 : i32, message = "nbh,nhd->nbd"}> : () -> ()
    %cst_188 = arith.constant dense<0.000000e+00> : vector<2x2x128xf32>
    %691 = tpu.matmul %689, %690, %cst_188 {dimension_numbers = #tpu.dot_dimension_numbers<[2], [1], [1], [2], [0, 0, 0, 1, 1, 2], [0], [0]>} : vector<2x2x256xbf16>, vector<2x256x128xbf16>, vector<2x2x128xf32> -> vector<2x2x128xf32>
    "tpu.trace_stop"() : () -> ()
    %c0_189 = arith.constant 0 : index
    %c0_190 = arith.constant 0 : index
    %c0_191 = arith.constant 0 : index
    %692 = vector.load %arg26[%c0_189, %c0_190, %c0_191] : memref<2x1x128xf32, #tpu.memory_space<vmem>>, vector<2x1x128xf32>
    %693 = vector.broadcast %692 : vector<2x1x128xf32> to vector<2x2x128xf32>
    %694 = arith.addf %691, %693 : vector<2x2x128xf32>
    %c0_192 = arith.constant 0 : index
    %c0_193 = arith.constant 0 : index
    %c0_194 = arith.constant 0 : index
    %695 = vector.load %arg27[%c0_192, %c0_193, %c0_194] : memref<2x1x128xf32, #tpu.memory_space<vmem>>, vector<2x1x128xf32>
    %c0_195 = arith.constant 0 : index
    %c0_196 = arith.constant 0 : index
    %c0_197 = arith.constant 0 : index
    %696 = vector.load %arg28[%c0_195, %c0_196, %c0_197] : memref<2x1x128xf32, #tpu.memory_space<vmem>>, vector<2x1x128xf32>
    %cst_198 = arith.constant dense<0.000000e+00> : vector<2x2xf32>
    %697 = vector.multi_reduction <add>, %694, %cst_198 [2] : vector<2x2x128xf32> to vector<2x2xf32>
    %698 = vector.shape_cast %697 : vector<2x2xf32> to vector<2x2x1xf32>
    %cst_199 = arith.constant 1.280000e+02 : f32
    %699 = vector.broadcast %cst_199 : f32 to vector<2x2x1xf32>
    %700 = arith.divf %698, %699 : vector<2x2x1xf32>
    %701 = vector.broadcast %700 : vector<2x2x1xf32> to vector<2x2x128xf32>
    %702 = arith.subf %694, %701 : vector<2x2x128xf32>
    %703 = arith.mulf %702, %702 : vector<2x2x128xf32>
    %cst_200 = arith.constant dense<0.000000e+00> : vector<2x2xf32>
    %704 = vector.multi_reduction <add>, %703, %cst_200 [2] : vector<2x2x128xf32> to vector<2x2xf32>
    %705 = vector.shape_cast %704 : vector<2x2xf32> to vector<2x2x1xf32>
    %cst_201 = arith.constant 1.280000e+02 : f32
    %706 = vector.broadcast %cst_201 : f32 to vector<2x2x1xf32>
    %707 = arith.divf %705, %706 : vector<2x2x1xf32>
    %708 = vector.broadcast %700 : vector<2x2x1xf32> to vector<2x2x128xf32>
    %709 = arith.subf %694, %708 : vector<2x2x128xf32>
    %cst_202 = arith.constant 9.99999974E-6 : f32
    %710 = vector.broadcast %cst_202 : f32 to vector<2x2x1xf32>
    %711 = arith.addf %707, %710 : vector<2x2x1xf32>
    %712 = math.rsqrt %711 : vector<2x2x1xf32>
    %713 = vector.broadcast %712 : vector<2x2x1xf32> to vector<2x2x128xf32>
    %714 = arith.mulf %709, %713 : vector<2x2x128xf32>
    %715 = vector.broadcast %695 : vector<2x1x128xf32> to vector<2x2x128xf32>
    %716 = arith.mulf %714, %715 : vector<2x2x128xf32>
    %717 = vector.broadcast %696 : vector<2x1x128xf32> to vector<2x2x128xf32>
    %718 = arith.addf %716, %717 : vector<2x2x128xf32>
    %cst_203 = arith.constant 0.000000e+00 : f32
    %719 = vector.broadcast %cst_203 : f32 to vector<2x2x128xf32>
    %720 = arith.maximumf %718, %719 : vector<2x2x128xf32>
    %721 = arith.truncf %720 : vector<2x2x128xf32> to vector<2x2x128xbf16>
    %c0_204 = arith.constant 0 : index
    %c0_205 = arith.constant 0 : index
    %c0_206 = arith.constant 0 : index
    %722 = vector.load %arg29[%c0_204, %c0_205, %c0_206] : memref<2x128x1xbf16, #tpu.memory_space<vmem>>, vector<2x128x1xbf16>
    "tpu.trace_start"() <{level = 10 : i32, message = "nbh,nhd->nbd"}> : () -> ()
    %cst_207 = arith.constant dense<0.000000e+00> : vector<2x2x1xf32>
    %723 = tpu.matmul %721, %722, %cst_207 {dimension_numbers = #tpu.dot_dimension_numbers<[2], [1], [1], [2], [0, 0, 0, 1, 1, 2], [0], [0]>} : vector<2x2x128xbf16>, vector<2x128x1xbf16>, vector<2x2x1xf32> -> vector<2x2x1xf32>
    "tpu.trace_stop"() : () -> ()
    %c0_208 = arith.constant 0 : index
    %c0_209 = arith.constant 0 : index
    %c0_210 = arith.constant 0 : index
    %724 = vector.load %arg30[%c0_208, %c0_209, %c0_210] : memref<2x1x1xf32, #tpu.memory_space<vmem>>, vector<2x1x1xf32>
    %725 = vector.broadcast %724 : vector<2x1x1xf32> to vector<2x2x1xf32>
    %726 = arith.addf %723, %725 : vector<2x2x1xf32>
    %727 = vector.extract_strided_slice %726 {offsets = [0, 0, 0], sizes = [1, 2, 1], strides = [1, 1, 1]} : vector<2x2x1xf32> to vector<1x2x1xf32>
    %728 = vector.shape_cast %727 : vector<1x2x1xf32> to vector<2x1xf32>
    %729 = vector.extract_strided_slice %726 {offsets = [1, 0, 0], sizes = [1, 2, 1], strides = [1, 1, 1]} : vector<2x2x1xf32> to vector<1x2x1xf32>
    %730 = vector.shape_cast %729 : vector<1x2x1xf32> to vector<2x1xf32>
    %731 = tpu.concatenate %728, %730 in 1 : vector<2x1xf32>, vector<2x1xf32> -> vector<2x2xf32>
    %c0_211 = arith.constant 0 : index
    %c0_212 = arith.constant 0 : index
    %732 = vector.load %arg31[%c0_211, %c0_212] : memref<2x2xf32, #tpu.memory_space<vmem>>, vector<2x2xf32>
    tpu.vector_store %arg31[%c0_211, %c0_212], %731 {strides = array<i32>} : memref<2x2xf32, #tpu.memory_space<vmem>>, vector<2x2xf32>,
    return
  }
  func.func @transform_0(%arg0: i32) -> (i32, i32, i32) {
    %c0_i32 = arith.constant 0 : i32
    %c0_i32_0 = arith.constant 0 : i32
    %c0_i32_1 = arith.constant 0 : i32
    return %arg0, %c0_i32, %c0_i32_0 : i32, i32, i32
  }
  func.func @transform_1(%arg0: i32) -> (i32, i32, i32) {
    %c0_i32 = arith.constant 0 : i32
    %c0_i32_0 = arith.constant 0 : i32
    %c0_i32_1 = arith.constant 0 : i32
    return %arg0, %c0_i32, %c0_i32_0 : i32, i32, i32
  }
  func.func @transform_2(%arg0: i32) -> (i32, i32, i32) {
    %c0_i32 = arith.constant 0 : i32
    %c0_i32_0 = arith.constant 0 : i32
    %c0_i32_1 = arith.constant 0 : i32
    return %arg0, %c0_i32, %c0_i32_0 : i32, i32, i32
  }
  func.func @transform_3(%arg0: i32) -> (i32, i32) {
    %c0_i32 = arith.constant 0 : i32
    %c0_i32_0 = arith.constant 0 : i32
    return %arg0, %c0_i32 : i32, i32
  }
  func.func @transform_4(%arg0: i32) -> (i32, i32) {
    %c0_i32 = arith.constant 0 : i32
    %c0_i32_0 = arith.constant 0 : i32
    %c0_i32_1 = arith.constant 0 : i32
    return %c0_i32, %c0_i32_0 : i32, i32
  }
  func.func @transform_5(%arg0: i32) -> (i32, i32) {
    %c0_i32 = arith.constant 0 : i32
    %c0_i32_0 = arith.constant 0 : i32
    %c0_i32_1 = arith.constant 0 : i32
    return %c0_i32, %c0_i32_0 : i32, i32
  }
  func.func @transform_6(%arg0: i32) -> (i32, i32) {
    %c0_i32 = arith.constant 0 : i32
    %c0_i32_0 = arith.constant 0 : i32
    %c0_i32_1 = arith.constant 0 : i32
    return %c0_i32, %c0_i32_0 : i32, i32
  }
  func.func @transform_7(%arg0: i32) -> (i32, i32) {
    %c0_i32 = arith.constant 0 : i32
    %c0_i32_0 = arith.constant 0 : i32
    %c0_i32_1 = arith.constant 0 : i32
    return %c0_i32, %c0_i32_0 : i32, i32
  }
  func.func @transform_8(%arg0: i32) -> (i32, i32) {
    %c0_i32 = arith.constant 0 : i32
    %c0_i32_0 = arith.constant 0 : i32
    %c0_i32_1 = arith.constant 0 : i32
    return %c0_i32, %c0_i32_0 : i32, i32
  }
  func.func @transform_9(%arg0: i32) -> (i32, i32) {
    %c0_i32 = arith.constant 0 : i32
    %c0_i32_0 = arith.constant 0 : i32
    %c0_i32_1 = arith.constant 0 : i32
    return %c0_i32, %c0_i32_0 : i32, i32
  }
  func.func @transform_10(%arg0: i32) -> (i32, i32) {
    %c0_i32 = arith.constant 0 : i32
    %c0_i32_0 = arith.constant 0 : i32
    %c0_i32_1 = arith.constant 0 : i32
    return %c0_i32, %c0_i32_0 : i32, i32
  }
  func.func @transform_11(%arg0: i32) -> (i32, i32) {
    %c0_i32 = arith.constant 0 : i32
    %c0_i32_0 = arith.constant 0 : i32
    %c0_i32_1 = arith.constant 0 : i32
    return %c0_i32, %c0_i32_0 : i32, i32
  }
  func.func @transform_12(%arg0: i32) -> (i32, i32) {
    %c0_i32 = arith.constant 0 : i32
    %c0_i32_0 = arith.constant 0 : i32
    %c0_i32_1 = arith.constant 0 : i32
    return %c0_i32, %c0_i32_0 : i32, i32
  }
  func.func @transform_13(%arg0: i32) -> (i32, i32, i32) {
    %c0_i32 = arith.constant 0 : i32
    %c0_i32_0 = arith.constant 0 : i32
    %c0_i32_1 = arith.constant 0 : i32
    %c0_i32_2 = arith.constant 0 : i32
    return %c0_i32, %c0_i32_0, %c0_i32_1 : i32, i32, i32
  }
  func.func @transform_14(%arg0: i32) -> (i32, i32, i32) {
    %c0_i32 = arith.constant 0 : i32
    %c0_i32_0 = arith.constant 0 : i32
    %c0_i32_1 = arith.constant 0 : i32
    %c0_i32_2 = arith.constant 0 : i32
    return %c0_i32, %c0_i32_0, %c0_i32_1 : i32, i32, i32
  }
  func.func @transform_15(%arg0: i32) -> (i32, i32, i32) {
    %c0_i32 = arith.constant 0 : i32
    %c0_i32_0 = arith.constant 0 : i32
    %c0_i32_1 = arith.constant 0 : i32
    %c0_i32_2 = arith.constant 0 : i32
    return %c0_i32, %c0_i32_0, %c0_i32_1 : i32, i32, i32
  }
  func.func @transform_16(%arg0: i32) -> (i32, i32, i32) {
    %c0_i32 = arith.constant 0 : i32
    %c0_i32_0 = arith.constant 0 : i32
    %c0_i32_1 = arith.constant 0 : i32
    %c0_i32_2 = arith.constant 0 : i32
    return %c0_i32, %c0_i32_0, %c0_i32_1 : i32, i32, i32
  }
  func.func @transform_17(%arg0: i32) -> (i32, i32, i32) {
    %c0_i32 = arith.constant 0 : i32
    %c0_i32_0 = arith.constant 0 : i32
    %c0_i32_1 = arith.constant 0 : i32
    %c0_i32_2 = arith.constant 0 : i32
    return %c0_i32, %c0_i32_0, %c0_i32_1 : i32, i32, i32
  }
  func.func @transform_18(%arg0: i32) -> (i32, i32, i32) {
    %c0_i32 = arith.constant 0 : i32
    %c0_i32_0 = arith.constant 0 : i32
    %c0_i32_1 = arith.constant 0 : i32
    %c0_i32_2 = arith.constant 0 : i32
    return %c0_i32, %c0_i32_0, %c0_i32_1 : i32, i32, i32
  }
  func.func @transform_19(%arg0: i32) -> (i32, i32) {
    %c0_i32 = arith.constant 0 : i32
    %c0_i32_0 = arith.constant 0 : i32
    %c0_i32_1 = arith.constant 0 : i32
    return %c0_i32, %c0_i32_0 : i32, i32
  }
  func.func @transform_20(%arg0: i32) -> (i32, i32) {
    %c0_i32 = arith.constant 0 : i32
    %c0_i32_0 = arith.constant 0 : i32
    %c0_i32_1 = arith.constant 0 : i32
    return %c0_i32, %c0_i32_0 : i32, i32
  }
  func.func @transform_21(%arg0: i32) -> (i32, i32) {
    %c0_i32 = arith.constant 0 : i32
    %c0_i32_0 = arith.constant 0 : i32
    %c0_i32_1 = arith.constant 0 : i32
    return %c0_i32, %c0_i32_0 : i32, i32
  }
  func.func @transform_22(%arg0: i32) -> (i32, i32, i32) {
    %c0_i32 = arith.constant 0 : i32
    %c0_i32_0 = arith.constant 0 : i32
    %c0_i32_1 = arith.constant 0 : i32
    %c0_i32_2 = arith.constant 0 : i32
    return %c0_i32, %c0_i32_0, %c0_i32_1 : i32, i32, i32
  }
  func.func @transform_23(%arg0: i32) -> (i32, i32, i32) {
    %c0_i32 = arith.constant 0 : i32
    %c0_i32_0 = arith.constant 0 : i32
    %c0_i32_1 = arith.constant 0 : i32
    %c0_i32_2 = arith.constant 0 : i32
    return %c0_i32, %c0_i32_0, %c0_i32_1 : i32, i32, i32
  }
  func.func @transform_24(%arg0: i32) -> (i32, i32, i32) {
    %c0_i32 = arith.constant 0 : i32
    %c0_i32_0 = arith.constant 0 : i32
    %c0_i32_1 = arith.constant 0 : i32
    %c0_i32_2 = arith.constant 0 : i32
    return %c0_i32, %c0_i32_0, %c0_i32_1 : i32, i32, i32
  }
  func.func @transform_25(%arg0: i32) -> (i32, i32, i32) {
    %c0_i32 = arith.constant 0 : i32
    %c0_i32_0 = arith.constant 0 : i32
    %c0_i32_1 = arith.constant 0 : i32
    %c0_i32_2 = arith.constant 0 : i32
    return %c0_i32, %c0_i32_0, %c0_i32_1 : i32, i32, i32
  }
  func.func @transform_26(%arg0: i32) -> (i32, i32, i32) {
    %c0_i32 = arith.constant 0 : i32
    %c0_i32_0 = arith.constant 0 : i32
    %c0_i32_1 = arith.constant 0 : i32
    %c0_i32_2 = arith.constant 0 : i32
    return %c0_i32, %c0_i32_0, %c0_i32_1 : i32, i32, i32
  }
  func.func @transform_27(%arg0: i32) -> (i32, i32, i32) {
    %c0_i32 = arith.constant 0 : i32
    %c0_i32_0 = arith.constant 0 : i32
    %c0_i32_1 = arith.constant 0 : i32
    %c0_i32_2 = arith.constant 0 : i32
    return %c0_i32, %c0_i32_0, %c0_i32_1 : i32, i32, i32
  }
  func.func @transform_28(%arg0: i32) -> (i32, i32, i32) {
    %c0_i32 = arith.constant 0 : i32
    %c0_i32_0 = arith.constant 0 : i32
    %c0_i32_1 = arith.constant 0 : i32
    %c0_i32_2 = arith.constant 0 : i32
    return %c0_i32, %c0_i32_0, %c0_i32_1 : i32, i32, i32
  }
  func.func @transform_29(%arg0: i32) -> (i32, i32, i32) {
    %c0_i32 = arith.constant 0 : i32
    %c0_i32_0 = arith.constant 0 : i32
    %c0_i32_1 = arith.constant 0 : i32
    %c0_i32_2 = arith.constant 0 : i32
    return %c0_i32, %c0_i32_0, %c0_i32_1 : i32, i32, i32
  }
  func.func @transform_30(%arg0: i32) -> (i32, i32) {
    %c0_i32 = arith.constant 0 : i32
    %c0_i32_0 = arith.constant 0 : i32
    return %arg0, %c0_i32 : i32, i32
  }
}

</mosaic_0001>

<llo_original>
// kernel: tpu_custom_call.1
$region0: #{tpu_custom_call.1}
  #allocation0 [shape = 'u32[]', space=smem, size = 0x4, offset = 0x4, fixed_abs, tag = 'smem constant byte address 0x4 - core index']
  #allocation1 [shape = 'u32[144,128]{1,0:T(1,128)}', space=vmem, size = 0x12000, scoped, tag = 'internal scratch']
  #allocation2 [shape = 'f32[2,8,64]{2,1,0:T(8,128)}', space=vmem, size = 0x2000, scoped, tag = 'scratch operand']
  %s0 = inlined_call_operand.smem [shape: u32[31], index: -1, kind: input, shape index: {}]
  %s1 = sld [smem:[%s0]]
  %s2 = scalar_lea.smem %s0, 1
  %s3 = sld [smem:[%s2]]
  %s4 = scalar_lea.smem %s0, 2
  %s5 = sld [smem:[%s4]]
  %s6 = scalar_lea.smem %s0, 3
  %s7 = sld [smem:[%s6]]
  %s8 = scalar_lea.smem %s0, 4
  %s9 = sld [smem:[%s8]]
  %s10 = scalar_lea.smem %s0, 5
  %s11 = sld [smem:[%s10]]
  %s12 = scalar_lea.smem %s0, 6
  %s13 = sld [smem:[%s12]]
  %s14 = scalar_lea.smem %s0, 7
  %s15 = sld [smem:[%s14]]
  %s16 = scalar_lea.smem %s0, 8
  %s17 = sld [smem:[%s16]]
  %s18 = scalar_lea.smem %s0, 9
  %s19 = sld [smem:[%s18]]
  %s20 = scalar_lea.smem %s0, 10
  %s21 = sld [smem:[%s20]]
  %s22 = scalar_lea.smem %s0, 11
  %s23 = sld [smem:[%s22]]
  %s24 = scalar_lea.smem %s0, 12
  %s25 = sld [smem:[%s24]]
  %s26 = scalar_lea.smem %s0, 13
  %s27 = sld [smem:[%s26]]
  %s28 = scalar_lea.smem %s0, 14
  %s29 = sld [smem:[%s28]]
  %s30 = scalar_lea.smem %s0, 15
  %s31 = sld [smem:[%s30]]
  %s32 = scalar_lea.smem %s0, 16
  %s33 = sld [smem:[%s32]]
  %s34 = scalar_lea.smem %s0, 17
  %s35 = sld [smem:[%s34]]
  %s36 = scalar_lea.smem %s0, 18
  %s37 = sld [smem:[%s36]]
  %s38 = scalar_lea.smem %s0, 19
  %s39 = sld [smem:[%s38]]
  %s40 = scalar_lea.smem %s0, 20
  %s41 = sld [smem:[%s40]]
  %s42 = scalar_lea.smem %s0, 21
  %s43 = sld [smem:[%s42]]
  %s44 = scalar_lea.smem %s0, 22
  %s45 = sld [smem:[%s44]]
  %s46 = scalar_lea.smem %s0, 23
  %s47 = sld [smem:[%s46]]
  %s48 = scalar_lea.smem %s0, 24
  %s49 = sld [smem:[%s48]]
  %s50 = scalar_lea.smem %s0, 25
  %s51 = sld [smem:[%s50]]
  %s52 = scalar_lea.smem %s0, 26
  %s53 = sld [smem:[%s52]]
  %s54 = scalar_lea.smem %s0, 27
  %s55 = sld [smem:[%s54]]
  %s56 = scalar_lea.smem %s0, 28
  %s57 = sld [smem:[%s56]]
  %s58 = scalar_lea.smem %s0, 29
  %s59 = sld [smem:[%s58]]
  %s60 = scalar_lea.smem %s0, 30
  %s61 = sld [smem:[%s60]]
  %s62 = sld [smem:[#allocation0]]
  $region206: #{tpu_custom_call.1} parent=0
    _
  %s64 = ssub.s32 1, %s62
  %s65 = scalar_select 0, %s64, %s62
  $region1: #{tpu_custom_call.1} parent=0
    #allocation3 [shape = 'u8[8192]{0}', space=vmem, size = 0x2000, scoped, tag = 'input window, operand 0, single buffered']
    #allocation4 [shape = 's32[1]{0}', space=sflag, size = 0x4, scoped, tag = 'scoped memory for tpu_custom_call.1']
    #allocation5 [shape = 's32[1]{0}', space=sflag, size = 0x4, scoped, tag = 'scoped memory for tpu_custom_call.1']
    #allocation6 [shape = 'u8[1024]{0}', space=vmem, size = 0x400, scoped, tag = 'input window, operand 3, single buffered']
    #allocation7 [shape = 's32[1]{0}', space=sflag, size = 0x4, scoped, tag = 'scoped memory for tpu_custom_call.1']
    #allocation8 [shape = 'u8[12288]{0}', space=vmem, size = 0x3000, scoped, tag = 'input window, operand 4, single buffered']
    #allocation9 [shape = 'u8[512]{0}', space=vmem, size = 0x400, scoped, tag = 'input window, operand 5, single buffered']
    #allocation10 [shape = 's32[1]{0}', space=sflag, size = 0x4, scoped, tag = 'scoped memory for tpu_custom_call.1']
    #allocation11 [shape = 'u8[32768]{0}', space=vmem, size = 0x8000, scoped, tag = 'input window, operand 6, single buffered']
    #allocation12 [shape = 'u8[32768]{0}', space=vmem, size = 0x8000, scoped, tag = 'input window, operand 7, single buffered']
    #allocation13 [shape = 's32[1]{0}', space=sflag, size = 0x4, scoped, tag = 'scoped memory for tpu_custom_call.1']
    #allocation14 [shape = 'u8[1024]{0}', space=vmem, size = 0x400, scoped, tag = 'input window, operand 8, single buffered']
    #allocation15 [shape = 'u8[1024]{0}', space=vmem, size = 0x400, scoped, tag = 'input window, operand 9, single buffered']
    #allocation16 [shape = 's32[1]{0}', space=sflag, size = 0x4, scoped, tag = 'scoped memory for tpu_custom_call.1']
    #allocation17 [shape = 'u8[512]{0}', space=vmem, size = 0x400, scoped, tag = 'input window, operand 10, single buffered']
    #allocation18 [shape = 'u8[512]{0}', space=vmem, size = 0x400, scoped, tag = 'input window, operand 11, single buffered']
    #allocation19 [shape = 's32[1]{0}', space=sflag, size = 0x4, scoped, tag = 'scoped memory for tpu_custom_call.1']
    #allocation20 [shape = 'u8[512]{0}', space=vmem, size = 0x400, scoped, tag = 'input window, operand 12, single buffered']
    #allocation21 [shape = 'u8[294912]{0}', space=vmem, size = 0x48000, scoped, tag = 'input window, operand 13, single buffered']
    #allocation22 [shape = 's32[1]{0}', space=sflag, size = 0x4, scoped, tag = 'scoped memory for tpu_custom_call.1']
    #allocation23 [shape = 'u8[1536]{0}', space=vmem, size = 0x800, scoped, tag = 'input window, operand 16, single buffered']
    #allocation24 [shape = 'u8[1536]{0}', space=vmem, size = 0x800, scoped, tag = 'input window, operand 17, single buffered']
    #allocation25 [shape = 's32[1]{0}', space=sflag, size = 0x4, scoped, tag = 'scoped memory for tpu_custom_call.1']
    #allocation26 [shape = 'u8[1536]{0}', space=vmem, size = 0x800, scoped, tag = 'input window, operand 18, single buffered']
    #allocation27 [shape = 'u8[131072]{0}', space=vmem, size = 0x20000, scoped, tag = 'input window, operand 19, single buffered']
    #allocation28 [shape = 's32[1]{0}', space=sflag, size = 0x4, scoped, tag = 'scoped memory for tpu_custom_call.1']
    #allocation29 [shape = 'u8[2048]{0}', space=vmem, size = 0x800, scoped, tag = 'input window, operand 21, single buffered']
    #allocation30 [shape = 'u8[2048]{0}', space=vmem, size = 0x800, scoped, tag = 'input window, operand 23, single buffered']
    #allocation31 [shape = 's32[1]{0}', space=sflag, size = 0x4, scoped, tag = 'scoped memory for tpu_custom_call.1']
    #allocation32 [shape = 'u8[131072]{0}', space=vmem, size = 0x20000, scoped, tag = 'input window, operand 24, single buffered']
    #allocation33 [shape = 'u8[1024]{0}', space=vmem, size = 0x400, scoped, tag = 'output window, operand 0, single buffered']
    %66 = vsyncpa [#allocation4], 0
    %67 = vsyncpa [#allocation7], 0
    %68 = vsyncpa [#allocation10], 0
    %69 = vsyncpa [#allocation13], 0
    %70 = vsyncpa [#allocation16], 0
    %71 = vsyncpa [#allocation19], 0
    %72 = vsyncpa [#allocation22], 0
    %73 = vsyncpa [#allocation25], 0
    %74 = vsyncpa [#allocation28], 0
    %75 = vsyncpa [#allocation31], 0
    %76 = vsyncpa [#allocation5], 0
    // Predicated region
    $region2: #{tpu_custom_call.1} parent=1 // pred_check
      _
    $region3: #{tpu_custom_call.1} parent=1 // pred_check_branch
      %78 = sbr.rel (0) target = $region5
    $region4: #{tpu_custom_call.1} parent=1 // pred_region
      %s80 = ssub.s32 256, 256
      %81 = vsyncadd [#allocation4], %s80
      %s82 = sshll.u32 [#allocation3], 4
      %s83 = int_to_ptr.vmem [resolvable:$true] %s82
      %88 = dma.hbm_to_vmem [thread:$0]  %s1, 256, %s83, [#allocation4], 128, 128, 8
    $region5: #{tpu_custom_call.1} parent=1 // pred_fallthru
      _
    // Predicated region
    $region6: #{tpu_custom_call.1} parent=1 // pred_check
      _
    $region7: #{tpu_custom_call.1} parent=1 // pred_check_branch
      %90 = sbr.rel (0) target = $region9
    $region8: #{tpu_custom_call.1} parent=1 // pred_region
      _
    $region9: #{tpu_custom_call.1} parent=1 // pred_fallthru
      _
    // Predicated region
    $region10: #{tpu_custom_call.1} parent=1 // pred_check
      _
    $region11: #{tpu_custom_call.1} parent=1 // pred_check_branch
      %92 = sbr.rel (0) target = $region13
    $region12: #{tpu_custom_call.1} parent=1 // pred_region
      _
    $region13: #{tpu_custom_call.1} parent=1 // pred_fallthru
      _
    // Predicated region
    $region14: #{tpu_custom_call.1} parent=1 // pred_check
      _
    $region15: #{tpu_custom_call.1} parent=1 // pred_check_branch
      %94 = sbr.rel (0) target = $region17
    $region16: #{tpu_custom_call.1} parent=1 // pred_region
      %s96 = ssub.s32 32, 32
      %97 = vsyncadd [#allocation7], %s96
      %s99 = sshll.u32 [#allocation6], 4
      %s100 = int_to_ptr.vmem [resolvable:$true] %s99
      %102 = dma.hbm_to_vmem [thread:$0]  %s7, 32, %s100, [#allocation7]
    $region17: #{tpu_custom_call.1} parent=1 // pred_fallthru
      _
    // Predicated region
    $region18: #{tpu_custom_call.1} parent=1 // pred_check
      _
    $region19: #{tpu_custom_call.1} parent=1 // pred_check_branch
      %104 = sbr.rel (0) target = $region21
    $region20: #{tpu_custom_call.1} parent=1 // pred_region
      %s106 = ssub.s32 384, 384
      %107 = vsyncadd [#allocation7], %s106
      %s108 = sshll.u32 [#allocation8], 4
      %s109 = int_to_ptr.vmem [resolvable:$true] %s108
      %114 = dma.hbm_to_vmem [thread:$0]  %s9, 384, %s109, [#allocation7], 128, 128, 8
    $region21: #{tpu_custom_call.1} parent=1 // pred_fallthru
      _
    // Predicated region
    $region22: #{tpu_custom_call.1} parent=1 // pred_check
      _
    $region23: #{tpu_custom_call.1} parent=1 // pred_check_branch
      %116 = sbr.rel (0) target = $region25
    $region24: #{tpu_custom_call.1} parent=1 // pred_region
      %s118 = ssub.s32 16, 16
      %119 = vsyncadd [#allocation10], %s118
      %s121 = sshll.u32 [#allocation9], 4
      %s122 = int_to_ptr.vmem [resolvable:$true] %s121
      %124 = dma.hbm_to_vmem [thread:$0]  %s11, 16, %s122, [#allocation10]
    $region25: #{tpu_custom_call.1} parent=1 // pred_fallthru
      _
    // Predicated region
    $region26: #{tpu_custom_call.1} parent=1 // pred_check
      _
    $region27: #{tpu_custom_call.1} parent=1 // pred_check_branch
      %126 = sbr.rel (0) target = $region29
    $region28: #{tpu_custom_call.1} parent=1 // pred_region
      %s128 = ssub.s32 1024, 1024
      %129 = vsyncadd [#allocation10], %s128
      %s130 = sshll.u32 [#allocation11], 4
      %s131 = int_to_ptr.vmem [resolvable:$true] %s130
      %136 = dma.hbm_to_vmem [thread:$0]  %s13, 1024, %s131, [#allocation10], 128, 128, 8
    $region29: #{tpu_custom_call.1} parent=1 // pred_fallthru
      _
    // Predicated region
    $region30: #{tpu_custom_call.1} parent=1 // pred_check
      _
    $region31: #{tpu_custom_call.1} parent=1 // pred_check_branch
      %138 = sbr.rel (0) target = $region33
    $region32: #{tpu_custom_call.1} parent=1 // pred_region
      %s140 = ssub.s32 1024, 1024
      %141 = vsyncadd [#allocation13], %s140
      %s142 = sshll.u32 [#allocation12], 4
      %s143 = int_to_ptr.vmem [resolvable:$true] %s142
      %148 = dma.hbm_to_vmem [thread:$0]  %s15, 1024, %s143, [#allocation13], 128, 128, 8
    $region33: #{tpu_custom_call.1} parent=1 // pred_fallthru
      _
    // Predicated region
    $region34: #{tpu_custom_call.1} parent=1 // pred_check
      _
    $region35: #{tpu_custom_call.1} parent=1 // pred_check_branch
      %150 = sbr.rel (0) target = $region37
    $region36: #{tpu_custom_call.1} parent=1 // pred_region
      %s152 = ssub.s32 32, 32
      %153 = vsyncadd [#allocation13], %s152
      %s155 = sshll.u32 [#allocation14], 4
      %s156 = int_to_ptr.vmem [resolvable:$true] %s155
      %158 = dma.hbm_to_vmem [thread:$0]  %s17, 32, %s156, [#allocation13]
    $region37: #{tpu_custom_call.1} parent=1 // pred_fallthru
      _
    // Predicated region
    $region38: #{tpu_custom_call.1} parent=1 // pred_check
      _
    $region39: #{tpu_custom_call.1} parent=1 // pred_check_branch
      %160 = sbr.rel (0) target = $region41
    $region40: #{tpu_custom_call.1} parent=1 // pred_region
      %s162 = ssub.s32 32, 32
      %163 = vsyncadd [#allocation16], %s162
      %s165 = sshll.u32 [#allocation15], 4
      %s166 = int_to_ptr.vmem [resolvable:$true] %s165
      %168 = dma.hbm_to_vmem [thread:$0]  %s19, 32, %s166, [#allocation16]
    $region41: #{tpu_custom_call.1} parent=1 // pred_fallthru
      _
    // Predicated region
    $region42: #{tpu_custom_call.1} parent=1 // pred_check
      _
    $region43: #{tpu_custom_call.1} parent=1 // pred_check_branch
      %170 = sbr.rel (0) target = $region45
    $region44: #{tpu_custom_call.1} parent=1 // pred_region
      %s172 = ssub.s32 16, 16
      %173 = vsyncadd [#allocation16], %s172
      %s175 = sshll.u32 [#allocation17], 4
      %s176 = int_to_ptr.vmem [resolvable:$true] %s175
      %178 = dma.hbm_to_vmem [thread:$0]  %s21, 16, %s176, [#allocation16]
    $region45: #{tpu_custom_call.1} parent=1 // pred_fallthru
      _
    // Predicated region
    $region46: #{tpu_custom_call.1} parent=1 // pred_check
      _
    $region47: #{tpu_custom_call.1} parent=1 // pred_check_branch
      %180 = sbr.rel (0) target = $region49
    $region48: #{tpu_custom_call.1} parent=1 // pred_region
      %s182 = ssub.s32 16, 16
      %183 = vsyncadd [#allocation19], %s182
      %s185 = sshll.u32 [#allocation18], 4
      %s186 = int_to_ptr.vmem [resolvable:$true] %s185
      %188 = dma.hbm_to_vmem [thread:$0]  %s23, 16, %s186, [#allocation19]
    $region49: #{tpu_custom_call.1} parent=1 // pred_fallthru
      _
    // Predicated region
    $region50: #{tpu_custom_call.1} parent=1 // pred_check
      _
    $region51: #{tpu_custom_call.1} parent=1 // pred_check_branch
      %190 = sbr.rel (0) target = $region53
    $region52: #{tpu_custom_call.1} parent=1 // pred_region
      %s192 = ssub.s32 16, 16
      %193 = vsyncadd [#allocation19], %s192
      %s195 = sshll.u32 [#allocation20], 4
      %s196 = int_to_ptr.vmem [resolvable:$true] %s195
      %198 = dma.hbm_to_vmem [thread:$0]  %s25, 16, %s196, [#allocation19]
    $region53: #{tpu_custom_call.1} parent=1 // pred_fallthru
      _
    // Predicated region
    $region54: #{tpu_custom_call.1} parent=1 // pred_check
      _
    $region55: #{tpu_custom_call.1} parent=1 // pred_check_branch
      %200 = sbr.rel (0) target = $region57
    $region56: #{tpu_custom_call.1} parent=1 // pred_region
      %s202 = ssub.s32 9216, 9216
      %203 = vsyncadd [#allocation22], %s202
      %s204 = sshll.u32 [#allocation21], 4
      %s205 = int_to_ptr.vmem [resolvable:$true] %s204
      %210 = dma.hbm_to_vmem [thread:$0]  %s27, 9216, %s205, [#allocation22], 192, 192, 12
    $region57: #{tpu_custom_call.1} parent=1 // pred_fallthru
      _
    // Predicated region
    $region58: #{tpu_custom_call.1} parent=1 // pred_check
      _
    $region59: #{tpu_custom_call.1} parent=1 // pred_check_branch
      %212 = sbr.rel (0) target = $region61
    $region60: #{tpu_custom_call.1} parent=1 // pred_region
      _
    $region61: #{tpu_custom_call.1} parent=1 // pred_fallthru
      _
    // Predicated region
    $region62: #{tpu_custom_call.1} parent=1 // pred_check
      _
    $region63: #{tpu_custom_call.1} parent=1 // pred_check_branch
      %214 = sbr.rel (0) target = $region65
    $region64: #{tpu_custom_call.1} parent=1 // pred_region
      _
    $region65: #{tpu_custom_call.1} parent=1 // pred_fallthru
      _
    // Predicated region
    $region66: #{tpu_custom_call.1} parent=1 // pred_check
      _
    $region67: #{tpu_custom_call.1} parent=1 // pred_check_branch
      %216 = sbr.rel (0) target = $region69
    $region68: #{tpu_custom_call.1} parent=1 // pred_region
      %s218 = ssub.s32 48, 48
      %219 = vsyncadd [#allocation22], %s218
      %s220 = sshll.u32 [#allocation23], 4
      %s221 = int_to_ptr.vmem [resolvable:$true] %s220
      %226 = dma.hbm_to_vmem [thread:$0]  %s33, 48, %s221, [#allocation22], 16, 16, 1
    $region69: #{tpu_custom_call.1} parent=1 // pred_fallthru
      _
    // Predicated region
    $region70: #{tpu_custom_call.1} parent=1 // pred_check
      _
    $region71: #{tpu_custom_call.1} parent=1 // pred_check_branch
      %228 = sbr.rel (0) target = $region73
    $region72: #{tpu_custom_call.1} parent=1 // pred_region
      %s230 = ssub.s32 48, 48
      %231 = vsyncadd [#allocation25], %s230
      %s232 = sshll.u32 [#allocation24], 4
      %s233 = int_to_ptr.vmem [resolvable:$true] %s232
      %238 = dma.hbm_to_vmem [thread:$0]  %s35, 48, %s233, [#allocation25], 16, 16, 1
    $region73: #{tpu_custom_call.1} parent=1 // pred_fallthru
      _
    // Predicated region
    $region74: #{tpu_custom_call.1} parent=1 // pred_check
      _
    $region75: #{tpu_custom_call.1} parent=1 // pred_check_branch
      %240 = sbr.rel (0) target = $region77
    $region76: #{tpu_custom_call.1} parent=1 // pred_region
      %s242 = ssub.s32 48, 48
      %243 = vsyncadd [#allocation25], %s242
      %s244 = sshll.u32 [#allocation26], 4
      %s245 = int_to_ptr.vmem [resolvable:$true] %s244
      %250 = dma.hbm_to_vmem [thread:$0]  %s37, 48, %s245, [#allocation25], 16, 16, 1
    $region77: #{tpu_custom_call.1} parent=1 // pred_fallthru
      _
    // Predicated region
    $region78: #{tpu_custom_call.1} parent=1 // pred_check
      _
    $region79: #{tpu_custom_call.1} parent=1 // pred_check_branch
      %252 = sbr.rel (0) target = $region81
    $region80: #{tpu_custom_call.1} parent=1 // pred_region
      %s254 = ssub.s32 4096, 4096
      %255 = vsyncadd [#allocation28], %s254
      %s256 = sshll.u32 [#allocation27], 4
      %s257 = int_to_ptr.vmem [resolvable:$true] %s256
      %262 = dma.hbm_to_vmem [thread:$0]  %s39, 4096, %s257, [#allocation28], 256, 256, 16
    $region81: #{tpu_custom_call.1} parent=1 // pred_fallthru
      _
    // Predicated region
    $region82: #{tpu_custom_call.1} parent=1 // pred_check
      _
    $region83: #{tpu_custom_call.1} parent=1 // pred_check_branch
      %264 = sbr.rel (0) target = $region85
    $region84: #{tpu_custom_call.1} parent=1 // pred_region
      _
    $region85: #{tpu_custom_call.1} parent=1 // pred_fallthru
      _
    // Predicated region
    $region86: #{tpu_custom_call.1} parent=1 // pred_check
      _
    $region87: #{tpu_custom_call.1} parent=1 // pred_check_branch
      %266 = sbr.rel (0) target = $region89
    $region88: #{tpu_custom_call.1} parent=1 // pred_region
      %s268 = ssub.s32 64, 64
      %269 = vsyncadd [#allocation28], %s268
      %s271 = sshll.u32 [#allocation29], 4
      %s272 = int_to_ptr.vmem [resolvable:$true] %s271
      %274 = dma.hbm_to_vmem [thread:$0]  %s43, 64, %s272, [#allocation28]
    $region89: #{tpu_custom_call.1} parent=1 // pred_fallthru
      _
    // Predicated region
    $region90: #{tpu_custom_call.1} parent=1 // pred_check
      _
    $region91: #{tpu_custom_call.1} parent=1 // pred_check_branch
      %276 = sbr.rel (0) target = $region93
    $region92: #{tpu_custom_call.1} parent=1 // pred_region
      _
    $region93: #{tpu_custom_call.1} parent=1 // pred_fallthru
      _
    // Predicated region
    $region94: #{tpu_custom_call.1} parent=1 // pred_check
      _
    $region95: #{tpu_custom_call.1} parent=1 // pred_check_branch
      %278 = sbr.rel (0) target = $region97
    $region96: #{tpu_custom_call.1} parent=1 // pred_region
      %s280 = ssub.s32 64, 64
      %281 = vsyncadd [#allocation31], %s280
      %s282 = sshll.u32 [#allocation30], 4
      %s283 = int_to_ptr.vmem [resolvable:$true] %s282
      %288 = dma.hbm_to_vmem [thread:$0]  %s47, 64, %s283, [#allocation31], 32, 32, 2
    $region97: #{tpu_custom_call.1} parent=1 // pred_fallthru
      _
    // Predicated region
    $region98: #{tpu_custom_call.1} parent=1 // pred_check
      _
    $region99: #{tpu_custom_call.1} parent=1 // pred_check_branch
      %290 = sbr.rel (0) target = $region101
    $region100: #{tpu_custom_call.1} parent=1 // pred_region
      %s292 = ssub.s32 4096, 4096
      %293 = vsyncadd [#allocation31], %s292
      %s294 = sshll.u32 [#allocation32], 4
      %s295 = int_to_ptr.vmem [resolvable:$true] %s294
      %300 = dma.hbm_to_vmem [thread:$0]  %s49, 4096, %s295, [#allocation31], 64, 64, 4
    $region101: #{tpu_custom_call.1} parent=1 // pred_fallthru
      _
    // Predicated region
    $region102: #{tpu_custom_call.1} parent=1 // pred_check
      _
    $region103: #{tpu_custom_call.1} parent=1 // pred_check_branch
      %302 = sbr.rel (0) target = $region105
    $region104: #{tpu_custom_call.1} parent=1 // pred_region
      _
    $region105: #{tpu_custom_call.1} parent=1 // pred_fallthru
      _
    // Predicated region
    $region106: #{tpu_custom_call.1} parent=1 // pred_check
      _
    $region107: #{tpu_custom_call.1} parent=1 // pred_check_branch
      %304 = sbr.rel (0) target = $region109
    $region108: #{tpu_custom_call.1} parent=1 // pred_region
      _
    $region109: #{tpu_custom_call.1} parent=1 // pred_fallthru
      _
    // Predicated region
    $region110: #{tpu_custom_call.1} parent=1 // pred_check
      _
    $region111: #{tpu_custom_call.1} parent=1 // pred_check_branch
      %306 = sbr.rel (0) target = $region113
    $region112: #{tpu_custom_call.1} parent=1 // pred_region
      _
    $region113: #{tpu_custom_call.1} parent=1 // pred_fallthru
      _
    // Predicated region
    $region114: #{tpu_custom_call.1} parent=1 // pred_check
      _
    $region115: #{tpu_custom_call.1} parent=1 // pred_check_branch
      %308 = sbr.rel (0) target = $region117
    $region116: #{tpu_custom_call.1} parent=1 // pred_region
      _
    $region117: #{tpu_custom_call.1} parent=1 // pred_fallthru
      _
    // Predicated region
    $region118: #{tpu_custom_call.1} parent=1 // pred_check
      _
    $region119: #{tpu_custom_call.1} parent=1 // pred_check_branch
      %310 = sbr.rel (0) target = $region121
    $region120: #{tpu_custom_call.1} parent=1 // pred_region
      _
    $region121: #{tpu_custom_call.1} parent=1 // pred_fallthru
      _
    // Predicated region
    $region122: #{tpu_custom_call.1} parent=1 // pred_check
      _
    $region123: #{tpu_custom_call.1} parent=1 // pred_check_branch
      %312 = sbr.rel (0) target = $region125
    $region124: #{tpu_custom_call.1} parent=1 // pred_region
      %313 = dma.done [#allocation4], 256
    $region125: #{tpu_custom_call.1} parent=1 // pred_fallthru
      _
    // Predicated region
    $region126: #{tpu_custom_call.1} parent=1 // pred_check
      _
    $region127: #{tpu_custom_call.1} parent=1 // pred_check_branch
      %315 = sbr.rel (0) target = $region129
    $region128: #{tpu_custom_call.1} parent=1 // pred_region
      %316 = dma.done [#allocation7], 32
    $region129: #{tpu_custom_call.1} parent=1 // pred_fallthru
      _
    // Predicated region
    $region130: #{tpu_custom_call.1} parent=1 // pred_check
      _
    $region131: #{tpu_custom_call.1} parent=1 // pred_check_branch
      %318 = sbr.rel (0) target = $region133
    $region132: #{tpu_custom_call.1} parent=1 // pred_region
      %319 = dma.done [#allocation7], 384
    $region133: #{tpu_custom_call.1} parent=1 // pred_fallthru
      _
    // Predicated region
    $region134: #{tpu_custom_call.1} parent=1 // pred_check
      _
    $region135: #{tpu_custom_call.1} parent=1 // pred_check_branch
      %321 = sbr.rel (0) target = $region137
    $region136: #{tpu_custom_call.1} parent=1 // pred_region
      %322 = dma.done [#allocation10], 16
    $region137: #{tpu_custom_call.1} parent=1 // pred_fallthru
      _
    // Predicated region
    $region138: #{tpu_custom_call.1} parent=1 // pred_check
      _
    $region139: #{tpu_custom_call.1} parent=1 // pred_check_branch
      %324 = sbr.rel (0) target = $region141
    $region140: #{tpu_custom_call.1} parent=1 // pred_region
      %325 = dma.done [#allocation10], 1024
    $region141: #{tpu_custom_call.1} parent=1 // pred_fallthru
      _
    // Predicated region
    $region142: #{tpu_custom_call.1} parent=1 // pred_check
      _
    $region143: #{tpu_custom_call.1} parent=1 // pred_check_branch
      %327 = sbr.rel (0) target = $region145
    $region144: #{tpu_custom_call.1} parent=1 // pred_region
      %328 = dma.done [#allocation13], 1024
    $region145: #{tpu_custom_call.1} parent=1 // pred_fallthru
      _
    // Predicated region
    $region146: #{tpu_custom_call.1} parent=1 // pred_check
      _
    $region147: #{tpu_custom_call.1} parent=1 // pred_check_branch
      %330 = sbr.rel (0) target = $region149
    $region148: #{tpu_custom_call.1} parent=1 // pred_region
      %331 = dma.done [#allocation13], 32
    $region149: #{tpu_custom_call.1} parent=1 // pred_fallthru
      _
    // Predicated region
    $region150: #{tpu_custom_call.1} parent=1 // pred_check
      _
    $region151: #{tpu_custom_call.1} parent=1 // pred_check_branch
      %333 = sbr.rel (0) target = $region153
    $region152: #{tpu_custom_call.1} parent=1 // pred_region
      %334 = dma.done [#allocation16], 32
    $region153: #{tpu_custom_call.1} parent=1 // pred_fallthru
      _
    // Predicated region
    $region154: #{tpu_custom_call.1} parent=1 // pred_check
      _
    $region155: #{tpu_custom_call.1} parent=1 // pred_check_branch
      %336 = sbr.rel (0) target = $region157
    $region156: #{tpu_custom_call.1} parent=1 // pred_region
      %337 = dma.done [#allocation16], 16
    $region157: #{tpu_custom_call.1} parent=1 // pred_fallthru
      _
    // Predicated region
    $region158: #{tpu_custom_call.1} parent=1 // pred_check
      _
    $region159: #{tpu_custom_call.1} parent=1 // pred_check_branch
      %339 = sbr.rel (0) target = $region161
    $region160: #{tpu_custom_call.1} parent=1 // pred_region
      %340 = dma.done [#allocation19], 16
    $region161: #{tpu_custom_call.1} parent=1 // pred_fallthru
      _
    // Predicated region
    $region162: #{tpu_custom_call.1} parent=1 // pred_check
      _
    $region163: #{tpu_custom_call.1} parent=1 // pred_check_branch
      %342 = sbr.rel (0) target = $region165
    $region164: #{tpu_custom_call.1} parent=1 // pred_region
      %343 = dma.done [#allocation19], 16
    $region165: #{tpu_custom_call.1} parent=1 // pred_fallthru
      _
    // Predicated region
    $region166: #{tpu_custom_call.1} parent=1 // pred_check
      _
    $region167: #{tpu_custom_call.1} parent=1 // pred_check_branch
      %345 = sbr.rel (0) target = $region169
    $region168: #{tpu_custom_call.1} parent=1 // pred_region
      %346 = dma.done [#allocation22], 9216
    $region169: #{tpu_custom_call.1} parent=1 // pred_fallthru
      _
    // Predicated region
    $region170: #{tpu_custom_call.1} parent=1 // pred_check
      _
    $region171: #{tpu_custom_call.1} parent=1 // pred_check_branch
      %348 = sbr.rel (0) target = $region173
    $region172: #{tpu_custom_call.1} parent=1 // pred_region
      %349 = dma.done [#allocation22], 48
    $region173: #{tpu_custom_call.1} parent=1 // pred_fallthru
      _
    // Predicated region
    $region174: #{tpu_custom_call.1} parent=1 // pred_check
      _
    $region175: #{tpu_custom_call.1} parent=1 // pred_check_branch
      %351 = sbr.rel (0) target = $region177
    $region176: #{tpu_custom_call.1} parent=1 // pred_region
      %352 = dma.done [#allocation25], 48
    $region177: #{tpu_custom_call.1} parent=1 // pred_fallthru
      _
    // Predicated region
    $region178: #{tpu_custom_call.1} parent=1 // pred_check
      _
    $region179: #{tpu_custom_call.1} parent=1 // pred_check_branch
      %354 = sbr.rel (0) target = $region181
    $region180: #{tpu_custom_call.1} parent=1 // pred_region
      %355 = dma.done [#allocation25], 48
    $region181: #{tpu_custom_call.1} parent=1 // pred_fallthru
      _
    // Predicated region
    $region182: #{tpu_custom_call.1} parent=1 // pred_check
      _
    $region183: #{tpu_custom_call.1} parent=1 // pred_check_branch
      %357 = sbr.rel (0) target = $region185
    $region184: #{tpu_custom_call.1} parent=1 // pred_region
      %358 = dma.done [#allocation28], 4096
    $region185: #{tpu_custom_call.1} parent=1 // pred_fallthru
      _
    // Predicated region
    $region186: #{tpu_custom_call.1} parent=1 // pred_check
      _
    $region187: #{tpu_custom_call.1} parent=1 // pred_check_branch
      %360 = sbr.rel (0) target = $region189
    $region188: #{tpu_custom_call.1} parent=1 // pred_region
      %361 = dma.done [#allocation28], 64
    $region189: #{tpu_custom_call.1} parent=1 // pred_fallthru
      _
    // Predicated region
    $region190: #{tpu_custom_call.1} parent=1 // pred_check
      _
    $region191: #{tpu_custom_call.1} parent=1 // pred_check_branch
      %363 = sbr.rel (0) target = $region193
    $region192: #{tpu_custom_call.1} parent=1 // pred_region
      %364 = dma.done [#allocation31], 64
    $region193: #{tpu_custom_call.1} parent=1 // pred_fallthru
      _
    // Predicated region
    $region194: #{tpu_custom_call.1} parent=1 // pred_check
      _
    $region195: #{tpu_custom_call.1} parent=1 // pred_check_branch
      %366 = sbr.rel (0) target = $region197
    $region196: #{tpu_custom_call.1} parent=1 // pred_region
      %367 = dma.done [#allocation31], 4096
    $region197: #{tpu_custom_call.1} parent=1 // pred_fallthru
      _
    %v369 = vld [vmem:[#allocation3] sm:$0xff]
    %v370 = vld [vmem:[#allocation3 + $0x8] sm:$0xff]
    %v371 = vld [vmem:[#allocation8] sm:$0xff]
    %v372 = vld [vmem:[#allocation8 + $0x8] sm:$0xff]
    %v373 = vld [vmem:[#allocation8 + $0x10] sm:$0x33]
    %v374 = vpack.c.bf16 %v370, %v369
    %v378 = vunpack.c.l.b16 %v371
    %v379 = vunpack.c.h.b16 %v371
    %v380 = vunpack.c.l.b16 %v372
    %v381 = vunpack.c.h.b16 %v372
    %v382 = vunpack.c.l.b16 %v373
    %v383 = vunpack.c.h.b16 %v373
    %v384 = vpack.c.b16 %v380, %v378
    %v385 = vpack.c.b16 %v381, %v379
    %v386 = vpack.c.b16 %v382, %v382
    %v387 = vpack.c.b16 %v383, %v383
    %vm390 = vcmask 162816
    %v392 = vsel %vm390, %v374, 0
    %vm394 = vcmask 1041408
    %v396 = vsel %vm394, %v386, 0
    %v399 = vsel %vm394, %v387, 0
    %401 = vmatprep.subr.bf16.mxu0 0
    %402 = vmatpush1.bf16.msra.mxu0 0
    %403 = vmatprep.subr.bf16.mxu0 0
    %404 = vmatpush1.bf16.msra.mxu0 0
    %405 = vmatprep.subr.bf16.mxu0 0
    %406 = vmatpush1.bf16.msra.mxu0 0
    %407 = vmatprep.subr.bf16.mxu0 0
    %408 = vmatpush1.bf16.msra.mxu0 0
    %409 = vmatprep.subr.bf16.mxu0 0
    %410 = vmatpush1.bf16.msra.mxu0 0
    %411 = vmatprep.subr.bf16.mxu0 0
    %412 = vmatpush1.bf16.msra.mxu0 0
    %413 = vmatprep.subr.bf16.mxu0 %v399
    %414 = vmatpush1.bf16.msra.mxu0 %v396
    %415 = vmatprep.subr.bf16.mxu0 %v385
    %416 = vmatpush1.bf16.msra.mxu0 %v384
    %417 = vmatprep.subr.bf16.mxu0 0
    %418 = vmatpush2.bf16.msra.mxu0 0
    %419 = vmatprep.subr.bf16.mxu0 0
    %420 = vmatpush2.bf16.msra.mxu0 0
    %421 = vmatprep.subr.bf16.mxu0 0
    %422 = vmatpush2.bf16.msra.mxu0 0
    %423 = vmatprep.subr.bf16.mxu0 0
    %424 = vmatpush2.bf16.msra.mxu0 0
    %425 = vmatprep.subr.bf16.mxu0 0
    %426 = vmatpush2.bf16.msra.mxu0 0
    %427 = vmatprep.subr.bf16.mxu0 0
    %428 = vmatpush2.bf16.msra.mxu0 0
    %429 = vmatprep.subr.bf16.mxu0 0
    %430 = vmatpush2.bf16.msra.mxu0 0
    %431 = vmatprep.subr.bf16.mxu0 0
    %432 = vmatpush2.bf16.msra.mxu0 0
    %433 = vmatprep.mubr.bf16.mxu0 0
    %434 = vmatmul.mubr.bf16.gmra.mxu0 %v392
    %v435 = vpop.f32.mrf.mxu0
    %v436 = vadd.f32 0.0, %v435
    %v437 = vpop.f32.mrf.mxu0
    %v438 = vadd.f32 0.0, %v437
    %v439 = vpop.f32.mrf.mxu0
    %v440 = vadd.f32 0.0, %v439
    %v441 = vpop.f32.mrf.mxu0
    %v442 = vadd.f32 0.0, %v441
    %443 = vdwg.mxu0
    %v444 = vlaneseq
    %v445 = vshrl.u32 %v444, 7
    %vm446 = vcmp.eq.s32.totalorder %v445, 0
    %v447 = vrot.slane %v436, 7
    %v448 = vrot.slane %v440, 7
    %vm449 = vcmp.lt.s32.totalorder %v445, 1
    %v450 = vsel %vm449, %v447, %v448
    %v451 = vsel %vm449, %v448, %v447
    %v452 = vsel %vm446, 0.0, %v451
    %v453 = vsel %vm446, 0.0, %v450
    %vm454 = vcmp.eq.s32.totalorder %v445, 7
    %v455 = vrot.slane %v438, 1
    %v456 = vrot.slane %v442, 1
    %vm457 = vcmp.lt.s32.totalorder %v445, 7
    %v458 = vsel %vm457, %v455, %v456
    %v459 = vsel %vm457, %v456, %v455
    %v460 = vsel %vm454, 0.0, %v458
    %v461 = vsel %vm454, 0.0, %v459
    %464 = vrot.lane.b32.xlu0 %v436, 64
    %v465 = vpop.permute.xlu0 %464
    %466 = vrot.lane.b32.xlu0 %v440, 64
    %v467 = vpop.permute.xlu0 %466
    %v470 = vadd.f32 %v452, %v465
    %v471 = vadd.f32 %v453, %v467
    %v472 = vadd.f32 %v470, %v460
    %v473 = vadd.f32 %v471, %v461
    %v474 = vld [vmem:[#allocation9] sm:$0x1]
    %v476 = vlaneseq
    %v477 = vshrl.u32 %v476, 7
    %v478 = vsub.s32 0, %v477
    %v479 = vrot.slane %v474, %v478
    %v481 = vadd.f32 %v472, %v479
    %v482 = vadd.f32 %v473, %v479
    %v483 = vmax.f32 %v481, 0.0
    %v484 = vmax.f32 %v482, 0.0
    %v485 = vld [vmem:[#allocation11] sm:$0xff]
    %v486 = vld [vmem:[#allocation11 + $0x8] sm:$0xff]
    %v487 = vld [vmem:[#allocation11 + $0x10] sm:$0xff]
    %v488 = vld [vmem:[#allocation11 + $0x18] sm:$0xff]
    %v489 = vld [vmem:[#allocation11 + $0x20] sm:$0xff]
    %v490 = vld [vmem:[#allocation11 + $0x28] sm:$0xff]
    %v491 = vld [vmem:[#allocation11 + $0x30] sm:$0xff]
    %v492 = vld [vmem:[#allocation11 + $0x38] sm:$0xff]
    %v493 = vpack.c.bf16 %v484, %v483
    %v494 = vld [vmem:[#allocation14] sm:$0x3]
    %v496 = vlaneseq
    %v497 = vshrl.u32 %v496, 7
    %v498 = vsub.s32 0, %v497
    %v499 = vrot.slane %v494, %v498
    %v500 = vlaneseq
    %v501 = vshrl.u32 %v500, 7
    %v502 = vsub.s32 1, %v501
    %v503 = vrot.slane %v494, %v502
    %v514 = vunpack.c.l.b16 %v485
    %v515 = vunpack.c.h.b16 %v485
    %v516 = vunpack.c.l.b16 %v486
    %v517 = vunpack.c.h.b16 %v486
    %v518 = vunpack.c.l.b16 %v487
    %v519 = vunpack.c.h.b16 %v487
    %v520 = vunpack.c.l.b16 %v488
    %v521 = vunpack.c.h.b16 %v488
    %v522 = vunpack.c.l.b16 %v489
    %v523 = vunpack.c.h.b16 %v489
    %v524 = vunpack.c.l.b16 %v490
    %v525 = vunpack.c.h.b16 %v490
    %v526 = vunpack.c.l.b16 %v491
    %v527 = vunpack.c.h.b16 %v491
    %v528 = vunpack.c.l.b16 %v492
    %v529 = vunpack.c.h.b16 %v492
    %v530 = vpack.c.b16 %v516, %v514
    %v531 = vpack.c.b16 %v517, %v515
    %v532 = vpack.c.b16 %v520, %v518
    %v533 = vpack.c.b16 %v521, %v519
    %v534 = vpack.c.b16 %v524, %v522
    %v535 = vpack.c.b16 %v525, %v523
    %v536 = vpack.c.b16 %v528, %v526
    %v537 = vpack.c.b16 %v529, %v527
    %vm546 = vcmask 523264
    %v548 = vsel %vm546, %v493, 0
    %550 = vmatprep.subr.bf16.mxu0 0
    %551 = vmatpush1.bf16.msra.mxu0 0
    %552 = vmatprep.subr.bf16.mxu0 0
    %553 = vmatpush1.bf16.msra.mxu0 0
    %554 = vmatprep.subr.bf16.mxu0 0
    %555 = vmatpush1.bf16.msra.mxu0 0
    %556 = vmatprep.subr.bf16.mxu0 0
    %557 = vmatpush1.bf16.msra.mxu0 0
    %558 = vmatprep.subr.bf16.mxu0 %v537
    %559 = vmatpush1.bf16.msra.mxu0 %v536
    %560 = vmatprep.subr.bf16.mxu0 %v535
    %561 = vmatpush1.bf16.msra.mxu0 %v534
    %562 = vmatprep.subr.bf16.mxu0 %v533
    %563 = vmatpush1.bf16.msra.mxu0 %v532
    %564 = vmatprep.subr.bf16.mxu0 %v531
    %565 = vmatpush1.bf16.msra.mxu0 %v530
    %566 = vmatprep.subr.bf16.mxu0 0
    %567 = vmatpush2.bf16.msra.mxu0 0
    %568 = vmatprep.subr.bf16.mxu0 0
    %569 = vmatpush2.bf16.msra.mxu0 0
    %570 = vmatprep.subr.bf16.mxu0 0
    %571 = vmatpush2.bf16.msra.mxu0 0
    %572 = vmatprep.subr.bf16.mxu0 0
    %573 = vmatpush2.bf16.msra.mxu0 0
    %574 = vmatprep.subr.bf16.mxu0 0
    %575 = vmatpush2.bf16.msra.mxu0 0
    %576 = vmatprep.subr.bf16.mxu0 0
    %577 = vmatpush2.bf16.msra.mxu0 0
    %578 = vmatprep.subr.bf16.mxu0 0
    %579 = vmatpush2.bf16.msra.mxu0 0
    %580 = vmatprep.subr.bf16.mxu0 0
    %581 = vmatpush2.bf16.msra.mxu0 0
    %582 = vmatprep.mubr.bf16.mxu0 0
    %583 = vmatmul.mubr.bf16.gmra.mxu0 %v548
    %v584 = vpop.f32.mrf.mxu0
    %v585 = vadd.f32 %v499, %v584
    %v586 = vpop.f32.mrf.mxu0
    %v587 = vadd.f32 %v503, %v586
    %v588 = vpop.f32.mrf.mxu0
    %v589 = vadd.f32 %v499, %v588
    %v590 = vpop.f32.mrf.mxu0
    %v591 = vadd.f32 %v503, %v590
    %592 = vdwg.mxu0
    %v593 = vld [vmem:[#allocation12] sm:$0xff]
    %v594 = vld [vmem:[#allocation12 + $0x8] sm:$0xff]
    %v595 = vld [vmem:[#allocation12 + $0x10] sm:$0xff]
    %v596 = vld [vmem:[#allocation12 + $0x18] sm:$0xff]
    %v597 = vld [vmem:[#allocation12 + $0x20] sm:$0xff]
    %v598 = vld [vmem:[#allocation12 + $0x28] sm:$0xff]
    %v599 = vld [vmem:[#allocation12 + $0x30] sm:$0xff]
    %v600 = vld [vmem:[#allocation12 + $0x38] sm:$0xff]
    %v609 = vunpack.c.l.b16 %v593
    %v610 = vunpack.c.h.b16 %v593
    %v611 = vunpack.c.l.b16 %v594
    %v612 = vunpack.c.h.b16 %v594
    %v613 = vunpack.c.l.b16 %v595
    %v614 = vunpack.c.h.b16 %v595
    %v615 = vunpack.c.l.b16 %v596
    %v616 = vunpack.c.h.b16 %v596
    %v617 = vunpack.c.l.b16 %v597
    %v618 = vunpack.c.h.b16 %v597
    %v619 = vunpack.c.l.b16 %v598
    %v620 = vunpack.c.h.b16 %v598
    %v621 = vunpack.c.l.b16 %v599
    %v622 = vunpack.c.h.b16 %v599
    %v623 = vunpack.c.l.b16 %v600
    %v624 = vunpack.c.h.b16 %v600
    %v625 = vpack.c.b16 %v611, %v609
    %v626 = vpack.c.b16 %v612, %v610
    %v627 = vpack.c.b16 %v615, %v613
    %v628 = vpack.c.b16 %v616, %v614
    %v629 = vpack.c.b16 %v619, %v617
    %v630 = vpack.c.b16 %v620, %v618
    %v631 = vpack.c.b16 %v623, %v621
    %v632 = vpack.c.b16 %v624, %v622
    %v642 = vsel %vm546, 0, 0
    %644 = vmatprep.subr.bf16.mxu0 0
    %645 = vmatpush1.bf16.msra.mxu0 0
    %646 = vmatprep.subr.bf16.mxu0 0
    %647 = vmatpush1.bf16.msra.mxu0 0
    %648 = vmatprep.subr.bf16.mxu0 0
    %649 = vmatpush1.bf16.msra.mxu0 0
    %650 = vmatprep.subr.bf16.mxu0 0
    %651 = vmatpush1.bf16.msra.mxu0 0
    %652 = vmatprep.subr.bf16.mxu0 %v632
    %653 = vmatpush1.bf16.msra.mxu0 %v631
    %654 = vmatprep.subr.bf16.mxu0 %v630
    %655 = vmatpush1.bf16.msra.mxu0 %v629
    %656 = vmatprep.subr.bf16.mxu0 %v628
    %657 = vmatpush1.bf16.msra.mxu0 %v627
    %658 = vmatprep.subr.bf16.mxu0 %v626
    %659 = vmatpush1.bf16.msra.mxu0 %v625
    %660 = vmatprep.subr.bf16.mxu0 0
    %661 = vmatpush2.bf16.msra.mxu0 0
    %662 = vmatprep.subr.bf16.mxu0 0
    %663 = vmatpush2.bf16.msra.mxu0 0
    %664 = vmatprep.subr.bf16.mxu0 0
    %665 = vmatpush2.bf16.msra.mxu0 0
    %666 = vmatprep.subr.bf16.mxu0 0
    %667 = vmatpush2.bf16.msra.mxu0 0
    %668 = vmatprep.subr.bf16.mxu0 0
    %669 = vmatpush2.bf16.msra.mxu0 0
    %670 = vmatprep.subr.bf16.mxu0 0
    %671 = vmatpush2.bf16.msra.mxu0 0
    %672 = vmatprep.subr.bf16.mxu0 0
    %673 = vmatpush2.bf16.msra.mxu0 0
    %674 = vmatprep.subr.bf16.mxu0 0
    %675 = vmatpush2.bf16.msra.mxu0 0
    %676 = vmatprep.mubr.bf16.mxu0 0
    %677 = vmatmul.mubr.bf16.gmra.mxu0 %v642
    %v678 = vpop.f32.mrf.mxu0
    %v679 = vadd.f32 0.0, %v678
    %v680 = vpop.f32.mrf.mxu0
    %v681 = vadd.f32 0.0, %v680
    %v682 = vpop.f32.mrf.mxu0
    %v683 = vpop.f32.mrf.mxu0
    %684 = vdwg.mxu0
    %v687 = vrot.slane %v679, 1
    %v688 = vrot.slane %v681, 1
    %v693 = vadd.f32 %v585, %v679
    %v694 = vadd.f32 %v587, %v681
    %v695 = vadd.f32 %v589, %v687
    %v696 = vadd.f32 %v591, %v688
    %v697 = vxor.u32 %v693, 2147483648
    %v698 = vxor.u32 %v694, 2147483648
    %v699 = vxor.u32 %v695, 2147483648
    %v700 = vxor.u32 %v696, 2147483648
    %v701 = vmul.f32 %v697, 1.442695
    %v702 = vpow.pop %v701
    %v703 = vmul.f32 %v698, 1.442695
    %v704 = vpow.pop %v703
    %v705 = vmul.f32 %v699, 1.442695
    %v706 = vpow.pop %v705
    %v707 = vmul.f32 %v700, 1.442695
    %v708 = vpow.pop %v707
    %v709 = vadd.f32 %v702, 1.0
    %v710 = vadd.f32 %v704, 1.0
    %v711 = vadd.f32 %v706, 1.0
    %v712 = vadd.f32 %v708, 1.0
    %v713 = vrcp.pop %v709
    %v714 = vmul.f32 1.0, %v713
    %v715 = vrcp.pop %v710
    %v716 = vmul.f32 1.0, %v715
    %v717 = vrcp.pop %v711
    %v718 = vmul.f32 1.0, %v717
    %v719 = vrcp.pop %v712
    %v720 = vmul.f32 1.0, %v719
    %v721 = vtanh.pop %v694
    %v722 = vtanh.pop %v696
    %v723 = vmul.f32 %v714, 0.0
    %v724 = vmul.f32 %v718, 0.0
    %727 = vrot.lane.b32.xlu0 %v721, 64
    %v728 = vpop.permute.xlu0 %727
    %729 = vrot.lane.b32.xlu0 %v722, 64
    %v730 = vpop.permute.xlu0 %729
    %v733 = vmul.f32 %v714, %v728
    %v734 = vmul.f32 %v718, %v730
    %737 = vrot.lane.b32.xlu0 %v733, 64
    %v738 = vpop.permute.xlu0 %737
    %739 = vrot.lane.b32.xlu0 %v734, 64
    %v740 = vpop.permute.xlu0 %739
    %v743 = vadd.f32 %v723, %v738
    %v744 = vadd.f32 %v724, %v740
    %v745 = vtanh.pop %v743
    %v746 = vtanh.pop %v744
    %749 = vrot.lane.b32.xlu0 %v745, 64
    %v750 = vpop.permute.xlu0 %749
    %751 = vrot.lane.b32.xlu0 %v746, 64
    %v752 = vpop.permute.xlu0 %751
    %v755 = vmul.f32 %v716, %v750
    %v756 = vmul.f32 %v720, %v752
    %vm757 = vcmask 516096
    %758 = vst.msk [vmem:[#allocation2] sm:$0x1] %vm757, %v755
    %759 = vst.msk [vmem:[#allocation2 + $0x8] sm:$0x1] %vm757, %v756
    %v760 = vpack.c.bf16 %v755, %v755
    %v761 = vpack.c.bf16 %v756, %v756
    %v764 = vunpack.c.l.b16 %v760
    %v765 = vunpack.c.l.b16 %v761
    %v766 = vrot.slane %v765, 7
    %vm767 = vcmask 1041409
    %v768 = vsel %vm767, %v766, %v764
    %v769 = vpack.c.b16 %v768, %v768
    %v771 = vsel %vm546, %v769, 0
    %773 = vmatprep.subr.bf16.mxu0 0
    %774 = vmatpush1.bf16.msra.mxu0 0
    %775 = vmatprep.subr.bf16.mxu0 0
    %776 = vmatpush1.bf16.msra.mxu0 0
    %777 = vmatprep.subr.bf16.mxu0 0
    %778 = vmatpush1.bf16.msra.mxu0 0
    %779 = vmatprep.subr.bf16.mxu0 0
    %780 = vmatpush1.bf16.msra.mxu0 0
    %781 = vmatprep.subr.bf16.mxu0 %v632
    %782 = vmatpush1.bf16.msra.mxu0 %v631
    %783 = vmatprep.subr.bf16.mxu0 %v630
    %784 = vmatpush1.bf16.msra.mxu0 %v629
    %785 = vmatprep.subr.bf16.mxu0 %v628
    %786 = vmatpush1.bf16.msra.mxu0 %v627
    %787 = vmatprep.subr.bf16.mxu0 %v626
    %788 = vmatpush1.bf16.msra.mxu0 %v625
    %789 = vmatprep.subr.bf16.mxu0 0
    %790 = vmatpush2.bf16.msra.mxu0 0
    %791 = vmatprep.subr.bf16.mxu0 0
    %792 = vmatpush2.bf16.msra.mxu0 0
    %793 = vmatprep.subr.bf16.mxu0 0
    %794 = vmatpush2.bf16.msra.mxu0 0
    %795 = vmatprep.subr.bf16.mxu0 0
    %796 = vmatpush2.bf16.msra.mxu0 0
    %797 = vmatprep.subr.bf16.mxu0 0
    %798 = vmatpush2.bf16.msra.mxu0 0
    %799 = vmatprep.subr.bf16.mxu0 0
    %800 = vmatpush2.bf16.msra.mxu0 0
    %801 = vmatprep.subr.bf16.mxu0 0
    %802 = vmatpush2.bf16.msra.mxu0 0
    %803 = vmatprep.subr.bf16.mxu0 0
    %804 = vmatpush2.bf16.msra.mxu0 0
    %805 = vmatprep.mubr.bf16.mxu0 0
    %806 = vmatmul.mubr.bf16.gmra.mxu0 %v771
    %v807 = vpop.f32.mrf.mxu0
    %v808 = vadd.f32 0.0, %v807
    %v809 = vpop.f32.mrf.mxu0
    %v810 = vadd.f32 0.0, %v809
    %v811 = vpop.f32.mrf.mxu0
    %v812 = vpop.f32.mrf.mxu0
    %813 = vdwg.mxu0
    %v816 = vrot.slane %v808, 7
    %v817 = vrot.slane %v810, 7
    %v822 = vadd.f32 %v585, %v816
    %v823 = vadd.f32 %v587, %v817
    %v824 = vadd.f32 %v589, %v808
    %v825 = vadd.f32 %v591, %v810
    %v826 = vxor.u32 %v822, 2147483648
    %v827 = vxor.u32 %v823, 2147483648
    %v828 = vxor.u32 %v824, 2147483648
    %v829 = vxor.u32 %v825, 2147483648
    %v830 = vmul.f32 %v826, 1.442695
    %v831 = vpow.pop %v830
    %v832 = vmul.f32 %v827, 1.442695
    %v833 = vpow.pop %v832
    %v834 = vmul.f32 %v828, 1.442695
    %v835 = vpow.pop %v834
    %v836 = vmul.f32 %v829, 1.442695
    %v837 = vpow.pop %v836
    %v838 = vadd.f32 %v831, 1.0
    %v839 = vadd.f32 %v833, 1.0
    %v840 = vadd.f32 %v835, 1.0
    %v841 = vadd.f32 %v837, 1.0
    %v842 = vrcp.pop %v838
    %v843 = vmul.f32 1.0, %v842
    %v844 = vrcp.pop %v839
    %v845 = vmul.f32 1.0, %v844
    %v846 = vrcp.pop %v840
    %v847 = vmul.f32 1.0, %v846
    %v848 = vrcp.pop %v841
    %v849 = vmul.f32 1.0, %v848
    %v850 = vtanh.pop %v823
    %v851 = vtanh.pop %v825
    %v854 = vrot.slane %v743, 7
    %v855 = vrot.slane %v744, 7
    %v858 = vmul.f32 %v843, %v854
    %v859 = vmul.f32 %v847, %v855
    %862 = vrot.lane.b32.xlu0 %v850, 64
    %v863 = vpop.permute.xlu0 %862
    %864 = vrot.lane.b32.xlu0 %v851, 64
    %v865 = vpop.permute.xlu0 %864
    %v868 = vmul.f32 %v843, %v863
    %v869 = vmul.f32 %v847, %v865
    %872 = vrot.lane.b32.xlu0 %v868, 64
    %v873 = vpop.permute.xlu0 %872
    %874 = vrot.lane.b32.xlu0 %v869, 64
    %v875 = vpop.permute.xlu0 %874
    %v878 = vadd.f32 %v858, %v873
    %v879 = vadd.f32 %v859, %v875
    %v880 = vtanh.pop %v878
    %v881 = vtanh.pop %v879
    %884 = vrot.lane.b32.xlu0 %v880, 64
    %v885 = vpop.permute.xlu0 %884
    %886 = vrot.lane.b32.xlu0 %v881, 64
    %v887 = vpop.permute.xlu0 %886
    %v890 = vmul.f32 %v845, %v885
    %v891 = vmul.f32 %v849, %v887
    %vm892 = vcmask 517121
    %893 = vst.msk [vmem:[#allocation2] sm:$0x2] %vm892, %v890
    %894 = vst.msk [vmem:[#allocation2 + $0x8] sm:$0x2] %vm892, %v891
    %v895 = vpack.c.bf16 %v890, %v890
    %v896 = vpack.c.bf16 %v891, %v891
    %v899 = vunpack.c.l.b16 %v895
    %v900 = vunpack.c.l.b16 %v896
    %v901 = vrot.slane %v899, 1
    %v902 = vsel %vm767, %v900, %v901
    %v903 = vpack.c.b16 %v902, %v902
    %v905 = vsel %vm546, %v903, 0
    %907 = vmatprep.subr.bf16.mxu0 0
    %908 = vmatpush1.bf16.msra.mxu0 0
    %909 = vmatprep.subr.bf16.mxu0 0
    %910 = vmatpush1.bf16.msra.mxu0 0
    %911 = vmatprep.subr.bf16.mxu0 0
    %912 = vmatpush1.bf16.msra.mxu0 0
    %913 = vmatprep.subr.bf16.mxu0 0
    %914 = vmatpush1.bf16.msra.mxu0 0
    %915 = vmatprep.subr.bf16.mxu0 %v632
    %916 = vmatpush1.bf16.msra.mxu0 %v631
    %917 = vmatprep.subr.bf16.mxu0 %v630
    %918 = vmatpush1.bf16.msra.mxu0 %v629
    %919 = vmatprep.subr.bf16.mxu0 %v628
    %920 = vmatpush1.bf16.msra.mxu0 %v627
    %921 = vmatprep.subr.bf16.mxu0 %v626
    %922 = vmatpush1.bf16.msra.mxu0 %v625
    %923 = vmatprep.subr.bf16.mxu0 0
    %924 = vmatpush2.bf16.msra.mxu0 0
    %925 = vmatprep.subr.bf16.mxu0 0
    %926 = vmatpush2.bf16.msra.mxu0 0
    %927 = vmatprep.subr.bf16.mxu0 0
    %928 = vmatpush2.bf16.msra.mxu0 0
    %929 = vmatprep.subr.bf16.mxu0 0
    %930 = vmatpush2.bf16.msra.mxu0 0
    %931 = vmatprep.subr.bf16.mxu0 0
    %932 = vmatpush2.bf16.msra.mxu0 0
    %933 = vmatprep.subr.bf16.mxu0 0
    %934 = vmatpush2.bf16.msra.mxu0 0
    %935 = vmatprep.subr.bf16.mxu0 0
    %936 = vmatpush2.bf16.msra.mxu0 0
    %937 = vmatprep.subr.bf16.mxu0 0
    %938 = vmatpush2.bf16.msra.mxu0 0
    %939 = vmatprep.mubr.bf16.mxu0 0
    %940 = vmatmul.mubr.bf16.gmra.mxu0 %v905
    %v941 = vpop.f32.mrf.mxu0
    %v942 = vadd.f32 0.0, %v941
    %v943 = vpop.f32.mrf.mxu0
    %v944 = vadd.f32 0.0, %v943
    %v945 = vpop.f32.mrf.mxu0
    %v946 = vpop.f32.mrf.mxu0
    %947 = vdwg.mxu0
    %v950 = vrot.slane %v942, 6
    %v951 = vrot.slane %v944, 6
    %v952 = vrot.slane %v942, 7
    %v953 = vrot.slane %v944, 7
    %v958 = vadd.f32 %v585, %v950
    %v959 = vadd.f32 %v587, %v951
    %v960 = vadd.f32 %v589, %v952
    %v961 = vadd.f32 %v591, %v953
    %v962 = vxor.u32 %v958, 2147483648
    %v963 = vxor.u32 %v959, 2147483648
    %v964 = vxor.u32 %v960, 2147483648
    %v965 = vxor.u32 %v961, 2147483648
    %v966 = vmul.f32 %v962, 1.442695
    %v967 = vpow.pop %v966
    %v968 = vmul.f32 %v963, 1.442695
    %v969 = vpow.pop %v968
    %v970 = vmul.f32 %v964, 1.442695
    %v971 = vpow.pop %v970
    %v972 = vmul.f32 %v965, 1.442695
    %v973 = vpow.pop %v972
    %v974 = vadd.f32 %v967, 1.0
    %v975 = vadd.f32 %v969, 1.0
    %v976 = vadd.f32 %v971, 1.0
    %v977 = vadd.f32 %v973, 1.0
    %v978 = vrcp.pop %v974
    %v979 = vmul.f32 1.0, %v978
    %v980 = vrcp.pop %v975
    %v981 = vmul.f32 1.0, %v980
    %v982 = vrcp.pop %v976
    %v983 = vmul.f32 1.0, %v982
    %v984 = vrcp.pop %v977
    %v985 = vmul.f32 1.0, %v984
    %v986 = vtanh.pop %v959
    %v987 = vtanh.pop %v961
    %v990 = vrot.slane %v878, 7
    %v991 = vrot.slane %v879, 7
    %v994 = vmul.f32 %v979, %v990
    %v995 = vmul.f32 %v983, %v991
    %998 = vrot.lane.b32.xlu0 %v986, 64
    %v999 = vpop.permute.xlu0 %998
    %1000 = vrot.lane.b32.xlu0 %v987, 64
    %v1001 = vpop.permute.xlu0 %1000
    %v1004 = vmul.f32 %v979, %v999
    %v1005 = vmul.f32 %v983, %v1001
    %1008 = vrot.lane.b32.xlu0 %v1004, 64
    %v1009 = vpop.permute.xlu0 %1008
    %1010 = vrot.lane.b32.xlu0 %v1005, 64
    %v1011 = vpop.permute.xlu0 %1010
    %v1014 = vadd.f32 %v994, %v1009
    %v1015 = vadd.f32 %v995, %v1011
    %v1016 = vtanh.pop %v1014
    %v1017 = vtanh.pop %v1015
    %1020 = vrot.lane.b32.xlu0 %v1016, 64
    %v1021 = vpop.permute.xlu0 %1020
    %1022 = vrot.lane.b32.xlu0 %v1017, 64
    %v1023 = vpop.permute.xlu0 %1022
    %v1026 = vmul.f32 %v981, %v1021
    %v1027 = vmul.f32 %v985, %v1023
    %vm1028 = vcmask 518146
    %1029 = vst.msk [vmem:[#allocation2] sm:$0x4] %vm1028, %v1026
    %1030 = vst.msk [vmem:[#allocation2 + $0x8] sm:$0x4] %vm1028, %v1027
    %v1031 = vpack.c.bf16 %v1026, %v1026
    %v1032 = vpack.c.bf16 %v1027, %v1027
    %v1035 = vunpack.c.l.b16 %v1031
    %v1036 = vunpack.c.l.b16 %v1032
    %v1037 = vrot.slane %v1035, 2
    %v1038 = vrot.slane %v1036, 1
    %v1039 = vsel %vm767, %v1038, %v1037
    %v1040 = vpack.c.b16 %v1039, %v1039
    %v1042 = vsel %vm546, %v1040, 0
    %1044 = vmatprep.subr.bf16.mxu0 0
    %1045 = vmatpush1.bf16.msra.mxu0 0
    %1046 = vmatprep.subr.bf16.mxu0 0
    %1047 = vmatpush1.bf16.msra.mxu0 0
    %1048 = vmatprep.subr.bf16.mxu0 0
    %1049 = vmatpush1.bf16.msra.mxu0 0
    %1050 = vmatprep.subr.bf16.mxu0 0
    %1051 = vmatpush1.bf16.msra.mxu0 0
    %1052 = vmatprep.subr.bf16.mxu0 %v632
    %1053 = vmatpush1.bf16.msra.mxu0 %v631
    %1054 = vmatprep.subr.bf16.mxu0 %v630
    %1055 = vmatpush1.bf16.msra.mxu0 %v629
    %1056 = vmatprep.subr.bf16.mxu0 %v628
    %1057 = vmatpush1.bf16.msra.mxu0 %v627
    %1058 = vmatprep.subr.bf16.mxu0 %v626
    %1059 = vmatpush1.bf16.msra.mxu0 %v625
    %1060 = vmatprep.subr.bf16.mxu0 0
    %1061 = vmatpush2.bf16.msra.mxu0 0
    %1062 = vmatprep.subr.bf16.mxu0 0
    %1063 = vmatpush2.bf16.msra.mxu0 0
    %1064 = vmatprep.subr.bf16.mxu0 0
    %1065 = vmatpush2.bf16.msra.mxu0 0
    %1066 = vmatprep.subr.bf16.mxu0 0
    %1067 = vmatpush2.bf16.msra.mxu0 0
    %1068 = vmatprep.subr.bf16.mxu0 0
    %1069 = vmatpush2.bf16.msra.mxu0 0
    %1070 = vmatprep.subr.bf16.mxu0 0
    %1071 = vmatpush2.bf16.msra.mxu0 0
    %1072 = vmatprep.subr.bf16.mxu0 0
    %1073 = vmatpush2.bf16.msra.mxu0 0
    %1074 = vmatprep.subr.bf16.mxu0 0
    %1075 = vmatpush2.bf16.msra.mxu0 0
    %1076 = vmatprep.mubr.bf16.mxu0 0
    %1077 = vmatmul.mubr.bf16.gmra.mxu0 %v1042
    %v1078 = vpop.f32.mrf.mxu0
    %v1079 = vadd.f32 0.0, %v1078
    %v1080 = vpop.f32.mrf.mxu0
    %v1081 = vadd.f32 0.0, %v1080
    %v1082 = vpop.f32.mrf.mxu0
    %v1083 = vpop.f32.mrf.mxu0
    %1084 = vdwg.mxu0
    %v1087 = vrot.slane %v1079, 5
    %v1088 = vrot.slane %v1081, 5
    %v1089 = vrot.slane %v1079, 6
    %v1090 = vrot.slane %v1081, 6
    %v1095 = vadd.f32 %v585, %v1087
    %v1096 = vadd.f32 %v587, %v1088
    %v1097 = vadd.f32 %v589, %v1089
    %v1098 = vadd.f32 %v591, %v1090
    %v1099 = vxor.u32 %v1095, 2147483648
    %v1100 = vxor.u32 %v1096, 2147483648
    %v1101 = vxor.u32 %v1097, 2147483648
    %v1102 = vxor.u32 %v1098, 2147483648
    %v1103 = vmul.f32 %v1099, 1.442695
    %v1104 = vpow.pop %v1103
    %v1105 = vmul.f32 %v1100, 1.442695
    %v1106 = vpow.pop %v1105
    %v1107 = vmul.f32 %v1101, 1.442695
    %v1108 = vpow.pop %v1107
    %v1109 = vmul.f32 %v1102, 1.442695
    %v1110 = vpow.pop %v1109
    %v1111 = vadd.f32 %v1104, 1.0
    %v1112 = vadd.f32 %v1106, 1.0
    %v1113 = vadd.f32 %v1108, 1.0
    %v1114 = vadd.f32 %v1110, 1.0
    %v1115 = vrcp.pop %v1111
    %v1116 = vmul.f32 1.0, %v1115
    %v1117 = vrcp.pop %v1112
    %v1118 = vmul.f32 1.0, %v1117
    %v1119 = vrcp.pop %v1113
    %v1120 = vmul.f32 1.0, %v1119
    %v1121 = vrcp.pop %v1114
    %v1122 = vmul.f32 1.0, %v1121
    %v1123 = vtanh.pop %v1096
    %v1124 = vtanh.pop %v1098
    %v1127 = vrot.slane %v1014, 7
    %v1128 = vrot.slane %v1015, 7
    %v1131 = vmul.f32 %v1116, %v1127
    %v1132 = vmul.f32 %v1120, %v1128
    %1135 = vrot.lane.b32.xlu0 %v1123, 64
    %v1136 = vpop.permute.xlu0 %1135
    %1137 = vrot.lane.b32.xlu0 %v1124, 64
    %v1138 = vpop.permute.xlu0 %1137
    %v1141 = vmul.f32 %v1116, %v1136
    %v1142 = vmul.f32 %v1120, %v1138
    %1145 = vrot.lane.b32.xlu0 %v1141, 64
    %v1146 = vpop.permute.xlu0 %1145
    %1147 = vrot.lane.b32.xlu0 %v1142, 64
    %v1148 = vpop.permute.xlu0 %1147
    %v1151 = vadd.f32 %v1131, %v1146
    %v1152 = vadd.f32 %v1132, %v1148
    %v1153 = vtanh.pop %v1151
    %v1154 = vtanh.pop %v1152
    %1157 = vrot.lane.b32.xlu0 %v1153, 64
    %v1158 = vpop.permute.xlu0 %1157
    %1159 = vrot.lane.b32.xlu0 %v1154, 64
    %v1160 = vpop.permute.xlu0 %1159
    %v1163 = vmul.f32 %v1118, %v1158
    %v1164 = vmul.f32 %v1122, %v1160
    %vm1165 = vcmask 519171
    %1166 = vst.msk [vmem:[#allocation2] sm:$0x8] %vm1165, %v1163
    %1167 = vst.msk [vmem:[#allocation2 + $0x8] sm:$0x8] %vm1165, %v1164
    %v1168 = vpack.c.bf16 %v1163, %v1163
    %v1169 = vpack.c.bf16 %v1164, %v1164
    %v1172 = vunpack.c.l.b16 %v1168
    %v1173 = vunpack.c.l.b16 %v1169
    %v1174 = vrot.slane %v1172, 3
    %v1175 = vrot.slane %v1173, 2
    %v1176 = vsel %vm767, %v1175, %v1174
    %v1177 = vpack.c.b16 %v1176, %v1176
    %v1179 = vsel %vm546, %v1177, 0
    %1181 = vmatprep.subr.bf16.mxu0 0
    %1182 = vmatpush1.bf16.msra.mxu0 0
    %1183 = vmatprep.subr.bf16.mxu0 0
    %1184 = vmatpush1.bf16.msra.mxu0 0
    %1185 = vmatprep.subr.bf16.mxu0 0
    %1186 = vmatpush1.bf16.msra.mxu0 0
    %1187 = vmatprep.subr.bf16.mxu0 0
    %1188 = vmatpush1.bf16.msra.mxu0 0
    %1189 = vmatprep.subr.bf16.mxu0 %v632
    %1190 = vmatpush1.bf16.msra.mxu0 %v631
    %1191 = vmatprep.subr.bf16.mxu0 %v630
    %1192 = vmatpush1.bf16.msra.mxu0 %v629
    %1193 = vmatprep.subr.bf16.mxu0 %v628
    %1194 = vmatpush1.bf16.msra.mxu0 %v627
    %1195 = vmatprep.subr.bf16.mxu0 %v626
    %1196 = vmatpush1.bf16.msra.mxu0 %v625
    %1197 = vmatprep.subr.bf16.mxu0 0
    %1198 = vmatpush2.bf16.msra.mxu0 0
    %1199 = vmatprep.subr.bf16.mxu0 0
    %1200 = vmatpush2.bf16.msra.mxu0 0
    %1201 = vmatprep.subr.bf16.mxu0 0
    %1202 = vmatpush2.bf16.msra.mxu0 0
    %1203 = vmatprep.subr.bf16.mxu0 0
    %1204 = vmatpush2.bf16.msra.mxu0 0
    %1205 = vmatprep.subr.bf16.mxu0 0
    %1206 = vmatpush2.bf16.msra.mxu0 0
    %1207 = vmatprep.subr.bf16.mxu0 0
    %1208 = vmatpush2.bf16.msra.mxu0 0
    %1209 = vmatprep.subr.bf16.mxu0 0
    %1210 = vmatpush2.bf16.msra.mxu0 0
    %1211 = vmatprep.subr.bf16.mxu0 0
    %1212 = vmatpush2.bf16.msra.mxu0 0
    %1213 = vmatprep.mubr.bf16.mxu0 0
    %1214 = vmatmul.mubr.bf16.gmra.mxu0 %v1179
    %v1215 = vpop.f32.mrf.mxu0
    %v1216 = vadd.f32 0.0, %v1215
    %v1217 = vpop.f32.mrf.mxu0
    %v1218 = vadd.f32 0.0, %v1217
    %v1219 = vpop.f32.mrf.mxu0
    %v1220 = vpop.f32.mrf.mxu0
    %1221 = vdwg.mxu0
    %v1224 = vrot.slane %v1216, 4
    %v1225 = vrot.slane %v1218, 4
    %v1226 = vrot.slane %v1216, 5
    %v1227 = vrot.slane %v1218, 5
    %v1232 = vadd.f32 %v585, %v1224
    %v1233 = vadd.f32 %v587, %v1225
    %v1234 = vadd.f32 %v589, %v1226
    %v1235 = vadd.f32 %v591, %v1227
    %v1236 = vxor.u32 %v1232, 2147483648
    %v1237 = vxor.u32 %v1233, 2147483648
    %v1238 = vxor.u32 %v1234, 2147483648
    %v1239 = vxor.u32 %v1235, 2147483648
    %v1240 = vmul.f32 %v1236, 1.442695
    %v1241 = vpow.pop %v1240
    %v1242 = vmul.f32 %v1237, 1.442695
    %v1243 = vpow.pop %v1242
    %v1244 = vmul.f32 %v1238, 1.442695
    %v1245 = vpow.pop %v1244
    %v1246 = vmul.f32 %v1239, 1.442695
    %v1247 = vpow.pop %v1246
    %v1248 = vadd.f32 %v1241, 1.0
    %v1249 = vadd.f32 %v1243, 1.0
    %v1250 = vadd.f32 %v1245, 1.0
    %v1251 = vadd.f32 %v1247, 1.0
    %v1252 = vrcp.pop %v1248
    %v1253 = vmul.f32 1.0, %v1252
    %v1254 = vrcp.pop %v1249
    %v1255 = vmul.f32 1.0, %v1254
    %v1256 = vrcp.pop %v1250
    %v1257 = vmul.f32 1.0, %v1256
    %v1258 = vrcp.pop %v1251
    %v1259 = vmul.f32 1.0, %v1258
    %v1260 = vtanh.pop %v1233
    %v1261 = vtanh.pop %v1235
    %v1264 = vrot.slane %v1151, 7
    %v1265 = vrot.slane %v1152, 7
    %v1268 = vmul.f32 %v1253, %v1264
    %v1269 = vmul.f32 %v1257, %v1265
    %1272 = vrot.lane.b32.xlu0 %v1260, 64
    %v1273 = vpop.permute.xlu0 %1272
    %1274 = vrot.lane.b32.xlu0 %v1261, 64
    %v1275 = vpop.permute.xlu0 %1274
    %v1278 = vmul.f32 %v1253, %v1273
    %v1279 = vmul.f32 %v1257, %v1275
    %1282 = vrot.lane.b32.xlu0 %v1278, 64
    %v1283 = vpop.permute.xlu0 %1282
    %1284 = vrot.lane.b32.xlu0 %v1279, 64
    %v1285 = vpop.permute.xlu0 %1284
    %v1288 = vadd.f32 %v1268, %v1283
    %v1289 = vadd.f32 %v1269, %v1285
    %v1290 = vtanh.pop %v1288
    %v1291 = vtanh.pop %v1289
    %1294 = vrot.lane.b32.xlu0 %v1290, 64
    %v1295 = vpop.permute.xlu0 %1294
    %1296 = vrot.lane.b32.xlu0 %v1291, 64
    %v1297 = vpop.permute.xlu0 %1296
    %v1300 = vmul.f32 %v1255, %v1295
    %v1301 = vmul.f32 %v1259, %v1297
    %vm1302 = vcmask 520196
    %1303 = vst.msk [vmem:[#allocation2] sm:$0x10] %vm1302, %v1300
    %1304 = vst.msk [vmem:[#allocation2 + $0x8] sm:$0x10] %vm1302, %v1301
    %v1305 = vpack.c.bf16 %v1300, %v1300
    %v1306 = vpack.c.bf16 %v1301, %v1301
    %v1309 = vunpack.c.l.b16 %v1305
    %v1310 = vunpack.c.l.b16 %v1306
    %v1311 = vrot.slane %v1309, 4
    %v1312 = vrot.slane %v1310, 3
    %v1313 = vsel %vm767, %v1312, %v1311
    %v1314 = vpack.c.b16 %v1313, %v1313
    %v1316 = vsel %vm546, %v1314, 0
    %1318 = vmatprep.subr.bf16.mxu0 0
    %1319 = vmatpush1.bf16.msra.mxu0 0
    %1320 = vmatprep.subr.bf16.mxu0 0
    %1321 = vmatpush1.bf16.msra.mxu0 0
    %1322 = vmatprep.subr.bf16.mxu0 0
    %1323 = vmatpush1.bf16.msra.mxu0 0
    %1324 = vmatprep.subr.bf16.mxu0 0
    %1325 = vmatpush1.bf16.msra.mxu0 0
    %1326 = vmatprep.subr.bf16.mxu0 %v632
    %1327 = vmatpush1.bf16.msra.mxu0 %v631
    %1328 = vmatprep.subr.bf16.mxu0 %v630
    %1329 = vmatpush1.bf16.msra.mxu0 %v629
    %1330 = vmatprep.subr.bf16.mxu0 %v628
    %1331 = vmatpush1.bf16.msra.mxu0 %v627
    %1332 = vmatprep.subr.bf16.mxu0 %v626
    %1333 = vmatpush1.bf16.msra.mxu0 %v625
    %1334 = vmatprep.subr.bf16.mxu0 0
    %1335 = vmatpush2.bf16.msra.mxu0 0
    %1336 = vmatprep.subr.bf16.mxu0 0
    %1337 = vmatpush2.bf16.msra.mxu0 0
    %1338 = vmatprep.subr.bf16.mxu0 0
    %1339 = vmatpush2.bf16.msra.mxu0 0
    %1340 = vmatprep.subr.bf16.mxu0 0
    %1341 = vmatpush2.bf16.msra.mxu0 0
    %1342 = vmatprep.subr.bf16.mxu0 0
    %1343 = vmatpush2.bf16.msra.mxu0 0
    %1344 = vmatprep.subr.bf16.mxu0 0
    %1345 = vmatpush2.bf16.msra.mxu0 0
    %1346 = vmatprep.subr.bf16.mxu0 0
    %1347 = vmatpush2.bf16.msra.mxu0 0
    %1348 = vmatprep.subr.bf16.mxu0 0
    %1349 = vmatpush2.bf16.msra.mxu0 0
    %1350 = vmatprep.mubr.bf16.mxu0 0
    %1351 = vmatmul.mubr.bf16.gmra.mxu0 %v1316
    %v1352 = vpop.f32.mrf.mxu0
    %v1353 = vadd.f32 0.0, %v1352
    %v1354 = vpop.f32.mrf.mxu0
    %v1355 = vadd.f32 0.0, %v1354
    %v1356 = vpop.f32.mrf.mxu0
    %v1357 = vpop.f32.mrf.mxu0
    %1358 = vdwg.mxu0
    %v1361 = vrot.slane %v1353, 3
    %v1362 = vrot.slane %v1355, 3
    %v1363 = vrot.slane %v1353, 4
    %v1364 = vrot.slane %v1355, 4
    %v1369 = vadd.f32 %v585, %v1361
    %v1370 = vadd.f32 %v587, %v1362
    %v1371 = vadd.f32 %v589, %v1363
    %v1372 = vadd.f32 %v591, %v1364
    %v1373 = vxor.u32 %v1369, 2147483648
    %v1374 = vxor.u32 %v1370, 2147483648
    %v1375 = vxor.u32 %v1371, 2147483648
    %v1376 = vxor.u32 %v1372, 2147483648
    %v1377 = vmul.f32 %v1373, 1.442695
    %v1378 = vpow.pop %v1377
    %v1379 = vmul.f32 %v1374, 1.442695
    %v1380 = vpow.pop %v1379
    %v1381 = vmul.f32 %v1375, 1.442695
    %v1382 = vpow.pop %v1381
    %v1383 = vmul.f32 %v1376, 1.442695
    %v1384 = vpow.pop %v1383
    %v1385 = vadd.f32 %v1378, 1.0
    %v1386 = vadd.f32 %v1380, 1.0
    %v1387 = vadd.f32 %v1382, 1.0
    %v1388 = vadd.f32 %v1384, 1.0
    %v1389 = vrcp.pop %v1385
    %v1390 = vmul.f32 1.0, %v1389
    %v1391 = vrcp.pop %v1386
    %v1392 = vmul.f32 1.0, %v1391
    %v1393 = vrcp.pop %v1387
    %v1394 = vmul.f32 1.0, %v1393
    %v1395 = vrcp.pop %v1388
    %v1396 = vmul.f32 1.0, %v1395
    %v1397 = vtanh.pop %v1370
    %v1398 = vtanh.pop %v1372
    %v1401 = vrot.slane %v1288, 7
    %v1402 = vrot.slane %v1289, 7
    %v1405 = vmul.f32 %v1390, %v1401
    %v1406 = vmul.f32 %v1394, %v1402
    %1409 = vrot.lane.b32.xlu0 %v1397, 64
    %v1410 = vpop.permute.xlu0 %1409
    %1411 = vrot.lane.b32.xlu0 %v1398, 64
    %v1412 = vpop.permute.xlu0 %1411
    %v1415 = vmul.f32 %v1390, %v1410
    %v1416 = vmul.f32 %v1394, %v1412
    %1419 = vrot.lane.b32.xlu0 %v1415, 64
    %v1420 = vpop.permute.xlu0 %1419
    %1421 = vrot.lane.b32.xlu0 %v1416, 64
    %v1422 = vpop.permute.xlu0 %1421
    %v1425 = vadd.f32 %v1405, %v1420
    %v1426 = vadd.f32 %v1406, %v1422
    %v1427 = vtanh.pop %v1425
    %v1428 = vtanh.pop %v1426
    %1431 = vrot.lane.b32.xlu0 %v1427, 64
    %v1432 = vpop.permute.xlu0 %1431
    %1433 = vrot.lane.b32.xlu0 %v1428, 64
    %v1434 = vpop.permute.xlu0 %1433
    %v1437 = vmul.f32 %v1392, %v1432
    %v1438 = vmul.f32 %v1396, %v1434
    %vm1439 = vcmask 521221
    %1440 = vst.msk [vmem:[#allocation2] sm:$0x20] %vm1439, %v1437
    %1441 = vst.msk [vmem:[#allocation2 + $0x8] sm:$0x20] %vm1439, %v1438
    %v1442 = vpack.c.bf16 %v1437, %v1437
    %v1443 = vpack.c.bf16 %v1438, %v1438
    %v1446 = vunpack.c.l.b16 %v1442
    %v1447 = vunpack.c.l.b16 %v1443
    %v1448 = vrot.slane %v1446, 5
    %v1449 = vrot.slane %v1447, 4
    %v1450 = vsel %vm767, %v1449, %v1448
    %v1451 = vpack.c.b16 %v1450, %v1450
    %v1453 = vsel %vm546, %v1451, 0
    %1455 = vmatprep.subr.bf16.mxu0 0
    %1456 = vmatpush1.bf16.msra.mxu0 0
    %1457 = vmatprep.subr.bf16.mxu0 0
    %1458 = vmatpush1.bf16.msra.mxu0 0
    %1459 = vmatprep.subr.bf16.mxu0 0
    %1460 = vmatpush1.bf16.msra.mxu0 0
    %1461 = vmatprep.subr.bf16.mxu0 0
    %1462 = vmatpush1.bf16.msra.mxu0 0
    %1463 = vmatprep.subr.bf16.mxu0 %v632
    %1464 = vmatpush1.bf16.msra.mxu0 %v631
    %1465 = vmatprep.subr.bf16.mxu0 %v630
    %1466 = vmatpush1.bf16.msra.mxu0 %v629
    %1467 = vmatprep.subr.bf16.mxu0 %v628
    %1468 = vmatpush1.bf16.msra.mxu0 %v627
    %1469 = vmatprep.subr.bf16.mxu0 %v626
    %1470 = vmatpush1.bf16.msra.mxu0 %v625
    %1471 = vmatprep.subr.bf16.mxu0 0
    %1472 = vmatpush2.bf16.msra.mxu0 0
    %1473 = vmatprep.subr.bf16.mxu0 0
    %1474 = vmatpush2.bf16.msra.mxu0 0
    %1475 = vmatprep.subr.bf16.mxu0 0
    %1476 = vmatpush2.bf16.msra.mxu0 0
    %1477 = vmatprep.subr.bf16.mxu0 0
    %1478 = vmatpush2.bf16.msra.mxu0 0
    %1479 = vmatprep.subr.bf16.mxu0 0
    %1480 = vmatpush2.bf16.msra.mxu0 0
    %1481 = vmatprep.subr.bf16.mxu0 0
    %1482 = vmatpush2.bf16.msra.mxu0 0
    %1483 = vmatprep.subr.bf16.mxu0 0
    %1484 = vmatpush2.bf16.msra.mxu0 0
    %1485 = vmatprep.subr.bf16.mxu0 0
    %1486 = vmatpush2.bf16.msra.mxu0 0
    %1487 = vmatprep.mubr.bf16.mxu0 0
    %1488 = vmatmul.mubr.bf16.gmra.mxu0 %v1453
    %v1489 = vpop.f32.mrf.mxu0
    %v1490 = vadd.f32 0.0, %v1489
    %v1491 = vpop.f32.mrf.mxu0
    %v1492 = vadd.f32 0.0, %v1491
    %v1493 = vpop.f32.mrf.mxu0
    %v1494 = vpop.f32.mrf.mxu0
    %1495 = vdwg.mxu0
    %v1498 = vrot.slane %v1490, 2
    %v1499 = vrot.slane %v1492, 2
    %v1500 = vrot.slane %v1490, 3
    %v1501 = vrot.slane %v1492, 3
    %v1506 = vadd.f32 %v585, %v1498
    %v1507 = vadd.f32 %v587, %v1499
    %v1508 = vadd.f32 %v589, %v1500
    %v1509 = vadd.f32 %v591, %v1501
    %v1510 = vxor.u32 %v1506, 2147483648
    %v1511 = vxor.u32 %v1507, 2147483648
    %v1512 = vxor.u32 %v1508, 2147483648
    %v1513 = vxor.u32 %v1509, 2147483648
    %v1514 = vmul.f32 %v1510, 1.442695
    %v1515 = vpow.pop %v1514
    %v1516 = vmul.f32 %v1511, 1.442695
    %v1517 = vpow.pop %v1516
    %v1518 = vmul.f32 %v1512, 1.442695
    %v1519 = vpow.pop %v1518
    %v1520 = vmul.f32 %v1513, 1.442695
    %v1521 = vpow.pop %v1520
    %v1522 = vadd.f32 %v1515, 1.0
    %v1523 = vadd.f32 %v1517, 1.0
    %v1524 = vadd.f32 %v1519, 1.0
    %v1525 = vadd.f32 %v1521, 1.0
    %v1526 = vrcp.pop %v1522
    %v1527 = vmul.f32 1.0, %v1526
    %v1528 = vrcp.pop %v1523
    %v1529 = vmul.f32 1.0, %v1528
    %v1530 = vrcp.pop %v1524
    %v1531 = vmul.f32 1.0, %v1530
    %v1532 = vrcp.pop %v1525
    %v1533 = vmul.f32 1.0, %v1532
    %v1534 = vtanh.pop %v1507
    %v1535 = vtanh.pop %v1509
    %v1538 = vrot.slane %v1425, 7
    %v1539 = vrot.slane %v1426, 7
    %v1542 = vmul.f32 %v1527, %v1538
    %v1543 = vmul.f32 %v1531, %v1539
    %1546 = vrot.lane.b32.xlu0 %v1534, 64
    %v1547 = vpop.permute.xlu0 %1546
    %1548 = vrot.lane.b32.xlu0 %v1535, 64
    %v1549 = vpop.permute.xlu0 %1548
    %v1552 = vmul.f32 %v1527, %v1547
    %v1553 = vmul.f32 %v1531, %v1549
    %1556 = vrot.lane.b32.xlu0 %v1552, 64
    %v1557 = vpop.permute.xlu0 %1556
    %1558 = vrot.lane.b32.xlu0 %v1553, 64
    %v1559 = vpop.permute.xlu0 %1558
    %v1562 = vadd.f32 %v1542, %v1557
    %v1563 = vadd.f32 %v1543, %v1559
    %v1564 = vtanh.pop %v1562
    %v1565 = vtanh.pop %v1563
    %1568 = vrot.lane.b32.xlu0 %v1564, 64
    %v1569 = vpop.permute.xlu0 %1568
    %1570 = vrot.lane.b32.xlu0 %v1565, 64
    %v1571 = vpop.permute.xlu0 %1570
    %v1574 = vmul.f32 %v1529, %v1569
    %v1575 = vmul.f32 %v1533, %v1571
    %vm1576 = vcmask 522246
    %1577 = vst.msk [vmem:[#allocation2] sm:$0x40] %vm1576, %v1574
    %1578 = vst.msk [vmem:[#allocation2 + $0x8] sm:$0x40] %vm1576, %v1575
    %v1579 = vpack.c.bf16 %v1574, %v1574
    %v1580 = vpack.c.bf16 %v1575, %v1575
    %v1583 = vunpack.c.l.b16 %v1579
    %v1584 = vunpack.c.l.b16 %v1580
    %v1585 = vrot.slane %v1583, 6
    %v1586 = vrot.slane %v1584, 5
    %v1587 = vsel %vm767, %v1586, %v1585
    %v1588 = vpack.c.b16 %v1587, %v1587
    %v1590 = vsel %vm546, %v1588, 0
    %1592 = vmatprep.subr.bf16.mxu0 0
    %1593 = vmatpush1.bf16.msra.mxu0 0
    %1594 = vmatprep.subr.bf16.mxu0 0
    %1595 = vmatpush1.bf16.msra.mxu0 0
    %1596 = vmatprep.subr.bf16.mxu0 0
    %1597 = vmatpush1.bf16.msra.mxu0 0
    %1598 = vmatprep.subr.bf16.mxu0 0
    %1599 = vmatpush1.bf16.msra.mxu0 0
    %1600 = vmatprep.subr.bf16.mxu0 %v632
    %1601 = vmatpush1.bf16.msra.mxu0 %v631
    %1602 = vmatprep.subr.bf16.mxu0 %v630
    %1603 = vmatpush1.bf16.msra.mxu0 %v629
    %1604 = vmatprep.subr.bf16.mxu0 %v628
    %1605 = vmatpush1.bf16.msra.mxu0 %v627
    %1606 = vmatprep.subr.bf16.mxu0 %v626
    %1607 = vmatpush1.bf16.msra.mxu0 %v625
    %1608 = vmatprep.subr.bf16.mxu0 0
    %1609 = vmatpush2.bf16.msra.mxu0 0
    %1610 = vmatprep.subr.bf16.mxu0 0
    %1611 = vmatpush2.bf16.msra.mxu0 0
    %1612 = vmatprep.subr.bf16.mxu0 0
    %1613 = vmatpush2.bf16.msra.mxu0 0
    %1614 = vmatprep.subr.bf16.mxu0 0
    %1615 = vmatpush2.bf16.msra.mxu0 0
    %1616 = vmatprep.subr.bf16.mxu0 0
    %1617 = vmatpush2.bf16.msra.mxu0 0
    %1618 = vmatprep.subr.bf16.mxu0 0
    %1619 = vmatpush2.bf16.msra.mxu0 0
    %1620 = vmatprep.subr.bf16.mxu0 0
    %1621 = vmatpush2.bf16.msra.mxu0 0
    %1622 = vmatprep.subr.bf16.mxu0 0
    %1623 = vmatpush2.bf16.msra.mxu0 0
    %1624 = vmatprep.mubr.bf16.mxu0 0
    %1625 = vmatmul.mubr.bf16.gmra.mxu0 %v1590
    %v1626 = vpop.f32.mrf.mxu0
    %v1627 = vadd.f32 0.0, %v1626
    %v1628 = vpop.f32.mrf.mxu0
    %v1629 = vadd.f32 0.0, %v1628
    %v1630 = vpop.f32.mrf.mxu0
    %v1631 = vpop.f32.mrf.mxu0
    %1632 = vdwg.mxu0
    %v1635 = vrot.slane %v1627, 1
    %v1636 = vrot.slane %v1629, 1
    %v1637 = vrot.slane %v1627, 2
    %v1638 = vrot.slane %v1629, 2
    %v1643 = vadd.f32 %v585, %v1635
    %v1644 = vadd.f32 %v587, %v1636
    %v1645 = vadd.f32 %v589, %v1637
    %v1646 = vadd.f32 %v591, %v1638
    %v1647 = vxor.u32 %v1643, 2147483648
    %v1648 = vxor.u32 %v1644, 2147483648
    %v1649 = vxor.u32 %v1645, 2147483648
    %v1650 = vxor.u32 %v1646, 2147483648
    %v1651 = vmul.f32 %v1647, 1.442695
    %v1652 = vpow.pop %v1651
    %v1653 = vmul.f32 %v1648, 1.442695
    %v1654 = vpow.pop %v1653
    %v1655 = vmul.f32 %v1649, 1.442695
    %v1656 = vpow.pop %v1655
    %v1657 = vmul.f32 %v1650, 1.442695
    %v1658 = vpow.pop %v1657
    %v1659 = vadd.f32 %v1652, 1.0
    %v1660 = vadd.f32 %v1654, 1.0
    %v1661 = vadd.f32 %v1656, 1.0
    %v1662 = vadd.f32 %v1658, 1.0
    %v1663 = vrcp.pop %v1659
    %v1664 = vmul.f32 1.0, %v1663
    %v1665 = vrcp.pop %v1660
    %v1666 = vmul.f32 1.0, %v1665
    %v1667 = vrcp.pop %v1661
    %v1668 = vmul.f32 1.0, %v1667
    %v1669 = vrcp.pop %v1662
    %v1670 = vmul.f32 1.0, %v1669
    %v1671 = vtanh.pop %v1644
    %v1672 = vtanh.pop %v1646
    %v1675 = vrot.slane %v1562, 7
    %v1676 = vrot.slane %v1563, 7
    %v1679 = vmul.f32 %v1664, %v1675
    %v1680 = vmul.f32 %v1668, %v1676
    %1683 = vrot.lane.b32.xlu0 %v1671, 64
    %v1684 = vpop.permute.xlu0 %1683
    %1685 = vrot.lane.b32.xlu0 %v1672, 64
    %v1686 = vpop.permute.xlu0 %1685
    %v1689 = vmul.f32 %v1664, %v1684
    %v1690 = vmul.f32 %v1668, %v1686
    %1693 = vrot.lane.b32.xlu0 %v1689, 64
    %v1694 = vpop.permute.xlu0 %1693
    %1695 = vrot.lane.b32.xlu0 %v1690, 64
    %v1696 = vpop.permute.xlu0 %1695
    %v1699 = vadd.f32 %v1679, %v1694
    %v1700 = vadd.f32 %v1680, %v1696
    %v1701 = vtanh.pop %v1699
    %v1702 = vtanh.pop %v1700
    %1705 = vrot.lane.b32.xlu0 %v1701, 64
    %v1706 = vpop.permute.xlu0 %1705
    %1707 = vrot.lane.b32.xlu0 %v1702, 64
    %v1708 = vpop.permute.xlu0 %1707
    %v1711 = vmul.f32 %v1666, %v1706
    %v1712 = vmul.f32 %v1670, %v1708
    %vm1713 = vcmask 523271
    %1714 = vst.msk [vmem:[#allocation2] sm:$0x80] %vm1713, %v1711
    %1715 = vst.msk [vmem:[#allocation2 + $0x8] sm:$0x80] %vm1713, %v1712
    %v1716 = vld [vmem:[#allocation2] sm:$0xff]
    %v1717 = vld [vmem:[#allocation2 + $0x8] sm:$0xff]
    %v1718 = vld [vmem:[%s3] sm:$0xff]
    %v1719 = vld [vmem:[%s3 + $0x8] sm:$0xff]
    %v1720 = vld [vmem:[#allocation15] sm:$0x3]
    %v1721 = vpack.c.bf16 %v1719, %v1718
    %v1722 = vld [vmem:[#allocation17] sm:$0x1]
    %v1724 = vlaneseq
    %v1725 = vshrl.u32 %v1724, 7
    %v1726 = vsub.s32 0, %v1725
    %v1727 = vrot.slane %v1722, %v1726
    %vm1729 = vcmask 31744
    %v1731 = vsel %vm1729, %v1721, 0
    %v1734 = vsel %vm394, %v1720, 0
    %1736 = vmatprep.subr.bf16.mxu0 0
    %1737 = vmatpush1.bf16.msra.mxu0 0
    %1738 = vmatprep.subr.bf16.mxu0 0
    %1739 = vmatpush1.bf16.msra.mxu0 0
    %1740 = vmatprep.subr.bf16.mxu0 0
    %1741 = vmatpush1.bf16.msra.mxu0 0
    %1742 = vmatprep.subr.bf16.mxu0 0
    %1743 = vmatpush1.bf16.msra.mxu0 0
    %1744 = vmatprep.subr.bf16.mxu0 0
    %1745 = vmatpush1.bf16.msra.mxu0 0
    %1746 = vmatprep.subr.bf16.mxu0 0
    %1747 = vmatpush1.bf16.msra.mxu0 0
    %1748 = vmatprep.subr.bf16.mxu0 0
    %1749 = vmatpush1.bf16.msra.mxu0 0
    %1750 = vmatprep.subr.bf16.mxu0 0
    %1751 = vmatpush1.bf16.msra.mxu0 %v1734
    %1752 = vmatprep.subr.bf16.mxu0 0
    %1753 = vmatpush2.bf16.msra.mxu0 0
    %1754 = vmatprep.subr.bf16.mxu0 0
    %1755 = vmatpush2.bf16.msra.mxu0 0
    %1756 = vmatprep.subr.bf16.mxu0 0
    %1757 = vmatpush2.bf16.msra.mxu0 0
    %1758 = vmatprep.subr.bf16.mxu0 0
    %1759 = vmatpush2.bf16.msra.mxu0 0
    %1760 = vmatprep.subr.bf16.mxu0 0
    %1761 = vmatpush2.bf16.msra.mxu0 0
    %1762 = vmatprep.subr.bf16.mxu0 0
    %1763 = vmatpush2.bf16.msra.mxu0 0
    %1764 = vmatprep.subr.bf16.mxu0 0
    %1765 = vmatpush2.bf16.msra.mxu0 0
    %1766 = vmatprep.subr.bf16.mxu0 0
    %1767 = vmatpush2.bf16.msra.mxu0 0
    %1768 = vmatprep.mubr.bf16.mxu0 0
    %1769 = vmatmul.mubr.bf16.gmra.mxu0 %v1731
    %v1770 = vpop.f32.mrf.mxu0
    %v1771 = vadd.f32 %v1727, %v1770
    %v1772 = vpop.f32.mrf.mxu0
    %v1773 = vpop.f32.mrf.mxu0
    %v1774 = vadd.f32 %v1727, %v1773
    %v1775 = vpop.f32.mrf.mxu0
    %1776 = vdwg.mxu0
    %v1777 = vmax.f32 %v1771, 0.0
    %v1778 = vmax.f32 %v1774, 0.0
    %v1779 = vld [vmem:[%s5] sm:$0xff]
    %v1780 = vld [vmem:[%s5 + $0x8] sm:$0xff]
    %v1781 = vld [vmem:[#allocation18] sm:$0x1]
    %1783 = vset.pattern.permute.xlu0 0
    %1784 = vperm.xlu0 %1783, %v1779
    %v1785 = vpop.permute.xlu0 %1784
    %1788 = vset.pattern.permute.xlu0 0
    %1789 = vperm.xlu0 %1788, %v1780
    %v1790 = vpop.permute.xlu0 %1789
    %v1793 = vlaneseq
    %v1794 = vshrl.u32 %v1793, 7
    %v1795 = vsub.s32 0, %v1794
    %v1796 = vrot.slane %v1781, %v1795
    %v1798 = vmul.f32 %v1785, %v1796
    %v1799 = vmul.f32 %v1790, %v1796
    %v1800 = vld [vmem:[#allocation20] sm:$0x1]
    %v1802 = vlaneseq
    %v1803 = vshrl.u32 %v1802, 7
    %v1804 = vsub.s32 0, %v1803
    %v1805 = vrot.slane %v1800, %v1804
    %v1807 = vadd.f32 %v1798, %v1805
    %v1808 = vadd.f32 %v1799, %v1805
    %v1809 = vmax.f32 %v1807, 0.0
    %v1810 = vmax.f32 %v1808, 0.0
    %1813 = vrot.lane.b32.xlu0 %v1777, 64
    %v1814 = vpop.permute.xlu0 %1813
    %1815 = vrot.lane.b32.xlu0 %v1778, 64
    %v1816 = vpop.permute.xlu0 %1815
    %1821 = vrot.lane.b32.xlu0 %v1809, 96
    %v1822 = vpop.permute.xlu0 %1821
    %1823 = vrot.lane.b32.xlu0 %v1810, 96
    %v1824 = vpop.permute.xlu0 %1823
    %v1827 = vsel %vm546, %v1716, %v1814
    %v1828 = vsel %vm546, %v1717, %v1816
    %vm1829 = vcmask 785408
    %v1830 = vsel %vm1829, %v1827, %v1822
    %v1831 = vsel %vm1829, %v1828, %v1824
    %v1832 = vld [vmem:[#allocation21] sm:$0xff]
    %v1833 = vld [vmem:[#allocation21 + $0x8] sm:$0xf]
    %v1834 = vld [vmem:[#allocation21 + $0xc] sm:$0xff]
    %v1835 = vld [vmem:[#allocation21 + $0x14] sm:$0xf]
    %v1836 = vld [vmem:[#allocation21 + $0x18] sm:$0xff]
    %v1837 = vld [vmem:[#allocation21 + $0x20] sm:$0xf]
    %v1838 = vld [vmem:[#allocation21 + $0x24] sm:$0xff]
    %v1839 = vld [vmem:[#allocation21 + $0x2c] sm:$0xf]
    %v1840 = vld [vmem:[#allocation21 + $0x30] sm:$0xff]
    %v1841 = vld [vmem:[#allocation21 + $0x38] sm:$0xf]
    %v1842 = vld [vmem:[#allocation21 + $0x3c] sm:$0xff]
    %v1843 = vld [vmem:[#allocation21 + $0x44] sm:$0xf]
    %v1844 = vld [vmem:[#allocation21 + $0x48] sm:$0xff]
    %v1845 = vld [vmem:[#allocation21 + $0x50] sm:$0xf]
    %v1846 = vld [vmem:[#allocation21 + $0x54] sm:$0xff]
    %v1847 = vld [vmem:[#allocation21 + $0x5c] sm:$0xf]
    %v1848 = vld [vmem:[#allocation21 + $0x60] sm:$0xff]
    %v1849 = vld [vmem:[#allocation21 + $0x68] sm:$0xf]
    %v1850 = vld [vmem:[#allocation21 + $0x6c] sm:$0xff]
    %v1851 = vld [vmem:[#allocation21 + $0x74] sm:$0xf]
    %v1852 = vld [vmem:[#allocation21 + $0x78] sm:$0xff]
    %v1853 = vld [vmem:[#allocation21 + $0x80] sm:$0xf]
    %v1854 = vld [vmem:[#allocation21 + $0x84] sm:$0xff]
    %v1855 = vld [vmem:[#allocation21 + $0x8c] sm:$0xf]
    %v1856 = vld [vmem:[#allocation21 + $0x90] sm:$0xff]
    %v1857 = vld [vmem:[#allocation21 + $0x98] sm:$0xf]
    %v1858 = vld [vmem:[#allocation21 + $0x9c] sm:$0xff]
    %v1859 = vld [vmem:[#allocation21 + $0xa4] sm:$0xf]
    %v1860 = vld [vmem:[#allocation21 + $0xa8] sm:$0xff]
    %v1861 = vld [vmem:[#allocation21 + $0xb0] sm:$0xf]
    %v1862 = vld [vmem:[#allocation21 + $0xb4] sm:$0xff]
    %v1863 = vld [vmem:[#allocation21 + $0xbc] sm:$0xf]
    %v1864 = vpack.c.bf16 %v1831, %v1830
    %v1865 = vld [vmem:[%s29] sm:$0x7]
    %v1867 = vlaneseq
    %v1868 = vshrl.u32 %v1867, 7
    %v1869 = vsub.s32 0, %v1868
    %v1870 = vrot.slane %v1865, %v1869
    %v1871 = vlaneseq
    %v1872 = vshrl.u32 %v1871, 7
    %v1873 = vsub.s32 1, %v1872
    %v1874 = vrot.slane %v1865, %v1873
    %v1875 = vlaneseq
    %v1876 = vshrl.u32 %v1875, 7
    %v1877 = vsub.s32 2, %v1876
    %v1878 = vrot.slane %v1865, %v1877
    %v1914 = vunpack.c.l.b16 %v1832
    %v1915 = vunpack.c.h.b16 %v1832
    %v1916 = vunpack.c.l.b16 %v1833
    %v1917 = vunpack.c.l.b16 %v1834
    %v1918 = vunpack.c.h.b16 %v1834
    %v1919 = vunpack.c.l.b16 %v1835
    %v1920 = vunpack.c.l.b16 %v1836
    %v1921 = vunpack.c.h.b16 %v1836
    %v1922 = vunpack.c.l.b16 %v1837
    %v1923 = vunpack.c.l.b16 %v1838
    %v1924 = vunpack.c.h.b16 %v1838
    %v1925 = vunpack.c.l.b16 %v1839
    %v1926 = vunpack.c.l.b16 %v1840
    %v1927 = vunpack.c.h.b16 %v1840
    %v1928 = vunpack.c.l.b16 %v1841
    %v1929 = vunpack.c.l.b16 %v1842
    %v1930 = vunpack.c.h.b16 %v1842
    %v1931 = vunpack.c.l.b16 %v1843
    %v1932 = vunpack.c.l.b16 %v1844
    %v1933 = vunpack.c.h.b16 %v1844
    %v1934 = vunpack.c.l.b16 %v1845
    %v1935 = vunpack.c.l.b16 %v1846
    %v1936 = vunpack.c.h.b16 %v1846
    %v1937 = vunpack.c.l.b16 %v1847
    %v1938 = vunpack.c.l.b16 %v1848
    %v1939 = vunpack.c.h.b16 %v1848
    %v1940 = vunpack.c.l.b16 %v1849
    %v1941 = vunpack.c.l.b16 %v1850
    %v1942 = vunpack.c.h.b16 %v1850
    %v1943 = vunpack.c.l.b16 %v1851
    %v1944 = vunpack.c.l.b16 %v1852
    %v1945 = vunpack.c.h.b16 %v1852
    %v1946 = vunpack.c.l.b16 %v1853
    %v1947 = vunpack.c.l.b16 %v1854
    %v1948 = vunpack.c.h.b16 %v1854
    %v1949 = vunpack.c.l.b16 %v1855
    %v1950 = vunpack.c.l.b16 %v1856
    %v1951 = vunpack.c.h.b16 %v1856
    %v1952 = vunpack.c.l.b16 %v1857
    %v1953 = vunpack.c.l.b16 %v1858
    %v1954 = vunpack.c.h.b16 %v1858
    %v1955 = vunpack.c.l.b16 %v1859
    %v1956 = vunpack.c.l.b16 %v1860
    %v1957 = vunpack.c.h.b16 %v1860
    %v1958 = vunpack.c.l.b16 %v1861
    %v1959 = vunpack.c.l.b16 %v1862
    %v1960 = vunpack.c.h.b16 %v1862
    %v1961 = vunpack.c.l.b16 %v1863
    %v1962 = vpack.c.b16 %v1917, %v1914
    %v1963 = vpack.c.b16 %v1918, %v1915
    %v1964 = vpack.c.b16 %v1919, %v1916
    %v1965 = vpack.c.b16 %v1923, %v1920
    %v1966 = vpack.c.b16 %v1924, %v1921
    %v1967 = vpack.c.b16 %v1925, %v1922
    %v1968 = vpack.c.b16 %v1929, %v1926
    %v1969 = vpack.c.b16 %v1930, %v1927
    %v1970 = vpack.c.b16 %v1931, %v1928
    %v1971 = vpack.c.b16 %v1935, %v1932
    %v1972 = vpack.c.b16 %v1936, %v1933
    %v1973 = vpack.c.b16 %v1937, %v1934
    %v1974 = vpack.c.b16 %v1941, %v1938
    %v1975 = vpack.c.b16 %v1942, %v1939
    %v1976 = vpack.c.b16 %v1943, %v1940
    %v1977 = vpack.c.b16 %v1947, %v1944
    %v1978 = vpack.c.b16 %v1948, %v1945
    %v1979 = vpack.c.b16 %v1949, %v1946
    %v1980 = vpack.c.b16 %v1953, %v1950
    %v1981 = vpack.c.b16 %v1954, %v1951
    %v1982 = vpack.c.b16 %v1955, %v1952
    %v1983 = vpack.c.b16 %v1959, %v1956
    %v1984 = vpack.c.b16 %v1960, %v1957
    %v1985 = vpack.c.b16 %v1961, %v1958
    %2010 = vmatprep.subr.bf16.mxu0 %v1984
    %2011 = vmatpush1.bf16.msra.mxu0 %v1983
    %2012 = vmatprep.subr.bf16.mxu0 %v1981
    %2013 = vmatpush1.bf16.msra.mxu0 %v1980
    %2014 = vmatprep.subr.bf16.mxu0 %v1978
    %2015 = vmatpush1.bf16.msra.mxu0 %v1977
    %2016 = vmatprep.subr.bf16.mxu0 %v1975
    %2017 = vmatpush1.bf16.msra.mxu0 %v1974
    %2018 = vmatprep.subr.bf16.mxu0 %v1972
    %2019 = vmatpush1.bf16.msra.mxu0 %v1971
    %2020 = vmatprep.subr.bf16.mxu0 %v1969
    %2021 = vmatpush1.bf16.msra.mxu0 %v1968
    %2022 = vmatprep.subr.bf16.mxu0 %v1966
    %2023 = vmatpush1.bf16.msra.mxu0 %v1965
    %2024 = vmatprep.subr.bf16.mxu0 %v1963
    %2025 = vmatpush1.bf16.msra.mxu0 %v1962
    %2026 = vmatprep.subr.bf16.mxu0 0
    %2027 = vmatpush2.bf16.msra.mxu0 0
    %2028 = vmatprep.subr.bf16.mxu0 0
    %2029 = vmatpush2.bf16.msra.mxu0 0
    %2030 = vmatprep.subr.bf16.mxu0 0
    %2031 = vmatpush2.bf16.msra.mxu0 0
    %2032 = vmatprep.subr.bf16.mxu0 0
    %2033 = vmatpush2.bf16.msra.mxu0 0
    %2034 = vmatprep.subr.bf16.mxu0 0
    %2035 = vmatpush2.bf16.msra.mxu0 0
    %2036 = vmatprep.subr.bf16.mxu0 0
    %2037 = vmatpush2.bf16.msra.mxu0 0
    %2038 = vmatprep.subr.bf16.mxu0 0
    %2039 = vmatpush2.bf16.msra.mxu0 0
    %2040 = vmatprep.subr.bf16.mxu0 0
    %2041 = vmatpush2.bf16.msra.mxu0 0
    %2042 = vmatprep.mubr.bf16.mxu0 0
    %2043 = vmatmul.mubr.bf16.gmra.mxu0 %v1864
    %v2044 = vpop.f32.mrf.mxu0
    %v2045 = vadd.f32 %v1870, %v2044
    %v2046 = vpop.f32.mrf.mxu0
    %v2047 = vadd.f32 %v1874, %v2046
    %v2048 = vpop.f32.mrf.mxu0
    %v2049 = vadd.f32 %v1870, %v2048
    %v2050 = vpop.f32.mrf.mxu0
    %v2051 = vadd.f32 %v1874, %v2050
    %2052 = vdwg.mxu0
    %2053 = vmatprep.subr.bf16.mxu0 0
    %2054 = vmatpush1.bf16.msra.mxu0 %v1985
    %2055 = vmatprep.subr.bf16.mxu0 0
    %2056 = vmatpush1.bf16.msra.mxu0 %v1982
    %2057 = vmatprep.subr.bf16.mxu0 0
    %2058 = vmatpush1.bf16.msra.mxu0 %v1979
    %2059 = vmatprep.subr.bf16.mxu0 0
    %2060 = vmatpush1.bf16.msra.mxu0 %v1976
    %2061 = vmatprep.subr.bf16.mxu0 0
    %2062 = vmatpush1.bf16.msra.mxu0 %v1973
    %2063 = vmatprep.subr.bf16.mxu0 0
    %2064 = vmatpush1.bf16.msra.mxu0 %v1970
    %2065 = vmatprep.subr.bf16.mxu0 0
    %2066 = vmatpush1.bf16.msra.mxu0 %v1967
    %2067 = vmatprep.subr.bf16.mxu0 0
    %2068 = vmatpush1.bf16.msra.mxu0 %v1964
    %2069 = vmatprep.subr.bf16.mxu0 0
    %2070 = vmatpush2.bf16.msra.mxu0 0
    %2071 = vmatprep.subr.bf16.mxu0 0
    %2072 = vmatpush2.bf16.msra.mxu0 0
    %2073 = vmatprep.subr.bf16.mxu0 0
    %2074 = vmatpush2.bf16.msra.mxu0 0
    %2075 = vmatprep.subr.bf16.mxu0 0
    %2076 = vmatpush2.bf16.msra.mxu0 0
    %2077 = vmatprep.subr.bf16.mxu0 0
    %2078 = vmatpush2.bf16.msra.mxu0 0
    %2079 = vmatprep.subr.bf16.mxu0 0
    %2080 = vmatpush2.bf16.msra.mxu0 0
    %2081 = vmatprep.subr.bf16.mxu0 0
    %2082 = vmatpush2.bf16.msra.mxu0 0
    %2083 = vmatprep.subr.bf16.mxu0 0
    %2084 = vmatpush2.bf16.msra.mxu0 0
    %2085 = vmatprep.mubr.bf16.mxu0 0
    %2086 = vmatmul.mubr.bf16.gmra.mxu0 %v1864
    %v2087 = vpop.f32.mrf.mxu0
    %v2088 = vadd.f32 %v1878, %v2087
    %v2089 = vpop.f32.mrf.mxu0
    %v2090 = vpop.f32.mrf.mxu0
    %v2091 = vadd.f32 %v1878, %v2090
    %v2092 = vpop.f32.mrf.mxu0
    %2093 = vdwg.mxu0
    %v2094 = vpack.c.bf16 %v2049, %v2045
    %v2095 = vpack.c.bf16 %v2051, %v2047
    %v2096 = vpack.c.bf16 %v2091, %v2088
    %v2098 = vunpack.c.l.b16 %v2094
    %v2099 = vunpack.c.h.b16 %v2094
    %v2100 = vpack.c.b16 %v2098, %v2098
    %v2101 = vpack.c.b16 %v2099, %v2099
    %2102 = vrot.lane.b32.xlu0 %v2100, 112
    %v2103 = vpop.permute.xlu0 %2102
    %2104 = vrot.lane.b32.xlu0 %v2101, 112
    %v2105 = vpop.permute.xlu0 %2104
    %2106 = vrot.lane.b32.xlu0 %v2100, 96
    %v2107 = vpop.permute.xlu0 %2106
    %2108 = vrot.lane.b32.xlu0 %v2101, 96
    %v2109 = vpop.permute.xlu0 %2108
    %2110 = vrot.lane.b32.xlu0 %v2100, 80
    %v2111 = vpop.permute.xlu0 %2110
    %2112 = vrot.lane.b32.xlu0 %v2101, 80
    %v2113 = vpop.permute.xlu0 %2112
    %2114 = vrot.lane.b32.xlu0 %v2100, 64
    %v2115 = vpop.permute.xlu0 %2114
    %2116 = vrot.lane.b32.xlu0 %v2101, 64
    %v2117 = vpop.permute.xlu0 %2116
    %2118 = vrot.lane.b32.xlu0 %v2100, 48
    %v2119 = vpop.permute.xlu0 %2118
    %2120 = vrot.lane.b32.xlu0 %v2101, 48
    %v2121 = vpop.permute.xlu0 %2120
    %2122 = vrot.lane.b32.xlu0 %v2100, 32
    %v2123 = vpop.permute.xlu0 %2122
    %2124 = vrot.lane.b32.xlu0 %v2101, 32
    %v2125 = vpop.permute.xlu0 %2124
    %2126 = vrot.lane.b32.xlu0 %v2100, 16
    %v2127 = vpop.permute.xlu0 %2126
    %2128 = vrot.lane.b32.xlu0 %v2101, 16
    %v2129 = vpop.permute.xlu0 %2128
    %v2131 = vunpack.c.l.b16 %v2095
    %v2132 = vunpack.c.h.b16 %v2095
    %v2133 = vpack.c.b16 %v2131, %v2131
    %v2134 = vpack.c.b16 %v2132, %v2132
    %2135 = vrot.lane.b32.xlu0 %v2133, 112
    %v2136 = vpop.permute.xlu0 %2135
    %2137 = vrot.lane.b32.xlu0 %v2134, 112
    %v2138 = vpop.permute.xlu0 %2137
    %2139 = vrot.lane.b32.xlu0 %v2133, 96
    %v2140 = vpop.permute.xlu0 %2139
    %2141 = vrot.lane.b32.xlu0 %v2134, 96
    %v2142 = vpop.permute.xlu0 %2141
    %2143 = vrot.lane.b32.xlu0 %v2133, 80
    %v2144 = vpop.permute.xlu0 %2143
    %2145 = vrot.lane.b32.xlu0 %v2134, 80
    %v2146 = vpop.permute.xlu0 %2145
    %2147 = vrot.lane.b32.xlu0 %v2133, 64
    %v2148 = vpop.permute.xlu0 %2147
    %2149 = vrot.lane.b32.xlu0 %v2134, 64
    %v2150 = vpop.permute.xlu0 %2149
    %2151 = vrot.lane.b32.xlu0 %v2133, 48
    %v2152 = vpop.permute.xlu0 %2151
    %2153 = vrot.lane.b32.xlu0 %v2134, 48
    %v2154 = vpop.permute.xlu0 %2153
    %2155 = vrot.lane.b32.xlu0 %v2133, 32
    %v2156 = vpop.permute.xlu0 %2155
    %2157 = vrot.lane.b32.xlu0 %v2134, 32
    %v2158 = vpop.permute.xlu0 %2157
    %2159 = vrot.lane.b32.xlu0 %v2133, 16
    %v2160 = vpop.permute.xlu0 %2159
    %2161 = vrot.lane.b32.xlu0 %v2134, 16
    %v2162 = vpop.permute.xlu0 %2161
    %v2164 = vunpack.c.l.b16 %v2096
    %v2165 = vunpack.c.h.b16 %v2096
    %v2166 = vpack.c.b16 %v2164, %v2164
    %v2167 = vpack.c.b16 %v2165, %v2165
    %2168 = vrot.lane.b32.xlu0 %v2166, 112
    %v2169 = vpop.permute.xlu0 %2168
    %2170 = vrot.lane.b32.xlu0 %v2167, 112
    %v2171 = vpop.permute.xlu0 %2170
    %2172 = vrot.lane.b32.xlu0 %v2166, 96
    %v2173 = vpop.permute.xlu0 %2172
    %2174 = vrot.lane.b32.xlu0 %v2167, 96
    %v2175 = vpop.permute.xlu0 %2174
    %2176 = vrot.lane.b32.xlu0 %v2166, 80
    %v2177 = vpop.permute.xlu0 %2176
    %2178 = vrot.lane.b32.xlu0 %v2167, 80
    %v2179 = vpop.permute.xlu0 %2178
    %2180 = vrot.lane.b32.xlu0 %v2166, 64
    %v2181 = vpop.permute.xlu0 %2180
    %2182 = vrot.lane.b32.xlu0 %v2167, 64
    %v2183 = vpop.permute.xlu0 %2182
    %2184 = vrot.lane.b32.xlu0 %v2166, 48
    %v2185 = vpop.permute.xlu0 %2184
    %2186 = vrot.lane.b32.xlu0 %v2167, 48
    %v2187 = vpop.permute.xlu0 %2186
    %2188 = vrot.lane.b32.xlu0 %v2166, 32
    %v2189 = vpop.permute.xlu0 %2188
    %2190 = vrot.lane.b32.xlu0 %v2167, 32
    %v2191 = vpop.permute.xlu0 %2190
    %2192 = vrot.lane.b32.xlu0 %v2166, 16
    %v2193 = vpop.permute.xlu0 %2192
    %2194 = vrot.lane.b32.xlu0 %v2167, 16
    %v2195 = vpop.permute.xlu0 %2194
    %vm2196 = vcmask 130048
    %v2198 = vsel %vm2196, %v2100, 0
    %v2201 = vsel %vm2196, %v2133, 0
    %2203 = vmatprep.subr.bf16.mxu0 0
    %2204 = vmatpush1.bf16.xpose.msra.mxu0 0
    %2205 = vmatprep.subr.bf16.mxu0 0
    %2206 = vmatpush1.bf16.xpose.msra.mxu0 0
    %2207 = vmatprep.subr.bf16.mxu0 0
    %2208 = vmatpush1.bf16.xpose.msra.mxu0 0
    %2209 = vmatprep.subr.bf16.mxu0 0
    %2210 = vmatpush1.bf16.xpose.msra.mxu0 0
    %2211 = vmatprep.subr.bf16.mxu0 0
    %2212 = vmatpush1.bf16.xpose.msra.mxu0 0
    %2213 = vmatprep.subr.bf16.mxu0 0
    %2214 = vmatpush1.bf16.xpose.msra.mxu0 0
    %2215 = vmatprep.subr.bf16.mxu0 0
    %2216 = vmatpush1.bf16.xpose.msra.mxu0 0
    %2217 = vmatprep.subr.bf16.mxu0 0
    %2218 = vmatpush1.bf16.xpose.msra.mxu0 %v2201
    %2219 = vmatprep.subr.bf16.mxu0 0
    %2220 = vmatpush2.bf16.xpose.msra.mxu0 0
    %2221 = vmatprep.subr.bf16.mxu0 0
    %2222 = vmatpush2.bf16.xpose.msra.mxu0 0
    %2223 = vmatprep.subr.bf16.mxu0 0
    %2224 = vmatpush2.bf16.xpose.msra.mxu0 0
    %2225 = vmatprep.subr.bf16.mxu0 0
    %2226 = vmatpush2.bf16.xpose.msra.mxu0 0
    %2227 = vmatprep.subr.bf16.mxu0 0
    %2228 = vmatpush2.bf16.xpose.msra.mxu0 0
    %2229 = vmatprep.subr.bf16.mxu0 0
    %2230 = vmatpush2.bf16.xpose.msra.mxu0 0
    %2231 = vmatprep.subr.bf16.mxu0 0
    %2232 = vmatpush2.bf16.xpose.msra.mxu0 0
    %2233 = vmatprep.subr.bf16.mxu0 0
    %2234 = vmatpush2.bf16.xpose.msra.mxu0 0
    %2235 = vmatprep.mubr.bf16.mxu0 0
    %2236 = vmatmul.mubr.bf16.gmra.mxu0 %v2198
    %v2237 = vpop.f32.mrf.mxu0
    %v2238 = vadd.f32 0.0, %v2237
    %v2239 = vpop.f32.mrf.mxu0
    %v2240 = vpop.f32.mrf.mxu0
    %v2241 = vpop.f32.mrf.mxu0
    %2242 = vdwg.mxu0
    %v2244 = vsel %vm2196, %v2101, 0
    %v2247 = vsel %vm2196, %v2134, 0
    %2249 = vmatprep.subr.bf16.mxu0 0
    %2250 = vmatpush1.bf16.xpose.msra.mxu0 0
    %2251 = vmatprep.subr.bf16.mxu0 0
    %2252 = vmatpush1.bf16.xpose.msra.mxu0 0
    %2253 = vmatprep.subr.bf16.mxu0 0
    %2254 = vmatpush1.bf16.xpose.msra.mxu0 0
    %2255 = vmatprep.subr.bf16.mxu0 0
    %2256 = vmatpush1.bf16.xpose.msra.mxu0 0
    %2257 = vmatprep.subr.bf16.mxu0 0
    %2258 = vmatpush1.bf16.xpose.msra.mxu0 0
    %2259 = vmatprep.subr.bf16.mxu0 0
    %2260 = vmatpush1.bf16.xpose.msra.mxu0 0
    %2261 = vmatprep.subr.bf16.mxu0 0
    %2262 = vmatpush1.bf16.xpose.msra.mxu0 0
    %2263 = vmatprep.subr.bf16.mxu0 0
    %2264 = vmatpush1.bf16.xpose.msra.mxu0 %v2247
    %2265 = vmatprep.subr.bf16.mxu0 0
    %2266 = vmatpush2.bf16.xpose.msra.mxu0 0
    %2267 = vmatprep.subr.bf16.mxu0 0
    %2268 = vmatpush2.bf16.xpose.msra.mxu0 0
    %2269 = vmatprep.subr.bf16.mxu0 0
    %2270 = vmatpush2.bf16.xpose.msra.mxu0 0
    %2271 = vmatprep.subr.bf16.mxu0 0
    %2272 = vmatpush2.bf16.xpose.msra.mxu0 0
    %2273 = vmatprep.subr.bf16.mxu0 0
    %2274 = vmatpush2.bf16.xpose.msra.mxu0 0
    %2275 = vmatprep.subr.bf16.mxu0 0
    %2276 = vmatpush2.bf16.xpose.msra.mxu0 0
    %2277 = vmatprep.subr.bf16.mxu0 0
    %2278 = vmatpush2.bf16.xpose.msra.mxu0 0
    %2279 = vmatprep.subr.bf16.mxu0 0
    %2280 = vmatpush2.bf16.xpose.msra.mxu0 0
    %2281 = vmatprep.mubr.bf16.mxu0 0
    %2282 = vmatmul.mubr.bf16.gmra.mxu0 %v2244
    %v2283 = vpop.f32.mrf.mxu0
    %v2284 = vadd.f32 0.0, %v2283
    %v2285 = vpop.f32.mrf.mxu0
    %v2286 = vpop.f32.mrf.mxu0
    %v2287 = vpop.f32.mrf.mxu0
    %2288 = vdwg.mxu0
    %v2290 = vsel %vm2196, %v2103, 0
    %v2293 = vsel %vm2196, %v2136, 0
    %2295 = vmatprep.subr.bf16.mxu0 0
    %2296 = vmatpush1.bf16.xpose.msra.mxu0 0
    %2297 = vmatprep.subr.bf16.mxu0 0
    %2298 = vmatpush1.bf16.xpose.msra.mxu0 0
    %2299 = vmatprep.subr.bf16.mxu0 0
    %2300 = vmatpush1.bf16.xpose.msra.mxu0 0
    %2301 = vmatprep.subr.bf16.mxu0 0
    %2302 = vmatpush1.bf16.xpose.msra.mxu0 0
    %2303 = vmatprep.subr.bf16.mxu0 0
    %2304 = vmatpush1.bf16.xpose.msra.mxu0 0
    %2305 = vmatprep.subr.bf16.mxu0 0
    %2306 = vmatpush1.bf16.xpose.msra.mxu0 0
    %2307 = vmatprep.subr.bf16.mxu0 0
    %2308 = vmatpush1.bf16.xpose.msra.mxu0 0
    %2309 = vmatprep.subr.bf16.mxu0 0
    %2310 = vmatpush1.bf16.xpose.msra.mxu0 %v2293
    %2311 = vmatprep.subr.bf16.mxu0 0
    %2312 = vmatpush2.bf16.xpose.msra.mxu0 0
    %2313 = vmatprep.subr.bf16.mxu0 0
    %2314 = vmatpush2.bf16.xpose.msra.mxu0 0
    %2315 = vmatprep.subr.bf16.mxu0 0
    %2316 = vmatpush2.bf16.xpose.msra.mxu0 0
    %2317 = vmatprep.subr.bf16.mxu0 0
    %2318 = vmatpush2.bf16.xpose.msra.mxu0 0
    %2319 = vmatprep.subr.bf16.mxu0 0
    %2320 = vmatpush2.bf16.xpose.msra.mxu0 0
    %2321 = vmatprep.subr.bf16.mxu0 0
    %2322 = vmatpush2.bf16.xpose.msra.mxu0 0
    %2323 = vmatprep.subr.bf16.mxu0 0
    %2324 = vmatpush2.bf16.xpose.msra.mxu0 0
    %2325 = vmatprep.subr.bf16.mxu0 0
    %2326 = vmatpush2.bf16.xpose.msra.mxu0 0
    %2327 = vmatprep.mubr.bf16.mxu0 0
    %2328 = vmatmul.mubr.bf16.gmra.mxu0 %v2290
    %v2329 = vpop.f32.mrf.mxu0
    %v2330 = vadd.f32 0.0, %v2329
    %v2331 = vpop.f32.mrf.mxu0
    %v2332 = vpop.f32.mrf.mxu0
    %v2333 = vpop.f32.mrf.mxu0
    %2334 = vdwg.mxu0
    %v2336 = vsel %vm2196, %v2105, 0
    %v2339 = vsel %vm2196, %v2138, 0
    %2341 = vmatprep.subr.bf16.mxu0 0
    %2342 = vmatpush1.bf16.xpose.msra.mxu0 0
    %2343 = vmatprep.subr.bf16.mxu0 0
    %2344 = vmatpush1.bf16.xpose.msra.mxu0 0
    %2345 = vmatprep.subr.bf16.mxu0 0
    %2346 = vmatpush1.bf16.xpose.msra.mxu0 0
    %2347 = vmatprep.subr.bf16.mxu0 0
    %2348 = vmatpush1.bf16.xpose.msra.mxu0 0
    %2349 = vmatprep.subr.bf16.mxu0 0
    %2350 = vmatpush1.bf16.xpose.msra.mxu0 0
    %2351 = vmatprep.subr.bf16.mxu0 0
    %2352 = vmatpush1.bf16.xpose.msra.mxu0 0
    %2353 = vmatprep.subr.bf16.mxu0 0
    %2354 = vmatpush1.bf16.xpose.msra.mxu0 0
    %2355 = vmatprep.subr.bf16.mxu0 0
    %2356 = vmatpush1.bf16.xpose.msra.mxu0 %v2339
    %2357 = vmatprep.subr.bf16.mxu0 0
    %2358 = vmatpush2.bf16.xpose.msra.mxu0 0
    %2359 = vmatprep.subr.bf16.mxu0 0
    %2360 = vmatpush2.bf16.xpose.msra.mxu0 0
    %2361 = vmatprep.subr.bf16.mxu0 0
    %2362 = vmatpush2.bf16.xpose.msra.mxu0 0
    %2363 = vmatprep.subr.bf16.mxu0 0
    %2364 = vmatpush2.bf16.xpose.msra.mxu0 0
    %2365 = vmatprep.subr.bf16.mxu0 0
    %2366 = vmatpush2.bf16.xpose.msra.mxu0 0
    %2367 = vmatprep.subr.bf16.mxu0 0
    %2368 = vmatpush2.bf16.xpose.msra.mxu0 0
    %2369 = vmatprep.subr.bf16.mxu0 0
    %2370 = vmatpush2.bf16.xpose.msra.mxu0 0
    %2371 = vmatprep.subr.bf16.mxu0 0
    %2372 = vmatpush2.bf16.xpose.msra.mxu0 0
    %2373 = vmatprep.mubr.bf16.mxu0 0
    %2374 = vmatmul.mubr.bf16.gmra.mxu0 %v2336
    %v2375 = vpop.f32.mrf.mxu0
    %v2376 = vadd.f32 0.0, %v2375
    %v2377 = vpop.f32.mrf.mxu0
    %v2378 = vpop.f32.mrf.mxu0
    %v2379 = vpop.f32.mrf.mxu0
    %2380 = vdwg.mxu0
    %v2382 = vsel %vm2196, %v2107, 0
    %v2385 = vsel %vm2196, %v2140, 0
    %2387 = vmatprep.subr.bf16.mxu0 0
    %2388 = vmatpush1.bf16.xpose.msra.mxu0 0
    %2389 = vmatprep.subr.bf16.mxu0 0
    %2390 = vmatpush1.bf16.xpose.msra.mxu0 0
    %2391 = vmatprep.subr.bf16.mxu0 0
    %2392 = vmatpush1.bf16.xpose.msra.mxu0 0
    %2393 = vmatprep.subr.bf16.mxu0 0
    %2394 = vmatpush1.bf16.xpose.msra.mxu0 0
    %2395 = vmatprep.subr.bf16.mxu0 0
    %2396 = vmatpush1.bf16.xpose.msra.mxu0 0
    %2397 = vmatprep.subr.bf16.mxu0 0
    %2398 = vmatpush1.bf16.xpose.msra.mxu0 0
    %2399 = vmatprep.subr.bf16.mxu0 0
    %2400 = vmatpush1.bf16.xpose.msra.mxu0 0
    %2401 = vmatprep.subr.bf16.mxu0 0
    %2402 = vmatpush1.bf16.xpose.msra.mxu0 %v2385
    %2403 = vmatprep.subr.bf16.mxu0 0
    %2404 = vmatpush2.bf16.xpose.msra.mxu0 0
    %2405 = vmatprep.subr.bf16.mxu0 0
    %2406 = vmatpush2.bf16.xpose.msra.mxu0 0
    %2407 = vmatprep.subr.bf16.mxu0 0
    %2408 = vmatpush2.bf16.xpose.msra.mxu0 0
    %2409 = vmatprep.subr.bf16.mxu0 0
    %2410 = vmatpush2.bf16.xpose.msra.mxu0 0
    %2411 = vmatprep.subr.bf16.mxu0 0
    %2412 = vmatpush2.bf16.xpose.msra.mxu0 0
    %2413 = vmatprep.subr.bf16.mxu0 0
    %2414 = vmatpush2.bf16.xpose.msra.mxu0 0
    %2415 = vmatprep.subr.bf16.mxu0 0
    %2416 = vmatpush2.bf16.xpose.msra.mxu0 0
    %2417 = vmatprep.subr.bf16.mxu0 0
    %2418 = vmatpush2.bf16.xpose.msra.mxu0 0
    %2419 = vmatprep.mubr.bf16.mxu0 0
    %2420 = vmatmul.mubr.bf16.gmra.mxu0 %v2382
    %v2421 = vpop.f32.mrf.mxu0
    %v2422 = vadd.f32 0.0, %v2421
    %v2423 = vpop.f32.mrf.mxu0
    %v2424 = vpop.f32.mrf.mxu0
    %v2425 = vpop.f32.mrf.mxu0
    %2426 = vdwg.mxu0
    %v2428 = vsel %vm2196, %v2109, 0
    %v2431 = vsel %vm2196, %v2142, 0
    %2433 = vmatprep.subr.bf16.mxu0 0
    %2434 = vmatpush1.bf16.xpose.msra.mxu0 0
    %2435 = vmatprep.subr.bf16.mxu0 0
    %2436 = vmatpush1.bf16.xpose.msra.mxu0 0
    %2437 = vmatprep.subr.bf16.mxu0 0
    %2438 = vmatpush1.bf16.xpose.msra.mxu0 0
    %2439 = vmatprep.subr.bf16.mxu0 0
    %2440 = vmatpush1.bf16.xpose.msra.mxu0 0
    %2441 = vmatprep.subr.bf16.mxu0 0
    %2442 = vmatpush1.bf16.xpose.msra.mxu0 0
    %2443 = vmatprep.subr.bf16.mxu0 0
    %2444 = vmatpush1.bf16.xpose.msra.mxu0 0
    %2445 = vmatprep.subr.bf16.mxu0 0
    %2446 = vmatpush1.bf16.xpose.msra.mxu0 0
    %2447 = vmatprep.subr.bf16.mxu0 0
    %2448 = vmatpush1.bf16.xpose.msra.mxu0 %v2431
    %2449 = vmatprep.subr.bf16.mxu0 0
    %2450 = vmatpush2.bf16.xpose.msra.mxu0 0
    %2451 = vmatprep.subr.bf16.mxu0 0
    %2452 = vmatpush2.bf16.xpose.msra.mxu0 0
    %2453 = vmatprep.subr.bf16.mxu0 0
    %2454 = vmatpush2.bf16.xpose.msra.mxu0 0
    %2455 = vmatprep.subr.bf16.mxu0 0
    %2456 = vmatpush2.bf16.xpose.msra.mxu0 0
    %2457 = vmatprep.subr.bf16.mxu0 0
    %2458 = vmatpush2.bf16.xpose.msra.mxu0 0
    %2459 = vmatprep.subr.bf16.mxu0 0
    %2460 = vmatpush2.bf16.xpose.msra.mxu0 0
    %2461 = vmatprep.subr.bf16.mxu0 0
    %2462 = vmatpush2.bf16.xpose.msra.mxu0 0
    %2463 = vmatprep.subr.bf16.mxu0 0
    %2464 = vmatpush2.bf16.xpose.msra.mxu0 0
    %2465 = vmatprep.mubr.bf16.mxu0 0
    %2466 = vmatmul.mubr.bf16.gmra.mxu0 %v2428
    %v2467 = vpop.f32.mrf.mxu0
    %v2468 = vadd.f32 0.0, %v2467
    %v2469 = vpop.f32.mrf.mxu0
    %v2470 = vpop.f32.mrf.mxu0
    %v2471 = vpop.f32.mrf.mxu0
    %2472 = vdwg.mxu0
    %v2474 = vsel %vm2196, %v2111, 0
    %v2477 = vsel %vm2196, %v2144, 0
    %2479 = vmatprep.subr.bf16.mxu0 0
    %2480 = vmatpush1.bf16.xpose.msra.mxu0 0
    %2481 = vmatprep.subr.bf16.mxu0 0
    %2482 = vmatpush1.bf16.xpose.msra.mxu0 0
    %2483 = vmatprep.subr.bf16.mxu0 0
    %2484 = vmatpush1.bf16.xpose.msra.mxu0 0
    %2485 = vmatprep.subr.bf16.mxu0 0
    %2486 = vmatpush1.bf16.xpose.msra.mxu0 0
    %2487 = vmatprep.subr.bf16.mxu0 0
    %2488 = vmatpush1.bf16.xpose.msra.mxu0 0
    %2489 = vmatprep.subr.bf16.mxu0 0
    %2490 = vmatpush1.bf16.xpose.msra.mxu0 0
    %2491 = vmatprep.subr.bf16.mxu0 0
    %2492 = vmatpush1.bf16.xpose.msra.mxu0 0
    %2493 = vmatprep.subr.bf16.mxu0 0
    %2494 = vmatpush1.bf16.xpose.msra.mxu0 %v2477
    %2495 = vmatprep.subr.bf16.mxu0 0
    %2496 = vmatpush2.bf16.xpose.msra.mxu0 0
    %2497 = vmatprep.subr.bf16.mxu0 0
    %2498 = vmatpush2.bf16.xpose.msra.mxu0 0
    %2499 = vmatprep.subr.bf16.mxu0 0
    %2500 = vmatpush2.bf16.xpose.msra.mxu0 0
    %2501 = vmatprep.subr.bf16.mxu0 0
    %2502 = vmatpush2.bf16.xpose.msra.mxu0 0
    %2503 = vmatprep.subr.bf16.mxu0 0
    %2504 = vmatpush2.bf16.xpose.msra.mxu0 0
    %2505 = vmatprep.subr.bf16.mxu0 0
    %2506 = vmatpush2.bf16.xpose.msra.mxu0 0
    %2507 = vmatprep.subr.bf16.mxu0 0
    %2508 = vmatpush2.bf16.xpose.msra.mxu0 0
    %2509 = vmatprep.subr.bf16.mxu0 0
    %2510 = vmatpush2.bf16.xpose.msra.mxu0 0
    %2511 = vmatprep.mubr.bf16.mxu0 0
    %2512 = vmatmul.mubr.bf16.gmra.mxu0 %v2474
    %v2513 = vpop.f32.mrf.mxu0
    %v2514 = vadd.f32 0.0, %v2513
    %v2515 = vpop.f32.mrf.mxu0
    %v2516 = vpop.f32.mrf.mxu0
    %v2517 = vpop.f32.mrf.mxu0
    %2518 = vdwg.mxu0
    %v2520 = vsel %vm2196, %v2113, 0
    %v2523 = vsel %vm2196, %v2146, 0
    %2525 = vmatprep.subr.bf16.mxu0 0
    %2526 = vmatpush1.bf16.xpose.msra.mxu0 0
    %2527 = vmatprep.subr.bf16.mxu0 0
    %2528 = vmatpush1.bf16.xpose.msra.mxu0 0
    %2529 = vmatprep.subr.bf16.mxu0 0
    %2530 = vmatpush1.bf16.xpose.msra.mxu0 0
    %2531 = vmatprep.subr.bf16.mxu0 0
    %2532 = vmatpush1.bf16.xpose.msra.mxu0 0
    %2533 = vmatprep.subr.bf16.mxu0 0
    %2534 = vmatpush1.bf16.xpose.msra.mxu0 0
    %2535 = vmatprep.subr.bf16.mxu0 0
    %2536 = vmatpush1.bf16.xpose.msra.mxu0 0
    %2537 = vmatprep.subr.bf16.mxu0 0
    %2538 = vmatpush1.bf16.xpose.msra.mxu0 0
    %2539 = vmatprep.subr.bf16.mxu0 0
    %2540 = vmatpush1.bf16.xpose.msra.mxu0 %v2523
    %2541 = vmatprep.subr.bf16.mxu0 0
    %2542 = vmatpush2.bf16.xpose.msra.mxu0 0
    %2543 = vmatprep.subr.bf16.mxu0 0
    %2544 = vmatpush2.bf16.xpose.msra.mxu0 0
    %2545 = vmatprep.subr.bf16.mxu0 0
    %2546 = vmatpush2.bf16.xpose.msra.mxu0 0
    %2547 = vmatprep.subr.bf16.mxu0 0
    %2548 = vmatpush2.bf16.xpose.msra.mxu0 0
    %2549 = vmatprep.subr.bf16.mxu0 0
    %2550 = vmatpush2.bf16.xpose.msra.mxu0 0
    %2551 = vmatprep.subr.bf16.mxu0 0
    %2552 = vmatpush2.bf16.xpose.msra.mxu0 0
    %2553 = vmatprep.subr.bf16.mxu0 0
    %2554 = vmatpush2.bf16.xpose.msra.mxu0 0
    %2555 = vmatprep.subr.bf16.mxu0 0
    %2556 = vmatpush2.bf16.xpose.msra.mxu0 0
    %2557 = vmatprep.mubr.bf16.mxu0 0
    %2558 = vmatmul.mubr.bf16.gmra.mxu0 %v2520
    %v2559 = vpop.f32.mrf.mxu0
    %v2560 = vadd.f32 0.0, %v2559
    %v2561 = vpop.f32.mrf.mxu0
    %v2562 = vpop.f32.mrf.mxu0
    %v2563 = vpop.f32.mrf.mxu0
    %2564 = vdwg.mxu0
    %v2566 = vsel %vm2196, %v2115, 0
    %v2569 = vsel %vm2196, %v2148, 0
    %2571 = vmatprep.subr.bf16.mxu0 0
    %2572 = vmatpush1.bf16.xpose.msra.mxu0 0
    %2573 = vmatprep.subr.bf16.mxu0 0
    %2574 = vmatpush1.bf16.xpose.msra.mxu0 0
    %2575 = vmatprep.subr.bf16.mxu0 0
    %2576 = vmatpush1.bf16.xpose.msra.mxu0 0
    %2577 = vmatprep.subr.bf16.mxu0 0
    %2578 = vmatpush1.bf16.xpose.msra.mxu0 0
    %2579 = vmatprep.subr.bf16.mxu0 0
    %2580 = vmatpush1.bf16.xpose.msra.mxu0 0
    %2581 = vmatprep.subr.bf16.mxu0 0
    %2582 = vmatpush1.bf16.xpose.msra.mxu0 0
    %2583 = vmatprep.subr.bf16.mxu0 0
    %2584 = vmatpush1.bf16.xpose.msra.mxu0 0
    %2585 = vmatprep.subr.bf16.mxu0 0
    %2586 = vmatpush1.bf16.xpose.msra.mxu0 %v2569
    %2587 = vmatprep.subr.bf16.mxu0 0
    %2588 = vmatpush2.bf16.xpose.msra.mxu0 0
    %2589 = vmatprep.subr.bf16.mxu0 0
    %2590 = vmatpush2.bf16.xpose.msra.mxu0 0
    %2591 = vmatprep.subr.bf16.mxu0 0
    %2592 = vmatpush2.bf16.xpose.msra.mxu0 0
    %2593 = vmatprep.subr.bf16.mxu0 0
    %2594 = vmatpush2.bf16.xpose.msra.mxu0 0
    %2595 = vmatprep.subr.bf16.mxu0 0
    %2596 = vmatpush2.bf16.xpose.msra.mxu0 0
    %2597 = vmatprep.subr.bf16.mxu0 0
    %2598 = vmatpush2.bf16.xpose.msra.mxu0 0
    %2599 = vmatprep.subr.bf16.mxu0 0
    %2600 = vmatpush2.bf16.xpose.msra.mxu0 0
    %2601 = vmatprep.subr.bf16.mxu0 0
    %2602 = vmatpush2.bf16.xpose.msra.mxu0 0
    %2603 = vmatprep.mubr.bf16.mxu0 0
    %2604 = vmatmul.mubr.bf16.gmra.mxu0 %v2566
    %v2605 = vpop.f32.mrf.mxu0
    %v2606 = vadd.f32 0.0, %v2605
    %v2607 = vpop.f32.mrf.mxu0
    %v2608 = vpop.f32.mrf.mxu0
    %v2609 = vpop.f32.mrf.mxu0
    %2610 = vdwg.mxu0
    %v2612 = vsel %vm2196, %v2117, 0
    %v2615 = vsel %vm2196, %v2150, 0
    %2617 = vmatprep.subr.bf16.mxu0 0
    %2618 = vmatpush1.bf16.xpose.msra.mxu0 0
    %2619 = vmatprep.subr.bf16.mxu0 0
    %2620 = vmatpush1.bf16.xpose.msra.mxu0 0
    %2621 = vmatprep.subr.bf16.mxu0 0
    %2622 = vmatpush1.bf16.xpose.msra.mxu0 0
    %2623 = vmatprep.subr.bf16.mxu0 0
    %2624 = vmatpush1.bf16.xpose.msra.mxu0 0
    %2625 = vmatprep.subr.bf16.mxu0 0
    %2626 = vmatpush1.bf16.xpose.msra.mxu0 0
    %2627 = vmatprep.subr.bf16.mxu0 0
    %2628 = vmatpush1.bf16.xpose.msra.mxu0 0
    %2629 = vmatprep.subr.bf16.mxu0 0
    %2630 = vmatpush1.bf16.xpose.msra.mxu0 0
    %2631 = vmatprep.subr.bf16.mxu0 0
    %2632 = vmatpush1.bf16.xpose.msra.mxu0 %v2615
    %2633 = vmatprep.subr.bf16.mxu0 0
    %2634 = vmatpush2.bf16.xpose.msra.mxu0 0
    %2635 = vmatprep.subr.bf16.mxu0 0
    %2636 = vmatpush2.bf16.xpose.msra.mxu0 0
    %2637 = vmatprep.subr.bf16.mxu0 0
    %2638 = vmatpush2.bf16.xpose.msra.mxu0 0
    %2639 = vmatprep.subr.bf16.mxu0 0
    %2640 = vmatpush2.bf16.xpose.msra.mxu0 0
    %2641 = vmatprep.subr.bf16.mxu0 0
    %2642 = vmatpush2.bf16.xpose.msra.mxu0 0
    %2643 = vmatprep.subr.bf16.mxu0 0
    %2644 = vmatpush2.bf16.xpose.msra.mxu0 0
    %2645 = vmatprep.subr.bf16.mxu0 0
    %2646 = vmatpush2.bf16.xpose.msra.mxu0 0
    %2647 = vmatprep.subr.bf16.mxu0 0
    %2648 = vmatpush2.bf16.xpose.msra.mxu0 0
    %2649 = vmatprep.mubr.bf16.mxu0 0
    %2650 = vmatmul.mubr.bf16.gmra.mxu0 %v2612
    %v2651 = vpop.f32.mrf.mxu0
    %v2652 = vadd.f32 0.0, %v2651
    %v2653 = vpop.f32.mrf.mxu0
    %v2654 = vpop.f32.mrf.mxu0
    %v2655 = vpop.f32.mrf.mxu0
    %2656 = vdwg.mxu0
    %v2658 = vsel %vm2196, %v2119, 0
    %v2661 = vsel %vm2196, %v2152, 0
    %2663 = vmatprep.subr.bf16.mxu0 0
    %2664 = vmatpush1.bf16.xpose.msra.mxu0 0
    %2665 = vmatprep.subr.bf16.mxu0 0
    %2666 = vmatpush1.bf16.xpose.msra.mxu0 0
    %2667 = vmatprep.subr.bf16.mxu0 0
    %2668 = vmatpush1.bf16.xpose.msra.mxu0 0
    %2669 = vmatprep.subr.bf16.mxu0 0
    %2670 = vmatpush1.bf16.xpose.msra.mxu0 0
    %2671 = vmatprep.subr.bf16.mxu0 0
    %2672 = vmatpush1.bf16.xpose.msra.mxu0 0
    %2673 = vmatprep.subr.bf16.mxu0 0
    %2674 = vmatpush1.bf16.xpose.msra.mxu0 0
    %2675 = vmatprep.subr.bf16.mxu0 0
    %2676 = vmatpush1.bf16.xpose.msra.mxu0 0
    %2677 = vmatprep.subr.bf16.mxu0 0
    %2678 = vmatpush1.bf16.xpose.msra.mxu0 %v2661
    %2679 = vmatprep.subr.bf16.mxu0 0
    %2680 = vmatpush2.bf16.xpose.msra.mxu0 0
    %2681 = vmatprep.subr.bf16.mxu0 0
    %2682 = vmatpush2.bf16.xpose.msra.mxu0 0
    %2683 = vmatprep.subr.bf16.mxu0 0
    %2684 = vmatpush2.bf16.xpose.msra.mxu0 0
    %2685 = vmatprep.subr.bf16.mxu0 0
    %2686 = vmatpush2.bf16.xpose.msra.mxu0 0
    %2687 = vmatprep.subr.bf16.mxu0 0
    %2688 = vmatpush2.bf16.xpose.msra.mxu0 0
    %2689 = vmatprep.subr.bf16.mxu0 0
    %2690 = vmatpush2.bf16.xpose.msra.mxu0 0
    %2691 = vmatprep.subr.bf16.mxu0 0
    %2692 = vmatpush2.bf16.xpose.msra.mxu0 0
    %2693 = vmatprep.subr.bf16.mxu0 0
    %2694 = vmatpush2.bf16.xpose.msra.mxu0 0
    %2695 = vmatprep.mubr.bf16.mxu0 0
    %2696 = vmatmul.mubr.bf16.gmra.mxu0 %v2658
    %v2697 = vpop.f32.mrf.mxu0
    %v2698 = vadd.f32 0.0, %v2697
    %v2699 = vpop.f32.mrf.mxu0
    %v2700 = vpop.f32.mrf.mxu0
    %v2701 = vpop.f32.mrf.mxu0
    %2702 = vdwg.mxu0
    %v2704 = vsel %vm2196, %v2121, 0
    %v2707 = vsel %vm2196, %v2154, 0
    %2709 = vmatprep.subr.bf16.mxu0 0
    %2710 = vmatpush1.bf16.xpose.msra.mxu0 0
    %2711 = vmatprep.subr.bf16.mxu0 0
    %2712 = vmatpush1.bf16.xpose.msra.mxu0 0
    %2713 = vmatprep.subr.bf16.mxu0 0
    %2714 = vmatpush1.bf16.xpose.msra.mxu0 0
    %2715 = vmatprep.subr.bf16.mxu0 0
    %2716 = vmatpush1.bf16.xpose.msra.mxu0 0
    %2717 = vmatprep.subr.bf16.mxu0 0
    %2718 = vmatpush1.bf16.xpose.msra.mxu0 0
    %2719 = vmatprep.subr.bf16.mxu0 0
    %2720 = vmatpush1.bf16.xpose.msra.mxu0 0
    %2721 = vmatprep.subr.bf16.mxu0 0
    %2722 = vmatpush1.bf16.xpose.msra.mxu0 0
    %2723 = vmatprep.subr.bf16.mxu0 0
    %2724 = vmatpush1.bf16.xpose.msra.mxu0 %v2707
    %2725 = vmatprep.subr.bf16.mxu0 0
    %2726 = vmatpush2.bf16.xpose.msra.mxu0 0
    %2727 = vmatprep.subr.bf16.mxu0 0
    %2728 = vmatpush2.bf16.xpose.msra.mxu0 0
    %2729 = vmatprep.subr.bf16.mxu0 0
    %2730 = vmatpush2.bf16.xpose.msra.mxu0 0
    %2731 = vmatprep.subr.bf16.mxu0 0
    %2732 = vmatpush2.bf16.xpose.msra.mxu0 0
    %2733 = vmatprep.subr.bf16.mxu0 0
    %2734 = vmatpush2.bf16.xpose.msra.mxu0 0
    %2735 = vmatprep.subr.bf16.mxu0 0
    %2736 = vmatpush2.bf16.xpose.msra.mxu0 0
    %2737 = vmatprep.subr.bf16.mxu0 0
    %2738 = vmatpush2.bf16.xpose.msra.mxu0 0
    %2739 = vmatprep.subr.bf16.mxu0 0
    %2740 = vmatpush2.bf16.xpose.msra.mxu0 0
    %2741 = vmatprep.mubr.bf16.mxu0 0
    %2742 = vmatmul.mubr.bf16.gmra.mxu0 %v2704
    %v2743 = vpop.f32.mrf.mxu0
    %v2744 = vadd.f32 0.0, %v2743
    %v2745 = vpop.f32.mrf.mxu0
    %v2746 = vpop.f32.mrf.mxu0
    %v2747 = vpop.f32.mrf.mxu0
    %2748 = vdwg.mxu0
    %v2750 = vsel %vm2196, %v2123, 0
    %v2753 = vsel %vm2196, %v2156, 0
    %2755 = vmatprep.subr.bf16.mxu0 0
    %2756 = vmatpush1.bf16.xpose.msra.mxu0 0
    %2757 = vmatprep.subr.bf16.mxu0 0
    %2758 = vmatpush1.bf16.xpose.msra.mxu0 0
    %2759 = vmatprep.subr.bf16.mxu0 0
    %2760 = vmatpush1.bf16.xpose.msra.mxu0 0
    %2761 = vmatprep.subr.bf16.mxu0 0
    %2762 = vmatpush1.bf16.xpose.msra.mxu0 0
    %2763 = vmatprep.subr.bf16.mxu0 0
    %2764 = vmatpush1.bf16.xpose.msra.mxu0 0
    %2765 = vmatprep.subr.bf16.mxu0 0
    %2766 = vmatpush1.bf16.xpose.msra.mxu0 0
    %2767 = vmatprep.subr.bf16.mxu0 0
    %2768 = vmatpush1.bf16.xpose.msra.mxu0 0
    %2769 = vmatprep.subr.bf16.mxu0 0
    %2770 = vmatpush1.bf16.xpose.msra.mxu0 %v2753
    %2771 = vmatprep.subr.bf16.mxu0 0
    %2772 = vmatpush2.bf16.xpose.msra.mxu0 0
    %2773 = vmatprep.subr.bf16.mxu0 0
    %2774 = vmatpush2.bf16.xpose.msra.mxu0 0
    %2775 = vmatprep.subr.bf16.mxu0 0
    %2776 = vmatpush2.bf16.xpose.msra.mxu0 0
    %2777 = vmatprep.subr.bf16.mxu0 0
    %2778 = vmatpush2.bf16.xpose.msra.mxu0 0
    %2779 = vmatprep.subr.bf16.mxu0 0
    %2780 = vmatpush2.bf16.xpose.msra.mxu0 0
    %2781 = vmatprep.subr.bf16.mxu0 0
    %2782 = vmatpush2.bf16.xpose.msra.mxu0 0
    %2783 = vmatprep.subr.bf16.mxu0 0
    %2784 = vmatpush2.bf16.xpose.msra.mxu0 0
    %2785 = vmatprep.subr.bf16.mxu0 0
    %2786 = vmatpush2.bf16.xpose.msra.mxu0 0
    %2787 = vmatprep.mubr.bf16.mxu0 0
    %2788 = vmatmul.mubr.bf16.gmra.mxu0 %v2750
    %v2789 = vpop.f32.mrf.mxu0
    %v2790 = vadd.f32 0.0, %v2789
    %v2791 = vpop.f32.mrf.mxu0
    %v2792 = vpop.f32.mrf.mxu0
    %v2793 = vpop.f32.mrf.mxu0
    %2794 = vdwg.mxu0
    %v2796 = vsel %vm2196, %v2125, 0
    %v2799 = vsel %vm2196, %v2158, 0
    %2801 = vmatprep.subr.bf16.mxu0 0
    %2802 = vmatpush1.bf16.xpose.msra.mxu0 0
    %2803 = vmatprep.subr.bf16.mxu0 0
    %2804 = vmatpush1.bf16.xpose.msra.mxu0 0
    %2805 = vmatprep.subr.bf16.mxu0 0
    %2806 = vmatpush1.bf16.xpose.msra.mxu0 0
    %2807 = vmatprep.subr.bf16.mxu0 0
    %2808 = vmatpush1.bf16.xpose.msra.mxu0 0
    %2809 = vmatprep.subr.bf16.mxu0 0
    %2810 = vmatpush1.bf16.xpose.msra.mxu0 0
    %2811 = vmatprep.subr.bf16.mxu0 0
    %2812 = vmatpush1.bf16.xpose.msra.mxu0 0
    %2813 = vmatprep.subr.bf16.mxu0 0
    %2814 = vmatpush1.bf16.xpose.msra.mxu0 0
    %2815 = vmatprep.subr.bf16.mxu0 0
    %2816 = vmatpush1.bf16.xpose.msra.mxu0 %v2799
    %2817 = vmatprep.subr.bf16.mxu0 0
    %2818 = vmatpush2.bf16.xpose.msra.mxu0 0
    %2819 = vmatprep.subr.bf16.mxu0 0
    %2820 = vmatpush2.bf16.xpose.msra.mxu0 0
    %2821 = vmatprep.subr.bf16.mxu0 0
    %2822 = vmatpush2.bf16.xpose.msra.mxu0 0
    %2823 = vmatprep.subr.bf16.mxu0 0
    %2824 = vmatpush2.bf16.xpose.msra.mxu0 0
    %2825 = vmatprep.subr.bf16.mxu0 0
    %2826 = vmatpush2.bf16.xpose.msra.mxu0 0
    %2827 = vmatprep.subr.bf16.mxu0 0
    %2828 = vmatpush2.bf16.xpose.msra.mxu0 0
    %2829 = vmatprep.subr.bf16.mxu0 0
    %2830 = vmatpush2.bf16.xpose.msra.mxu0 0
    %2831 = vmatprep.subr.bf16.mxu0 0
    %2832 = vmatpush2.bf16.xpose.msra.mxu0 0
    %2833 = vmatprep.mubr.bf16.mxu0 0
    %2834 = vmatmul.mubr.bf16.gmra.mxu0 %v2796
    %v2835 = vpop.f32.mrf.mxu0
    %v2836 = vadd.f32 0.0, %v2835
    %v2837 = vpop.f32.mrf.mxu0
    %v2838 = vpop.f32.mrf.mxu0
    %v2839 = vpop.f32.mrf.mxu0
    %2840 = vdwg.mxu0
    %v2842 = vsel %vm2196, %v2127, 0
    %v2845 = vsel %vm2196, %v2160, 0
    %2847 = vmatprep.subr.bf16.mxu0 0
    %2848 = vmatpush1.bf16.xpose.msra.mxu0 0
    %2849 = vmatprep.subr.bf16.mxu0 0
    %2850 = vmatpush1.bf16.xpose.msra.mxu0 0
    %2851 = vmatprep.subr.bf16.mxu0 0
    %2852 = vmatpush1.bf16.xpose.msra.mxu0 0
    %2853 = vmatprep.subr.bf16.mxu0 0
    %2854 = vmatpush1.bf16.xpose.msra.mxu0 0
    %2855 = vmatprep.subr.bf16.mxu0 0
    %2856 = vmatpush1.bf16.xpose.msra.mxu0 0
    %2857 = vmatprep.subr.bf16.mxu0 0
    %2858 = vmatpush1.bf16.xpose.msra.mxu0 0
    %2859 = vmatprep.subr.bf16.mxu0 0
    %2860 = vmatpush1.bf16.xpose.msra.mxu0 0
    %2861 = vmatprep.subr.bf16.mxu0 0
    %2862 = vmatpush1.bf16.xpose.msra.mxu0 %v2845
    %2863 = vmatprep.subr.bf16.mxu0 0
    %2864 = vmatpush2.bf16.xpose.msra.mxu0 0
    %2865 = vmatprep.subr.bf16.mxu0 0
    %2866 = vmatpush2.bf16.xpose.msra.mxu0 0
    %2867 = vmatprep.subr.bf16.mxu0 0
    %2868 = vmatpush2.bf16.xpose.msra.mxu0 0
    %2869 = vmatprep.subr.bf16.mxu0 0
    %2870 = vmatpush2.bf16.xpose.msra.mxu0 0
    %2871 = vmatprep.subr.bf16.mxu0 0
    %2872 = vmatpush2.bf16.xpose.msra.mxu0 0
    %2873 = vmatprep.subr.bf16.mxu0 0
    %2874 = vmatpush2.bf16.xpose.msra.mxu0 0
    %2875 = vmatprep.subr.bf16.mxu0 0
    %2876 = vmatpush2.bf16.xpose.msra.mxu0 0
    %2877 = vmatprep.subr.bf16.mxu0 0
    %2878 = vmatpush2.bf16.xpose.msra.mxu0 0
    %2879 = vmatprep.mubr.bf16.mxu0 0
    %2880 = vmatmul.mubr.bf16.gmra.mxu0 %v2842
    %v2881 = vpop.f32.mrf.mxu0
    %v2882 = vadd.f32 0.0, %v2881
    %v2883 = vpop.f32.mrf.mxu0
    %v2884 = vpop.f32.mrf.mxu0
    %v2885 = vpop.f32.mrf.mxu0
    %2886 = vdwg.mxu0
    %v2888 = vsel %vm2196, %v2129, 0
    %v2891 = vsel %vm2196, %v2162, 0
    %2893 = vmatprep.subr.bf16.mxu0 0
    %2894 = vmatpush1.bf16.xpose.msra.mxu0 0
    %2895 = vmatprep.subr.bf16.mxu0 0
    %2896 = vmatpush1.bf16.xpose.msra.mxu0 0
    %2897 = vmatprep.subr.bf16.mxu0 0
    %2898 = vmatpush1.bf16.xpose.msra.mxu0 0
    %2899 = vmatprep.subr.bf16.mxu0 0
    %2900 = vmatpush1.bf16.xpose.msra.mxu0 0
    %2901 = vmatprep.subr.bf16.mxu0 0
    %2902 = vmatpush1.bf16.xpose.msra.mxu0 0
    %2903 = vmatprep.subr.bf16.mxu0 0
    %2904 = vmatpush1.bf16.xpose.msra.mxu0 0
    %2905 = vmatprep.subr.bf16.mxu0 0
    %2906 = vmatpush1.bf16.xpose.msra.mxu0 0
    %2907 = vmatprep.subr.bf16.mxu0 0
    %2908 = vmatpush1.bf16.xpose.msra.mxu0 %v2891
    %2909 = vmatprep.subr.bf16.mxu0 0
    %2910 = vmatpush2.bf16.xpose.msra.mxu0 0
    %2911 = vmatprep.subr.bf16.mxu0 0
    %2912 = vmatpush2.bf16.xpose.msra.mxu0 0
    %2913 = vmatprep.subr.bf16.mxu0 0
    %2914 = vmatpush2.bf16.xpose.msra.mxu0 0
    %2915 = vmatprep.subr.bf16.mxu0 0
    %2916 = vmatpush2.bf16.xpose.msra.mxu0 0
    %2917 = vmatprep.subr.bf16.mxu0 0
    %2918 = vmatpush2.bf16.xpose.msra.mxu0 0
    %2919 = vmatprep.subr.bf16.mxu0 0
    %2920 = vmatpush2.bf16.xpose.msra.mxu0 0
    %2921 = vmatprep.subr.bf16.mxu0 0
    %2922 = vmatpush2.bf16.xpose.msra.mxu0 0
    %2923 = vmatprep.subr.bf16.mxu0 0
    %2924 = vmatpush2.bf16.xpose.msra.mxu0 0
    %2925 = vmatprep.mubr.bf16.mxu0 0
    %2926 = vmatmul.mubr.bf16.gmra.mxu0 %v2888
    %v2927 = vpop.f32.mrf.mxu0
    %v2928 = vadd.f32 0.0, %v2927
    %v2929 = vpop.f32.mrf.mxu0
    %v2930 = vpop.f32.mrf.mxu0
    %v2931 = vpop.f32.mrf.mxu0
    %2932 = vdwg.mxu0
    %v2933 = vmul.f32 %v2238, 0.25
    %v2934 = vmul.f32 %v2284, 0.25
    %v2935 = vmul.f32 %v2330, 0.25
    %v2936 = vmul.f32 %v2376, 0.25
    %v2937 = vmul.f32 %v2422, 0.25
    %v2938 = vmul.f32 %v2468, 0.25
    %v2939 = vmul.f32 %v2514, 0.25
    %v2940 = vmul.f32 %v2560, 0.25
    %v2941 = vmul.f32 %v2606, 0.25
    %v2942 = vmul.f32 %v2652, 0.25
    %v2943 = vmul.f32 %v2698, 0.25
    %v2944 = vmul.f32 %v2744, 0.25
    %v2945 = vmul.f32 %v2790, 0.25
    %v2946 = vmul.f32 %v2836, 0.25
    %v2947 = vmul.f32 %v2882, 0.25
    %v2948 = vmul.f32 %v2928, 0.25
    %vm2949 = vcmask 64512
    %v2950 = vsel %vm2949, %v2933, -inf
    %2951 = vmax.xlane.f32.xlu0 %v2950
    %v2952 = vpop.xlane.xlu0 %2951
    %v2953 = vsel %vm2949, %v2934, -inf
    %2954 = vmax.xlane.f32.xlu0 %v2953
    %v2955 = vpop.xlane.xlu0 %2954
    %v2956 = vsel %vm2949, %v2935, -inf
    %2957 = vmax.xlane.f32.xlu0 %v2956
    %v2958 = vpop.xlane.xlu0 %2957
    %v2959 = vsel %vm2949, %v2936, -inf
    %2960 = vmax.xlane.f32.xlu0 %v2959
    %v2961 = vpop.xlane.xlu0 %2960
    %v2962 = vsel %vm2949, %v2937, -inf
    %2963 = vmax.xlane.f32.xlu0 %v2962
    %v2964 = vpop.xlane.xlu0 %2963
    %v2965 = vsel %vm2949, %v2938, -inf
    %2966 = vmax.xlane.f32.xlu0 %v2965
    %v2967 = vpop.xlane.xlu0 %2966
    %v2968 = vsel %vm2949, %v2939, -inf
    %2969 = vmax.xlane.f32.xlu0 %v2968
    %v2970 = vpop.xlane.xlu0 %2969
    %v2971 = vsel %vm2949, %v2940, -inf
    %2972 = vmax.xlane.f32.xlu0 %v2971
    %v2973 = vpop.xlane.xlu0 %2972
    %v2974 = vsel %vm2949, %v2941, -inf
    %2975 = vmax.xlane.f32.xlu0 %v2974
    %v2976 = vpop.xlane.xlu0 %2975
    %v2977 = vsel %vm2949, %v2942, -inf
    %2978 = vmax.xlane.f32.xlu0 %v2977
    %v2979 = vpop.xlane.xlu0 %2978
    %v2980 = vsel %vm2949, %v2943, -inf
    %2981 = vmax.xlane.f32.xlu0 %v2980
    %v2982 = vpop.xlane.xlu0 %2981
    %v2983 = vsel %vm2949, %v2944, -inf
    %2984 = vmax.xlane.f32.xlu0 %v2983
    %v2985 = vpop.xlane.xlu0 %2984
    %v2986 = vsel %vm2949, %v2945, -inf
    %2987 = vmax.xlane.f32.xlu0 %v2986
    %v2988 = vpop.xlane.xlu0 %2987
    %v2989 = vsel %vm2949, %v2946, -inf
    %2990 = vmax.xlane.f32.xlu0 %v2989
    %v2991 = vpop.xlane.xlu0 %2990
    %v2992 = vsel %vm2949, %v2947, -inf
    %2993 = vmax.xlane.f32.xlu0 %v2992
    %v2994 = vpop.xlane.xlu0 %2993
    %v2995 = vsel %vm2949, %v2948, -inf
    %2996 = vmax.xlane.f32.xlu0 %v2995
    %v2997 = vpop.xlane.xlu0 %2996
    %v2998 = vsub.f32 %v2933, %v2952
    %v2999 = vsub.f32 %v2934, %v2955
    %v3000 = vsub.f32 %v2935, %v2958
    %v3001 = vsub.f32 %v2936, %v2961
    %v3002 = vsub.f32 %v2937, %v2964
    %v3003 = vsub.f32 %v2938, %v2967
    %v3004 = vsub.f32 %v2939, %v2970
    %v3005 = vsub.f32 %v2940, %v2973
    %v3006 = vsub.f32 %v2941, %v2976
    %v3007 = vsub.f32 %v2942, %v2979
    %v3008 = vsub.f32 %v2943, %v2982
    %v3009 = vsub.f32 %v2944, %v2985
    %v3010 = vsub.f32 %v2945, %v2988
    %v3011 = vsub.f32 %v2946, %v2991
    %v3012 = vsub.f32 %v2947, %v2994
    %v3013 = vsub.f32 %v2948, %v2997
    %v3014 = vmul.f32 %v2998, 1.442695
    %v3015 = vpow.pop %v3014
    %v3016 = vmul.f32 %v2999, 1.442695
    %v3017 = vpow.pop %v3016
    %v3018 = vmul.f32 %v3000, 1.442695
    %v3019 = vpow.pop %v3018
    %v3020 = vmul.f32 %v3001, 1.442695
    %v3021 = vpow.pop %v3020
    %v3022 = vmul.f32 %v3002, 1.442695
    %v3023 = vpow.pop %v3022
    %v3024 = vmul.f32 %v3003, 1.442695
    %v3025 = vpow.pop %v3024
    %v3026 = vmul.f32 %v3004, 1.442695
    %v3027 = vpow.pop %v3026
    %v3028 = vmul.f32 %v3005, 1.442695
    %v3029 = vpow.pop %v3028
    %v3030 = vmul.f32 %v3006, 1.442695
    %v3031 = vpow.pop %v3030
    %v3032 = vmul.f32 %v3007, 1.442695
    %v3033 = vpow.pop %v3032
    %v3034 = vmul.f32 %v3008, 1.442695
    %v3035 = vpow.pop %v3034
    %v3036 = vmul.f32 %v3009, 1.442695
    %v3037 = vpow.pop %v3036
    %v3038 = vmul.f32 %v3010, 1.442695
    %v3039 = vpow.pop %v3038
    %v3040 = vmul.f32 %v3011, 1.442695
    %v3041 = vpow.pop %v3040
    %v3042 = vmul.f32 %v3012, 1.442695
    %v3043 = vpow.pop %v3042
    %v3044 = vmul.f32 %v3013, 1.442695
    %v3045 = vpow.pop %v3044
    %v3046 = vsel %vm2949, %v3015, 0.0
    %3047 = vadd.xlane.f32.xlu0 %v3046
    %v3048 = vpop.xlane.xlu0 %3047
    %v3049 = vsel %vm2949, %v3017, 0.0
    %3050 = vadd.xlane.f32.xlu0 %v3049
    %v3051 = vpop.xlane.xlu0 %3050
    %v3052 = vsel %vm2949, %v3019, 0.0
    %3053 = vadd.xlane.f32.xlu0 %v3052
    %v3054 = vpop.xlane.xlu0 %3053
    %v3055 = vsel %vm2949, %v3021, 0.0
    %3056 = vadd.xlane.f32.xlu0 %v3055
    %v3057 = vpop.xlane.xlu0 %3056
    %v3058 = vsel %vm2949, %v3023, 0.0
    %3059 = vadd.xlane.f32.xlu0 %v3058
    %v3060 = vpop.xlane.xlu0 %3059
    %v3061 = vsel %vm2949, %v3025, 0.0
    %3062 = vadd.xlane.f32.xlu0 %v3061
    %v3063 = vpop.xlane.xlu0 %3062
    %v3064 = vsel %vm2949, %v3027, 0.0
    %3065 = vadd.xlane.f32.xlu0 %v3064
    %v3066 = vpop.xlane.xlu0 %3065
    %v3067 = vsel %vm2949, %v3029, 0.0
    %3068 = vadd.xlane.f32.xlu0 %v3067
    %v3069 = vpop.xlane.xlu0 %3068
    %v3070 = vsel %vm2949, %v3031, 0.0
    %3071 = vadd.xlane.f32.xlu0 %v3070
    %v3072 = vpop.xlane.xlu0 %3071
    %v3073 = vsel %vm2949, %v3033, 0.0
    %3074 = vadd.xlane.f32.xlu0 %v3073
    %v3075 = vpop.xlane.xlu0 %3074
    %v3076 = vsel %vm2949, %v3035, 0.0
    %3077 = vadd.xlane.f32.xlu0 %v3076
    %v3078 = vpop.xlane.xlu0 %3077
    %v3079 = vsel %vm2949, %v3037, 0.0
    %3080 = vadd.xlane.f32.xlu0 %v3079
    %v3081 = vpop.xlane.xlu0 %3080
    %v3082 = vsel %vm2949, %v3039, 0.0
    %3083 = vadd.xlane.f32.xlu0 %v3082
    %v3084 = vpop.xlane.xlu0 %3083
    %v3085 = vsel %vm2949, %v3041, 0.0
    %3086 = vadd.xlane.f32.xlu0 %v3085
    %v3087 = vpop.xlane.xlu0 %3086
    %v3088 = vsel %vm2949, %v3043, 0.0
    %3089 = vadd.xlane.f32.xlu0 %v3088
    %v3090 = vpop.xlane.xlu0 %3089
    %v3091 = vsel %vm2949, %v3045, 0.0
    %3092 = vadd.xlane.f32.xlu0 %v3091
    %v3093 = vpop.xlane.xlu0 %3092
    %v3094 = vrcp.pop %v3048
    %v3095 = vrcp.pop %v3051
    %v3096 = vrcp.pop %v3054
    %v3097 = vrcp.pop %v3057
    %v3098 = vrcp.pop %v3060
    %v3099 = vrcp.pop %v3063
    %v3100 = vrcp.pop %v3066
    %v3101 = vrcp.pop %v3069
    %v3102 = vrcp.pop %v3072
    %v3103 = vrcp.pop %v3075
    %v3104 = vrcp.pop %v3078
    %v3105 = vrcp.pop %v3081
    %v3106 = vrcp.pop %v3084
    %v3107 = vrcp.pop %v3087
    %v3108 = vrcp.pop %v3090
    %v3109 = vrcp.pop %v3093
    %v3110 = vmul.f32 %v3015, %v3094
    %v3111 = vmul.f32 %v3017, %v3095
    %v3112 = vmul.f32 %v3019, %v3096
    %v3113 = vmul.f32 %v3021, %v3097
    %v3114 = vmul.f32 %v3023, %v3098
    %v3115 = vmul.f32 %v3025, %v3099
    %v3116 = vmul.f32 %v3027, %v3100
    %v3117 = vmul.f32 %v3029, %v3101
    %v3118 = vmul.f32 %v3031, %v3102
    %v3119 = vmul.f32 %v3033, %v3103
    %v3120 = vmul.f32 %v3035, %v3104
    %v3121 = vmul.f32 %v3037, %v3105
    %v3122 = vmul.f32 %v3039, %v3106
    %v3123 = vmul.f32 %v3041, %v3107
    %v3124 = vmul.f32 %v3043, %v3108
    %v3125 = vmul.f32 %v3045, %v3109
    %v3126 = vpack.c.bf16 %v3110, %v3110
    %v3127 = vpack.c.bf16 %v3111, %v3111
    %v3128 = vpack.c.bf16 %v3112, %v3112
    %v3129 = vpack.c.bf16 %v3113, %v3113
    %v3130 = vpack.c.bf16 %v3114, %v3114
    %v3131 = vpack.c.bf16 %v3115, %v3115
    %v3132 = vpack.c.bf16 %v3116, %v3116
    %v3133 = vpack.c.bf16 %v3117, %v3117
    %v3134 = vpack.c.bf16 %v3118, %v3118
    %v3135 = vpack.c.bf16 %v3119, %v3119
    %v3136 = vpack.c.bf16 %v3120, %v3120
    %v3137 = vpack.c.bf16 %v3121, %v3121
    %v3138 = vpack.c.bf16 %v3122, %v3122
    %v3139 = vpack.c.bf16 %v3123, %v3123
    %v3140 = vpack.c.bf16 %v3124, %v3124
    %v3141 = vpack.c.bf16 %v3125, %v3125
    %v3143 = vsel %vm2949, %v3126, 0
    %vm3145 = vcmask 1043456
    %v3147 = vsel %vm3145, %v2166, 0
    %3149 = vmatprep.subr.bf16.mxu0 0
    %3150 = vmatpush1.bf16.msra.mxu0 0
    %3151 = vmatprep.subr.bf16.mxu0 0
    %3152 = vmatpush1.bf16.msra.mxu0 0
    %3153 = vmatprep.subr.bf16.mxu0 0
    %3154 = vmatpush1.bf16.msra.mxu0 0
    %3155 = vmatprep.subr.bf16.mxu0 0
    %3156 = vmatpush1.bf16.msra.mxu0 0
    %3157 = vmatprep.subr.bf16.mxu0 0
    %3158 = vmatpush1.bf16.msra.mxu0 0
    %3159 = vmatprep.subr.bf16.mxu0 0
    %3160 = vmatpush1.bf16.msra.mxu0 0
    %3161 = vmatprep.subr.bf16.mxu0 0
    %3162 = vmatpush1.bf16.msra.mxu0 0
    %3163 = vmatprep.subr.bf16.mxu0 0
    %3164 = vmatpush1.bf16.msra.mxu0 %v3147
    %3165 = vmatprep.subr.bf16.mxu0 0
    %3166 = vmatpush2.bf16.msra.mxu0 0
    %3167 = vmatprep.subr.bf16.mxu0 0
    %3168 = vmatpush2.bf16.msra.mxu0 0
    %3169 = vmatprep.subr.bf16.mxu0 0
    %3170 = vmatpush2.bf16.msra.mxu0 0
    %3171 = vmatprep.subr.bf16.mxu0 0
    %3172 = vmatpush2.bf16.msra.mxu0 0
    %3173 = vmatprep.subr.bf16.mxu0 0
    %3174 = vmatpush2.bf16.msra.mxu0 0
    %3175 = vmatprep.subr.bf16.mxu0 0
    %3176 = vmatpush2.bf16.msra.mxu0 0
    %3177 = vmatprep.subr.bf16.mxu0 0
    %3178 = vmatpush2.bf16.msra.mxu0 0
    %3179 = vmatprep.subr.bf16.mxu0 0
    %3180 = vmatpush2.bf16.msra.mxu0 0
    %3181 = vmatprep.mubr.bf16.mxu0 0
    %3182 = vmatmul.mubr.bf16.gmra.mxu0 %v3143
    %v3183 = vpop.f32.mrf.mxu0
    %v3184 = vadd.f32 0.0, %v3183
    %v3185 = vpop.f32.mrf.mxu0
    %v3186 = vpop.f32.mrf.mxu0
    %v3187 = vpop.f32.mrf.mxu0
    %3188 = vdwg.mxu0
    %v3190 = vsel %vm2949, %v3127, 0
    %v3193 = vsel %vm3145, %v2167, 0
    %3195 = vmatprep.subr.bf16.mxu0 0
    %3196 = vmatpush1.bf16.msra.mxu0 0
    %3197 = vmatprep.subr.bf16.mxu0 0
    %3198 = vmatpush1.bf16.msra.mxu0 0
    %3199 = vmatprep.subr.bf16.mxu0 0
    %3200 = vmatpush1.bf16.msra.mxu0 0
    %3201 = vmatprep.subr.bf16.mxu0 0
    %3202 = vmatpush1.bf16.msra.mxu0 0
    %3203 = vmatprep.subr.bf16.mxu0 0
    %3204 = vmatpush1.bf16.msra.mxu0 0
    %3205 = vmatprep.subr.bf16.mxu0 0
    %3206 = vmatpush1.bf16.msra.mxu0 0
    %3207 = vmatprep.subr.bf16.mxu0 0
    %3208 = vmatpush1.bf16.msra.mxu0 0
    %3209 = vmatprep.subr.bf16.mxu0 0
    %3210 = vmatpush1.bf16.msra.mxu0 %v3193
    %3211 = vmatprep.subr.bf16.mxu0 0
    %3212 = vmatpush2.bf16.msra.mxu0 0
    %3213 = vmatprep.subr.bf16.mxu0 0
    %3214 = vmatpush2.bf16.msra.mxu0 0
    %3215 = vmatprep.subr.bf16.mxu0 0
    %3216 = vmatpush2.bf16.msra.mxu0 0
    %3217 = vmatprep.subr.bf16.mxu0 0
    %3218 = vmatpush2.bf16.msra.mxu0 0
    %3219 = vmatprep.subr.bf16.mxu0 0
    %3220 = vmatpush2.bf16.msra.mxu0 0
    %3221 = vmatprep.subr.bf16.mxu0 0
    %3222 = vmatpush2.bf16.msra.mxu0 0
    %3223 = vmatprep.subr.bf16.mxu0 0
    %3224 = vmatpush2.bf16.msra.mxu0 0
    %3225 = vmatprep.subr.bf16.mxu0 0
    %3226 = vmatpush2.bf16.msra.mxu0 0
    %3227 = vmatprep.mubr.bf16.mxu0 0
    %3228 = vmatmul.mubr.bf16.gmra.mxu0 %v3190
    %v3229 = vpop.f32.mrf.mxu0
    %v3230 = vadd.f32 0.0, %v3229
    %v3231 = vpop.f32.mrf.mxu0
    %v3232 = vpop.f32.mrf.mxu0
    %v3233 = vpop.f32.mrf.mxu0
    %3234 = vdwg.mxu0
    %v3236 = vsel %vm2949, %v3128, 0
    %v3239 = vsel %vm3145, %v2169, 0
    %3241 = vmatprep.subr.bf16.mxu0 0
    %3242 = vmatpush1.bf16.msra.mxu0 0
    %3243 = vmatprep.subr.bf16.mxu0 0
    %3244 = vmatpush1.bf16.msra.mxu0 0
    %3245 = vmatprep.subr.bf16.mxu0 0
    %3246 = vmatpush1.bf16.msra.mxu0 0
    %3247 = vmatprep.subr.bf16.mxu0 0
    %3248 = vmatpush1.bf16.msra.mxu0 0
    %3249 = vmatprep.subr.bf16.mxu0 0
    %3250 = vmatpush1.bf16.msra.mxu0 0
    %3251 = vmatprep.subr.bf16.mxu0 0
    %3252 = vmatpush1.bf16.msra.mxu0 0
    %3253 = vmatprep.subr.bf16.mxu0 0
    %3254 = vmatpush1.bf16.msra.mxu0 0
    %3255 = vmatprep.subr.bf16.mxu0 0
    %3256 = vmatpush1.bf16.msra.mxu0 %v3239
    %3257 = vmatprep.subr.bf16.mxu0 0
    %3258 = vmatpush2.bf16.msra.mxu0 0
    %3259 = vmatprep.subr.bf16.mxu0 0
    %3260 = vmatpush2.bf16.msra.mxu0 0
    %3261 = vmatprep.subr.bf16.mxu0 0
    %3262 = vmatpush2.bf16.msra.mxu0 0
    %3263 = vmatprep.subr.bf16.mxu0 0
    %3264 = vmatpush2.bf16.msra.mxu0 0
    %3265 = vmatprep.subr.bf16.mxu0 0
    %3266 = vmatpush2.bf16.msra.mxu0 0
    %3267 = vmatprep.subr.bf16.mxu0 0
    %3268 = vmatpush2.bf16.msra.mxu0 0
    %3269 = vmatprep.subr.bf16.mxu0 0
    %3270 = vmatpush2.bf16.msra.mxu0 0
    %3271 = vmatprep.subr.bf16.mxu0 0
    %3272 = vmatpush2.bf16.msra.mxu0 0
    %3273 = vmatprep.mubr.bf16.mxu0 0
    %3274 = vmatmul.mubr.bf16.gmra.mxu0 %v3236
    %v3275 = vpop.f32.mrf.mxu0
    %v3276 = vadd.f32 0.0, %v3275
    %v3277 = vpop.f32.mrf.mxu0
    %v3278 = vpop.f32.mrf.mxu0
    %v3279 = vpop.f32.mrf.mxu0
    %3280 = vdwg.mxu0
    %v3282 = vsel %vm2949, %v3129, 0
    %v3285 = vsel %vm3145, %v2171, 0
    %3287 = vmatprep.subr.bf16.mxu0 0
    %3288 = vmatpush1.bf16.msra.mxu0 0
    %3289 = vmatprep.subr.bf16.mxu0 0
    %3290 = vmatpush1.bf16.msra.mxu0 0
    %3291 = vmatprep.subr.bf16.mxu0 0
    %3292 = vmatpush1.bf16.msra.mxu0 0
    %3293 = vmatprep.subr.bf16.mxu0 0
    %3294 = vmatpush1.bf16.msra.mxu0 0
    %3295 = vmatprep.subr.bf16.mxu0 0
    %3296 = vmatpush1.bf16.msra.mxu0 0
    %3297 = vmatprep.subr.bf16.mxu0 0
    %3298 = vmatpush1.bf16.msra.mxu0 0
    %3299 = vmatprep.subr.bf16.mxu0 0
    %3300 = vmatpush1.bf16.msra.mxu0 0
    %3301 = vmatprep.subr.bf16.mxu0 0
    %3302 = vmatpush1.bf16.msra.mxu0 %v3285
    %3303 = vmatprep.subr.bf16.mxu0 0
    %3304 = vmatpush2.bf16.msra.mxu0 0
    %3305 = vmatprep.subr.bf16.mxu0 0
    %3306 = vmatpush2.bf16.msra.mxu0 0
    %3307 = vmatprep.subr.bf16.mxu0 0
    %3308 = vmatpush2.bf16.msra.mxu0 0
    %3309 = vmatprep.subr.bf16.mxu0 0
    %3310 = vmatpush2.bf16.msra.mxu0 0
    %3311 = vmatprep.subr.bf16.mxu0 0
    %3312 = vmatpush2.bf16.msra.mxu0 0
    %3313 = vmatprep.subr.bf16.mxu0 0
    %3314 = vmatpush2.bf16.msra.mxu0 0
    %3315 = vmatprep.subr.bf16.mxu0 0
    %3316 = vmatpush2.bf16.msra.mxu0 0
    %3317 = vmatprep.subr.bf16.mxu0 0
    %3318 = vmatpush2.bf16.msra.mxu0 0
    %3319 = vmatprep.mubr.bf16.mxu0 0
    %3320 = vmatmul.mubr.bf16.gmra.mxu0 %v3282
    %v3321 = vpop.f32.mrf.mxu0
    %v3322 = vadd.f32 0.0, %v3321
    %v3323 = vpop.f32.mrf.mxu0
    %v3324 = vpop.f32.mrf.mxu0
    %v3325 = vpop.f32.mrf.mxu0
    %3326 = vdwg.mxu0
    %v3328 = vsel %vm2949, %v3130, 0
    %v3331 = vsel %vm3145, %v2173, 0
    %3333 = vmatprep.subr.bf16.mxu0 0
    %3334 = vmatpush1.bf16.msra.mxu0 0
    %3335 = vmatprep.subr.bf16.mxu0 0
    %3336 = vmatpush1.bf16.msra.mxu0 0
    %3337 = vmatprep.subr.bf16.mxu0 0
    %3338 = vmatpush1.bf16.msra.mxu0 0
    %3339 = vmatprep.subr.bf16.mxu0 0
    %3340 = vmatpush1.bf16.msra.mxu0 0
    %3341 = vmatprep.subr.bf16.mxu0 0
    %3342 = vmatpush1.bf16.msra.mxu0 0
    %3343 = vmatprep.subr.bf16.mxu0 0
    %3344 = vmatpush1.bf16.msra.mxu0 0
    %3345 = vmatprep.subr.bf16.mxu0 0
    %3346 = vmatpush1.bf16.msra.mxu0 0
    %3347 = vmatprep.subr.bf16.mxu0 0
    %3348 = vmatpush1.bf16.msra.mxu0 %v3331
    %3349 = vmatprep.subr.bf16.mxu0 0
    %3350 = vmatpush2.bf16.msra.mxu0 0
    %3351 = vmatprep.subr.bf16.mxu0 0
    %3352 = vmatpush2.bf16.msra.mxu0 0
    %3353 = vmatprep.subr.bf16.mxu0 0
    %3354 = vmatpush2.bf16.msra.mxu0 0
    %3355 = vmatprep.subr.bf16.mxu0 0
    %3356 = vmatpush2.bf16.msra.mxu0 0
    %3357 = vmatprep.subr.bf16.mxu0 0
    %3358 = vmatpush2.bf16.msra.mxu0 0
    %3359 = vmatprep.subr.bf16.mxu0 0
    %3360 = vmatpush2.bf16.msra.mxu0 0
    %3361 = vmatprep.subr.bf16.mxu0 0
    %3362 = vmatpush2.bf16.msra.mxu0 0
    %3363 = vmatprep.subr.bf16.mxu0 0
    %3364 = vmatpush2.bf16.msra.mxu0 0
    %3365 = vmatprep.mubr.bf16.mxu0 0
    %3366 = vmatmul.mubr.bf16.gmra.mxu0 %v3328
    %v3367 = vpop.f32.mrf.mxu0
    %v3368 = vadd.f32 0.0, %v3367
    %v3369 = vpop.f32.mrf.mxu0
    %v3370 = vpop.f32.mrf.mxu0
    %v3371 = vpop.f32.mrf.mxu0
    %3372 = vdwg.mxu0
    %v3374 = vsel %vm2949, %v3131, 0
    %v3377 = vsel %vm3145, %v2175, 0
    %3379 = vmatprep.subr.bf16.mxu0 0
    %3380 = vmatpush1.bf16.msra.mxu0 0
    %3381 = vmatprep.subr.bf16.mxu0 0
    %3382 = vmatpush1.bf16.msra.mxu0 0
    %3383 = vmatprep.subr.bf16.mxu0 0
    %3384 = vmatpush1.bf16.msra.mxu0 0
    %3385 = vmatprep.subr.bf16.mxu0 0
    %3386 = vmatpush1.bf16.msra.mxu0 0
    %3387 = vmatprep.subr.bf16.mxu0 0
    %3388 = vmatpush1.bf16.msra.mxu0 0
    %3389 = vmatprep.subr.bf16.mxu0 0
    %3390 = vmatpush1.bf16.msra.mxu0 0
    %3391 = vmatprep.subr.bf16.mxu0 0
    %3392 = vmatpush1.bf16.msra.mxu0 0
    %3393 = vmatprep.subr.bf16.mxu0 0
    %3394 = vmatpush1.bf16.msra.mxu0 %v3377
    %3395 = vmatprep.subr.bf16.mxu0 0
    %3396 = vmatpush2.bf16.msra.mxu0 0
    %3397 = vmatprep.subr.bf16.mxu0 0
    %3398 = vmatpush2.bf16.msra.mxu0 0
    %3399 = vmatprep.subr.bf16.mxu0 0
    %3400 = vmatpush2.bf16.msra.mxu0 0
    %3401 = vmatprep.subr.bf16.mxu0 0
    %3402 = vmatpush2.bf16.msra.mxu0 0
    %3403 = vmatprep.subr.bf16.mxu0 0
    %3404 = vmatpush2.bf16.msra.mxu0 0
    %3405 = vmatprep.subr.bf16.mxu0 0
    %3406 = vmatpush2.bf16.msra.mxu0 0
    %3407 = vmatprep.subr.bf16.mxu0 0
    %3408 = vmatpush2.bf16.msra.mxu0 0
    %3409 = vmatprep.subr.bf16.mxu0 0
    %3410 = vmatpush2.bf16.msra.mxu0 0
    %3411 = vmatprep.mubr.bf16.mxu0 0
    %3412 = vmatmul.mubr.bf16.gmra.mxu0 %v3374
    %v3413 = vpop.f32.mrf.mxu0
    %v3414 = vadd.f32 0.0, %v3413
    %v3415 = vpop.f32.mrf.mxu0
    %v3416 = vpop.f32.mrf.mxu0
    %v3417 = vpop.f32.mrf.mxu0
    %3418 = vdwg.mxu0
    %v3420 = vsel %vm2949, %v3132, 0
    %v3423 = vsel %vm3145, %v2177, 0
    %3425 = vmatprep.subr.bf16.mxu0 0
    %3426 = vmatpush1.bf16.msra.mxu0 0
    %3427 = vmatprep.subr.bf16.mxu0 0
    %3428 = vmatpush1.bf16.msra.mxu0 0
    %3429 = vmatprep.subr.bf16.mxu0 0
    %3430 = vmatpush1.bf16.msra.mxu0 0
    %3431 = vmatprep.subr.bf16.mxu0 0
    %3432 = vmatpush1.bf16.msra.mxu0 0
    %3433 = vmatprep.subr.bf16.mxu0 0
    %3434 = vmatpush1.bf16.msra.mxu0 0
    %3435 = vmatprep.subr.bf16.mxu0 0
    %3436 = vmatpush1.bf16.msra.mxu0 0
    %3437 = vmatprep.subr.bf16.mxu0 0
    %3438 = vmatpush1.bf16.msra.mxu0 0
    %3439 = vmatprep.subr.bf16.mxu0 0
    %3440 = vmatpush1.bf16.msra.mxu0 %v3423
    %3441 = vmatprep.subr.bf16.mxu0 0
    %3442 = vmatpush2.bf16.msra.mxu0 0
    %3443 = vmatprep.subr.bf16.mxu0 0
    %3444 = vmatpush2.bf16.msra.mxu0 0
    %3445 = vmatprep.subr.bf16.mxu0 0
    %3446 = vmatpush2.bf16.msra.mxu0 0
    %3447 = vmatprep.subr.bf16.mxu0 0
    %3448 = vmatpush2.bf16.msra.mxu0 0
    %3449 = vmatprep.subr.bf16.mxu0 0
    %3450 = vmatpush2.bf16.msra.mxu0 0
    %3451 = vmatprep.subr.bf16.mxu0 0
    %3452 = vmatpush2.bf16.msra.mxu0 0
    %3453 = vmatprep.subr.bf16.mxu0 0
    %3454 = vmatpush2.bf16.msra.mxu0 0
    %3455 = vmatprep.subr.bf16.mxu0 0
    %3456 = vmatpush2.bf16.msra.mxu0 0
    %3457 = vmatprep.mubr.bf16.mxu0 0
    %3458 = vmatmul.mubr.bf16.gmra.mxu0 %v3420
    %v3459 = vpop.f32.mrf.mxu0
    %v3460 = vadd.f32 0.0, %v3459
    %v3461 = vpop.f32.mrf.mxu0
    %v3462 = vpop.f32.mrf.mxu0
    %v3463 = vpop.f32.mrf.mxu0
    %3464 = vdwg.mxu0
    %v3466 = vsel %vm2949, %v3133, 0
    %v3469 = vsel %vm3145, %v2179, 0
    %3471 = vmatprep.subr.bf16.mxu0 0
    %3472 = vmatpush1.bf16.msra.mxu0 0
    %3473 = vmatprep.subr.bf16.mxu0 0
    %3474 = vmatpush1.bf16.msra.mxu0 0
    %3475 = vmatprep.subr.bf16.mxu0 0
    %3476 = vmatpush1.bf16.msra.mxu0 0
    %3477 = vmatprep.subr.bf16.mxu0 0
    %3478 = vmatpush1.bf16.msra.mxu0 0
    %3479 = vmatprep.subr.bf16.mxu0 0
    %3480 = vmatpush1.bf16.msra.mxu0 0
    %3481 = vmatprep.subr.bf16.mxu0 0
    %3482 = vmatpush1.bf16.msra.mxu0 0
    %3483 = vmatprep.subr.bf16.mxu0 0
    %3484 = vmatpush1.bf16.msra.mxu0 0
    %3485 = vmatprep.subr.bf16.mxu0 0
    %3486 = vmatpush1.bf16.msra.mxu0 %v3469
    %3487 = vmatprep.subr.bf16.mxu0 0
    %3488 = vmatpush2.bf16.msra.mxu0 0
    %3489 = vmatprep.subr.bf16.mxu0 0
    %3490 = vmatpush2.bf16.msra.mxu0 0
    %3491 = vmatprep.subr.bf16.mxu0 0
    %3492 = vmatpush2.bf16.msra.mxu0 0
    %3493 = vmatprep.subr.bf16.mxu0 0
    %3494 = vmatpush2.bf16.msra.mxu0 0
    %3495 = vmatprep.subr.bf16.mxu0 0
    %3496 = vmatpush2.bf16.msra.mxu0 0
    %3497 = vmatprep.subr.bf16.mxu0 0
    %3498 = vmatpush2.bf16.msra.mxu0 0
    %3499 = vmatprep.subr.bf16.mxu0 0
    %3500 = vmatpush2.bf16.msra.mxu0 0
    %3501 = vmatprep.subr.bf16.mxu0 0
    %3502 = vmatpush2.bf16.msra.mxu0 0
    %3503 = vmatprep.mubr.bf16.mxu0 0
    %3504 = vmatmul.mubr.bf16.gmra.mxu0 %v3466
    %v3505 = vpop.f32.mrf.mxu0
    %v3506 = vadd.f32 0.0, %v3505
    %v3507 = vpop.f32.mrf.mxu0
    %v3508 = vpop.f32.mrf.mxu0
    %v3509 = vpop.f32.mrf.mxu0
    %3510 = vdwg.mxu0
    %v3512 = vsel %vm2949, %v3134, 0
    %v3515 = vsel %vm3145, %v2181, 0
    %3517 = vmatprep.subr.bf16.mxu0 0
    %3518 = vmatpush1.bf16.msra.mxu0 0
    %3519 = vmatprep.subr.bf16.mxu0 0
    %3520 = vmatpush1.bf16.msra.mxu0 0
    %3521 = vmatprep.subr.bf16.mxu0 0
    %3522 = vmatpush1.bf16.msra.mxu0 0
    %3523 = vmatprep.subr.bf16.mxu0 0
    %3524 = vmatpush1.bf16.msra.mxu0 0
    %3525 = vmatprep.subr.bf16.mxu0 0
    %3526 = vmatpush1.bf16.msra.mxu0 0
    %3527 = vmatprep.subr.bf16.mxu0 0
    %3528 = vmatpush1.bf16.msra.mxu0 0
    %3529 = vmatprep.subr.bf16.mxu0 0
    %3530 = vmatpush1.bf16.msra.mxu0 0
    %3531 = vmatprep.subr.bf16.mxu0 0
    %3532 = vmatpush1.bf16.msra.mxu0 %v3515
    %3533 = vmatprep.subr.bf16.mxu0 0
    %3534 = vmatpush2.bf16.msra.mxu0 0
    %3535 = vmatprep.subr.bf16.mxu0 0
    %3536 = vmatpush2.bf16.msra.mxu0 0
    %3537 = vmatprep.subr.bf16.mxu0 0
    %3538 = vmatpush2.bf16.msra.mxu0 0
    %3539 = vmatprep.subr.bf16.mxu0 0
    %3540 = vmatpush2.bf16.msra.mxu0 0
    %3541 = vmatprep.subr.bf16.mxu0 0
    %3542 = vmatpush2.bf16.msra.mxu0 0
    %3543 = vmatprep.subr.bf16.mxu0 0
    %3544 = vmatpush2.bf16.msra.mxu0 0
    %3545 = vmatprep.subr.bf16.mxu0 0
    %3546 = vmatpush2.bf16.msra.mxu0 0
    %3547 = vmatprep.subr.bf16.mxu0 0
    %3548 = vmatpush2.bf16.msra.mxu0 0
    %3549 = vmatprep.mubr.bf16.mxu0 0
    %3550 = vmatmul.mubr.bf16.gmra.mxu0 %v3512
    %v3551 = vpop.f32.mrf.mxu0
    %v3552 = vadd.f32 0.0, %v3551
    %v3553 = vpop.f32.mrf.mxu0
    %v3554 = vpop.f32.mrf.mxu0
    %v3555 = vpop.f32.mrf.mxu0
    %3556 = vdwg.mxu0
    %v3558 = vsel %vm2949, %v3135, 0
    %v3561 = vsel %vm3145, %v2183, 0
    %3563 = vmatprep.subr.bf16.mxu0 0
    %3564 = vmatpush1.bf16.msra.mxu0 0
    %3565 = vmatprep.subr.bf16.mxu0 0
    %3566 = vmatpush1.bf16.msra.mxu0 0
    %3567 = vmatprep.subr.bf16.mxu0 0
    %3568 = vmatpush1.bf16.msra.mxu0 0
    %3569 = vmatprep.subr.bf16.mxu0 0
    %3570 = vmatpush1.bf16.msra.mxu0 0
    %3571 = vmatprep.subr.bf16.mxu0 0
    %3572 = vmatpush1.bf16.msra.mxu0 0
    %3573 = vmatprep.subr.bf16.mxu0 0
    %3574 = vmatpush1.bf16.msra.mxu0 0
    %3575 = vmatprep.subr.bf16.mxu0 0
    %3576 = vmatpush1.bf16.msra.mxu0 0
    %3577 = vmatprep.subr.bf16.mxu0 0
    %3578 = vmatpush1.bf16.msra.mxu0 %v3561
    %3579 = vmatprep.subr.bf16.mxu0 0
    %3580 = vmatpush2.bf16.msra.mxu0 0
    %3581 = vmatprep.subr.bf16.mxu0 0
    %3582 = vmatpush2.bf16.msra.mxu0 0
    %3583 = vmatprep.subr.bf16.mxu0 0
    %3584 = vmatpush2.bf16.msra.mxu0 0
    %3585 = vmatprep.subr.bf16.mxu0 0
    %3586 = vmatpush2.bf16.msra.mxu0 0
    %3587 = vmatprep.subr.bf16.mxu0 0
    %3588 = vmatpush2.bf16.msra.mxu0 0
    %3589 = vmatprep.subr.bf16.mxu0 0
    %3590 = vmatpush2.bf16.msra.mxu0 0
    %3591 = vmatprep.subr.bf16.mxu0 0
    %3592 = vmatpush2.bf16.msra.mxu0 0
    %3593 = vmatprep.subr.bf16.mxu0 0
    %3594 = vmatpush2.bf16.msra.mxu0 0
    %3595 = vmatprep.mubr.bf16.mxu0 0
    %3596 = vmatmul.mubr.bf16.gmra.mxu0 %v3558
    %v3597 = vpop.f32.mrf.mxu0
    %v3598 = vadd.f32 0.0, %v3597
    %v3599 = vpop.f32.mrf.mxu0
    %v3600 = vpop.f32.mrf.mxu0
    %v3601 = vpop.f32.mrf.mxu0
    %3602 = vdwg.mxu0
    %v3604 = vsel %vm2949, %v3136, 0
    %v3607 = vsel %vm3145, %v2185, 0
    %3609 = vmatprep.subr.bf16.mxu0 0
    %3610 = vmatpush1.bf16.msra.mxu0 0
    %3611 = vmatprep.subr.bf16.mxu0 0
    %3612 = vmatpush1.bf16.msra.mxu0 0
    %3613 = vmatprep.subr.bf16.mxu0 0
    %3614 = vmatpush1.bf16.msra.mxu0 0
    %3615 = vmatprep.subr.bf16.mxu0 0
    %3616 = vmatpush1.bf16.msra.mxu0 0
    %3617 = vmatprep.subr.bf16.mxu0 0
    %3618 = vmatpush1.bf16.msra.mxu0 0
    %3619 = vmatprep.subr.bf16.mxu0 0
    %3620 = vmatpush1.bf16.msra.mxu0 0
    %3621 = vmatprep.subr.bf16.mxu0 0
    %3622 = vmatpush1.bf16.msra.mxu0 0
    %3623 = vmatprep.subr.bf16.mxu0 0
    %3624 = vmatpush1.bf16.msra.mxu0 %v3607
    %3625 = vmatprep.subr.bf16.mxu0 0
    %3626 = vmatpush2.bf16.msra.mxu0 0
    %3627 = vmatprep.subr.bf16.mxu0 0
    %3628 = vmatpush2.bf16.msra.mxu0 0
    %3629 = vmatprep.subr.bf16.mxu0 0
    %3630 = vmatpush2.bf16.msra.mxu0 0
    %3631 = vmatprep.subr.bf16.mxu0 0
    %3632 = vmatpush2.bf16.msra.mxu0 0
    %3633 = vmatprep.subr.bf16.mxu0 0
    %3634 = vmatpush2.bf16.msra.mxu0 0
    %3635 = vmatprep.subr.bf16.mxu0 0
    %3636 = vmatpush2.bf16.msra.mxu0 0
    %3637 = vmatprep.subr.bf16.mxu0 0
    %3638 = vmatpush2.bf16.msra.mxu0 0
    %3639 = vmatprep.subr.bf16.mxu0 0
    %3640 = vmatpush2.bf16.msra.mxu0 0
    %3641 = vmatprep.mubr.bf16.mxu0 0
    %3642 = vmatmul.mubr.bf16.gmra.mxu0 %v3604
    %v3643 = vpop.f32.mrf.mxu0
    %v3644 = vadd.f32 0.0, %v3643
    %v3645 = vpop.f32.mrf.mxu0
    %v3646 = vpop.f32.mrf.mxu0
    %v3647 = vpop.f32.mrf.mxu0
    %3648 = vdwg.mxu0
    %v3650 = vsel %vm2949, %v3137, 0
    %v3653 = vsel %vm3145, %v2187, 0
    %3655 = vmatprep.subr.bf16.mxu0 0
    %3656 = vmatpush1.bf16.msra.mxu0 0
    %3657 = vmatprep.subr.bf16.mxu0 0
    %3658 = vmatpush1.bf16.msra.mxu0 0
    %3659 = vmatprep.subr.bf16.mxu0 0
    %3660 = vmatpush1.bf16.msra.mxu0 0
    %3661 = vmatprep.subr.bf16.mxu0 0
    %3662 = vmatpush1.bf16.msra.mxu0 0
    %3663 = vmatprep.subr.bf16.mxu0 0
    %3664 = vmatpush1.bf16.msra.mxu0 0
    %3665 = vmatprep.subr.bf16.mxu0 0
    %3666 = vmatpush1.bf16.msra.mxu0 0
    %3667 = vmatprep.subr.bf16.mxu0 0
    %3668 = vmatpush1.bf16.msra.mxu0 0
    %3669 = vmatprep.subr.bf16.mxu0 0
    %3670 = vmatpush1.bf16.msra.mxu0 %v3653
    %3671 = vmatprep.subr.bf16.mxu0 0
    %3672 = vmatpush2.bf16.msra.mxu0 0
    %3673 = vmatprep.subr.bf16.mxu0 0
    %3674 = vmatpush2.bf16.msra.mxu0 0
    %3675 = vmatprep.subr.bf16.mxu0 0
    %3676 = vmatpush2.bf16.msra.mxu0 0
    %3677 = vmatprep.subr.bf16.mxu0 0
    %3678 = vmatpush2.bf16.msra.mxu0 0
    %3679 = vmatprep.subr.bf16.mxu0 0
    %3680 = vmatpush2.bf16.msra.mxu0 0
    %3681 = vmatprep.subr.bf16.mxu0 0
    %3682 = vmatpush2.bf16.msra.mxu0 0
    %3683 = vmatprep.subr.bf16.mxu0 0
    %3684 = vmatpush2.bf16.msra.mxu0 0
    %3685 = vmatprep.subr.bf16.mxu0 0
    %3686 = vmatpush2.bf16.msra.mxu0 0
    %3687 = vmatprep.mubr.bf16.mxu0 0
    %3688 = vmatmul.mubr.bf16.gmra.mxu0 %v3650
    %v3689 = vpop.f32.mrf.mxu0
    %v3690 = vadd.f32 0.0, %v3689
    %v3691 = vpop.f32.mrf.mxu0
    %v3692 = vpop.f32.mrf.mxu0
    %v3693 = vpop.f32.mrf.mxu0
    %3694 = vdwg.mxu0
    %v3696 = vsel %vm2949, %v3138, 0
    %v3699 = vsel %vm3145, %v2189, 0
    %3701 = vmatprep.subr.bf16.mxu0 0
    %3702 = vmatpush1.bf16.msra.mxu0 0
    %3703 = vmatprep.subr.bf16.mxu0 0
    %3704 = vmatpush1.bf16.msra.mxu0 0
    %3705 = vmatprep.subr.bf16.mxu0 0
    %3706 = vmatpush1.bf16.msra.mxu0 0
    %3707 = vmatprep.subr.bf16.mxu0 0
    %3708 = vmatpush1.bf16.msra.mxu0 0
    %3709 = vmatprep.subr.bf16.mxu0 0
    %3710 = vmatpush1.bf16.msra.mxu0 0
    %3711 = vmatprep.subr.bf16.mxu0 0
    %3712 = vmatpush1.bf16.msra.mxu0 0
    %3713 = vmatprep.subr.bf16.mxu0 0
    %3714 = vmatpush1.bf16.msra.mxu0 0
    %3715 = vmatprep.subr.bf16.mxu0 0
    %3716 = vmatpush1.bf16.msra.mxu0 %v3699
    %3717 = vmatprep.subr.bf16.mxu0 0
    %3718 = vmatpush2.bf16.msra.mxu0 0
    %3719 = vmatprep.subr.bf16.mxu0 0
    %3720 = vmatpush2.bf16.msra.mxu0 0
    %3721 = vmatprep.subr.bf16.mxu0 0
    %3722 = vmatpush2.bf16.msra.mxu0 0
    %3723 = vmatprep.subr.bf16.mxu0 0
    %3724 = vmatpush2.bf16.msra.mxu0 0
    %3725 = vmatprep.subr.bf16.mxu0 0
    %3726 = vmatpush2.bf16.msra.mxu0 0
    %3727 = vmatprep.subr.bf16.mxu0 0
    %3728 = vmatpush2.bf16.msra.mxu0 0
    %3729 = vmatprep.subr.bf16.mxu0 0
    %3730 = vmatpush2.bf16.msra.mxu0 0
    %3731 = vmatprep.subr.bf16.mxu0 0
    %3732 = vmatpush2.bf16.msra.mxu0 0
    %3733 = vmatprep.mubr.bf16.mxu0 0
    %3734 = vmatmul.mubr.bf16.gmra.mxu0 %v3696
    %v3735 = vpop.f32.mrf.mxu0
    %v3736 = vadd.f32 0.0, %v3735
    %v3737 = vpop.f32.mrf.mxu0
    %v3738 = vpop.f32.mrf.mxu0
    %v3739 = vpop.f32.mrf.mxu0
    %3740 = vdwg.mxu0
    %v3742 = vsel %vm2949, %v3139, 0
    %v3745 = vsel %vm3145, %v2191, 0
    %3747 = vmatprep.subr.bf16.mxu0 0
    %3748 = vmatpush1.bf16.msra.mxu0 0
    %3749 = vmatprep.subr.bf16.mxu0 0
    %3750 = vmatpush1.bf16.msra.mxu0 0
    %3751 = vmatprep.subr.bf16.mxu0 0
    %3752 = vmatpush1.bf16.msra.mxu0 0
    %3753 = vmatprep.subr.bf16.mxu0 0
    %3754 = vmatpush1.bf16.msra.mxu0 0
    %3755 = vmatprep.subr.bf16.mxu0 0
    %3756 = vmatpush1.bf16.msra.mxu0 0
    %3757 = vmatprep.subr.bf16.mxu0 0
    %3758 = vmatpush1.bf16.msra.mxu0 0
    %3759 = vmatprep.subr.bf16.mxu0 0
    %3760 = vmatpush1.bf16.msra.mxu0 0
    %3761 = vmatprep.subr.bf16.mxu0 0
    %3762 = vmatpush1.bf16.msra.mxu0 %v3745
    %3763 = vmatprep.subr.bf16.mxu0 0
    %3764 = vmatpush2.bf16.msra.mxu0 0
    %3765 = vmatprep.subr.bf16.mxu0 0
    %3766 = vmatpush2.bf16.msra.mxu0 0
    %3767 = vmatprep.subr.bf16.mxu0 0
    %3768 = vmatpush2.bf16.msra.mxu0 0
    %3769 = vmatprep.subr.bf16.mxu0 0
    %3770 = vmatpush2.bf16.msra.mxu0 0
    %3771 = vmatprep.subr.bf16.mxu0 0
    %3772 = vmatpush2.bf16.msra.mxu0 0
    %3773 = vmatprep.subr.bf16.mxu0 0
    %3774 = vmatpush2.bf16.msra.mxu0 0
    %3775 = vmatprep.subr.bf16.mxu0 0
    %3776 = vmatpush2.bf16.msra.mxu0 0
    %3777 = vmatprep.subr.bf16.mxu0 0
    %3778 = vmatpush2.bf16.msra.mxu0 0
    %3779 = vmatprep.mubr.bf16.mxu0 0
    %3780 = vmatmul.mubr.bf16.gmra.mxu0 %v3742
    %v3781 = vpop.f32.mrf.mxu0
    %v3782 = vadd.f32 0.0, %v3781
    %v3783 = vpop.f32.mrf.mxu0
    %v3784 = vpop.f32.mrf.mxu0
    %v3785 = vpop.f32.mrf.mxu0
    %3786 = vdwg.mxu0
    %v3788 = vsel %vm2949, %v3140, 0
    %v3791 = vsel %vm3145, %v2193, 0
    %3793 = vmatprep.subr.bf16.mxu0 0
    %3794 = vmatpush1.bf16.msra.mxu0 0
    %3795 = vmatprep.subr.bf16.mxu0 0
    %3796 = vmatpush1.bf16.msra.mxu0 0
    %3797 = vmatprep.subr.bf16.mxu0 0
    %3798 = vmatpush1.bf16.msra.mxu0 0
    %3799 = vmatprep.subr.bf16.mxu0 0
    %3800 = vmatpush1.bf16.msra.mxu0 0
    %3801 = vmatprep.subr.bf16.mxu0 0
    %3802 = vmatpush1.bf16.msra.mxu0 0
    %3803 = vmatprep.subr.bf16.mxu0 0
    %3804 = vmatpush1.bf16.msra.mxu0 0
    %3805 = vmatprep.subr.bf16.mxu0 0
    %3806 = vmatpush1.bf16.msra.mxu0 0
    %3807 = vmatprep.subr.bf16.mxu0 0
    %3808 = vmatpush1.bf16.msra.mxu0 %v3791
    %3809 = vmatprep.subr.bf16.mxu0 0
    %3810 = vmatpush2.bf16.msra.mxu0 0
    %3811 = vmatprep.subr.bf16.mxu0 0
    %3812 = vmatpush2.bf16.msra.mxu0 0
    %3813 = vmatprep.subr.bf16.mxu0 0
    %3814 = vmatpush2.bf16.msra.mxu0 0
    %3815 = vmatprep.subr.bf16.mxu0 0
    %3816 = vmatpush2.bf16.msra.mxu0 0
    %3817 = vmatprep.subr.bf16.mxu0 0
    %3818 = vmatpush2.bf16.msra.mxu0 0
    %3819 = vmatprep.subr.bf16.mxu0 0
    %3820 = vmatpush2.bf16.msra.mxu0 0
    %3821 = vmatprep.subr.bf16.mxu0 0
    %3822 = vmatpush2.bf16.msra.mxu0 0
    %3823 = vmatprep.subr.bf16.mxu0 0
    %3824 = vmatpush2.bf16.msra.mxu0 0
    %3825 = vmatprep.mubr.bf16.mxu0 0
    %3826 = vmatmul.mubr.bf16.gmra.mxu0 %v3788
    %v3827 = vpop.f32.mrf.mxu0
    %v3828 = vadd.f32 0.0, %v3827
    %v3829 = vpop.f32.mrf.mxu0
    %v3830 = vpop.f32.mrf.mxu0
    %v3831 = vpop.f32.mrf.mxu0
    %3832 = vdwg.mxu0
    %v3834 = vsel %vm2949, %v3141, 0
    %v3837 = vsel %vm3145, %v2195, 0
    %3839 = vmatprep.subr.bf16.mxu0 0
    %3840 = vmatpush1.bf16.msra.mxu0 0
    %3841 = vmatprep.subr.bf16.mxu0 0
    %3842 = vmatpush1.bf16.msra.mxu0 0
    %3843 = vmatprep.subr.bf16.mxu0 0
    %3844 = vmatpush1.bf16.msra.mxu0 0
    %3845 = vmatprep.subr.bf16.mxu0 0
    %3846 = vmatpush1.bf16.msra.mxu0 0
    %3847 = vmatprep.subr.bf16.mxu0 0
    %3848 = vmatpush1.bf16.msra.mxu0 0
    %3849 = vmatprep.subr.bf16.mxu0 0
    %3850 = vmatpush1.bf16.msra.mxu0 0
    %3851 = vmatprep.subr.bf16.mxu0 0
    %3852 = vmatpush1.bf16.msra.mxu0 0
    %3853 = vmatprep.subr.bf16.mxu0 0
    %3854 = vmatpush1.bf16.msra.mxu0 %v3837
    %3855 = vmatprep.subr.bf16.mxu0 0
    %3856 = vmatpush2.bf16.msra.mxu0 0
    %3857 = vmatprep.subr.bf16.mxu0 0
    %3858 = vmatpush2.bf16.msra.mxu0 0
    %3859 = vmatprep.subr.bf16.mxu0 0
    %3860 = vmatpush2.bf16.msra.mxu0 0
    %3861 = vmatprep.subr.bf16.mxu0 0
    %3862 = vmatpush2.bf16.msra.mxu0 0
    %3863 = vmatprep.subr.bf16.mxu0 0
    %3864 = vmatpush2.bf16.msra.mxu0 0
    %3865 = vmatprep.subr.bf16.mxu0 0
    %3866 = vmatpush2.bf16.msra.mxu0 0
    %3867 = vmatprep.subr.bf16.mxu0 0
    %3868 = vmatpush2.bf16.msra.mxu0 0
    %3869 = vmatprep.subr.bf16.mxu0 0
    %3870 = vmatpush2.bf16.msra.mxu0 0
    %3871 = vmatprep.mubr.bf16.mxu0 0
    %3872 = vmatmul.mubr.bf16.gmra.mxu0 %v3834
    %v3873 = vpop.f32.mrf.mxu0
    %v3874 = vadd.f32 0.0, %v3873
    %v3875 = vpop.f32.mrf.mxu0
    %v3876 = vpop.f32.mrf.mxu0
    %v3877 = vpop.f32.mrf.mxu0
    %3878 = vdwg.mxu0
    %3881 = vrot.lane.b32.xlu0 %v3276, 16
    %v3882 = vpop.permute.xlu0 %3881
    %3883 = vrot.lane.b32.xlu0 %v3322, 16
    %v3884 = vpop.permute.xlu0 %3883
    %3889 = vrot.lane.b32.xlu0 %v3368, 32
    %v3890 = vpop.permute.xlu0 %3889
    %3891 = vrot.lane.b32.xlu0 %v3414, 32
    %v3892 = vpop.permute.xlu0 %3891
    %3897 = vrot.lane.b32.xlu0 %v3460, 48
    %v3898 = vpop.permute.xlu0 %3897
    %3899 = vrot.lane.b32.xlu0 %v3506, 48
    %v3900 = vpop.permute.xlu0 %3899
    %3905 = vrot.lane.b32.xlu0 %v3552, 64
    %v3906 = vpop.permute.xlu0 %3905
    %3907 = vrot.lane.b32.xlu0 %v3598, 64
    %v3908 = vpop.permute.xlu0 %3907
    %3913 = vrot.lane.b32.xlu0 %v3644, 80
    %v3914 = vpop.permute.xlu0 %3913
    %3915 = vrot.lane.b32.xlu0 %v3690, 80
    %v3916 = vpop.permute.xlu0 %3915
    %3921 = vrot.lane.b32.xlu0 %v3736, 96
    %v3922 = vpop.permute.xlu0 %3921
    %3923 = vrot.lane.b32.xlu0 %v3782, 96
    %v3924 = vpop.permute.xlu0 %3923
    %3929 = vrot.lane.b32.xlu0 %v3828, 112
    %v3930 = vpop.permute.xlu0 %3929
    %3931 = vrot.lane.b32.xlu0 %v3874, 112
    %v3932 = vpop.permute.xlu0 %3931
    %v3935 = vsel %vm2196, %v3184, %v3882
    %v3936 = vsel %vm2196, %v3230, %v3884
    %vm3937 = vcmask 261120
    %v3938 = vsel %vm3937, %v3935, %v3890
    %v3939 = vsel %vm3937, %v3936, %v3892
    %vm3940 = vcmask 392192
    %v3941 = vsel %vm3940, %v3938, %v3898
    %v3942 = vsel %vm3940, %v3939, %v3900
    %v3943 = vsel %vm546, %v3941, %v3906
    %v3944 = vsel %vm546, %v3942, %v3908
    %vm3945 = vcmask 654336
    %v3946 = vsel %vm3945, %v3943, %v3914
    %v3947 = vsel %vm3945, %v3944, %v3916
    %v3948 = vsel %vm1829, %v3946, %v3922
    %v3949 = vsel %vm1829, %v3947, %v3924
    %vm3950 = vcmask 916480
    %v3951 = vsel %vm3950, %v3948, %v3930
    %v3952 = vsel %vm3950, %v3949, %v3932
    %v3953 = vld [vmem:[%s31] sm:$0xf]
    %v3954 = vld [vmem:[%s31 + $0x4] sm:$0xf]
    %v3955 = vld [vmem:[%s31 + $0x8] sm:$0xf]
    %v3956 = vld [vmem:[%s31 + $0xc] sm:$0xf]
    %v3957 = vld [vmem:[%s31 + $0x10] sm:$0xf]
    %v3958 = vld [vmem:[%s31 + $0x14] sm:$0xf]
    %v3959 = vld [vmem:[%s31 + $0x18] sm:$0xf]
    %v3960 = vld [vmem:[%s31 + $0x1c] sm:$0xf]
    %v3961 = vld [vmem:[%s31 + $0x20] sm:$0xf]
    %v3962 = vld [vmem:[%s31 + $0x24] sm:$0xf]
    %v3963 = vld [vmem:[%s31 + $0x28] sm:$0xf]
    %v3964 = vld [vmem:[%s31 + $0x2c] sm:$0xf]
    %v3965 = vld [vmem:[%s31 + $0x30] sm:$0xf]
    %v3966 = vld [vmem:[%s31 + $0x34] sm:$0xf]
    %v3967 = vld [vmem:[%s31 + $0x38] sm:$0xf]
    %v3968 = vld [vmem:[%s31 + $0x3c] sm:$0xf]
    %v3969 = vpack.c.bf16 %v3952, %v3951
    %v3970 = vld [vmem:[#allocation23] sm:$0x1]
    %v3972 = vlaneseq
    %v3973 = vshrl.u32 %v3972, 7
    %v3974 = vsub.s32 0, %v3973
    %v3975 = vrot.slane %v3970, %v3974
    %v3993 = vunpack.c.l.b16 %v3953
    %v3994 = vunpack.c.l.b16 %v3954
    %v3995 = vunpack.c.l.b16 %v3955
    %v3996 = vunpack.c.l.b16 %v3956
    %v3997 = vunpack.c.l.b16 %v3957
    %v3998 = vunpack.c.l.b16 %v3958
    %v3999 = vunpack.c.l.b16 %v3959
    %v4000 = vunpack.c.l.b16 %v3960
    %v4001 = vunpack.c.l.b16 %v3961
    %v4002 = vunpack.c.l.b16 %v3962
    %v4003 = vunpack.c.l.b16 %v3963
    %v4004 = vunpack.c.l.b16 %v3964
    %v4005 = vunpack.c.l.b16 %v3965
    %v4006 = vunpack.c.l.b16 %v3966
    %v4007 = vunpack.c.l.b16 %v3967
    %v4008 = vunpack.c.l.b16 %v3968
    %v4009 = vpack.c.b16 %v3994, %v3993
    %v4010 = vpack.c.b16 %v3996, %v3995
    %v4011 = vpack.c.b16 %v3998, %v3997
    %v4012 = vpack.c.b16 %v4000, %v3999
    %v4013 = vpack.c.b16 %v4002, %v4001
    %v4014 = vpack.c.b16 %v4004, %v4003
    %v4015 = vpack.c.b16 %v4006, %v4005
    %v4016 = vpack.c.b16 %v4008, %v4007
    %4025 = vmatprep.subr.bf16.mxu0 0
    %4026 = vmatpush1.bf16.msra.mxu0 %v4016
    %4027 = vmatprep.subr.bf16.mxu0 0
    %4028 = vmatpush1.bf16.msra.mxu0 %v4015
    %4029 = vmatprep.subr.bf16.mxu0 0
    %4030 = vmatpush1.bf16.msra.mxu0 %v4014
    %4031 = vmatprep.subr.bf16.mxu0 0
    %4032 = vmatpush1.bf16.msra.mxu0 %v4013
    %4033 = vmatprep.subr.bf16.mxu0 0
    %4034 = vmatpush1.bf16.msra.mxu0 %v4012
    %4035 = vmatprep.subr.bf16.mxu0 0
    %4036 = vmatpush1.bf16.msra.mxu0 %v4011
    %4037 = vmatprep.subr.bf16.mxu0 0
    %4038 = vmatpush1.bf16.msra.mxu0 %v4010
    %4039 = vmatprep.subr.bf16.mxu0 0
    %4040 = vmatpush1.bf16.msra.mxu0 %v4009
    %4041 = vmatprep.subr.bf16.mxu0 0
    %4042 = vmatpush2.bf16.msra.mxu0 0
    %4043 = vmatprep.subr.bf16.mxu0 0
    %4044 = vmatpush2.bf16.msra.mxu0 0
    %4045 = vmatprep.subr.bf16.mxu0 0
    %4046 = vmatpush2.bf16.msra.mxu0 0
    %4047 = vmatprep.subr.bf16.mxu0 0
    %4048 = vmatpush2.bf16.msra.mxu0 0
    %4049 = vmatprep.subr.bf16.mxu0 0
    %4050 = vmatpush2.bf16.msra.mxu0 0
    %4051 = vmatprep.subr.bf16.mxu0 0
    %4052 = vmatpush2.bf16.msra.mxu0 0
    %4053 = vmatprep.subr.bf16.mxu0 0
    %4054 = vmatpush2.bf16.msra.mxu0 0
    %4055 = vmatprep.subr.bf16.mxu0 0
    %4056 = vmatpush2.bf16.msra.mxu0 0
    %4057 = vmatprep.mubr.bf16.mxu0 0
    %4058 = vmatmul.mubr.bf16.gmra.mxu0 %v3969
    %v4059 = vpop.f32.mrf.mxu0
    %v4060 = vadd.f32 %v3975, %v4059
    %v4061 = vpop.f32.mrf.mxu0
    %v4062 = vpop.f32.mrf.mxu0
    %v4063 = vadd.f32 %v3975, %v4062
    %v4064 = vpop.f32.mrf.mxu0
    %4065 = vdwg.mxu0
    %v4066 = vadd.f32 %v1830, %v4060
    %v4067 = vadd.f32 %v1831, %v4063
    %v4068 = vld [vmem:[#allocation24] sm:$0x1]
    %v4069 = vld [vmem:[#allocation26] sm:$0x1]
    %4070 = vadd.xlane.f32.xlu0 %v4066
    %v4071 = vpop.xlane.xlu0 %4070
    %4072 = vadd.xlane.f32.xlu0 %v4067
    %v4073 = vpop.xlane.xlu0 %4072
    %v4074 = vrcp.pop 128.0
    %v4075 = vmul.f32 %v4071, %v4074
    %v4076 = vmul.f32 %v4073, %v4074
    %v4077 = vsub.f32 %v4066, %v4075
    %v4078 = vsub.f32 %v4067, %v4076
    %v4079 = vmul.f32 %v4077, %v4077
    %v4080 = vmul.f32 %v4078, %v4078
    %4081 = vadd.xlane.f32.xlu0 %v4079
    %v4082 = vpop.xlane.xlu0 %4081
    %4083 = vadd.xlane.f32.xlu0 %v4080
    %v4084 = vpop.xlane.xlu0 %4083
    %v4085 = vmul.f32 %v4082, %v4074
    %v4086 = vmul.f32 %v4084, %v4074
    %v4087 = vadd.f32 %v4085, 1e-05
    %v4088 = vadd.f32 %v4086, 1e-05
    %v4089 = vrsqrt.pop %v4087
    %v4090 = vrsqrt.pop %v4088
    %v4091 = vmul.f32 %v4077, %v4089
    %v4092 = vmul.f32 %v4078, %v4090
    %v4094 = vlaneseq
    %v4095 = vshrl.u32 %v4094, 7
    %v4096 = vsub.s32 0, %v4095
    %v4097 = vrot.slane %v4068, %v4096
    %v4099 = vmul.f32 %v4091, %v4097
    %v4100 = vmul.f32 %v4092, %v4097
    %v4102 = vlaneseq
    %v4103 = vshrl.u32 %v4102, 7
    %v4104 = vsub.s32 0, %v4103
    %v4105 = vrot.slane %v4069, %v4104
    %v4107 = vadd.f32 %v4099, %v4105
    %v4108 = vadd.f32 %v4100, %v4105
    %s4109 = scalar_lea.vmem [#allocation21], 192
    %v4110 = vld [vmem:[%s4109] sm:$0xff]
    %v4111 = vld [vmem:[%s4109 + $0x8] sm:$0xf]
    %v4112 = vld [vmem:[%s4109 + $0xc] sm:$0xff]
    %v4113 = vld [vmem:[%s4109 + $0x14] sm:$0xf]
    %v4114 = vld [vmem:[%s4109 + $0x18] sm:$0xff]
    %v4115 = vld [vmem:[%s4109 + $0x20] sm:$0xf]
    %v4116 = vld [vmem:[%s4109 + $0x24] sm:$0xff]
    %v4117 = vld [vmem:[%s4109 + $0x2c] sm:$0xf]
    %v4118 = vld [vmem:[%s4109 + $0x30] sm:$0xff]
    %v4119 = vld [vmem:[%s4109 + $0x38] sm:$0xf]
    %v4120 = vld [vmem:[%s4109 + $0x3c] sm:$0xff]
    %v4121 = vld [vmem:[%s4109 + $0x44] sm:$0xf]
    %v4122 = vld [vmem:[%s4109 + $0x48] sm:$0xff]
    %v4123 = vld [vmem:[%s4109 + $0x50] sm:$0xf]
    %v4124 = vld [vmem:[%s4109 + $0x54] sm:$0xff]
    %v4125 = vld [vmem:[%s4109 + $0x5c] sm:$0xf]
    %v4126 = vld [vmem:[%s4109 + $0x60] sm:$0xff]
    %v4127 = vld [vmem:[%s4109 + $0x68] sm:$0xf]
    %v4128 = vld [vmem:[%s4109 + $0x6c] sm:$0xff]
    %v4129 = vld [vmem:[%s4109 + $0x74] sm:$0xf]
    %v4130 = vld [vmem:[%s4109 + $0x78] sm:$0xff]
    %v4131 = vld [vmem:[%s4109 + $0x80] sm:$0xf]
    %v4132 = vld [vmem:[%s4109 + $0x84] sm:$0xff]
    %v4133 = vld [vmem:[%s4109 + $0x8c] sm:$0xf]
    %v4134 = vld [vmem:[%s4109 + $0x90] sm:$0xff]
    %v4135 = vld [vmem:[%s4109 + $0x98] sm:$0xf]
    %v4136 = vld [vmem:[%s4109 + $0x9c] sm:$0xff]
    %v4137 = vld [vmem:[%s4109 + $0xa4] sm:$0xf]
    %v4138 = vld [vmem:[%s4109 + $0xa8] sm:$0xff]
    %v4139 = vld [vmem:[%s4109 + $0xb0] sm:$0xf]
    %v4140 = vld [vmem:[%s4109 + $0xb4] sm:$0xff]
    %v4141 = vld [vmem:[%s4109 + $0xbc] sm:$0xf]
    %v4142 = vpack.c.bf16 %v4108, %v4107
    %s4143 = scalar_lea.vmem %s29, 3
    %v4144 = vld [vmem:[%s4143] sm:$0x7]
    %v4146 = vlaneseq
    %v4147 = vshrl.u32 %v4146, 7
    %v4148 = vsub.s32 0, %v4147
    %v4149 = vrot.slane %v4144, %v4148
    %v4150 = vlaneseq
    %v4151 = vshrl.u32 %v4150, 7
    %v4152 = vsub.s32 1, %v4151
    %v4153 = vrot.slane %v4144, %v4152
    %v4154 = vlaneseq
    %v4155 = vshrl.u32 %v4154, 7
    %v4156 = vsub.s32 2, %v4155
    %v4157 = vrot.slane %v4144, %v4156
    %v4193 = vunpack.c.l.b16 %v4110
    %v4194 = vunpack.c.h.b16 %v4110
    %v4195 = vunpack.c.l.b16 %v4111
    %v4196 = vunpack.c.l.b16 %v4112
    %v4197 = vunpack.c.h.b16 %v4112
    %v4198 = vunpack.c.l.b16 %v4113
    %v4199 = vunpack.c.l.b16 %v4114
    %v4200 = vunpack.c.h.b16 %v4114
    %v4201 = vunpack.c.l.b16 %v4115
    %v4202 = vunpack.c.l.b16 %v4116
    %v4203 = vunpack.c.h.b16 %v4116
    %v4204 = vunpack.c.l.b16 %v4117
    %v4205 = vunpack.c.l.b16 %v4118
    %v4206 = vunpack.c.h.b16 %v4118
    %v4207 = vunpack.c.l.b16 %v4119
    %v4208 = vunpack.c.l.b16 %v4120
    %v4209 = vunpack.c.h.b16 %v4120
    %v4210 = vunpack.c.l.b16 %v4121
    %v4211 = vunpack.c.l.b16 %v4122
    %v4212 = vunpack.c.h.b16 %v4122
    %v4213 = vunpack.c.l.b16 %v4123
    %v4214 = vunpack.c.l.b16 %v4124
    %v4215 = vunpack.c.h.b16 %v4124
    %v4216 = vunpack.c.l.b16 %v4125
    %v4217 = vunpack.c.l.b16 %v4126
    %v4218 = vunpack.c.h.b16 %v4126
    %v4219 = vunpack.c.l.b16 %v4127
    %v4220 = vunpack.c.l.b16 %v4128
    %v4221 = vunpack.c.h.b16 %v4128
    %v4222 = vunpack.c.l.b16 %v4129
    %v4223 = vunpack.c.l.b16 %v4130
    %v4224 = vunpack.c.h.b16 %v4130
    %v4225 = vunpack.c.l.b16 %v4131
    %v4226 = vunpack.c.l.b16 %v4132
    %v4227 = vunpack.c.h.b16 %v4132
    %v4228 = vunpack.c.l.b16 %v4133
    %v4229 = vunpack.c.l.b16 %v4134
    %v4230 = vunpack.c.h.b16 %v4134
    %v4231 = vunpack.c.l.b16 %v4135
    %v4232 = vunpack.c.l.b16 %v4136
    %v4233 = vunpack.c.h.b16 %v4136
    %v4234 = vunpack.c.l.b16 %v4137
    %v4235 = vunpack.c.l.b16 %v4138
    %v4236 = vunpack.c.h.b16 %v4138
    %v4237 = vunpack.c.l.b16 %v4139
    %v4238 = vunpack.c.l.b16 %v4140
    %v4239 = vunpack.c.h.b16 %v4140
    %v4240 = vunpack.c.l.b16 %v4141
    %v4241 = vpack.c.b16 %v4196, %v4193
    %v4242 = vpack.c.b16 %v4197, %v4194
    %v4243 = vpack.c.b16 %v4198, %v4195
    %v4244 = vpack.c.b16 %v4202, %v4199
    %v4245 = vpack.c.b16 %v4203, %v4200
    %v4246 = vpack.c.b16 %v4204, %v4201
    %v4247 = vpack.c.b16 %v4208, %v4205
    %v4248 = vpack.c.b16 %v4209, %v4206
    %v4249 = vpack.c.b16 %v4210, %v4207
    %v4250 = vpack.c.b16 %v4214, %v4211
    %v4251 = vpack.c.b16 %v4215, %v4212
    %v4252 = vpack.c.b16 %v4216, %v4213
    %v4253 = vpack.c.b16 %v4220, %v4217
    %v4254 = vpack.c.b16 %v4221, %v4218
    %v4255 = vpack.c.b16 %v4222, %v4219
    %v4256 = vpack.c.b16 %v4226, %v4223
    %v4257 = vpack.c.b16 %v4227, %v4224
    %v4258 = vpack.c.b16 %v4228, %v4225
    %v4259 = vpack.c.b16 %v4232, %v4229
    %v4260 = vpack.c.b16 %v4233, %v4230
    %v4261 = vpack.c.b16 %v4234, %v4231
    %v4262 = vpack.c.b16 %v4238, %v4235
    %v4263 = vpack.c.b16 %v4239, %v4236
    %v4264 = vpack.c.b16 %v4240, %v4237
    %4289 = vmatprep.subr.bf16.mxu0 %v4263
    %4290 = vmatpush1.bf16.msra.mxu0 %v4262
    %4291 = vmatprep.subr.bf16.mxu0 %v4260
    %4292 = vmatpush1.bf16.msra.mxu0 %v4259
    %4293 = vmatprep.subr.bf16.mxu0 %v4257
    %4294 = vmatpush1.bf16.msra.mxu0 %v4256
    %4295 = vmatprep.subr.bf16.mxu0 %v4254
    %4296 = vmatpush1.bf16.msra.mxu0 %v4253
    %4297 = vmatprep.subr.bf16.mxu0 %v4251
    %4298 = vmatpush1.bf16.msra.mxu0 %v4250
    %4299 = vmatprep.subr.bf16.mxu0 %v4248
    %4300 = vmatpush1.bf16.msra.mxu0 %v4247
    %4301 = vmatprep.subr.bf16.mxu0 %v4245
    %4302 = vmatpush1.bf16.msra.mxu0 %v4244
    %4303 = vmatprep.subr.bf16.mxu0 %v4242
    %4304 = vmatpush1.bf16.msra.mxu0 %v4241
    %4305 = vmatprep.subr.bf16.mxu0 0
    %4306 = vmatpush2.bf16.msra.mxu0 0
    %4307 = vmatprep.subr.bf16.mxu0 0
    %4308 = vmatpush2.bf16.msra.mxu0 0
    %4309 = vmatprep.subr.bf16.mxu0 0
    %4310 = vmatpush2.bf16.msra.mxu0 0
    %4311 = vmatprep.subr.bf16.mxu0 0
    %4312 = vmatpush2.bf16.msra.mxu0 0
    %4313 = vmatprep.subr.bf16.mxu0 0
    %4314 = vmatpush2.bf16.msra.mxu0 0
    %4315 = vmatprep.subr.bf16.mxu0 0
    %4316 = vmatpush2.bf16.msra.mxu0 0
    %4317 = vmatprep.subr.bf16.mxu0 0
    %4318 = vmatpush2.bf16.msra.mxu0 0
    %4319 = vmatprep.subr.bf16.mxu0 0
    %4320 = vmatpush2.bf16.msra.mxu0 0
    %4321 = vmatprep.mubr.bf16.mxu0 0
    %4322 = vmatmul.mubr.bf16.gmra.mxu0 %v4142
    %v4323 = vpop.f32.mrf.mxu0
    %v4324 = vadd.f32 %v4149, %v4323
    %v4325 = vpop.f32.mrf.mxu0
    %v4326 = vadd.f32 %v4153, %v4325
    %v4327 = vpop.f32.mrf.mxu0
    %v4328 = vadd.f32 %v4149, %v4327
    %v4329 = vpop.f32.mrf.mxu0
    %v4330 = vadd.f32 %v4153, %v4329
    %4331 = vdwg.mxu0
    %4332 = vmatprep.subr.bf16.mxu0 0
    %4333 = vmatpush1.bf16.msra.mxu0 %v4264
    %4334 = vmatprep.subr.bf16.mxu0 0
    %4335 = vmatpush1.bf16.msra.mxu0 %v4261
    %4336 = vmatprep.subr.bf16.mxu0 0
    %4337 = vmatpush1.bf16.msra.mxu0 %v4258
    %4338 = vmatprep.subr.bf16.mxu0 0
    %4339 = vmatpush1.bf16.msra.mxu0 %v4255
    %4340 = vmatprep.subr.bf16.mxu0 0
    %4341 = vmatpush1.bf16.msra.mxu0 %v4252
    %4342 = vmatprep.subr.bf16.mxu0 0
    %4343 = vmatpush1.bf16.msra.mxu0 %v4249
    %4344 = vmatprep.subr.bf16.mxu0 0
    %4345 = vmatpush1.bf16.msra.mxu0 %v4246
    %4346 = vmatprep.subr.bf16.mxu0 0
    %4347 = vmatpush1.bf16.msra.mxu0 %v4243
    %4348 = vmatprep.subr.bf16.mxu0 0
    %4349 = vmatpush2.bf16.msra.mxu0 0
    %4350 = vmatprep.subr.bf16.mxu0 0
    %4351 = vmatpush2.bf16.msra.mxu0 0
    %4352 = vmatprep.subr.bf16.mxu0 0
    %4353 = vmatpush2.bf16.msra.mxu0 0
    %4354 = vmatprep.subr.bf16.mxu0 0
    %4355 = vmatpush2.bf16.msra.mxu0 0
    %4356 = vmatprep.subr.bf16.mxu0 0
    %4357 = vmatpush2.bf16.msra.mxu0 0
    %4358 = vmatprep.subr.bf16.mxu0 0
    %4359 = vmatpush2.bf16.msra.mxu0 0
    %4360 = vmatprep.subr.bf16.mxu0 0
    %4361 = vmatpush2.bf16.msra.mxu0 0
    %4362 = vmatprep.subr.bf16.mxu0 0
    %4363 = vmatpush2.bf16.msra.mxu0 0
    %4364 = vmatprep.mubr.bf16.mxu0 0
    %4365 = vmatmul.mubr.bf16.gmra.mxu0 %v4142
    %v4366 = vpop.f32.mrf.mxu0
    %v4367 = vadd.f32 %v4157, %v4366
    %v4368 = vpop.f32.mrf.mxu0
    %v4369 = vpop.f32.mrf.mxu0
    %v4370 = vadd.f32 %v4157, %v4369
    %v4371 = vpop.f32.mrf.mxu0
    %4372 = vdwg.mxu0
    %v4373 = vpack.c.bf16 %v4328, %v4324
    %v4374 = vpack.c.bf16 %v4330, %v4326
    %v4375 = vpack.c.bf16 %v4370, %v4367
    %v4377 = vunpack.c.l.b16 %v4373
    %v4378 = vunpack.c.h.b16 %v4373
    %v4379 = vpack.c.b16 %v4377, %v4377
    %v4380 = vpack.c.b16 %v4378, %v4378
    %4381 = vrot.lane.b32.xlu0 %v4379, 112
    %v4382 = vpop.permute.xlu0 %4381
    %4383 = vrot.lane.b32.xlu0 %v4380, 112
    %v4384 = vpop.permute.xlu0 %4383
    %4385 = vrot.lane.b32.xlu0 %v4379, 96
    %v4386 = vpop.permute.xlu0 %4385
    %4387 = vrot.lane.b32.xlu0 %v4380, 96
    %v4388 = vpop.permute.xlu0 %4387
    %4389 = vrot.lane.b32.xlu0 %v4379, 80
    %v4390 = vpop.permute.xlu0 %4389
    %4391 = vrot.lane.b32.xlu0 %v4380, 80
    %v4392 = vpop.permute.xlu0 %4391
    %4393 = vrot.lane.b32.xlu0 %v4379, 64
    %v4394 = vpop.permute.xlu0 %4393
    %4395 = vrot.lane.b32.xlu0 %v4380, 64
    %v4396 = vpop.permute.xlu0 %4395
    %4397 = vrot.lane.b32.xlu0 %v4379, 48
    %v4398 = vpop.permute.xlu0 %4397
    %4399 = vrot.lane.b32.xlu0 %v4380, 48
    %v4400 = vpop.permute.xlu0 %4399
    %4401 = vrot.lane.b32.xlu0 %v4379, 32
    %v4402 = vpop.permute.xlu0 %4401
    %4403 = vrot.lane.b32.xlu0 %v4380, 32
    %v4404 = vpop.permute.xlu0 %4403
    %4405 = vrot.lane.b32.xlu0 %v4379, 16
    %v4406 = vpop.permute.xlu0 %4405
    %4407 = vrot.lane.b32.xlu0 %v4380, 16
    %v4408 = vpop.permute.xlu0 %4407
    %v4410 = vunpack.c.l.b16 %v4374
    %v4411 = vunpack.c.h.b16 %v4374
    %v4412 = vpack.c.b16 %v4410, %v4410
    %v4413 = vpack.c.b16 %v4411, %v4411
    %4414 = vrot.lane.b32.xlu0 %v4412, 112
    %v4415 = vpop.permute.xlu0 %4414
    %4416 = vrot.lane.b32.xlu0 %v4413, 112
    %v4417 = vpop.permute.xlu0 %4416
    %4418 = vrot.lane.b32.xlu0 %v4412, 96
    %v4419 = vpop.permute.xlu0 %4418
    %4420 = vrot.lane.b32.xlu0 %v4413, 96
    %v4421 = vpop.permute.xlu0 %4420
    %4422 = vrot.lane.b32.xlu0 %v4412, 80
    %v4423 = vpop.permute.xlu0 %4422
    %4424 = vrot.lane.b32.xlu0 %v4413, 80
    %v4425 = vpop.permute.xlu0 %4424
    %4426 = vrot.lane.b32.xlu0 %v4412, 64
    %v4427 = vpop.permute.xlu0 %4426
    %4428 = vrot.lane.b32.xlu0 %v4413, 64
    %v4429 = vpop.permute.xlu0 %4428
    %4430 = vrot.lane.b32.xlu0 %v4412, 48
    %v4431 = vpop.permute.xlu0 %4430
    %4432 = vrot.lane.b32.xlu0 %v4413, 48
    %v4433 = vpop.permute.xlu0 %4432
    %4434 = vrot.lane.b32.xlu0 %v4412, 32
    %v4435 = vpop.permute.xlu0 %4434
    %4436 = vrot.lane.b32.xlu0 %v4413, 32
    %v4437 = vpop.permute.xlu0 %4436
    %4438 = vrot.lane.b32.xlu0 %v4412, 16
    %v4439 = vpop.permute.xlu0 %4438
    %4440 = vrot.lane.b32.xlu0 %v4413, 16
    %v4441 = vpop.permute.xlu0 %4440
    %v4443 = vunpack.c.l.b16 %v4375
    %v4444 = vunpack.c.h.b16 %v4375
    %v4445 = vpack.c.b16 %v4443, %v4443
    %v4446 = vpack.c.b16 %v4444, %v4444
    %4447 = vrot.lane.b32.xlu0 %v4445, 112
    %v4448 = vpop.permute.xlu0 %4447
    %4449 = vrot.lane.b32.xlu0 %v4446, 112
    %v4450 = vpop.permute.xlu0 %4449
    %4451 = vrot.lane.b32.xlu0 %v4445, 96
    %v4452 = vpop.permute.xlu0 %4451
    %4453 = vrot.lane.b32.xlu0 %v4446, 96
    %v4454 = vpop.permute.xlu0 %4453
    %4455 = vrot.lane.b32.xlu0 %v4445, 80
    %v4456 = vpop.permute.xlu0 %4455
    %4457 = vrot.lane.b32.xlu0 %v4446, 80
    %v4458 = vpop.permute.xlu0 %4457
    %4459 = vrot.lane.b32.xlu0 %v4445, 64
    %v4460 = vpop.permute.xlu0 %4459
    %4461 = vrot.lane.b32.xlu0 %v4446, 64
    %v4462 = vpop.permute.xlu0 %4461
    %4463 = vrot.lane.b32.xlu0 %v4445, 48
    %v4464 = vpop.permute.xlu0 %4463
    %4465 = vrot.lane.b32.xlu0 %v4446, 48
    %v4466 = vpop.permute.xlu0 %4465
    %4467 = vrot.lane.b32.xlu0 %v4445, 32
    %v4468 = vpop.permute.xlu0 %4467
    %4469 = vrot.lane.b32.xlu0 %v4446, 32
    %v4470 = vpop.permute.xlu0 %4469
    %4471 = vrot.lane.b32.xlu0 %v4445, 16
    %v4472 = vpop.permute.xlu0 %4471
    %4473 = vrot.lane.b32.xlu0 %v4446, 16
    %v4474 = vpop.permute.xlu0 %4473
    %v4476 = vsel %vm2196, %v4379, 0
    %v4479 = vsel %vm2196, %v4412, 0
    %4481 = vmatprep.subr.bf16.mxu0 0
    %4482 = vmatpush1.bf16.xpose.msra.mxu0 0
    %4483 = vmatprep.subr.bf16.mxu0 0
    %4484 = vmatpush1.bf16.xpose.msra.mxu0 0
    %4485 = vmatprep.subr.bf16.mxu0 0
    %4486 = vmatpush1.bf16.xpose.msra.mxu0 0
    %4487 = vmatprep.subr.bf16.mxu0 0
    %4488 = vmatpush1.bf16.xpose.msra.mxu0 0
    %4489 = vmatprep.subr.bf16.mxu0 0
    %4490 = vmatpush1.bf16.xpose.msra.mxu0 0
    %4491 = vmatprep.subr.bf16.mxu0 0
    %4492 = vmatpush1.bf16.xpose.msra.mxu0 0
    %4493 = vmatprep.subr.bf16.mxu0 0
    %4494 = vmatpush1.bf16.xpose.msra.mxu0 0
    %4495 = vmatprep.subr.bf16.mxu0 0
    %4496 = vmatpush1.bf16.xpose.msra.mxu0 %v4479
    %4497 = vmatprep.subr.bf16.mxu0 0
    %4498 = vmatpush2.bf16.xpose.msra.mxu0 0
    %4499 = vmatprep.subr.bf16.mxu0 0
    %4500 = vmatpush2.bf16.xpose.msra.mxu0 0
    %4501 = vmatprep.subr.bf16.mxu0 0
    %4502 = vmatpush2.bf16.xpose.msra.mxu0 0
    %4503 = vmatprep.subr.bf16.mxu0 0
    %4504 = vmatpush2.bf16.xpose.msra.mxu0 0
    %4505 = vmatprep.subr.bf16.mxu0 0
    %4506 = vmatpush2.bf16.xpose.msra.mxu0 0
    %4507 = vmatprep.subr.bf16.mxu0 0
    %4508 = vmatpush2.bf16.xpose.msra.mxu0 0
    %4509 = vmatprep.subr.bf16.mxu0 0
    %4510 = vmatpush2.bf16.xpose.msra.mxu0 0
    %4511 = vmatprep.subr.bf16.mxu0 0
    %4512 = vmatpush2.bf16.xpose.msra.mxu0 0
    %4513 = vmatprep.mubr.bf16.mxu0 0
    %4514 = vmatmul.mubr.bf16.gmra.mxu0 %v4476
    %v4515 = vpop.f32.mrf.mxu0
    %v4516 = vadd.f32 0.0, %v4515
    %v4517 = vpop.f32.mrf.mxu0
    %v4518 = vpop.f32.mrf.mxu0
    %v4519 = vpop.f32.mrf.mxu0
    %4520 = vdwg.mxu0
    %v4522 = vsel %vm2196, %v4380, 0
    %v4525 = vsel %vm2196, %v4413, 0
    %4527 = vmatprep.subr.bf16.mxu0 0
    %4528 = vmatpush1.bf16.xpose.msra.mxu0 0
    %4529 = vmatprep.subr.bf16.mxu0 0
    %4530 = vmatpush1.bf16.xpose.msra.mxu0 0
    %4531 = vmatprep.subr.bf16.mxu0 0
    %4532 = vmatpush1.bf16.xpose.msra.mxu0 0
    %4533 = vmatprep.subr.bf16.mxu0 0
    %4534 = vmatpush1.bf16.xpose.msra.mxu0 0
    %4535 = vmatprep.subr.bf16.mxu0 0
    %4536 = vmatpush1.bf16.xpose.msra.mxu0 0
    %4537 = vmatprep.subr.bf16.mxu0 0
    %4538 = vmatpush1.bf16.xpose.msra.mxu0 0
    %4539 = vmatprep.subr.bf16.mxu0 0
    %4540 = vmatpush1.bf16.xpose.msra.mxu0 0
    %4541 = vmatprep.subr.bf16.mxu0 0
    %4542 = vmatpush1.bf16.xpose.msra.mxu0 %v4525
    %4543 = vmatprep.subr.bf16.mxu0 0
    %4544 = vmatpush2.bf16.xpose.msra.mxu0 0
    %4545 = vmatprep.subr.bf16.mxu0 0
    %4546 = vmatpush2.bf16.xpose.msra.mxu0 0
    %4547 = vmatprep.subr.bf16.mxu0 0
    %4548 = vmatpush2.bf16.xpose.msra.mxu0 0
    %4549 = vmatprep.subr.bf16.mxu0 0
    %4550 = vmatpush2.bf16.xpose.msra.mxu0 0
    %4551 = vmatprep.subr.bf16.mxu0 0
    %4552 = vmatpush2.bf16.xpose.msra.mxu0 0
    %4553 = vmatprep.subr.bf16.mxu0 0
    %4554 = vmatpush2.bf16.xpose.msra.mxu0 0
    %4555 = vmatprep.subr.bf16.mxu0 0
    %4556 = vmatpush2.bf16.xpose.msra.mxu0 0
    %4557 = vmatprep.subr.bf16.mxu0 0
    %4558 = vmatpush2.bf16.xpose.msra.mxu0 0
    %4559 = vmatprep.mubr.bf16.mxu0 0
    %4560 = vmatmul.mubr.bf16.gmra.mxu0 %v4522
    %v4561 = vpop.f32.mrf.mxu0
    %v4562 = vadd.f32 0.0, %v4561
    %v4563 = vpop.f32.mrf.mxu0
    %v4564 = vpop.f32.mrf.mxu0
    %v4565 = vpop.f32.mrf.mxu0
    %4566 = vdwg.mxu0
    %v4568 = vsel %vm2196, %v4382, 0
    %v4571 = vsel %vm2196, %v4415, 0
    %4573 = vmatprep.subr.bf16.mxu0 0
    %4574 = vmatpush1.bf16.xpose.msra.mxu0 0
    %4575 = vmatprep.subr.bf16.mxu0 0
    %4576 = vmatpush1.bf16.xpose.msra.mxu0 0
    %4577 = vmatprep.subr.bf16.mxu0 0
    %4578 = vmatpush1.bf16.xpose.msra.mxu0 0
    %4579 = vmatprep.subr.bf16.mxu0 0
    %4580 = vmatpush1.bf16.xpose.msra.mxu0 0
    %4581 = vmatprep.subr.bf16.mxu0 0
    %4582 = vmatpush1.bf16.xpose.msra.mxu0 0
    %4583 = vmatprep.subr.bf16.mxu0 0
    %4584 = vmatpush1.bf16.xpose.msra.mxu0 0
    %4585 = vmatprep.subr.bf16.mxu0 0
    %4586 = vmatpush1.bf16.xpose.msra.mxu0 0
    %4587 = vmatprep.subr.bf16.mxu0 0
    %4588 = vmatpush1.bf16.xpose.msra.mxu0 %v4571
    %4589 = vmatprep.subr.bf16.mxu0 0
    %4590 = vmatpush2.bf16.xpose.msra.mxu0 0
    %4591 = vmatprep.subr.bf16.mxu0 0
    %4592 = vmatpush2.bf16.xpose.msra.mxu0 0
    %4593 = vmatprep.subr.bf16.mxu0 0
    %4594 = vmatpush2.bf16.xpose.msra.mxu0 0
    %4595 = vmatprep.subr.bf16.mxu0 0
    %4596 = vmatpush2.bf16.xpose.msra.mxu0 0
    %4597 = vmatprep.subr.bf16.mxu0 0
    %4598 = vmatpush2.bf16.xpose.msra.mxu0 0
    %4599 = vmatprep.subr.bf16.mxu0 0
    %4600 = vmatpush2.bf16.xpose.msra.mxu0 0
    %4601 = vmatprep.subr.bf16.mxu0 0
    %4602 = vmatpush2.bf16.xpose.msra.mxu0 0
    %4603 = vmatprep.subr.bf16.mxu0 0
    %4604 = vmatpush2.bf16.xpose.msra.mxu0 0
    %4605 = vmatprep.mubr.bf16.mxu0 0
    %4606 = vmatmul.mubr.bf16.gmra.mxu0 %v4568
    %v4607 = vpop.f32.mrf.mxu0
    %v4608 = vadd.f32 0.0, %v4607
    %v4609 = vpop.f32.mrf.mxu0
    %v4610 = vpop.f32.mrf.mxu0
    %v4611 = vpop.f32.mrf.mxu0
    %4612 = vdwg.mxu0
    %v4614 = vsel %vm2196, %v4384, 0
    %v4617 = vsel %vm2196, %v4417, 0
    %4619 = vmatprep.subr.bf16.mxu0 0
    %4620 = vmatpush1.bf16.xpose.msra.mxu0 0
    %4621 = vmatprep.subr.bf16.mxu0 0
    %4622 = vmatpush1.bf16.xpose.msra.mxu0 0
    %4623 = vmatprep.subr.bf16.mxu0 0
    %4624 = vmatpush1.bf16.xpose.msra.mxu0 0
    %4625 = vmatprep.subr.bf16.mxu0 0
    %4626 = vmatpush1.bf16.xpose.msra.mxu0 0
    %4627 = vmatprep.subr.bf16.mxu0 0
    %4628 = vmatpush1.bf16.xpose.msra.mxu0 0
    %4629 = vmatprep.subr.bf16.mxu0 0
    %4630 = vmatpush1.bf16.xpose.msra.mxu0 0
    %4631 = vmatprep.subr.bf16.mxu0 0
    %4632 = vmatpush1.bf16.xpose.msra.mxu0 0
    %4633 = vmatprep.subr.bf16.mxu0 0
    %4634 = vmatpush1.bf16.xpose.msra.mxu0 %v4617
    %4635 = vmatprep.subr.bf16.mxu0 0
    %4636 = vmatpush2.bf16.xpose.msra.mxu0 0
    %4637 = vmatprep.subr.bf16.mxu0 0
    %4638 = vmatpush2.bf16.xpose.msra.mxu0 0
    %4639 = vmatprep.subr.bf16.mxu0 0
    %4640 = vmatpush2.bf16.xpose.msra.mxu0 0
    %4641 = vmatprep.subr.bf16.mxu0 0
    %4642 = vmatpush2.bf16.xpose.msra.mxu0 0
    %4643 = vmatprep.subr.bf16.mxu0 0
    %4644 = vmatpush2.bf16.xpose.msra.mxu0 0
    %4645 = vmatprep.subr.bf16.mxu0 0
    %4646 = vmatpush2.bf16.xpose.msra.mxu0 0
    %4647 = vmatprep.subr.bf16.mxu0 0
    %4648 = vmatpush2.bf16.xpose.msra.mxu0 0
    %4649 = vmatprep.subr.bf16.mxu0 0
    %4650 = vmatpush2.bf16.xpose.msra.mxu0 0
    %4651 = vmatprep.mubr.bf16.mxu0 0
    %4652 = vmatmul.mubr.bf16.gmra.mxu0 %v4614
    %v4653 = vpop.f32.mrf.mxu0
    %v4654 = vadd.f32 0.0, %v4653
    %v4655 = vpop.f32.mrf.mxu0
    %v4656 = vpop.f32.mrf.mxu0
    %v4657 = vpop.f32.mrf.mxu0
    %4658 = vdwg.mxu0
    %v4660 = vsel %vm2196, %v4386, 0
    %v4663 = vsel %vm2196, %v4419, 0
    %4665 = vmatprep.subr.bf16.mxu0 0
    %4666 = vmatpush1.bf16.xpose.msra.mxu0 0
    %4667 = vmatprep.subr.bf16.mxu0 0
    %4668 = vmatpush1.bf16.xpose.msra.mxu0 0
    %4669 = vmatprep.subr.bf16.mxu0 0
    %4670 = vmatpush1.bf16.xpose.msra.mxu0 0
    %4671 = vmatprep.subr.bf16.mxu0 0
    %4672 = vmatpush1.bf16.xpose.msra.mxu0 0
    %4673 = vmatprep.subr.bf16.mxu0 0
    %4674 = vmatpush1.bf16.xpose.msra.mxu0 0
    %4675 = vmatprep.subr.bf16.mxu0 0
    %4676 = vmatpush1.bf16.xpose.msra.mxu0 0
    %4677 = vmatprep.subr.bf16.mxu0 0
    %4678 = vmatpush1.bf16.xpose.msra.mxu0 0
    %4679 = vmatprep.subr.bf16.mxu0 0
    %4680 = vmatpush1.bf16.xpose.msra.mxu0 %v4663
    %4681 = vmatprep.subr.bf16.mxu0 0
    %4682 = vmatpush2.bf16.xpose.msra.mxu0 0
    %4683 = vmatprep.subr.bf16.mxu0 0
    %4684 = vmatpush2.bf16.xpose.msra.mxu0 0
    %4685 = vmatprep.subr.bf16.mxu0 0
    %4686 = vmatpush2.bf16.xpose.msra.mxu0 0
    %4687 = vmatprep.subr.bf16.mxu0 0
    %4688 = vmatpush2.bf16.xpose.msra.mxu0 0
    %4689 = vmatprep.subr.bf16.mxu0 0
    %4690 = vmatpush2.bf16.xpose.msra.mxu0 0
    %4691 = vmatprep.subr.bf16.mxu0 0
    %4692 = vmatpush2.bf16.xpose.msra.mxu0 0
    %4693 = vmatprep.subr.bf16.mxu0 0
    %4694 = vmatpush2.bf16.xpose.msra.mxu0 0
    %4695 = vmatprep.subr.bf16.mxu0 0
    %4696 = vmatpush2.bf16.xpose.msra.mxu0 0
    %4697 = vmatprep.mubr.bf16.mxu0 0
    %4698 = vmatmul.mubr.bf16.gmra.mxu0 %v4660
    %v4699 = vpop.f32.mrf.mxu0
    %v4700 = vadd.f32 0.0, %v4699
    %v4701 = vpop.f32.mrf.mxu0
    %v4702 = vpop.f32.mrf.mxu0
    %v4703 = vpop.f32.mrf.mxu0
    %4704 = vdwg.mxu0
    %v4706 = vsel %vm2196, %v4388, 0
    %v4709 = vsel %vm2196, %v4421, 0
    %4711 = vmatprep.subr.bf16.mxu0 0
    %4712 = vmatpush1.bf16.xpose.msra.mxu0 0
    %4713 = vmatprep.subr.bf16.mxu0 0
    %4714 = vmatpush1.bf16.xpose.msra.mxu0 0
    %4715 = vmatprep.subr.bf16.mxu0 0
    %4716 = vmatpush1.bf16.xpose.msra.mxu0 0
    %4717 = vmatprep.subr.bf16.mxu0 0
    %4718 = vmatpush1.bf16.xpose.msra.mxu0 0
    %4719 = vmatprep.subr.bf16.mxu0 0
    %4720 = vmatpush1.bf16.xpose.msra.mxu0 0
    %4721 = vmatprep.subr.bf16.mxu0 0
    %4722 = vmatpush1.bf16.xpose.msra.mxu0 0
    %4723 = vmatprep.subr.bf16.mxu0 0
    %4724 = vmatpush1.bf16.xpose.msra.mxu0 0
    %4725 = vmatprep.subr.bf16.mxu0 0
    %4726 = vmatpush1.bf16.xpose.msra.mxu0 %v4709
    %4727 = vmatprep.subr.bf16.mxu0 0
    %4728 = vmatpush2.bf16.xpose.msra.mxu0 0
    %4729 = vmatprep.subr.bf16.mxu0 0
    %4730 = vmatpush2.bf16.xpose.msra.mxu0 0
    %4731 = vmatprep.subr.bf16.mxu0 0
    %4732 = vmatpush2.bf16.xpose.msra.mxu0 0
    %4733 = vmatprep.subr.bf16.mxu0 0
    %4734 = vmatpush2.bf16.xpose.msra.mxu0 0
    %4735 = vmatprep.subr.bf16.mxu0 0
    %4736 = vmatpush2.bf16.xpose.msra.mxu0 0
    %4737 = vmatprep.subr.bf16.mxu0 0
    %4738 = vmatpush2.bf16.xpose.msra.mxu0 0
    %4739 = vmatprep.subr.bf16.mxu0 0
    %4740 = vmatpush2.bf16.xpose.msra.mxu0 0
    %4741 = vmatprep.subr.bf16.mxu0 0
    %4742 = vmatpush2.bf16.xpose.msra.mxu0 0
    %4743 = vmatprep.mubr.bf16.mxu0 0
    %4744 = vmatmul.mubr.bf16.gmra.mxu0 %v4706
    %v4745 = vpop.f32.mrf.mxu0
    %v4746 = vadd.f32 0.0, %v4745
    %v4747 = vpop.f32.mrf.mxu0
    %v4748 = vpop.f32.mrf.mxu0
    %v4749 = vpop.f32.mrf.mxu0
    %4750 = vdwg.mxu0
    %v4752 = vsel %vm2196, %v4390, 0
    %v4755 = vsel %vm2196, %v4423, 0
    %4757 = vmatprep.subr.bf16.mxu0 0
    %4758 = vmatpush1.bf16.xpose.msra.mxu0 0
    %4759 = vmatprep.subr.bf16.mxu0 0
    %4760 = vmatpush1.bf16.xpose.msra.mxu0 0
    %4761 = vmatprep.subr.bf16.mxu0 0
    %4762 = vmatpush1.bf16.xpose.msra.mxu0 0
    %4763 = vmatprep.subr.bf16.mxu0 0
    %4764 = vmatpush1.bf16.xpose.msra.mxu0 0
    %4765 = vmatprep.subr.bf16.mxu0 0
    %4766 = vmatpush1.bf16.xpose.msra.mxu0 0
    %4767 = vmatprep.subr.bf16.mxu0 0
    %4768 = vmatpush1.bf16.xpose.msra.mxu0 0
    %4769 = vmatprep.subr.bf16.mxu0 0
    %4770 = vmatpush1.bf16.xpose.msra.mxu0 0
    %4771 = vmatprep.subr.bf16.mxu0 0
    %4772 = vmatpush1.bf16.xpose.msra.mxu0 %v4755
    %4773 = vmatprep.subr.bf16.mxu0 0
    %4774 = vmatpush2.bf16.xpose.msra.mxu0 0
    %4775 = vmatprep.subr.bf16.mxu0 0
    %4776 = vmatpush2.bf16.xpose.msra.mxu0 0
    %4777 = vmatprep.subr.bf16.mxu0 0
    %4778 = vmatpush2.bf16.xpose.msra.mxu0 0
    %4779 = vmatprep.subr.bf16.mxu0 0
    %4780 = vmatpush2.bf16.xpose.msra.mxu0 0
    %4781 = vmatprep.subr.bf16.mxu0 0
    %4782 = vmatpush2.bf16.xpose.msra.mxu0 0
    %4783 = vmatprep.subr.bf16.mxu0 0
    %4784 = vmatpush2.bf16.xpose.msra.mxu0 0
    %4785 = vmatprep.subr.bf16.mxu0 0
    %4786 = vmatpush2.bf16.xpose.msra.mxu0 0
    %4787 = vmatprep.subr.bf16.mxu0 0
    %4788 = vmatpush2.bf16.xpose.msra.mxu0 0
    %4789 = vmatprep.mubr.bf16.mxu0 0
    %4790 = vmatmul.mubr.bf16.gmra.mxu0 %v4752
    %v4791 = vpop.f32.mrf.mxu0
    %v4792 = vadd.f32 0.0, %v4791
    %v4793 = vpop.f32.mrf.mxu0
    %v4794 = vpop.f32.mrf.mxu0
    %v4795 = vpop.f32.mrf.mxu0
    %4796 = vdwg.mxu0
    %v4798 = vsel %vm2196, %v4392, 0
    %v4801 = vsel %vm2196, %v4425, 0
    %4803 = vmatprep.subr.bf16.mxu0 0
    %4804 = vmatpush1.bf16.xpose.msra.mxu0 0
    %4805 = vmatprep.subr.bf16.mxu0 0
    %4806 = vmatpush1.bf16.xpose.msra.mxu0 0
    %4807 = vmatprep.subr.bf16.mxu0 0
    %4808 = vmatpush1.bf16.xpose.msra.mxu0 0
    %4809 = vmatprep.subr.bf16.mxu0 0
    %4810 = vmatpush1.bf16.xpose.msra.mxu0 0
    %4811 = vmatprep.subr.bf16.mxu0 0
    %4812 = vmatpush1.bf16.xpose.msra.mxu0 0
    %4813 = vmatprep.subr.bf16.mxu0 0
    %4814 = vmatpush1.bf16.xpose.msra.mxu0 0
    %4815 = vmatprep.subr.bf16.mxu0 0
    %4816 = vmatpush1.bf16.xpose.msra.mxu0 0
    %4817 = vmatprep.subr.bf16.mxu0 0
    %4818 = vmatpush1.bf16.xpose.msra.mxu0 %v4801
    %4819 = vmatprep.subr.bf16.mxu0 0
    %4820 = vmatpush2.bf16.xpose.msra.mxu0 0
    %4821 = vmatprep.subr.bf16.mxu0 0
    %4822 = vmatpush2.bf16.xpose.msra.mxu0 0
    %4823 = vmatprep.subr.bf16.mxu0 0
    %4824 = vmatpush2.bf16.xpose.msra.mxu0 0
    %4825 = vmatprep.subr.bf16.mxu0 0
    %4826 = vmatpush2.bf16.xpose.msra.mxu0 0
    %4827 = vmatprep.subr.bf16.mxu0 0
    %4828 = vmatpush2.bf16.xpose.msra.mxu0 0
    %4829 = vmatprep.subr.bf16.mxu0 0
    %4830 = vmatpush2.bf16.xpose.msra.mxu0 0
    %4831 = vmatprep.subr.bf16.mxu0 0
    %4832 = vmatpush2.bf16.xpose.msra.mxu0 0
    %4833 = vmatprep.subr.bf16.mxu0 0
    %4834 = vmatpush2.bf16.xpose.msra.mxu0 0
    %4835 = vmatprep.mubr.bf16.mxu0 0
    %4836 = vmatmul.mubr.bf16.gmra.mxu0 %v4798
    %v4837 = vpop.f32.mrf.mxu0
    %v4838 = vadd.f32 0.0, %v4837
    %v4839 = vpop.f32.mrf.mxu0
    %v4840 = vpop.f32.mrf.mxu0
    %v4841 = vpop.f32.mrf.mxu0
    %4842 = vdwg.mxu0
    %v4844 = vsel %vm2196, %v4394, 0
    %v4847 = vsel %vm2196, %v4427, 0
    %4849 = vmatprep.subr.bf16.mxu0 0
    %4850 = vmatpush1.bf16.xpose.msra.mxu0 0
    %4851 = vmatprep.subr.bf16.mxu0 0
    %4852 = vmatpush1.bf16.xpose.msra.mxu0 0
    %4853 = vmatprep.subr.bf16.mxu0 0
    %4854 = vmatpush1.bf16.xpose.msra.mxu0 0
    %4855 = vmatprep.subr.bf16.mxu0 0
    %4856 = vmatpush1.bf16.xpose.msra.mxu0 0
    %4857 = vmatprep.subr.bf16.mxu0 0
    %4858 = vmatpush1.bf16.xpose.msra.mxu0 0
    %4859 = vmatprep.subr.bf16.mxu0 0
    %4860 = vmatpush1.bf16.xpose.msra.mxu0 0
    %4861 = vmatprep.subr.bf16.mxu0 0
    %4862 = vmatpush1.bf16.xpose.msra.mxu0 0
    %4863 = vmatprep.subr.bf16.mxu0 0
    %4864 = vmatpush1.bf16.xpose.msra.mxu0 %v4847
    %4865 = vmatprep.subr.bf16.mxu0 0
    %4866 = vmatpush2.bf16.xpose.msra.mxu0 0
    %4867 = vmatprep.subr.bf16.mxu0 0
    %4868 = vmatpush2.bf16.xpose.msra.mxu0 0
    %4869 = vmatprep.subr.bf16.mxu0 0
    %4870 = vmatpush2.bf16.xpose.msra.mxu0 0
    %4871 = vmatprep.subr.bf16.mxu0 0
    %4872 = vmatpush2.bf16.xpose.msra.mxu0 0
    %4873 = vmatprep.subr.bf16.mxu0 0
    %4874 = vmatpush2.bf16.xpose.msra.mxu0 0
    %4875 = vmatprep.subr.bf16.mxu0 0
    %4876 = vmatpush2.bf16.xpose.msra.mxu0 0
    %4877 = vmatprep.subr.bf16.mxu0 0
    %4878 = vmatpush2.bf16.xpose.msra.mxu0 0
    %4879 = vmatprep.subr.bf16.mxu0 0
    %4880 = vmatpush2.bf16.xpose.msra.mxu0 0
    %4881 = vmatprep.mubr.bf16.mxu0 0
    %4882 = vmatmul.mubr.bf16.gmra.mxu0 %v4844
    %v4883 = vpop.f32.mrf.mxu0
    %v4884 = vadd.f32 0.0, %v4883
    %v4885 = vpop.f32.mrf.mxu0
    %v4886 = vpop.f32.mrf.mxu0
    %v4887 = vpop.f32.mrf.mxu0
    %4888 = vdwg.mxu0
    %v4890 = vsel %vm2196, %v4396, 0
    %v4893 = vsel %vm2196, %v4429, 0
    %4895 = vmatprep.subr.bf16.mxu0 0
    %4896 = vmatpush1.bf16.xpose.msra.mxu0 0
    %4897 = vmatprep.subr.bf16.mxu0 0
    %4898 = vmatpush1.bf16.xpose.msra.mxu0 0
    %4899 = vmatprep.subr.bf16.mxu0 0
    %4900 = vmatpush1.bf16.xpose.msra.mxu0 0
    %4901 = vmatprep.subr.bf16.mxu0 0
    %4902 = vmatpush1.bf16.xpose.msra.mxu0 0
    %4903 = vmatprep.subr.bf16.mxu0 0
    %4904 = vmatpush1.bf16.xpose.msra.mxu0 0
    %4905 = vmatprep.subr.bf16.mxu0 0
    %4906 = vmatpush1.bf16.xpose.msra.mxu0 0
    %4907 = vmatprep.subr.bf16.mxu0 0
    %4908 = vmatpush1.bf16.xpose.msra.mxu0 0
    %4909 = vmatprep.subr.bf16.mxu0 0
    %4910 = vmatpush1.bf16.xpose.msra.mxu0 %v4893
    %4911 = vmatprep.subr.bf16.mxu0 0
    %4912 = vmatpush2.bf16.xpose.msra.mxu0 0
    %4913 = vmatprep.subr.bf16.mxu0 0
    %4914 = vmatpush2.bf16.xpose.msra.mxu0 0
    %4915 = vmatprep.subr.bf16.mxu0 0
    %4916 = vmatpush2.bf16.xpose.msra.mxu0 0
    %4917 = vmatprep.subr.bf16.mxu0 0
    %4918 = vmatpush2.bf16.xpose.msra.mxu0 0
    %4919 = vmatprep.subr.bf16.mxu0 0
    %4920 = vmatpush2.bf16.xpose.msra.mxu0 0
    %4921 = vmatprep.subr.bf16.mxu0 0
    %4922 = vmatpush2.bf16.xpose.msra.mxu0 0
    %4923 = vmatprep.subr.bf16.mxu0 0
    %4924 = vmatpush2.bf16.xpose.msra.mxu0 0
    %4925 = vmatprep.subr.bf16.mxu0 0
    %4926 = vmatpush2.bf16.xpose.msra.mxu0 0
    %4927 = vmatprep.mubr.bf16.mxu0 0
    %4928 = vmatmul.mubr.bf16.gmra.mxu0 %v4890
    %v4929 = vpop.f32.mrf.mxu0
    %v4930 = vadd.f32 0.0, %v4929
    %v4931 = vpop.f32.mrf.mxu0
    %v4932 = vpop.f32.mrf.mxu0
    %v4933 = vpop.f32.mrf.mxu0
    %4934 = vdwg.mxu0
    %v4936 = vsel %vm2196, %v4398, 0
    %v4939 = vsel %vm2196, %v4431, 0
    %4941 = vmatprep.subr.bf16.mxu0 0
    %4942 = vmatpush1.bf16.xpose.msra.mxu0 0
    %4943 = vmatprep.subr.bf16.mxu0 0
    %4944 = vmatpush1.bf16.xpose.msra.mxu0 0
    %4945 = vmatprep.subr.bf16.mxu0 0
    %4946 = vmatpush1.bf16.xpose.msra.mxu0 0
    %4947 = vmatprep.subr.bf16.mxu0 0
    %4948 = vmatpush1.bf16.xpose.msra.mxu0 0
    %4949 = vmatprep.subr.bf16.mxu0 0
    %4950 = vmatpush1.bf16.xpose.msra.mxu0 0
    %4951 = vmatprep.subr.bf16.mxu0 0
    %4952 = vmatpush1.bf16.xpose.msra.mxu0 0
    %4953 = vmatprep.subr.bf16.mxu0 0
    %4954 = vmatpush1.bf16.xpose.msra.mxu0 0
    %4955 = vmatprep.subr.bf16.mxu0 0
    %4956 = vmatpush1.bf16.xpose.msra.mxu0 %v4939
    %4957 = vmatprep.subr.bf16.mxu0 0
    %4958 = vmatpush2.bf16.xpose.msra.mxu0 0
    %4959 = vmatprep.subr.bf16.mxu0 0
    %4960 = vmatpush2.bf16.xpose.msra.mxu0 0
    %4961 = vmatprep.subr.bf16.mxu0 0
    %4962 = vmatpush2.bf16.xpose.msra.mxu0 0
    %4963 = vmatprep.subr.bf16.mxu0 0
    %4964 = vmatpush2.bf16.xpose.msra.mxu0 0
    %4965 = vmatprep.subr.bf16.mxu0 0
    %4966 = vmatpush2.bf16.xpose.msra.mxu0 0
    %4967 = vmatprep.subr.bf16.mxu0 0
    %4968 = vmatpush2.bf16.xpose.msra.mxu0 0
    %4969 = vmatprep.subr.bf16.mxu0 0
    %4970 = vmatpush2.bf16.xpose.msra.mxu0 0
    %4971 = vmatprep.subr.bf16.mxu0 0
    %4972 = vmatpush2.bf16.xpose.msra.mxu0 0
    %4973 = vmatprep.mubr.bf16.mxu0 0
    %4974 = vmatmul.mubr.bf16.gmra.mxu0 %v4936
    %v4975 = vpop.f32.mrf.mxu0
    %v4976 = vadd.f32 0.0, %v4975
    %v4977 = vpop.f32.mrf.mxu0
    %v4978 = vpop.f32.mrf.mxu0
    %v4979 = vpop.f32.mrf.mxu0
    %4980 = vdwg.mxu0
    %v4982 = vsel %vm2196, %v4400, 0
    %v4985 = vsel %vm2196, %v4433, 0
    %4987 = vmatprep.subr.bf16.mxu0 0
    %4988 = vmatpush1.bf16.xpose.msra.mxu0 0
    %4989 = vmatprep.subr.bf16.mxu0 0
    %4990 = vmatpush1.bf16.xpose.msra.mxu0 0
    %4991 = vmatprep.subr.bf16.mxu0 0
    %4992 = vmatpush1.bf16.xpose.msra.mxu0 0
    %4993 = vmatprep.subr.bf16.mxu0 0
    %4994 = vmatpush1.bf16.xpose.msra.mxu0 0
    %4995 = vmatprep.subr.bf16.mxu0 0
    %4996 = vmatpush1.bf16.xpose.msra.mxu0 0
    %4997 = vmatprep.subr.bf16.mxu0 0
    %4998 = vmatpush1.bf16.xpose.msra.mxu0 0
    %4999 = vmatprep.subr.bf16.mxu0 0
    %5000 = vmatpush1.bf16.xpose.msra.mxu0 0
    %5001 = vmatprep.subr.bf16.mxu0 0
    %5002 = vmatpush1.bf16.xpose.msra.mxu0 %v4985
    %5003 = vmatprep.subr.bf16.mxu0 0
    %5004 = vmatpush2.bf16.xpose.msra.mxu0 0
    %5005 = vmatprep.subr.bf16.mxu0 0
    %5006 = vmatpush2.bf16.xpose.msra.mxu0 0
    %5007 = vmatprep.subr.bf16.mxu0 0
    %5008 = vmatpush2.bf16.xpose.msra.mxu0 0
    %5009 = vmatprep.subr.bf16.mxu0 0
    %5010 = vmatpush2.bf16.xpose.msra.mxu0 0
    %5011 = vmatprep.subr.bf16.mxu0 0
    %5012 = vmatpush2.bf16.xpose.msra.mxu0 0
    %5013 = vmatprep.subr.bf16.mxu0 0
    %5014 = vmatpush2.bf16.xpose.msra.mxu0 0
    %5015 = vmatprep.subr.bf16.mxu0 0
    %5016 = vmatpush2.bf16.xpose.msra.mxu0 0
    %5017 = vmatprep.subr.bf16.mxu0 0
    %5018 = vmatpush2.bf16.xpose.msra.mxu0 0
    %5019 = vmatprep.mubr.bf16.mxu0 0
    %5020 = vmatmul.mubr.bf16.gmra.mxu0 %v4982
    %v5021 = vpop.f32.mrf.mxu0
    %v5022 = vadd.f32 0.0, %v5021
    %v5023 = vpop.f32.mrf.mxu0
    %v5024 = vpop.f32.mrf.mxu0
    %v5025 = vpop.f32.mrf.mxu0
    %5026 = vdwg.mxu0
    %v5028 = vsel %vm2196, %v4402, 0
    %v5031 = vsel %vm2196, %v4435, 0
    %5033 = vmatprep.subr.bf16.mxu0 0
    %5034 = vmatpush1.bf16.xpose.msra.mxu0 0
    %5035 = vmatprep.subr.bf16.mxu0 0
    %5036 = vmatpush1.bf16.xpose.msra.mxu0 0
    %5037 = vmatprep.subr.bf16.mxu0 0
    %5038 = vmatpush1.bf16.xpose.msra.mxu0 0
    %5039 = vmatprep.subr.bf16.mxu0 0
    %5040 = vmatpush1.bf16.xpose.msra.mxu0 0
    %5041 = vmatprep.subr.bf16.mxu0 0
    %5042 = vmatpush1.bf16.xpose.msra.mxu0 0
    %5043 = vmatprep.subr.bf16.mxu0 0
    %5044 = vmatpush1.bf16.xpose.msra.mxu0 0
    %5045 = vmatprep.subr.bf16.mxu0 0
    %5046 = vmatpush1.bf16.xpose.msra.mxu0 0
    %5047 = vmatprep.subr.bf16.mxu0 0
    %5048 = vmatpush1.bf16.xpose.msra.mxu0 %v5031
    %5049 = vmatprep.subr.bf16.mxu0 0
    %5050 = vmatpush2.bf16.xpose.msra.mxu0 0
    %5051 = vmatprep.subr.bf16.mxu0 0
    %5052 = vmatpush2.bf16.xpose.msra.mxu0 0
    %5053 = vmatprep.subr.bf16.mxu0 0
    %5054 = vmatpush2.bf16.xpose.msra.mxu0 0
    %5055 = vmatprep.subr.bf16.mxu0 0
    %5056 = vmatpush2.bf16.xpose.msra.mxu0 0
    %5057 = vmatprep.subr.bf16.mxu0 0
    %5058 = vmatpush2.bf16.xpose.msra.mxu0 0
    %5059 = vmatprep.subr.bf16.mxu0 0
    %5060 = vmatpush2.bf16.xpose.msra.mxu0 0
    %5061 = vmatprep.subr.bf16.mxu0 0
    %5062 = vmatpush2.bf16.xpose.msra.mxu0 0
    %5063 = vmatprep.subr.bf16.mxu0 0
    %5064 = vmatpush2.bf16.xpose.msra.mxu0 0
    %5065 = vmatprep.mubr.bf16.mxu0 0
    %5066 = vmatmul.mubr.bf16.gmra.mxu0 %v5028
    %v5067 = vpop.f32.mrf.mxu0
    %v5068 = vadd.f32 0.0, %v5067
    %v5069 = vpop.f32.mrf.mxu0
    %v5070 = vpop.f32.mrf.mxu0
    %v5071 = vpop.f32.mrf.mxu0
    %5072 = vdwg.mxu0
    %v5074 = vsel %vm2196, %v4404, 0
    %v5077 = vsel %vm2196, %v4437, 0
    %5079 = vmatprep.subr.bf16.mxu0 0
    %5080 = vmatpush1.bf16.xpose.msra.mxu0 0
    %5081 = vmatprep.subr.bf16.mxu0 0
    %5082 = vmatpush1.bf16.xpose.msra.mxu0 0
    %5083 = vmatprep.subr.bf16.mxu0 0
    %5084 = vmatpush1.bf16.xpose.msra.mxu0 0
    %5085 = vmatprep.subr.bf16.mxu0 0
    %5086 = vmatpush1.bf16.xpose.msra.mxu0 0
    %5087 = vmatprep.subr.bf16.mxu0 0
    %5088 = vmatpush1.bf16.xpose.msra.mxu0 0
    %5089 = vmatprep.subr.bf16.mxu0 0
    %5090 = vmatpush1.bf16.xpose.msra.mxu0 0
    %5091 = vmatprep.subr.bf16.mxu0 0
    %5092 = vmatpush1.bf16.xpose.msra.mxu0 0
    %5093 = vmatprep.subr.bf16.mxu0 0
    %5094 = vmatpush1.bf16.xpose.msra.mxu0 %v5077
    %5095 = vmatprep.subr.bf16.mxu0 0
    %5096 = vmatpush2.bf16.xpose.msra.mxu0 0
    %5097 = vmatprep.subr.bf16.mxu0 0
    %5098 = vmatpush2.bf16.xpose.msra.mxu0 0
    %5099 = vmatprep.subr.bf16.mxu0 0
    %5100 = vmatpush2.bf16.xpose.msra.mxu0 0
    %5101 = vmatprep.subr.bf16.mxu0 0
    %5102 = vmatpush2.bf16.xpose.msra.mxu0 0
    %5103 = vmatprep.subr.bf16.mxu0 0
    %5104 = vmatpush2.bf16.xpose.msra.mxu0 0
    %5105 = vmatprep.subr.bf16.mxu0 0
    %5106 = vmatpush2.bf16.xpose.msra.mxu0 0
    %5107 = vmatprep.subr.bf16.mxu0 0
    %5108 = vmatpush2.bf16.xpose.msra.mxu0 0
    %5109 = vmatprep.subr.bf16.mxu0 0
    %5110 = vmatpush2.bf16.xpose.msra.mxu0 0
    %5111 = vmatprep.mubr.bf16.mxu0 0
    %5112 = vmatmul.mubr.bf16.gmra.mxu0 %v5074
    %v5113 = vpop.f32.mrf.mxu0
    %v5114 = vadd.f32 0.0, %v5113
    %v5115 = vpop.f32.mrf.mxu0
    %v5116 = vpop.f32.mrf.mxu0
    %v5117 = vpop.f32.mrf.mxu0
    %5118 = vdwg.mxu0
    %v5120 = vsel %vm2196, %v4406, 0
    %v5123 = vsel %vm2196, %v4439, 0
    %5125 = vmatprep.subr.bf16.mxu0 0
    %5126 = vmatpush1.bf16.xpose.msra.mxu0 0
    %5127 = vmatprep.subr.bf16.mxu0 0
    %5128 = vmatpush1.bf16.xpose.msra.mxu0 0
    %5129 = vmatprep.subr.bf16.mxu0 0
    %5130 = vmatpush1.bf16.xpose.msra.mxu0 0
    %5131 = vmatprep.subr.bf16.mxu0 0
    %5132 = vmatpush1.bf16.xpose.msra.mxu0 0
    %5133 = vmatprep.subr.bf16.mxu0 0
    %5134 = vmatpush1.bf16.xpose.msra.mxu0 0
    %5135 = vmatprep.subr.bf16.mxu0 0
    %5136 = vmatpush1.bf16.xpose.msra.mxu0 0
    %5137 = vmatprep.subr.bf16.mxu0 0
    %5138 = vmatpush1.bf16.xpose.msra.mxu0 0
    %5139 = vmatprep.subr.bf16.mxu0 0
    %5140 = vmatpush1.bf16.xpose.msra.mxu0 %v5123
    %5141 = vmatprep.subr.bf16.mxu0 0
    %5142 = vmatpush2.bf16.xpose.msra.mxu0 0
    %5143 = vmatprep.subr.bf16.mxu0 0
    %5144 = vmatpush2.bf16.xpose.msra.mxu0 0
    %5145 = vmatprep.subr.bf16.mxu0 0
    %5146 = vmatpush2.bf16.xpose.msra.mxu0 0
    %5147 = vmatprep.subr.bf16.mxu0 0
    %5148 = vmatpush2.bf16.xpose.msra.mxu0 0
    %5149 = vmatprep.subr.bf16.mxu0 0
    %5150 = vmatpush2.bf16.xpose.msra.mxu0 0
    %5151 = vmatprep.subr.bf16.mxu0 0
    %5152 = vmatpush2.bf16.xpose.msra.mxu0 0
    %5153 = vmatprep.subr.bf16.mxu0 0
    %5154 = vmatpush2.bf16.xpose.msra.mxu0 0
    %5155 = vmatprep.subr.bf16.mxu0 0
    %5156 = vmatpush2.bf16.xpose.msra.mxu0 0
    %5157 = vmatprep.mubr.bf16.mxu0 0
    %5158 = vmatmul.mubr.bf16.gmra.mxu0 %v5120
    %v5159 = vpop.f32.mrf.mxu0
    %v5160 = vadd.f32 0.0, %v5159
    %v5161 = vpop.f32.mrf.mxu0
    %v5162 = vpop.f32.mrf.mxu0
    %v5163 = vpop.f32.mrf.mxu0
    %5164 = vdwg.mxu0
    %v5166 = vsel %vm2196, %v4408, 0
    %v5169 = vsel %vm2196, %v4441, 0
    %5171 = vmatprep.subr.bf16.mxu0 0
    %5172 = vmatpush1.bf16.xpose.msra.mxu0 0
    %5173 = vmatprep.subr.bf16.mxu0 0
    %5174 = vmatpush1.bf16.xpose.msra.mxu0 0
    %5175 = vmatprep.subr.bf16.mxu0 0
    %5176 = vmatpush1.bf16.xpose.msra.mxu0 0
    %5177 = vmatprep.subr.bf16.mxu0 0
    %5178 = vmatpush1.bf16.xpose.msra.mxu0 0
    %5179 = vmatprep.subr.bf16.mxu0 0
    %5180 = vmatpush1.bf16.xpose.msra.mxu0 0
    %5181 = vmatprep.subr.bf16.mxu0 0
    %5182 = vmatpush1.bf16.xpose.msra.mxu0 0
    %5183 = vmatprep.subr.bf16.mxu0 0
    %5184 = vmatpush1.bf16.xpose.msra.mxu0 0
    %5185 = vmatprep.subr.bf16.mxu0 0
    %5186 = vmatpush1.bf16.xpose.msra.mxu0 %v5169
    %5187 = vmatprep.subr.bf16.mxu0 0
    %5188 = vmatpush2.bf16.xpose.msra.mxu0 0
    %5189 = vmatprep.subr.bf16.mxu0 0
    %5190 = vmatpush2.bf16.xpose.msra.mxu0 0
    %5191 = vmatprep.subr.bf16.mxu0 0
    %5192 = vmatpush2.bf16.xpose.msra.mxu0 0
    %5193 = vmatprep.subr.bf16.mxu0 0
    %5194 = vmatpush2.bf16.xpose.msra.mxu0 0
    %5195 = vmatprep.subr.bf16.mxu0 0
    %5196 = vmatpush2.bf16.xpose.msra.mxu0 0
    %5197 = vmatprep.subr.bf16.mxu0 0
    %5198 = vmatpush2.bf16.xpose.msra.mxu0 0
    %5199 = vmatprep.subr.bf16.mxu0 0
    %5200 = vmatpush2.bf16.xpose.msra.mxu0 0
    %5201 = vmatprep.subr.bf16.mxu0 0
    %5202 = vmatpush2.bf16.xpose.msra.mxu0 0
    %5203 = vmatprep.mubr.bf16.mxu0 0
    %5204 = vmatmul.mubr.bf16.gmra.mxu0 %v5166
    %v5205 = vpop.f32.mrf.mxu0
    %v5206 = vadd.f32 0.0, %v5205
    %v5207 = vpop.f32.mrf.mxu0
    %v5208 = vpop.f32.mrf.mxu0
    %v5209 = vpop.f32.mrf.mxu0
    %5210 = vdwg.mxu0
    %v5211 = vmul.f32 %v4516, 0.25
    %v5212 = vmul.f32 %v4562, 0.25
    %v5213 = vmul.f32 %v4608, 0.25
    %v5214 = vmul.f32 %v4654, 0.25
    %v5215 = vmul.f32 %v4700, 0.25
    %v5216 = vmul.f32 %v4746, 0.25
    %v5217 = vmul.f32 %v4792, 0.25
    %v5218 = vmul.f32 %v4838, 0.25
    %v5219 = vmul.f32 %v4884, 0.25
    %v5220 = vmul.f32 %v4930, 0.25
    %v5221 = vmul.f32 %v4976, 0.25
    %v5222 = vmul.f32 %v5022, 0.25
    %v5223 = vmul.f32 %v5068, 0.25
    %v5224 = vmul.f32 %v5114, 0.25
    %v5225 = vmul.f32 %v5160, 0.25
    %v5226 = vmul.f32 %v5206, 0.25
    %v5227 = vsel %vm2949, %v5211, -inf
    %5228 = vmax.xlane.f32.xlu0 %v5227
    %v5229 = vpop.xlane.xlu0 %5228
    %v5230 = vsel %vm2949, %v5212, -inf
    %5231 = vmax.xlane.f32.xlu0 %v5230
    %v5232 = vpop.xlane.xlu0 %5231
    %v5233 = vsel %vm2949, %v5213, -inf
    %5234 = vmax.xlane.f32.xlu0 %v5233
    %v5235 = vpop.xlane.xlu0 %5234
    %v5236 = vsel %vm2949, %v5214, -inf
    %5237 = vmax.xlane.f32.xlu0 %v5236
    %v5238 = vpop.xlane.xlu0 %5237
    %v5239 = vsel %vm2949, %v5215, -inf
    %5240 = vmax.xlane.f32.xlu0 %v5239
    %v5241 = vpop.xlane.xlu0 %5240
    %v5242 = vsel %vm2949, %v5216, -inf
    %5243 = vmax.xlane.f32.xlu0 %v5242
    %v5244 = vpop.xlane.xlu0 %5243
    %v5245 = vsel %vm2949, %v5217, -inf
    %5246 = vmax.xlane.f32.xlu0 %v5245
    %v5247 = vpop.xlane.xlu0 %5246
    %v5248 = vsel %vm2949, %v5218, -inf
    %5249 = vmax.xlane.f32.xlu0 %v5248
    %v5250 = vpop.xlane.xlu0 %5249
    %v5251 = vsel %vm2949, %v5219, -inf
    %5252 = vmax.xlane.f32.xlu0 %v5251
    %v5253 = vpop.xlane.xlu0 %5252
    %v5254 = vsel %vm2949, %v5220, -inf
    %5255 = vmax.xlane.f32.xlu0 %v5254
    %v5256 = vpop.xlane.xlu0 %5255
    %v5257 = vsel %vm2949, %v5221, -inf
    %5258 = vmax.xlane.f32.xlu0 %v5257
    %v5259 = vpop.xlane.xlu0 %5258
    %v5260 = vsel %vm2949, %v5222, -inf
    %5261 = vmax.xlane.f32.xlu0 %v5260
    %v5262 = vpop.xlane.xlu0 %5261
    %v5263 = vsel %vm2949, %v5223, -inf
    %5264 = vmax.xlane.f32.xlu0 %v5263
    %v5265 = vpop.xlane.xlu0 %5264
    %v5266 = vsel %vm2949, %v5224, -inf
    %5267 = vmax.xlane.f32.xlu0 %v5266
    %v5268 = vpop.xlane.xlu0 %5267
    %v5269 = vsel %vm2949, %v5225, -inf
    %5270 = vmax.xlane.f32.xlu0 %v5269
    %v5271 = vpop.xlane.xlu0 %5270
    %v5272 = vsel %vm2949, %v5226, -inf
    %5273 = vmax.xlane.f32.xlu0 %v5272
    %v5274 = vpop.xlane.xlu0 %5273
    %v5275 = vsub.f32 %v5211, %v5229
    %v5276 = vsub.f32 %v5212, %v5232
    %v5277 = vsub.f32 %v5213, %v5235
    %v5278 = vsub.f32 %v5214, %v5238
    %v5279 = vsub.f32 %v5215, %v5241
    %v5280 = vsub.f32 %v5216, %v5244
    %v5281 = vsub.f32 %v5217, %v5247
    %v5282 = vsub.f32 %v5218, %v5250
    %v5283 = vsub.f32 %v5219, %v5253
    %v5284 = vsub.f32 %v5220, %v5256
    %v5285 = vsub.f32 %v5221, %v5259
    %v5286 = vsub.f32 %v5222, %v5262
    %v5287 = vsub.f32 %v5223, %v5265
    %v5288 = vsub.f32 %v5224, %v5268
    %v5289 = vsub.f32 %v5225, %v5271
    %v5290 = vsub.f32 %v5226, %v5274
    %v5291 = vmul.f32 %v5275, 1.442695
    %v5292 = vpow.pop %v5291
    %v5293 = vmul.f32 %v5276, 1.442695
    %v5294 = vpow.pop %v5293
    %v5295 = vmul.f32 %v5277, 1.442695
    %v5296 = vpow.pop %v5295
    %v5297 = vmul.f32 %v5278, 1.442695
    %v5298 = vpow.pop %v5297
    %v5299 = vmul.f32 %v5279, 1.442695
    %v5300 = vpow.pop %v5299
    %v5301 = vmul.f32 %v5280, 1.442695
    %v5302 = vpow.pop %v5301
    %v5303 = vmul.f32 %v5281, 1.442695
    %v5304 = vpow.pop %v5303
    %v5305 = vmul.f32 %v5282, 1.442695
    %v5306 = vpow.pop %v5305
    %v5307 = vmul.f32 %v5283, 1.442695
    %v5308 = vpow.pop %v5307
    %v5309 = vmul.f32 %v5284, 1.442695
    %v5310 = vpow.pop %v5309
    %v5311 = vmul.f32 %v5285, 1.442695
    %v5312 = vpow.pop %v5311
    %v5313 = vmul.f32 %v5286, 1.442695
    %v5314 = vpow.pop %v5313
    %v5315 = vmul.f32 %v5287, 1.442695
    %v5316 = vpow.pop %v5315
    %v5317 = vmul.f32 %v5288, 1.442695
    %v5318 = vpow.pop %v5317
    %v5319 = vmul.f32 %v5289, 1.442695
    %v5320 = vpow.pop %v5319
    %v5321 = vmul.f32 %v5290, 1.442695
    %v5322 = vpow.pop %v5321
    %v5323 = vsel %vm2949, %v5292, 0.0
    %5324 = vadd.xlane.f32.xlu0 %v5323
    %v5325 = vpop.xlane.xlu0 %5324
    %v5326 = vsel %vm2949, %v5294, 0.0
    %5327 = vadd.xlane.f32.xlu0 %v5326
    %v5328 = vpop.xlane.xlu0 %5327
    %v5329 = vsel %vm2949, %v5296, 0.0
    %5330 = vadd.xlane.f32.xlu0 %v5329
    %v5331 = vpop.xlane.xlu0 %5330
    %v5332 = vsel %vm2949, %v5298, 0.0
    %5333 = vadd.xlane.f32.xlu0 %v5332
    %v5334 = vpop.xlane.xlu0 %5333
    %v5335 = vsel %vm2949, %v5300, 0.0
    %5336 = vadd.xlane.f32.xlu0 %v5335
    %v5337 = vpop.xlane.xlu0 %5336
    %v5338 = vsel %vm2949, %v5302, 0.0
    %5339 = vadd.xlane.f32.xlu0 %v5338
    %v5340 = vpop.xlane.xlu0 %5339
    %v5341 = vsel %vm2949, %v5304, 0.0
    %5342 = vadd.xlane.f32.xlu0 %v5341
    %v5343 = vpop.xlane.xlu0 %5342
    %v5344 = vsel %vm2949, %v5306, 0.0
    %5345 = vadd.xlane.f32.xlu0 %v5344
    %v5346 = vpop.xlane.xlu0 %5345
    %v5347 = vsel %vm2949, %v5308, 0.0
    %5348 = vadd.xlane.f32.xlu0 %v5347
    %v5349 = vpop.xlane.xlu0 %5348
    %v5350 = vsel %vm2949, %v5310, 0.0
    %5351 = vadd.xlane.f32.xlu0 %v5350
    %v5352 = vpop.xlane.xlu0 %5351
    %v5353 = vsel %vm2949, %v5312, 0.0
    %5354 = vadd.xlane.f32.xlu0 %v5353
    %v5355 = vpop.xlane.xlu0 %5354
    %v5356 = vsel %vm2949, %v5314, 0.0
    %5357 = vadd.xlane.f32.xlu0 %v5356
    %v5358 = vpop.xlane.xlu0 %5357
    %v5359 = vsel %vm2949, %v5316, 0.0
    %5360 = vadd.xlane.f32.xlu0 %v5359
    %v5361 = vpop.xlane.xlu0 %5360
    %v5362 = vsel %vm2949, %v5318, 0.0
    %5363 = vadd.xlane.f32.xlu0 %v5362
    %v5364 = vpop.xlane.xlu0 %5363
    %v5365 = vsel %vm2949, %v5320, 0.0
    %5366 = vadd.xlane.f32.xlu0 %v5365
    %v5367 = vpop.xlane.xlu0 %5366
    %v5368 = vsel %vm2949, %v5322, 0.0
    %5369 = vadd.xlane.f32.xlu0 %v5368
    %v5370 = vpop.xlane.xlu0 %5369
    %v5371 = vrcp.pop %v5325
    %v5372 = vrcp.pop %v5328
    %v5373 = vrcp.pop %v5331
    %v5374 = vrcp.pop %v5334
    %v5375 = vrcp.pop %v5337
    %v5376 = vrcp.pop %v5340
    %v5377 = vrcp.pop %v5343
    %v5378 = vrcp.pop %v5346
    %v5379 = vrcp.pop %v5349
    %v5380 = vrcp.pop %v5352
    %v5381 = vrcp.pop %v5355
    %v5382 = vrcp.pop %v5358
    %v5383 = vrcp.pop %v5361
    %v5384 = vrcp.pop %v5364
    %v5385 = vrcp.pop %v5367
    %v5386 = vrcp.pop %v5370
    %v5387 = vmul.f32 %v5292, %v5371
    %v5388 = vmul.f32 %v5294, %v5372
    %v5389 = vmul.f32 %v5296, %v5373
    %v5390 = vmul.f32 %v5298, %v5374
    %v5391 = vmul.f32 %v5300, %v5375
    %v5392 = vmul.f32 %v5302, %v5376
    %v5393 = vmul.f32 %v5304, %v5377
    %v5394 = vmul.f32 %v5306, %v5378
    %v5395 = vmul.f32 %v5308, %v5379
    %v5396 = vmul.f32 %v5310, %v5380
    %v5397 = vmul.f32 %v5312, %v5381
    %v5398 = vmul.f32 %v5314, %v5382
    %v5399 = vmul.f32 %v5316, %v5383
    %v5400 = vmul.f32 %v5318, %v5384
    %v5401 = vmul.f32 %v5320, %v5385
    %v5402 = vmul.f32 %v5322, %v5386
    %v5403 = vpack.c.bf16 %v5387, %v5387
    %v5404 = vpack.c.bf16 %v5388, %v5388
    %v5405 = vpack.c.bf16 %v5389, %v5389
    %v5406 = vpack.c.bf16 %v5390, %v5390
    %v5407 = vpack.c.bf16 %v5391, %v5391
    %v5408 = vpack.c.bf16 %v5392, %v5392
    %v5409 = vpack.c.bf16 %v5393, %v5393
    %v5410 = vpack.c.bf16 %v5394, %v5394
    %v5411 = vpack.c.bf16 %v5395, %v5395
    %v5412 = vpack.c.bf16 %v5396, %v5396
    %v5413 = vpack.c.bf16 %v5397, %v5397
    %v5414 = vpack.c.bf16 %v5398, %v5398
    %v5415 = vpack.c.bf16 %v5399, %v5399
    %v5416 = vpack.c.bf16 %v5400, %v5400
    %v5417 = vpack.c.bf16 %v5401, %v5401
    %v5418 = vpack.c.bf16 %v5402, %v5402
    %v5420 = vsel %vm2949, %v5403, 0
    %v5423 = vsel %vm3145, %v4445, 0
    %5425 = vmatprep.subr.bf16.mxu0 0
    %5426 = vmatpush1.bf16.msra.mxu0 0
    %5427 = vmatprep.subr.bf16.mxu0 0
    %5428 = vmatpush1.bf16.msra.mxu0 0
    %5429 = vmatprep.subr.bf16.mxu0 0
    %5430 = vmatpush1.bf16.msra.mxu0 0
    %5431 = vmatprep.subr.bf16.mxu0 0
    %5432 = vmatpush1.bf16.msra.mxu0 0
    %5433 = vmatprep.subr.bf16.mxu0 0
    %5434 = vmatpush1.bf16.msra.mxu0 0
    %5435 = vmatprep.subr.bf16.mxu0 0
    %5436 = vmatpush1.bf16.msra.mxu0 0
    %5437 = vmatprep.subr.bf16.mxu0 0
    %5438 = vmatpush1.bf16.msra.mxu0 0
    %5439 = vmatprep.subr.bf16.mxu0 0
    %5440 = vmatpush1.bf16.msra.mxu0 %v5423
    %5441 = vmatprep.subr.bf16.mxu0 0
    %5442 = vmatpush2.bf16.msra.mxu0 0
    %5443 = vmatprep.subr.bf16.mxu0 0
    %5444 = vmatpush2.bf16.msra.mxu0 0
    %5445 = vmatprep.subr.bf16.mxu0 0
    %5446 = vmatpush2.bf16.msra.mxu0 0
    %5447 = vmatprep.subr.bf16.mxu0 0
    %5448 = vmatpush2.bf16.msra.mxu0 0
    %5449 = vmatprep.subr.bf16.mxu0 0
    %5450 = vmatpush2.bf16.msra.mxu0 0
    %5451 = vmatprep.subr.bf16.mxu0 0
    %5452 = vmatpush2.bf16.msra.mxu0 0
    %5453 = vmatprep.subr.bf16.mxu0 0
    %5454 = vmatpush2.bf16.msra.mxu0 0
    %5455 = vmatprep.subr.bf16.mxu0 0
    %5456 = vmatpush2.bf16.msra.mxu0 0
    %5457 = vmatprep.mubr.bf16.mxu0 0
    %5458 = vmatmul.mubr.bf16.gmra.mxu0 %v5420
    %v5459 = vpop.f32.mrf.mxu0
    %v5460 = vadd.f32 0.0, %v5459
    %v5461 = vpop.f32.mrf.mxu0
    %v5462 = vpop.f32.mrf.mxu0
    %v5463 = vpop.f32.mrf.mxu0
    %5464 = vdwg.mxu0
    %v5466 = vsel %vm2949, %v5404, 0
    %v5469 = vsel %vm3145, %v4446, 0
    %5471 = vmatprep.subr.bf16.mxu0 0
    %5472 = vmatpush1.bf16.msra.mxu0 0
    %5473 = vmatprep.subr.bf16.mxu0 0
    %5474 = vmatpush1.bf16.msra.mxu0 0
    %5475 = vmatprep.subr.bf16.mxu0 0
    %5476 = vmatpush1.bf16.msra.mxu0 0
    %5477 = vmatprep.subr.bf16.mxu0 0
    %5478 = vmatpush1.bf16.msra.mxu0 0
    %5479 = vmatprep.subr.bf16.mxu0 0
    %5480 = vmatpush1.bf16.msra.mxu0 0
    %5481 = vmatprep.subr.bf16.mxu0 0
    %5482 = vmatpush1.bf16.msra.mxu0 0
    %5483 = vmatprep.subr.bf16.mxu0 0
    %5484 = vmatpush1.bf16.msra.mxu0 0
    %5485 = vmatprep.subr.bf16.mxu0 0
    %5486 = vmatpush1.bf16.msra.mxu0 %v5469
    %5487 = vmatprep.subr.bf16.mxu0 0
    %5488 = vmatpush2.bf16.msra.mxu0 0
    %5489 = vmatprep.subr.bf16.mxu0 0
    %5490 = vmatpush2.bf16.msra.mxu0 0
    %5491 = vmatprep.subr.bf16.mxu0 0
    %5492 = vmatpush2.bf16.msra.mxu0 0
    %5493 = vmatprep.subr.bf16.mxu0 0
    %5494 = vmatpush2.bf16.msra.mxu0 0
    %5495 = vmatprep.subr.bf16.mxu0 0
    %5496 = vmatpush2.bf16.msra.mxu0 0
    %5497 = vmatprep.subr.bf16.mxu0 0
    %5498 = vmatpush2.bf16.msra.mxu0 0
    %5499 = vmatprep.subr.bf16.mxu0 0
    %5500 = vmatpush2.bf16.msra.mxu0 0
    %5501 = vmatprep.subr.bf16.mxu0 0
    %5502 = vmatpush2.bf16.msra.mxu0 0
    %5503 = vmatprep.mubr.bf16.mxu0 0
    %5504 = vmatmul.mubr.bf16.gmra.mxu0 %v5466
    %v5505 = vpop.f32.mrf.mxu0
    %v5506 = vadd.f32 0.0, %v5505
    %v5507 = vpop.f32.mrf.mxu0
    %v5508 = vpop.f32.mrf.mxu0
    %v5509 = vpop.f32.mrf.mxu0
    %5510 = vdwg.mxu0
    %v5512 = vsel %vm2949, %v5405, 0
    %v5515 = vsel %vm3145, %v4448, 0
    %5517 = vmatprep.subr.bf16.mxu0 0
    %5518 = vmatpush1.bf16.msra.mxu0 0
    %5519 = vmatprep.subr.bf16.mxu0 0
    %5520 = vmatpush1.bf16.msra.mxu0 0
    %5521 = vmatprep.subr.bf16.mxu0 0
    %5522 = vmatpush1.bf16.msra.mxu0 0
    %5523 = vmatprep.subr.bf16.mxu0 0
    %5524 = vmatpush1.bf16.msra.mxu0 0
    %5525 = vmatprep.subr.bf16.mxu0 0
    %5526 = vmatpush1.bf16.msra.mxu0 0
    %5527 = vmatprep.subr.bf16.mxu0 0
    %5528 = vmatpush1.bf16.msra.mxu0 0
    %5529 = vmatprep.subr.bf16.mxu0 0
    %5530 = vmatpush1.bf16.msra.mxu0 0
    %5531 = vmatprep.subr.bf16.mxu0 0
    %5532 = vmatpush1.bf16.msra.mxu0 %v5515
    %5533 = vmatprep.subr.bf16.mxu0 0
    %5534 = vmatpush2.bf16.msra.mxu0 0
    %5535 = vmatprep.subr.bf16.mxu0 0
    %5536 = vmatpush2.bf16.msra.mxu0 0
    %5537 = vmatprep.subr.bf16.mxu0 0
    %5538 = vmatpush2.bf16.msra.mxu0 0
    %5539 = vmatprep.subr.bf16.mxu0 0
    %5540 = vmatpush2.bf16.msra.mxu0 0
    %5541 = vmatprep.subr.bf16.mxu0 0
    %5542 = vmatpush2.bf16.msra.mxu0 0
    %5543 = vmatprep.subr.bf16.mxu0 0
    %5544 = vmatpush2.bf16.msra.mxu0 0
    %5545 = vmatprep.subr.bf16.mxu0 0
    %5546 = vmatpush2.bf16.msra.mxu0 0
    %5547 = vmatprep.subr.bf16.mxu0 0
    %5548 = vmatpush2.bf16.msra.mxu0 0
    %5549 = vmatprep.mubr.bf16.mxu0 0
    %5550 = vmatmul.mubr.bf16.gmra.mxu0 %v5512
    %v5551 = vpop.f32.mrf.mxu0
    %v5552 = vadd.f32 0.0, %v5551
    %v5553 = vpop.f32.mrf.mxu0
    %v5554 = vpop.f32.mrf.mxu0
    %v5555 = vpop.f32.mrf.mxu0
    %5556 = vdwg.mxu0
    %v5558 = vsel %vm2949, %v5406, 0
    %v5561 = vsel %vm3145, %v4450, 0
    %5563 = vmatprep.subr.bf16.mxu0 0
    %5564 = vmatpush1.bf16.msra.mxu0 0
    %5565 = vmatprep.subr.bf16.mxu0 0
    %5566 = vmatpush1.bf16.msra.mxu0 0
    %5567 = vmatprep.subr.bf16.mxu0 0
    %5568 = vmatpush1.bf16.msra.mxu0 0
    %5569 = vmatprep.subr.bf16.mxu0 0
    %5570 = vmatpush1.bf16.msra.mxu0 0
    %5571 = vmatprep.subr.bf16.mxu0 0
    %5572 = vmatpush1.bf16.msra.mxu0 0
    %5573 = vmatprep.subr.bf16.mxu0 0
    %5574 = vmatpush1.bf16.msra.mxu0 0
    %5575 = vmatprep.subr.bf16.mxu0 0
    %5576 = vmatpush1.bf16.msra.mxu0 0
    %5577 = vmatprep.subr.bf16.mxu0 0
    %5578 = vmatpush1.bf16.msra.mxu0 %v5561
    %5579 = vmatprep.subr.bf16.mxu0 0
    %5580 = vmatpush2.bf16.msra.mxu0 0
    %5581 = vmatprep.subr.bf16.mxu0 0
    %5582 = vmatpush2.bf16.msra.mxu0 0
    %5583 = vmatprep.subr.bf16.mxu0 0
    %5584 = vmatpush2.bf16.msra.mxu0 0
    %5585 = vmatprep.subr.bf16.mxu0 0
    %5586 = vmatpush2.bf16.msra.mxu0 0
    %5587 = vmatprep.subr.bf16.mxu0 0
    %5588 = vmatpush2.bf16.msra.mxu0 0
    %5589 = vmatprep.subr.bf16.mxu0 0
    %5590 = vmatpush2.bf16.msra.mxu0 0
    %5591 = vmatprep.subr.bf16.mxu0 0
    %5592 = vmatpush2.bf16.msra.mxu0 0
    %5593 = vmatprep.subr.bf16.mxu0 0
    %5594 = vmatpush2.bf16.msra.mxu0 0
    %5595 = vmatprep.mubr.bf16.mxu0 0
    %5596 = vmatmul.mubr.bf16.gmra.mxu0 %v5558
    %v5597 = vpop.f32.mrf.mxu0
    %v5598 = vadd.f32 0.0, %v5597
    %v5599 = vpop.f32.mrf.mxu0
    %v5600 = vpop.f32.mrf.mxu0
    %v5601 = vpop.f32.mrf.mxu0
    %5602 = vdwg.mxu0
    %v5604 = vsel %vm2949, %v5407, 0
    %v5607 = vsel %vm3145, %v4452, 0
    %5609 = vmatprep.subr.bf16.mxu0 0
    %5610 = vmatpush1.bf16.msra.mxu0 0
    %5611 = vmatprep.subr.bf16.mxu0 0
    %5612 = vmatpush1.bf16.msra.mxu0 0
    %5613 = vmatprep.subr.bf16.mxu0 0
    %5614 = vmatpush1.bf16.msra.mxu0 0
    %5615 = vmatprep.subr.bf16.mxu0 0
    %5616 = vmatpush1.bf16.msra.mxu0 0
    %5617 = vmatprep.subr.bf16.mxu0 0
    %5618 = vmatpush1.bf16.msra.mxu0 0
    %5619 = vmatprep.subr.bf16.mxu0 0
    %5620 = vmatpush1.bf16.msra.mxu0 0
    %5621 = vmatprep.subr.bf16.mxu0 0
    %5622 = vmatpush1.bf16.msra.mxu0 0
    %5623 = vmatprep.subr.bf16.mxu0 0
    %5624 = vmatpush1.bf16.msra.mxu0 %v5607
    %5625 = vmatprep.subr.bf16.mxu0 0
    %5626 = vmatpush2.bf16.msra.mxu0 0
    %5627 = vmatprep.subr.bf16.mxu0 0
    %5628 = vmatpush2.bf16.msra.mxu0 0
    %5629 = vmatprep.subr.bf16.mxu0 0
    %5630 = vmatpush2.bf16.msra.mxu0 0
    %5631 = vmatprep.subr.bf16.mxu0 0
    %5632 = vmatpush2.bf16.msra.mxu0 0
    %5633 = vmatprep.subr.bf16.mxu0 0
    %5634 = vmatpush2.bf16.msra.mxu0 0
    %5635 = vmatprep.subr.bf16.mxu0 0
    %5636 = vmatpush2.bf16.msra.mxu0 0
    %5637 = vmatprep.subr.bf16.mxu0 0
    %5638 = vmatpush2.bf16.msra.mxu0 0
    %5639 = vmatprep.subr.bf16.mxu0 0
    %5640 = vmatpush2.bf16.msra.mxu0 0
    %5641 = vmatprep.mubr.bf16.mxu0 0
    %5642 = vmatmul.mubr.bf16.gmra.mxu0 %v5604
    %v5643 = vpop.f32.mrf.mxu0
    %v5644 = vadd.f32 0.0, %v5643
    %v5645 = vpop.f32.mrf.mxu0
    %v5646 = vpop.f32.mrf.mxu0
    %v5647 = vpop.f32.mrf.mxu0
    %5648 = vdwg.mxu0
    %v5650 = vsel %vm2949, %v5408, 0
    %v5653 = vsel %vm3145, %v4454, 0
    %5655 = vmatprep.subr.bf16.mxu0 0
    %5656 = vmatpush1.bf16.msra.mxu0 0
    %5657 = vmatprep.subr.bf16.mxu0 0
    %5658 = vmatpush1.bf16.msra.mxu0 0
    %5659 = vmatprep.subr.bf16.mxu0 0
    %5660 = vmatpush1.bf16.msra.mxu0 0
    %5661 = vmatprep.subr.bf16.mxu0 0
    %5662 = vmatpush1.bf16.msra.mxu0 0
    %5663 = vmatprep.subr.bf16.mxu0 0
    %5664 = vmatpush1.bf16.msra.mxu0 0
    %5665 = vmatprep.subr.bf16.mxu0 0
    %5666 = vmatpush1.bf16.msra.mxu0 0
    %5667 = vmatprep.subr.bf16.mxu0 0
    %5668 = vmatpush1.bf16.msra.mxu0 0
    %5669 = vmatprep.subr.bf16.mxu0 0
    %5670 = vmatpush1.bf16.msra.mxu0 %v5653
    %5671 = vmatprep.subr.bf16.mxu0 0
    %5672 = vmatpush2.bf16.msra.mxu0 0
    %5673 = vmatprep.subr.bf16.mxu0 0
    %5674 = vmatpush2.bf16.msra.mxu0 0
    %5675 = vmatprep.subr.bf16.mxu0 0
    %5676 = vmatpush2.bf16.msra.mxu0 0
    %5677 = vmatprep.subr.bf16.mxu0 0
    %5678 = vmatpush2.bf16.msra.mxu0 0
    %5679 = vmatprep.subr.bf16.mxu0 0
    %5680 = vmatpush2.bf16.msra.mxu0 0
    %5681 = vmatprep.subr.bf16.mxu0 0
    %5682 = vmatpush2.bf16.msra.mxu0 0
    %5683 = vmatprep.subr.bf16.mxu0 0
    %5684 = vmatpush2.bf16.msra.mxu0 0
    %5685 = vmatprep.subr.bf16.mxu0 0
    %5686 = vmatpush2.bf16.msra.mxu0 0
    %5687 = vmatprep.mubr.bf16.mxu0 0
    %5688 = vmatmul.mubr.bf16.gmra.mxu0 %v5650
    %v5689 = vpop.f32.mrf.mxu0
    %v5690 = vadd.f32 0.0, %v5689
    %v5691 = vpop.f32.mrf.mxu0
    %v5692 = vpop.f32.mrf.mxu0
    %v5693 = vpop.f32.mrf.mxu0
    %5694 = vdwg.mxu0
    %v5696 = vsel %vm2949, %v5409, 0
    %v5699 = vsel %vm3145, %v4456, 0
    %5701 = vmatprep.subr.bf16.mxu0 0
    %5702 = vmatpush1.bf16.msra.mxu0 0
    %5703 = vmatprep.subr.bf16.mxu0 0
    %5704 = vmatpush1.bf16.msra.mxu0 0
    %5705 = vmatprep.subr.bf16.mxu0 0
    %5706 = vmatpush1.bf16.msra.mxu0 0
    %5707 = vmatprep.subr.bf16.mxu0 0
    %5708 = vmatpush1.bf16.msra.mxu0 0
    %5709 = vmatprep.subr.bf16.mxu0 0
    %5710 = vmatpush1.bf16.msra.mxu0 0
    %5711 = vmatprep.subr.bf16.mxu0 0
    %5712 = vmatpush1.bf16.msra.mxu0 0
    %5713 = vmatprep.subr.bf16.mxu0 0
    %5714 = vmatpush1.bf16.msra.mxu0 0
    %5715 = vmatprep.subr.bf16.mxu0 0
    %5716 = vmatpush1.bf16.msra.mxu0 %v5699
    %5717 = vmatprep.subr.bf16.mxu0 0
    %5718 = vmatpush2.bf16.msra.mxu0 0
    %5719 = vmatprep.subr.bf16.mxu0 0
    %5720 = vmatpush2.bf16.msra.mxu0 0
    %5721 = vmatprep.subr.bf16.mxu0 0
    %5722 = vmatpush2.bf16.msra.mxu0 0
    %5723 = vmatprep.subr.bf16.mxu0 0
    %5724 = vmatpush2.bf16.msra.mxu0 0
    %5725 = vmatprep.subr.bf16.mxu0 0
    %5726 = vmatpush2.bf16.msra.mxu0 0
    %5727 = vmatprep.subr.bf16.mxu0 0
    %5728 = vmatpush2.bf16.msra.mxu0 0
    %5729 = vmatprep.subr.bf16.mxu0 0
    %5730 = vmatpush2.bf16.msra.mxu0 0
    %5731 = vmatprep.subr.bf16.mxu0 0
    %5732 = vmatpush2.bf16.msra.mxu0 0
    %5733 = vmatprep.mubr.bf16.mxu0 0
    %5734 = vmatmul.mubr.bf16.gmra.mxu0 %v5696
    %v5735 = vpop.f32.mrf.mxu0
    %v5736 = vadd.f32 0.0, %v5735
    %v5737 = vpop.f32.mrf.mxu0
    %v5738 = vpop.f32.mrf.mxu0
    %v5739 = vpop.f32.mrf.mxu0
    %5740 = vdwg.mxu0
    %v5742 = vsel %vm2949, %v5410, 0
    %v5745 = vsel %vm3145, %v4458, 0
    %5747 = vmatprep.subr.bf16.mxu0 0
    %5748 = vmatpush1.bf16.msra.mxu0 0
    %5749 = vmatprep.subr.bf16.mxu0 0
    %5750 = vmatpush1.bf16.msra.mxu0 0
    %5751 = vmatprep.subr.bf16.mxu0 0
    %5752 = vmatpush1.bf16.msra.mxu0 0
    %5753 = vmatprep.subr.bf16.mxu0 0
    %5754 = vmatpush1.bf16.msra.mxu0 0
    %5755 = vmatprep.subr.bf16.mxu0 0
    %5756 = vmatpush1.bf16.msra.mxu0 0
    %5757 = vmatprep.subr.bf16.mxu0 0
    %5758 = vmatpush1.bf16.msra.mxu0 0
    %5759 = vmatprep.subr.bf16.mxu0 0
    %5760 = vmatpush1.bf16.msra.mxu0 0
    %5761 = vmatprep.subr.bf16.mxu0 0
    %5762 = vmatpush1.bf16.msra.mxu0 %v5745
    %5763 = vmatprep.subr.bf16.mxu0 0
    %5764 = vmatpush2.bf16.msra.mxu0 0
    %5765 = vmatprep.subr.bf16.mxu0 0
    %5766 = vmatpush2.bf16.msra.mxu0 0
    %5767 = vmatprep.subr.bf16.mxu0 0
    %5768 = vmatpush2.bf16.msra.mxu0 0
    %5769 = vmatprep.subr.bf16.mxu0 0
    %5770 = vmatpush2.bf16.msra.mxu0 0
    %5771 = vmatprep.subr.bf16.mxu0 0
    %5772 = vmatpush2.bf16.msra.mxu0 0
    %5773 = vmatprep.subr.bf16.mxu0 0
    %5774 = vmatpush2.bf16.msra.mxu0 0
    %5775 = vmatprep.subr.bf16.mxu0 0
    %5776 = vmatpush2.bf16.msra.mxu0 0
    %5777 = vmatprep.subr.bf16.mxu0 0
    %5778 = vmatpush2.bf16.msra.mxu0 0
    %5779 = vmatprep.mubr.bf16.mxu0 0
    %5780 = vmatmul.mubr.bf16.gmra.mxu0 %v5742
    %v5781 = vpop.f32.mrf.mxu0
    %v5782 = vadd.f32 0.0, %v5781
    %v5783 = vpop.f32.mrf.mxu0
    %v5784 = vpop.f32.mrf.mxu0
    %v5785 = vpop.f32.mrf.mxu0
    %5786 = vdwg.mxu0
    %v5788 = vsel %vm2949, %v5411, 0
    %v5791 = vsel %vm3145, %v4460, 0
    %5793 = vmatprep.subr.bf16.mxu0 0
    %5794 = vmatpush1.bf16.msra.mxu0 0
    %5795 = vmatprep.subr.bf16.mxu0 0
    %5796 = vmatpush1.bf16.msra.mxu0 0
    %5797 = vmatprep.subr.bf16.mxu0 0
    %5798 = vmatpush1.bf16.msra.mxu0 0
    %5799 = vmatprep.subr.bf16.mxu0 0
    %5800 = vmatpush1.bf16.msra.mxu0 0
    %5801 = vmatprep.subr.bf16.mxu0 0
    %5802 = vmatpush1.bf16.msra.mxu0 0
    %5803 = vmatprep.subr.bf16.mxu0 0
    %5804 = vmatpush1.bf16.msra.mxu0 0
    %5805 = vmatprep.subr.bf16.mxu0 0
    %5806 = vmatpush1.bf16.msra.mxu0 0
    %5807 = vmatprep.subr.bf16.mxu0 0
    %5808 = vmatpush1.bf16.msra.mxu0 %v5791
    %5809 = vmatprep.subr.bf16.mxu0 0
    %5810 = vmatpush2.bf16.msra.mxu0 0
    %5811 = vmatprep.subr.bf16.mxu0 0
    %5812 = vmatpush2.bf16.msra.mxu0 0
    %5813 = vmatprep.subr.bf16.mxu0 0
    %5814 = vmatpush2.bf16.msra.mxu0 0
    %5815 = vmatprep.subr.bf16.mxu0 0
    %5816 = vmatpush2.bf16.msra.mxu0 0
    %5817 = vmatprep.subr.bf16.mxu0 0
    %5818 = vmatpush2.bf16.msra.mxu0 0
    %5819 = vmatprep.subr.bf16.mxu0 0
    %5820 = vmatpush2.bf16.msra.mxu0 0
    %5821 = vmatprep.subr.bf16.mxu0 0
    %5822 = vmatpush2.bf16.msra.mxu0 0
    %5823 = vmatprep.subr.bf16.mxu0 0
    %5824 = vmatpush2.bf16.msra.mxu0 0
    %5825 = vmatprep.mubr.bf16.mxu0 0
    %5826 = vmatmul.mubr.bf16.gmra.mxu0 %v5788
    %v5827 = vpop.f32.mrf.mxu0
    %v5828 = vadd.f32 0.0, %v5827
    %v5829 = vpop.f32.mrf.mxu0
    %v5830 = vpop.f32.mrf.mxu0
    %v5831 = vpop.f32.mrf.mxu0
    %5832 = vdwg.mxu0
    %v5834 = vsel %vm2949, %v5412, 0
    %v5837 = vsel %vm3145, %v4462, 0
    %5839 = vmatprep.subr.bf16.mxu0 0
    %5840 = vmatpush1.bf16.msra.mxu0 0
    %5841 = vmatprep.subr.bf16.mxu0 0
    %5842 = vmatpush1.bf16.msra.mxu0 0
    %5843 = vmatprep.subr.bf16.mxu0 0
    %5844 = vmatpush1.bf16.msra.mxu0 0
    %5845 = vmatprep.subr.bf16.mxu0 0
    %5846 = vmatpush1.bf16.msra.mxu0 0
    %5847 = vmatprep.subr.bf16.mxu0 0
    %5848 = vmatpush1.bf16.msra.mxu0 0
    %5849 = vmatprep.subr.bf16.mxu0 0
    %5850 = vmatpush1.bf16.msra.mxu0 0
    %5851 = vmatprep.subr.bf16.mxu0 0
    %5852 = vmatpush1.bf16.msra.mxu0 0
    %5853 = vmatprep.subr.bf16.mxu0 0
    %5854 = vmatpush1.bf16.msra.mxu0 %v5837
    %5855 = vmatprep.subr.bf16.mxu0 0
    %5856 = vmatpush2.bf16.msra.mxu0 0
    %5857 = vmatprep.subr.bf16.mxu0 0
    %5858 = vmatpush2.bf16.msra.mxu0 0
    %5859 = vmatprep.subr.bf16.mxu0 0
    %5860 = vmatpush2.bf16.msra.mxu0 0
    %5861 = vmatprep.subr.bf16.mxu0 0
    %5862 = vmatpush2.bf16.msra.mxu0 0
    %5863 = vmatprep.subr.bf16.mxu0 0
    %5864 = vmatpush2.bf16.msra.mxu0 0
    %5865 = vmatprep.subr.bf16.mxu0 0
    %5866 = vmatpush2.bf16.msra.mxu0 0
    %5867 = vmatprep.subr.bf16.mxu0 0
    %5868 = vmatpush2.bf16.msra.mxu0 0
    %5869 = vmatprep.subr.bf16.mxu0 0
    %5870 = vmatpush2.bf16.msra.mxu0 0
    %5871 = vmatprep.mubr.bf16.mxu0 0
    %5872 = vmatmul.mubr.bf16.gmra.mxu0 %v5834
    %v5873 = vpop.f32.mrf.mxu0
    %v5874 = vadd.f32 0.0, %v5873
    %v5875 = vpop.f32.mrf.mxu0
    %v5876 = vpop.f32.mrf.mxu0
    %v5877 = vpop.f32.mrf.mxu0
    %5878 = vdwg.mxu0
    %v5880 = vsel %vm2949, %v5413, 0
    %v5883 = vsel %vm3145, %v4464, 0
    %5885 = vmatprep.subr.bf16.mxu0 0
    %5886 = vmatpush1.bf16.msra.mxu0 0
    %5887 = vmatprep.subr.bf16.mxu0 0
    %5888 = vmatpush1.bf16.msra.mxu0 0
    %5889 = vmatprep.subr.bf16.mxu0 0
    %5890 = vmatpush1.bf16.msra.mxu0 0
    %5891 = vmatprep.subr.bf16.mxu0 0
    %5892 = vmatpush1.bf16.msra.mxu0 0
    %5893 = vmatprep.subr.bf16.mxu0 0
    %5894 = vmatpush1.bf16.msra.mxu0 0
    %5895 = vmatprep.subr.bf16.mxu0 0
    %5896 = vmatpush1.bf16.msra.mxu0 0
    %5897 = vmatprep.subr.bf16.mxu0 0
    %5898 = vmatpush1.bf16.msra.mxu0 0
    %5899 = vmatprep.subr.bf16.mxu0 0
    %5900 = vmatpush1.bf16.msra.mxu0 %v5883
    %5901 = vmatprep.subr.bf16.mxu0 0
    %5902 = vmatpush2.bf16.msra.mxu0 0
    %5903 = vmatprep.subr.bf16.mxu0 0
    %5904 = vmatpush2.bf16.msra.mxu0 0
    %5905 = vmatprep.subr.bf16.mxu0 0
    %5906 = vmatpush2.bf16.msra.mxu0 0
    %5907 = vmatprep.subr.bf16.mxu0 0
    %5908 = vmatpush2.bf16.msra.mxu0 0
    %5909 = vmatprep.subr.bf16.mxu0 0
    %5910 = vmatpush2.bf16.msra.mxu0 0
    %5911 = vmatprep.subr.bf16.mxu0 0
    %5912 = vmatpush2.bf16.msra.mxu0 0
    %5913 = vmatprep.subr.bf16.mxu0 0
    %5914 = vmatpush2.bf16.msra.mxu0 0
    %5915 = vmatprep.subr.bf16.mxu0 0
    %5916 = vmatpush2.bf16.msra.mxu0 0
    %5917 = vmatprep.mubr.bf16.mxu0 0
    %5918 = vmatmul.mubr.bf16.gmra.mxu0 %v5880
    %v5919 = vpop.f32.mrf.mxu0
    %v5920 = vadd.f32 0.0, %v5919
    %v5921 = vpop.f32.mrf.mxu0
    %v5922 = vpop.f32.mrf.mxu0
    %v5923 = vpop.f32.mrf.mxu0
    %5924 = vdwg.mxu0
    %v5926 = vsel %vm2949, %v5414, 0
    %v5929 = vsel %vm3145, %v4466, 0
    %5931 = vmatprep.subr.bf16.mxu0 0
    %5932 = vmatpush1.bf16.msra.mxu0 0
    %5933 = vmatprep.subr.bf16.mxu0 0
    %5934 = vmatpush1.bf16.msra.mxu0 0
    %5935 = vmatprep.subr.bf16.mxu0 0
    %5936 = vmatpush1.bf16.msra.mxu0 0
    %5937 = vmatprep.subr.bf16.mxu0 0
    %5938 = vmatpush1.bf16.msra.mxu0 0
    %5939 = vmatprep.subr.bf16.mxu0 0
    %5940 = vmatpush1.bf16.msra.mxu0 0
    %5941 = vmatprep.subr.bf16.mxu0 0
    %5942 = vmatpush1.bf16.msra.mxu0 0
    %5943 = vmatprep.subr.bf16.mxu0 0
    %5944 = vmatpush1.bf16.msra.mxu0 0
    %5945 = vmatprep.subr.bf16.mxu0 0
    %5946 = vmatpush1.bf16.msra.mxu0 %v5929
    %5947 = vmatprep.subr.bf16.mxu0 0
    %5948 = vmatpush2.bf16.msra.mxu0 0
    %5949 = vmatprep.subr.bf16.mxu0 0
    %5950 = vmatpush2.bf16.msra.mxu0 0
    %5951 = vmatprep.subr.bf16.mxu0 0
    %5952 = vmatpush2.bf16.msra.mxu0 0
    %5953 = vmatprep.subr.bf16.mxu0 0
    %5954 = vmatpush2.bf16.msra.mxu0 0
    %5955 = vmatprep.subr.bf16.mxu0 0
    %5956 = vmatpush2.bf16.msra.mxu0 0
    %5957 = vmatprep.subr.bf16.mxu0 0
    %5958 = vmatpush2.bf16.msra.mxu0 0
    %5959 = vmatprep.subr.bf16.mxu0 0
    %5960 = vmatpush2.bf16.msra.mxu0 0
    %5961 = vmatprep.subr.bf16.mxu0 0
    %5962 = vmatpush2.bf16.msra.mxu0 0
    %5963 = vmatprep.mubr.bf16.mxu0 0
    %5964 = vmatmul.mubr.bf16.gmra.mxu0 %v5926
    %v5965 = vpop.f32.mrf.mxu0
    %v5966 = vadd.f32 0.0, %v5965
    %v5967 = vpop.f32.mrf.mxu0
    %v5968 = vpop.f32.mrf.mxu0
    %v5969 = vpop.f32.mrf.mxu0
    %5970 = vdwg.mxu0
    %v5972 = vsel %vm2949, %v5415, 0
    %v5975 = vsel %vm3145, %v4468, 0
    %5977 = vmatprep.subr.bf16.mxu0 0
    %5978 = vmatpush1.bf16.msra.mxu0 0
    %5979 = vmatprep.subr.bf16.mxu0 0
    %5980 = vmatpush1.bf16.msra.mxu0 0
    %5981 = vmatprep.subr.bf16.mxu0 0
    %5982 = vmatpush1.bf16.msra.mxu0 0
    %5983 = vmatprep.subr.bf16.mxu0 0
    %5984 = vmatpush1.bf16.msra.mxu0 0
    %5985 = vmatprep.subr.bf16.mxu0 0
    %5986 = vmatpush1.bf16.msra.mxu0 0
    %5987 = vmatprep.subr.bf16.mxu0 0
    %5988 = vmatpush1.bf16.msra.mxu0 0
    %5989 = vmatprep.subr.bf16.mxu0 0
    %5990 = vmatpush1.bf16.msra.mxu0 0
    %5991 = vmatprep.subr.bf16.mxu0 0
    %5992 = vmatpush1.bf16.msra.mxu0 %v5975
    %5993 = vmatprep.subr.bf16.mxu0 0
    %5994 = vmatpush2.bf16.msra.mxu0 0
    %5995 = vmatprep.subr.bf16.mxu0 0
    %5996 = vmatpush2.bf16.msra.mxu0 0
    %5997 = vmatprep.subr.bf16.mxu0 0
    %5998 = vmatpush2.bf16.msra.mxu0 0
    %5999 = vmatprep.subr.bf16.mxu0 0
    %6000 = vmatpush2.bf16.msra.mxu0 0
    %6001 = vmatprep.subr.bf16.mxu0 0
    %6002 = vmatpush2.bf16.msra.mxu0 0
    %6003 = vmatprep.subr.bf16.mxu0 0
    %6004 = vmatpush2.bf16.msra.mxu0 0
    %6005 = vmatprep.subr.bf16.mxu0 0
    %6006 = vmatpush2.bf16.msra.mxu0 0
    %6007 = vmatprep.subr.bf16.mxu0 0
    %6008 = vmatpush2.bf16.msra.mxu0 0
    %6009 = vmatprep.mubr.bf16.mxu0 0
    %6010 = vmatmul.mubr.bf16.gmra.mxu0 %v5972
    %v6011 = vpop.f32.mrf.mxu0
    %v6012 = vadd.f32 0.0, %v6011
    %v6013 = vpop.f32.mrf.mxu0
    %v6014 = vpop.f32.mrf.mxu0
    %v6015 = vpop.f32.mrf.mxu0
    %6016 = vdwg.mxu0
    %v6018 = vsel %vm2949, %v5416, 0
    %v6021 = vsel %vm3145, %v4470, 0
    %6023 = vmatprep.subr.bf16.mxu0 0
    %6024 = vmatpush1.bf16.msra.mxu0 0
    %6025 = vmatprep.subr.bf16.mxu0 0
    %6026 = vmatpush1.bf16.msra.mxu0 0
    %6027 = vmatprep.subr.bf16.mxu0 0
    %6028 = vmatpush1.bf16.msra.mxu0 0
    %6029 = vmatprep.subr.bf16.mxu0 0
    %6030 = vmatpush1.bf16.msra.mxu0 0
    %6031 = vmatprep.subr.bf16.mxu0 0
    %6032 = vmatpush1.bf16.msra.mxu0 0
    %6033 = vmatprep.subr.bf16.mxu0 0
    %6034 = vmatpush1.bf16.msra.mxu0 0
    %6035 = vmatprep.subr.bf16.mxu0 0
    %6036 = vmatpush1.bf16.msra.mxu0 0
    %6037 = vmatprep.subr.bf16.mxu0 0
    %6038 = vmatpush1.bf16.msra.mxu0 %v6021
    %6039 = vmatprep.subr.bf16.mxu0 0
    %6040 = vmatpush2.bf16.msra.mxu0 0
    %6041 = vmatprep.subr.bf16.mxu0 0
    %6042 = vmatpush2.bf16.msra.mxu0 0
    %6043 = vmatprep.subr.bf16.mxu0 0
    %6044 = vmatpush2.bf16.msra.mxu0 0
    %6045 = vmatprep.subr.bf16.mxu0 0
    %6046 = vmatpush2.bf16.msra.mxu0 0
    %6047 = vmatprep.subr.bf16.mxu0 0
    %6048 = vmatpush2.bf16.msra.mxu0 0
    %6049 = vmatprep.subr.bf16.mxu0 0
    %6050 = vmatpush2.bf16.msra.mxu0 0
    %6051 = vmatprep.subr.bf16.mxu0 0
    %6052 = vmatpush2.bf16.msra.mxu0 0
    %6053 = vmatprep.subr.bf16.mxu0 0
    %6054 = vmatpush2.bf16.msra.mxu0 0
    %6055 = vmatprep.mubr.bf16.mxu0 0
    %6056 = vmatmul.mubr.bf16.gmra.mxu0 %v6018
    %v6057 = vpop.f32.mrf.mxu0
    %v6058 = vadd.f32 0.0, %v6057
    %v6059 = vpop.f32.mrf.mxu0
    %v6060 = vpop.f32.mrf.mxu0
    %v6061 = vpop.f32.mrf.mxu0
    %6062 = vdwg.mxu0
    %v6064 = vsel %vm2949, %v5417, 0
    %v6067 = vsel %vm3145, %v4472, 0
    %6069 = vmatprep.subr.bf16.mxu0 0
    %6070 = vmatpush1.bf16.msra.mxu0 0
    %6071 = vmatprep.subr.bf16.mxu0 0
    %6072 = vmatpush1.bf16.msra.mxu0 0
    %6073 = vmatprep.subr.bf16.mxu0 0
    %6074 = vmatpush1.bf16.msra.mxu0 0
    %6075 = vmatprep.subr.bf16.mxu0 0
    %6076 = vmatpush1.bf16.msra.mxu0 0
    %6077 = vmatprep.subr.bf16.mxu0 0
    %6078 = vmatpush1.bf16.msra.mxu0 0
    %6079 = vmatprep.subr.bf16.mxu0 0
    %6080 = vmatpush1.bf16.msra.mxu0 0
    %6081 = vmatprep.subr.bf16.mxu0 0
    %6082 = vmatpush1.bf16.msra.mxu0 0
    %6083 = vmatprep.subr.bf16.mxu0 0
    %6084 = vmatpush1.bf16.msra.mxu0 %v6067
    %6085 = vmatprep.subr.bf16.mxu0 0
    %6086 = vmatpush2.bf16.msra.mxu0 0
    %6087 = vmatprep.subr.bf16.mxu0 0
    %6088 = vmatpush2.bf16.msra.mxu0 0
    %6089 = vmatprep.subr.bf16.mxu0 0
    %6090 = vmatpush2.bf16.msra.mxu0 0
    %6091 = vmatprep.subr.bf16.mxu0 0
    %6092 = vmatpush2.bf16.msra.mxu0 0
    %6093 = vmatprep.subr.bf16.mxu0 0
    %6094 = vmatpush2.bf16.msra.mxu0 0
    %6095 = vmatprep.subr.bf16.mxu0 0
    %6096 = vmatpush2.bf16.msra.mxu0 0
    %6097 = vmatprep.subr.bf16.mxu0 0
    %6098 = vmatpush2.bf16.msra.mxu0 0
    %6099 = vmatprep.subr.bf16.mxu0 0
    %6100 = vmatpush2.bf16.msra.mxu0 0
    %6101 = vmatprep.mubr.bf16.mxu0 0
    %6102 = vmatmul.mubr.bf16.gmra.mxu0 %v6064
    %v6103 = vpop.f32.mrf.mxu0
    %v6104 = vadd.f32 0.0, %v6103
    %v6105 = vpop.f32.mrf.mxu0
    %v6106 = vpop.f32.mrf.mxu0
    %v6107 = vpop.f32.mrf.mxu0
    %6108 = vdwg.mxu0
    %v6110 = vsel %vm2949, %v5418, 0
    %v6113 = vsel %vm3145, %v4474, 0
    %6115 = vmatprep.subr.bf16.mxu0 0
    %6116 = vmatpush1.bf16.msra.mxu0 0
    %6117 = vmatprep.subr.bf16.mxu0 0
    %6118 = vmatpush1.bf16.msra.mxu0 0
    %6119 = vmatprep.subr.bf16.mxu0 0
    %6120 = vmatpush1.bf16.msra.mxu0 0
    %6121 = vmatprep.subr.bf16.mxu0 0
    %6122 = vmatpush1.bf16.msra.mxu0 0
    %6123 = vmatprep.subr.bf16.mxu0 0
    %6124 = vmatpush1.bf16.msra.mxu0 0
    %6125 = vmatprep.subr.bf16.mxu0 0
    %6126 = vmatpush1.bf16.msra.mxu0 0
    %6127 = vmatprep.subr.bf16.mxu0 0
    %6128 = vmatpush1.bf16.msra.mxu0 0
    %6129 = vmatprep.subr.bf16.mxu0 0
    %6130 = vmatpush1.bf16.msra.mxu0 %v6113
    %6131 = vmatprep.subr.bf16.mxu0 0
    %6132 = vmatpush2.bf16.msra.mxu0 0
    %6133 = vmatprep.subr.bf16.mxu0 0
    %6134 = vmatpush2.bf16.msra.mxu0 0
    %6135 = vmatprep.subr.bf16.mxu0 0
    %6136 = vmatpush2.bf16.msra.mxu0 0
    %6137 = vmatprep.subr.bf16.mxu0 0
    %6138 = vmatpush2.bf16.msra.mxu0 0
    %6139 = vmatprep.subr.bf16.mxu0 0
    %6140 = vmatpush2.bf16.msra.mxu0 0
    %6141 = vmatprep.subr.bf16.mxu0 0
    %6142 = vmatpush2.bf16.msra.mxu0 0
    %6143 = vmatprep.subr.bf16.mxu0 0
    %6144 = vmatpush2.bf16.msra.mxu0 0
    %6145 = vmatprep.subr.bf16.mxu0 0
    %6146 = vmatpush2.bf16.msra.mxu0 0
    %6147 = vmatprep.mubr.bf16.mxu0 0
    %6148 = vmatmul.mubr.bf16.gmra.mxu0 %v6110
    %v6149 = vpop.f32.mrf.mxu0
    %v6150 = vadd.f32 0.0, %v6149
    %v6151 = vpop.f32.mrf.mxu0
    %v6152 = vpop.f32.mrf.mxu0
    %v6153 = vpop.f32.mrf.mxu0
    %6154 = vdwg.mxu0
    %6157 = vrot.lane.b32.xlu0 %v5552, 16
    %v6158 = vpop.permute.xlu0 %6157
    %6159 = vrot.lane.b32.xlu0 %v5598, 16
    %v6160 = vpop.permute.xlu0 %6159
    %6165 = vrot.lane.b32.xlu0 %v5644, 32
    %v6166 = vpop.permute.xlu0 %6165
    %6167 = vrot.lane.b32.xlu0 %v5690, 32
    %v6168 = vpop.permute.xlu0 %6167
    %6173 = vrot.lane.b32.xlu0 %v5736, 48
    %v6174 = vpop.permute.xlu0 %6173
    %6175 = vrot.lane.b32.xlu0 %v5782, 48
    %v6176 = vpop.permute.xlu0 %6175
    %6181 = vrot.lane.b32.xlu0 %v5828, 64
    %v6182 = vpop.permute.xlu0 %6181
    %6183 = vrot.lane.b32.xlu0 %v5874, 64
    %v6184 = vpop.permute.xlu0 %6183
    %6189 = vrot.lane.b32.xlu0 %v5920, 80
    %v6190 = vpop.permute.xlu0 %6189
    %6191 = vrot.lane.b32.xlu0 %v5966, 80
    %v6192 = vpop.permute.xlu0 %6191
    %6197 = vrot.lane.b32.xlu0 %v6012, 96
    %v6198 = vpop.permute.xlu0 %6197
    %6199 = vrot.lane.b32.xlu0 %v6058, 96
    %v6200 = vpop.permute.xlu0 %6199
    %6205 = vrot.lane.b32.xlu0 %v6104, 112
    %v6206 = vpop.permute.xlu0 %6205
    %6207 = vrot.lane.b32.xlu0 %v6150, 112
    %v6208 = vpop.permute.xlu0 %6207
    %v6211 = vsel %vm2196, %v5460, %v6158
    %v6212 = vsel %vm2196, %v5506, %v6160
    %v6213 = vsel %vm3937, %v6211, %v6166
    %v6214 = vsel %vm3937, %v6212, %v6168
    %v6215 = vsel %vm3940, %v6213, %v6174
    %v6216 = vsel %vm3940, %v6214, %v6176
    %v6217 = vsel %vm546, %v6215, %v6182
    %v6218 = vsel %vm546, %v6216, %v6184
    %v6219 = vsel %vm3945, %v6217, %v6190
    %v6220 = vsel %vm3945, %v6218, %v6192
    %v6221 = vsel %vm1829, %v6219, %v6198
    %v6222 = vsel %vm1829, %v6220, %v6200
    %v6223 = vsel %vm3950, %v6221, %v6206
    %v6224 = vsel %vm3950, %v6222, %v6208
    %s6225 = scalar_lea.vmem %s31, 64
    %v6226 = vld [vmem:[%s6225] sm:$0xf]
    %v6227 = vld [vmem:[%s6225 + $0x4] sm:$0xf]
    %v6228 = vld [vmem:[%s6225 + $0x8] sm:$0xf]
    %v6229 = vld [vmem:[%s6225 + $0xc] sm:$0xf]
    %v6230 = vld [vmem:[%s6225 + $0x10] sm:$0xf]
    %v6231 = vld [vmem:[%s6225 + $0x14] sm:$0xf]
    %v6232 = vld [vmem:[%s6225 + $0x18] sm:$0xf]
    %v6233 = vld [vmem:[%s6225 + $0x1c] sm:$0xf]
    %v6234 = vld [vmem:[%s6225 + $0x20] sm:$0xf]
    %v6235 = vld [vmem:[%s6225 + $0x24] sm:$0xf]
    %v6236 = vld [vmem:[%s6225 + $0x28] sm:$0xf]
    %v6237 = vld [vmem:[%s6225 + $0x2c] sm:$0xf]
    %v6238 = vld [vmem:[%s6225 + $0x30] sm:$0xf]
    %v6239 = vld [vmem:[%s6225 + $0x34] sm:$0xf]
    %v6240 = vld [vmem:[%s6225 + $0x38] sm:$0xf]
    %v6241 = vld [vmem:[%s6225 + $0x3c] sm:$0xf]
    %v6242 = vpack.c.bf16 %v6224, %v6223
    %s6243 = scalar_lea.vmem [#allocation23], 1
    %v6244 = vld [vmem:[%s6243] sm:$0x1]
    %v6246 = vlaneseq
    %v6247 = vshrl.u32 %v6246, 7
    %v6248 = vsub.s32 0, %v6247
    %v6249 = vrot.slane %v6244, %v6248
    %v6267 = vunpack.c.l.b16 %v6226
    %v6268 = vunpack.c.l.b16 %v6227
    %v6269 = vunpack.c.l.b16 %v6228
    %v6270 = vunpack.c.l.b16 %v6229
    %v6271 = vunpack.c.l.b16 %v6230
    %v6272 = vunpack.c.l.b16 %v6231
    %v6273 = vunpack.c.l.b16 %v6232
    %v6274 = vunpack.c.l.b16 %v6233
    %v6275 = vunpack.c.l.b16 %v6234
    %v6276 = vunpack.c.l.b16 %v6235
    %v6277 = vunpack.c.l.b16 %v6236
    %v6278 = vunpack.c.l.b16 %v6237
    %v6279 = vunpack.c.l.b16 %v6238
    %v6280 = vunpack.c.l.b16 %v6239
    %v6281 = vunpack.c.l.b16 %v6240
    %v6282 = vunpack.c.l.b16 %v6241
    %v6283 = vpack.c.b16 %v6268, %v6267
    %v6284 = vpack.c.b16 %v6270, %v6269
    %v6285 = vpack.c.b16 %v6272, %v6271
    %v6286 = vpack.c.b16 %v6274, %v6273
    %v6287 = vpack.c.b16 %v6276, %v6275
    %v6288 = vpack.c.b16 %v6278, %v6277
    %v6289 = vpack.c.b16 %v6280, %v6279
    %v6290 = vpack.c.b16 %v6282, %v6281
    %6299 = vmatprep.subr.bf16.mxu0 0
    %6300 = vmatpush1.bf16.msra.mxu0 %v6290
    %6301 = vmatprep.subr.bf16.mxu0 0
    %6302 = vmatpush1.bf16.msra.mxu0 %v6289
    %6303 = vmatprep.subr.bf16.mxu0 0
    %6304 = vmatpush1.bf16.msra.mxu0 %v6288
    %6305 = vmatprep.subr.bf16.mxu0 0
    %6306 = vmatpush1.bf16.msra.mxu0 %v6287
    %6307 = vmatprep.subr.bf16.mxu0 0
    %6308 = vmatpush1.bf16.msra.mxu0 %v6286
    %6309 = vmatprep.subr.bf16.mxu0 0
    %6310 = vmatpush1.bf16.msra.mxu0 %v6285
    %6311 = vmatprep.subr.bf16.mxu0 0
    %6312 = vmatpush1.bf16.msra.mxu0 %v6284
    %6313 = vmatprep.subr.bf16.mxu0 0
    %6314 = vmatpush1.bf16.msra.mxu0 %v6283
    %6315 = vmatprep.subr.bf16.mxu0 0
    %6316 = vmatpush2.bf16.msra.mxu0 0
    %6317 = vmatprep.subr.bf16.mxu0 0
    %6318 = vmatpush2.bf16.msra.mxu0 0
    %6319 = vmatprep.subr.bf16.mxu0 0
    %6320 = vmatpush2.bf16.msra.mxu0 0
    %6321 = vmatprep.subr.bf16.mxu0 0
    %6322 = vmatpush2.bf16.msra.mxu0 0
    %6323 = vmatprep.subr.bf16.mxu0 0
    %6324 = vmatpush2.bf16.msra.mxu0 0
    %6325 = vmatprep.subr.bf16.mxu0 0
    %6326 = vmatpush2.bf16.msra.mxu0 0
    %6327 = vmatprep.subr.bf16.mxu0 0
    %6328 = vmatpush2.bf16.msra.mxu0 0
    %6329 = vmatprep.subr.bf16.mxu0 0
    %6330 = vmatpush2.bf16.msra.mxu0 0
    %6331 = vmatprep.mubr.bf16.mxu0 0
    %6332 = vmatmul.mubr.bf16.gmra.mxu0 %v6242
    %v6333 = vpop.f32.mrf.mxu0
    %v6334 = vadd.f32 %v6249, %v6333
    %v6335 = vpop.f32.mrf.mxu0
    %v6336 = vpop.f32.mrf.mxu0
    %v6337 = vadd.f32 %v6249, %v6336
    %v6338 = vpop.f32.mrf.mxu0
    %6339 = vdwg.mxu0
    %v6340 = vadd.f32 %v4107, %v6334
    %v6341 = vadd.f32 %v4108, %v6337
    %s6342 = scalar_lea.vmem [#allocation24], 1
    %v6343 = vld [vmem:[%s6342] sm:$0x1]
    %s6344 = scalar_lea.vmem [#allocation26], 1
    %v6345 = vld [vmem:[%s6344] sm:$0x1]
    %6346 = vadd.xlane.f32.xlu0 %v6340
    %v6347 = vpop.xlane.xlu0 %6346
    %6348 = vadd.xlane.f32.xlu0 %v6341
    %v6349 = vpop.xlane.xlu0 %6348
    %v6350 = vmul.f32 %v6347, %v4074
    %v6351 = vmul.f32 %v6349, %v4074
    %v6352 = vsub.f32 %v6340, %v6350
    %v6353 = vsub.f32 %v6341, %v6351
    %v6354 = vmul.f32 %v6352, %v6352
    %v6355 = vmul.f32 %v6353, %v6353
    %6356 = vadd.xlane.f32.xlu0 %v6354
    %v6357 = vpop.xlane.xlu0 %6356
    %6358 = vadd.xlane.f32.xlu0 %v6355
    %v6359 = vpop.xlane.xlu0 %6358
    %v6360 = vmul.f32 %v6357, %v4074
    %v6361 = vmul.f32 %v6359, %v4074
    %v6362 = vadd.f32 %v6360, 1e-05
    %v6363 = vadd.f32 %v6361, 1e-05
    %v6364 = vrsqrt.pop %v6362
    %v6365 = vrsqrt.pop %v6363
    %v6366 = vmul.f32 %v6352, %v6364
    %v6367 = vmul.f32 %v6353, %v6365
    %v6369 = vlaneseq
    %v6370 = vshrl.u32 %v6369, 7
    %v6371 = vsub.s32 0, %v6370
    %v6372 = vrot.slane %v6343, %v6371
    %v6374 = vmul.f32 %v6366, %v6372
    %v6375 = vmul.f32 %v6367, %v6372
    %v6377 = vlaneseq
    %v6378 = vshrl.u32 %v6377, 7
    %v6379 = vsub.s32 0, %v6378
    %v6380 = vrot.slane %v6345, %v6379
    %v6382 = vadd.f32 %v6374, %v6380
    %v6383 = vadd.f32 %v6375, %v6380
    %s6384 = scalar_lea.vmem [#allocation21], 384
    %v6385 = vld [vmem:[%s6384] sm:$0xff]
    %v6386 = vld [vmem:[%s6384 + $0x8] sm:$0xf]
    %v6387 = vld [vmem:[%s6384 + $0xc] sm:$0xff]
    %v6388 = vld [vmem:[%s6384 + $0x14] sm:$0xf]
    %v6389 = vld [vmem:[%s6384 + $0x18] sm:$0xff]
    %v6390 = vld [vmem:[%s6384 + $0x20] sm:$0xf]
    %v6391 = vld [vmem:[%s6384 + $0x24] sm:$0xff]
    %v6392 = vld [vmem:[%s6384 + $0x2c] sm:$0xf]
    %v6393 = vld [vmem:[%s6384 + $0x30] sm:$0xff]
    %v6394 = vld [vmem:[%s6384 + $0x38] sm:$0xf]
    %v6395 = vld [vmem:[%s6384 + $0x3c] sm:$0xff]
    %v6396 = vld [vmem:[%s6384 + $0x44] sm:$0xf]
    %v6397 = vld [vmem:[%s6384 + $0x48] sm:$0xff]
    %v6398 = vld [vmem:[%s6384 + $0x50] sm:$0xf]
    %v6399 = vld [vmem:[%s6384 + $0x54] sm:$0xff]
    %v6400 = vld [vmem:[%s6384 + $0x5c] sm:$0xf]
    %v6401 = vld [vmem:[%s6384 + $0x60] sm:$0xff]
    %v6402 = vld [vmem:[%s6384 + $0x68] sm:$0xf]
    %v6403 = vld [vmem:[%s6384 + $0x6c] sm:$0xff]
    %v6404 = vld [vmem:[%s6384 + $0x74] sm:$0xf]
    %v6405 = vld [vmem:[%s6384 + $0x78] sm:$0xff]
    %v6406 = vld [vmem:[%s6384 + $0x80] sm:$0xf]
    %v6407 = vld [vmem:[%s6384 + $0x84] sm:$0xff]
    %v6408 = vld [vmem:[%s6384 + $0x8c] sm:$0xf]
    %v6409 = vld [vmem:[%s6384 + $0x90] sm:$0xff]
    %v6410 = vld [vmem:[%s6384 + $0x98] sm:$0xf]
    %v6411 = vld [vmem:[%s6384 + $0x9c] sm:$0xff]
    %v6412 = vld [vmem:[%s6384 + $0xa4] sm:$0xf]
    %v6413 = vld [vmem:[%s6384 + $0xa8] sm:$0xff]
    %v6414 = vld [vmem:[%s6384 + $0xb0] sm:$0xf]
    %v6415 = vld [vmem:[%s6384 + $0xb4] sm:$0xff]
    %v6416 = vld [vmem:[%s6384 + $0xbc] sm:$0xf]
    %v6417 = vpack.c.bf16 %v6383, %v6382
    %s6418 = scalar_lea.vmem %s29, 6
    %v6419 = vld [vmem:[%s6418] sm:$0x7]
    %v6421 = vlaneseq
    %v6422 = vshrl.u32 %v6421, 7
    %v6423 = vsub.s32 0, %v6422
    %v6424 = vrot.slane %v6419, %v6423
    %v6425 = vlaneseq
    %v6426 = vshrl.u32 %v6425, 7
    %v6427 = vsub.s32 1, %v6426
    %v6428 = vrot.slane %v6419, %v6427
    %v6429 = vlaneseq
    %v6430 = vshrl.u32 %v6429, 7
    %v6431 = vsub.s32 2, %v6430
    %v6432 = vrot.slane %v6419, %v6431
    %v6468 = vunpack.c.l.b16 %v6385
    %v6469 = vunpack.c.h.b16 %v6385
    %v6470 = vunpack.c.l.b16 %v6386
    %v6471 = vunpack.c.l.b16 %v6387
    %v6472 = vunpack.c.h.b16 %v6387
    %v6473 = vunpack.c.l.b16 %v6388
    %v6474 = vunpack.c.l.b16 %v6389
    %v6475 = vunpack.c.h.b16 %v6389
    %v6476 = vunpack.c.l.b16 %v6390
    %v6477 = vunpack.c.l.b16 %v6391
    %v6478 = vunpack.c.h.b16 %v6391
    %v6479 = vunpack.c.l.b16 %v6392
    %v6480 = vunpack.c.l.b16 %v6393
    %v6481 = vunpack.c.h.b16 %v6393
    %v6482 = vunpack.c.l.b16 %v6394
    %v6483 = vunpack.c.l.b16 %v6395
    %v6484 = vunpack.c.h.b16 %v6395
    %v6485 = vunpack.c.l.b16 %v6396
    %v6486 = vunpack.c.l.b16 %v6397
    %v6487 = vunpack.c.h.b16 %v6397
    %v6488 = vunpack.c.l.b16 %v6398
    %v6489 = vunpack.c.l.b16 %v6399
    %v6490 = vunpack.c.h.b16 %v6399
    %v6491 = vunpack.c.l.b16 %v6400
    %v6492 = vunpack.c.l.b16 %v6401
    %v6493 = vunpack.c.h.b16 %v6401
    %v6494 = vunpack.c.l.b16 %v6402
    %v6495 = vunpack.c.l.b16 %v6403
    %v6496 = vunpack.c.h.b16 %v6403
    %v6497 = vunpack.c.l.b16 %v6404
    %v6498 = vunpack.c.l.b16 %v6405
    %v6499 = vunpack.c.h.b16 %v6405
    %v6500 = vunpack.c.l.b16 %v6406
    %v6501 = vunpack.c.l.b16 %v6407
    %v6502 = vunpack.c.h.b16 %v6407
    %v6503 = vunpack.c.l.b16 %v6408
    %v6504 = vunpack.c.l.b16 %v6409
    %v6505 = vunpack.c.h.b16 %v6409
    %v6506 = vunpack.c.l.b16 %v6410
    %v6507 = vunpack.c.l.b16 %v6411
    %v6508 = vunpack.c.h.b16 %v6411
    %v6509 = vunpack.c.l.b16 %v6412
    %v6510 = vunpack.c.l.b16 %v6413
    %v6511 = vunpack.c.h.b16 %v6413
    %v6512 = vunpack.c.l.b16 %v6414
    %v6513 = vunpack.c.l.b16 %v6415
    %v6514 = vunpack.c.h.b16 %v6415
    %v6515 = vunpack.c.l.b16 %v6416
    %v6516 = vpack.c.b16 %v6471, %v6468
    %v6517 = vpack.c.b16 %v6472, %v6469
    %v6518 = vpack.c.b16 %v6473, %v6470
    %v6519 = vpack.c.b16 %v6477, %v6474
    %v6520 = vpack.c.b16 %v6478, %v6475
    %v6521 = vpack.c.b16 %v6479, %v6476
    %v6522 = vpack.c.b16 %v6483, %v6480
    %v6523 = vpack.c.b16 %v6484, %v6481
    %v6524 = vpack.c.b16 %v6485, %v6482
    %v6525 = vpack.c.b16 %v6489, %v6486
    %v6526 = vpack.c.b16 %v6490, %v6487
    %v6527 = vpack.c.b16 %v6491, %v6488
    %v6528 = vpack.c.b16 %v6495, %v6492
    %v6529 = vpack.c.b16 %v6496, %v6493
    %v6530 = vpack.c.b16 %v6497, %v6494
    %v6531 = vpack.c.b16 %v6501, %v6498
    %v6532 = vpack.c.b16 %v6502, %v6499
    %v6533 = vpack.c.b16 %v6503, %v6500
    %v6534 = vpack.c.b16 %v6507, %v6504
    %v6535 = vpack.c.b16 %v6508, %v6505
    %v6536 = vpack.c.b16 %v6509, %v6506
    %v6537 = vpack.c.b16 %v6513, %v6510
    %v6538 = vpack.c.b16 %v6514, %v6511
    %v6539 = vpack.c.b16 %v6515, %v6512
    %6564 = vmatprep.subr.bf16.mxu0 %v6538
    %6565 = vmatpush1.bf16.msra.mxu0 %v6537
    %6566 = vmatprep.subr.bf16.mxu0 %v6535
    %6567 = vmatpush1.bf16.msra.mxu0 %v6534
    %6568 = vmatprep.subr.bf16.mxu0 %v6532
    %6569 = vmatpush1.bf16.msra.mxu0 %v6531
    %6570 = vmatprep.subr.bf16.mxu0 %v6529
    %6571 = vmatpush1.bf16.msra.mxu0 %v6528
    %6572 = vmatprep.subr.bf16.mxu0 %v6526
    %6573 = vmatpush1.bf16.msra.mxu0 %v6525
    %6574 = vmatprep.subr.bf16.mxu0 %v6523
    %6575 = vmatpush1.bf16.msra.mxu0 %v6522
    %6576 = vmatprep.subr.bf16.mxu0 %v6520
    %6577 = vmatpush1.bf16.msra.mxu0 %v6519
    %6578 = vmatprep.subr.bf16.mxu0 %v6517
    %6579 = vmatpush1.bf16.msra.mxu0 %v6516
    %6580 = vmatprep.subr.bf16.mxu0 0
    %6581 = vmatpush2.bf16.msra.mxu0 0
    %6582 = vmatprep.subr.bf16.mxu0 0
    %6583 = vmatpush2.bf16.msra.mxu0 0
    %6584 = vmatprep.subr.bf16.mxu0 0
    %6585 = vmatpush2.bf16.msra.mxu0 0
    %6586 = vmatprep.subr.bf16.mxu0 0
    %6587 = vmatpush2.bf16.msra.mxu0 0
    %6588 = vmatprep.subr.bf16.mxu0 0
    %6589 = vmatpush2.bf16.msra.mxu0 0
    %6590 = vmatprep.subr.bf16.mxu0 0
    %6591 = vmatpush2.bf16.msra.mxu0 0
    %6592 = vmatprep.subr.bf16.mxu0 0
    %6593 = vmatpush2.bf16.msra.mxu0 0
    %6594 = vmatprep.subr.bf16.mxu0 0
    %6595 = vmatpush2.bf16.msra.mxu0 0
    %6596 = vmatprep.mubr.bf16.mxu0 0
    %6597 = vmatmul.mubr.bf16.gmra.mxu0 %v6417
    %v6598 = vpop.f32.mrf.mxu0
    %v6599 = vadd.f32 %v6424, %v6598
    %v6600 = vpop.f32.mrf.mxu0
    %v6601 = vadd.f32 %v6428, %v6600
    %v6602 = vpop.f32.mrf.mxu0
    %v6603 = vadd.f32 %v6424, %v6602
    %v6604 = vpop.f32.mrf.mxu0
    %v6605 = vadd.f32 %v6428, %v6604
    %6606 = vdwg.mxu0
    %6607 = vmatprep.subr.bf16.mxu0 0
    %6608 = vmatpush1.bf16.msra.mxu0 %v6539
    %6609 = vmatprep.subr.bf16.mxu0 0
    %6610 = vmatpush1.bf16.msra.mxu0 %v6536
    %6611 = vmatprep.subr.bf16.mxu0 0
    %6612 = vmatpush1.bf16.msra.mxu0 %v6533
    %6613 = vmatprep.subr.bf16.mxu0 0
    %6614 = vmatpush1.bf16.msra.mxu0 %v6530
    %6615 = vmatprep.subr.bf16.mxu0 0
    %6616 = vmatpush1.bf16.msra.mxu0 %v6527
    %6617 = vmatprep.subr.bf16.mxu0 0
    %6618 = vmatpush1.bf16.msra.mxu0 %v6524
    %6619 = vmatprep.subr.bf16.mxu0 0
    %6620 = vmatpush1.bf16.msra.mxu0 %v6521
    %6621 = vmatprep.subr.bf16.mxu0 0
    %6622 = vmatpush1.bf16.msra.mxu0 %v6518
    %6623 = vmatprep.subr.bf16.mxu0 0
    %6624 = vmatpush2.bf16.msra.mxu0 0
    %6625 = vmatprep.subr.bf16.mxu0 0
    %6626 = vmatpush2.bf16.msra.mxu0 0
    %6627 = vmatprep.subr.bf16.mxu0 0
    %6628 = vmatpush2.bf16.msra.mxu0 0
    %6629 = vmatprep.subr.bf16.mxu0 0
    %6630 = vmatpush2.bf16.msra.mxu0 0
    %6631 = vmatprep.subr.bf16.mxu0 0
    %6632 = vmatpush2.bf16.msra.mxu0 0
    %6633 = vmatprep.subr.bf16.mxu0 0
    %6634 = vmatpush2.bf16.msra.mxu0 0
    %6635 = vmatprep.subr.bf16.mxu0 0
    %6636 = vmatpush2.bf16.msra.mxu0 0
    %6637 = vmatprep.subr.bf16.mxu0 0
    %6638 = vmatpush2.bf16.msra.mxu0 0
    %6639 = vmatprep.mubr.bf16.mxu0 0
    %6640 = vmatmul.mubr.bf16.gmra.mxu0 %v6417
    %v6641 = vpop.f32.mrf.mxu0
    %v6642 = vadd.f32 %v6432, %v6641
    %v6643 = vpop.f32.mrf.mxu0
    %v6644 = vpop.f32.mrf.mxu0
    %v6645 = vadd.f32 %v6432, %v6644
    %v6646 = vpop.f32.mrf.mxu0
    %6647 = vdwg.mxu0
    %v6648 = vpack.c.bf16 %v6603, %v6599
    %v6649 = vpack.c.bf16 %v6605, %v6601
    %v6650 = vpack.c.bf16 %v6645, %v6642
    %v6652 = vunpack.c.l.b16 %v6648
    %v6653 = vunpack.c.h.b16 %v6648
    %v6654 = vpack.c.b16 %v6652, %v6652
    %v6655 = vpack.c.b16 %v6653, %v6653
    %6656 = vrot.lane.b32.xlu0 %v6654, 112
    %v6657 = vpop.permute.xlu0 %6656
    %6658 = vrot.lane.b32.xlu0 %v6655, 112
    %v6659 = vpop.permute.xlu0 %6658
    %6660 = vrot.lane.b32.xlu0 %v6654, 96
    %v6661 = vpop.permute.xlu0 %6660
    %6662 = vrot.lane.b32.xlu0 %v6655, 96
    %v6663 = vpop.permute.xlu0 %6662
    %6664 = vrot.lane.b32.xlu0 %v6654, 80
    %v6665 = vpop.permute.xlu0 %6664
    %6666 = vrot.lane.b32.xlu0 %v6655, 80
    %v6667 = vpop.permute.xlu0 %6666
    %6668 = vrot.lane.b32.xlu0 %v6654, 64
    %v6669 = vpop.permute.xlu0 %6668
    %6670 = vrot.lane.b32.xlu0 %v6655, 64
    %v6671 = vpop.permute.xlu0 %6670
    %6672 = vrot.lane.b32.xlu0 %v6654, 48
    %v6673 = vpop.permute.xlu0 %6672
    %6674 = vrot.lane.b32.xlu0 %v6655, 48
    %v6675 = vpop.permute.xlu0 %6674
    %6676 = vrot.lane.b32.xlu0 %v6654, 32
    %v6677 = vpop.permute.xlu0 %6676
    %6678 = vrot.lane.b32.xlu0 %v6655, 32
    %v6679 = vpop.permute.xlu0 %6678
    %6680 = vrot.lane.b32.xlu0 %v6654, 16
    %v6681 = vpop.permute.xlu0 %6680
    %6682 = vrot.lane.b32.xlu0 %v6655, 16
    %v6683 = vpop.permute.xlu0 %6682
    %v6685 = vunpack.c.l.b16 %v6649
    %v6686 = vunpack.c.h.b16 %v6649
    %v6687 = vpack.c.b16 %v6685, %v6685
    %v6688 = vpack.c.b16 %v6686, %v6686
    %6689 = vrot.lane.b32.xlu0 %v6687, 112
    %v6690 = vpop.permute.xlu0 %6689
    %6691 = vrot.lane.b32.xlu0 %v6688, 112
    %v6692 = vpop.permute.xlu0 %6691
    %6693 = vrot.lane.b32.xlu0 %v6687, 96
    %v6694 = vpop.permute.xlu0 %6693
    %6695 = vrot.lane.b32.xlu0 %v6688, 96
    %v6696 = vpop.permute.xlu0 %6695
    %6697 = vrot.lane.b32.xlu0 %v6687, 80
    %v6698 = vpop.permute.xlu0 %6697
    %6699 = vrot.lane.b32.xlu0 %v6688, 80
    %v6700 = vpop.permute.xlu0 %6699
    %6701 = vrot.lane.b32.xlu0 %v6687, 64
    %v6702 = vpop.permute.xlu0 %6701
    %6703 = vrot.lane.b32.xlu0 %v6688, 64
    %v6704 = vpop.permute.xlu0 %6703
    %6705 = vrot.lane.b32.xlu0 %v6687, 48
    %v6706 = vpop.permute.xlu0 %6705
    %6707 = vrot.lane.b32.xlu0 %v6688, 48
    %v6708 = vpop.permute.xlu0 %6707
    %6709 = vrot.lane.b32.xlu0 %v6687, 32
    %v6710 = vpop.permute.xlu0 %6709
    %6711 = vrot.lane.b32.xlu0 %v6688, 32
    %v6712 = vpop.permute.xlu0 %6711
    %6713 = vrot.lane.b32.xlu0 %v6687, 16
    %v6714 = vpop.permute.xlu0 %6713
    %6715 = vrot.lane.b32.xlu0 %v6688, 16
    %v6716 = vpop.permute.xlu0 %6715
    %v6718 = vunpack.c.l.b16 %v6650
    %v6719 = vunpack.c.h.b16 %v6650
    %v6720 = vpack.c.b16 %v6718, %v6718
    %v6721 = vpack.c.b16 %v6719, %v6719
    %6722 = vrot.lane.b32.xlu0 %v6720, 112
    %v6723 = vpop.permute.xlu0 %6722
    %6724 = vrot.lane.b32.xlu0 %v6721, 112
    %v6725 = vpop.permute.xlu0 %6724
    %6726 = vrot.lane.b32.xlu0 %v6720, 96
    %v6727 = vpop.permute.xlu0 %6726
    %6728 = vrot.lane.b32.xlu0 %v6721, 96
    %v6729 = vpop.permute.xlu0 %6728
    %6730 = vrot.lane.b32.xlu0 %v6720, 80
    %v6731 = vpop.permute.xlu0 %6730
    %6732 = vrot.lane.b32.xlu0 %v6721, 80
    %v6733 = vpop.permute.xlu0 %6732
    %6734 = vrot.lane.b32.xlu0 %v6720, 64
    %v6735 = vpop.permute.xlu0 %6734
    %6736 = vrot.lane.b32.xlu0 %v6721, 64
    %v6737 = vpop.permute.xlu0 %6736
    %6738 = vrot.lane.b32.xlu0 %v6720, 48
    %v6739 = vpop.permute.xlu0 %6738
    %6740 = vrot.lane.b32.xlu0 %v6721, 48
    %v6741 = vpop.permute.xlu0 %6740
    %6742 = vrot.lane.b32.xlu0 %v6720, 32
    %v6743 = vpop.permute.xlu0 %6742
    %6744 = vrot.lane.b32.xlu0 %v6721, 32
    %v6745 = vpop.permute.xlu0 %6744
    %6746 = vrot.lane.b32.xlu0 %v6720, 16
    %v6747 = vpop.permute.xlu0 %6746
    %6748 = vrot.lane.b32.xlu0 %v6721, 16
    %v6749 = vpop.permute.xlu0 %6748
    %v6751 = vsel %vm2196, %v6654, 0
    %v6754 = vsel %vm2196, %v6687, 0
    %6756 = vmatprep.subr.bf16.mxu0 0
    %6757 = vmatpush1.bf16.xpose.msra.mxu0 0
    %6758 = vmatprep.subr.bf16.mxu0 0
    %6759 = vmatpush1.bf16.xpose.msra.mxu0 0
    %6760 = vmatprep.subr.bf16.mxu0 0
    %6761 = vmatpush1.bf16.xpose.msra.mxu0 0
    %6762 = vmatprep.subr.bf16.mxu0 0
    %6763 = vmatpush1.bf16.xpose.msra.mxu0 0
    %6764 = vmatprep.subr.bf16.mxu0 0
    %6765 = vmatpush1.bf16.xpose.msra.mxu0 0
    %6766 = vmatprep.subr.bf16.mxu0 0
    %6767 = vmatpush1.bf16.xpose.msra.mxu0 0
    %6768 = vmatprep.subr.bf16.mxu0 0
    %6769 = vmatpush1.bf16.xpose.msra.mxu0 0
    %6770 = vmatprep.subr.bf16.mxu0 0
    %6771 = vmatpush1.bf16.xpose.msra.mxu0 %v6754
    %6772 = vmatprep.subr.bf16.mxu0 0
    %6773 = vmatpush2.bf16.xpose.msra.mxu0 0
    %6774 = vmatprep.subr.bf16.mxu0 0
    %6775 = vmatpush2.bf16.xpose.msra.mxu0 0
    %6776 = vmatprep.subr.bf16.mxu0 0
    %6777 = vmatpush2.bf16.xpose.msra.mxu0 0
    %6778 = vmatprep.subr.bf16.mxu0 0
    %6779 = vmatpush2.bf16.xpose.msra.mxu0 0
    %6780 = vmatprep.subr.bf16.mxu0 0
    %6781 = vmatpush2.bf16.xpose.msra.mxu0 0
    %6782 = vmatprep.subr.bf16.mxu0 0
    %6783 = vmatpush2.bf16.xpose.msra.mxu0 0
    %6784 = vmatprep.subr.bf16.mxu0 0
    %6785 = vmatpush2.bf16.xpose.msra.mxu0 0
    %6786 = vmatprep.subr.bf16.mxu0 0
    %6787 = vmatpush2.bf16.xpose.msra.mxu0 0
    %6788 = vmatprep.mubr.bf16.mxu0 0
    %6789 = vmatmul.mubr.bf16.gmra.mxu0 %v6751
    %v6790 = vpop.f32.mrf.mxu0
    %v6791 = vadd.f32 0.0, %v6790
    %v6792 = vpop.f32.mrf.mxu0
    %v6793 = vpop.f32.mrf.mxu0
    %v6794 = vpop.f32.mrf.mxu0
    %6795 = vdwg.mxu0
    %v6797 = vsel %vm2196, %v6655, 0
    %v6800 = vsel %vm2196, %v6688, 0
    %6802 = vmatprep.subr.bf16.mxu0 0
    %6803 = vmatpush1.bf16.xpose.msra.mxu0 0
    %6804 = vmatprep.subr.bf16.mxu0 0
    %6805 = vmatpush1.bf16.xpose.msra.mxu0 0
    %6806 = vmatprep.subr.bf16.mxu0 0
    %6807 = vmatpush1.bf16.xpose.msra.mxu0 0
    %6808 = vmatprep.subr.bf16.mxu0 0
    %6809 = vmatpush1.bf16.xpose.msra.mxu0 0
    %6810 = vmatprep.subr.bf16.mxu0 0
    %6811 = vmatpush1.bf16.xpose.msra.mxu0 0
    %6812 = vmatprep.subr.bf16.mxu0 0
    %6813 = vmatpush1.bf16.xpose.msra.mxu0 0
    %6814 = vmatprep.subr.bf16.mxu0 0
    %6815 = vmatpush1.bf16.xpose.msra.mxu0 0
    %6816 = vmatprep.subr.bf16.mxu0 0
    %6817 = vmatpush1.bf16.xpose.msra.mxu0 %v6800
    %6818 = vmatprep.subr.bf16.mxu0 0
    %6819 = vmatpush2.bf16.xpose.msra.mxu0 0
    %6820 = vmatprep.subr.bf16.mxu0 0
    %6821 = vmatpush2.bf16.xpose.msra.mxu0 0
    %6822 = vmatprep.subr.bf16.mxu0 0
    %6823 = vmatpush2.bf16.xpose.msra.mxu0 0
    %6824 = vmatprep.subr.bf16.mxu0 0
    %6825 = vmatpush2.bf16.xpose.msra.mxu0 0
    %6826 = vmatprep.subr.bf16.mxu0 0
    %6827 = vmatpush2.bf16.xpose.msra.mxu0 0
    %6828 = vmatprep.subr.bf16.mxu0 0
    %6829 = vmatpush2.bf16.xpose.msra.mxu0 0
    %6830 = vmatprep.subr.bf16.mxu0 0
    %6831 = vmatpush2.bf16.xpose.msra.mxu0 0
    %6832 = vmatprep.subr.bf16.mxu0 0
    %6833 = vmatpush2.bf16.xpose.msra.mxu0 0
    %6834 = vmatprep.mubr.bf16.mxu0 0
    %6835 = vmatmul.mubr.bf16.gmra.mxu0 %v6797
    %v6836 = vpop.f32.mrf.mxu0
    %v6837 = vadd.f32 0.0, %v6836
    %v6838 = vpop.f32.mrf.mxu0
    %v6839 = vpop.f32.mrf.mxu0
    %v6840 = vpop.f32.mrf.mxu0
    %6841 = vdwg.mxu0
    %v6843 = vsel %vm2196, %v6657, 0
    %v6846 = vsel %vm2196, %v6690, 0
    %6848 = vmatprep.subr.bf16.mxu0 0
    %6849 = vmatpush1.bf16.xpose.msra.mxu0 0
    %6850 = vmatprep.subr.bf16.mxu0 0
    %6851 = vmatpush1.bf16.xpose.msra.mxu0 0
    %6852 = vmatprep.subr.bf16.mxu0 0
    %6853 = vmatpush1.bf16.xpose.msra.mxu0 0
    %6854 = vmatprep.subr.bf16.mxu0 0
    %6855 = vmatpush1.bf16.xpose.msra.mxu0 0
    %6856 = vmatprep.subr.bf16.mxu0 0
    %6857 = vmatpush1.bf16.xpose.msra.mxu0 0
    %6858 = vmatprep.subr.bf16.mxu0 0
    %6859 = vmatpush1.bf16.xpose.msra.mxu0 0
    %6860 = vmatprep.subr.bf16.mxu0 0
    %6861 = vmatpush1.bf16.xpose.msra.mxu0 0
    %6862 = vmatprep.subr.bf16.mxu0 0
    %6863 = vmatpush1.bf16.xpose.msra.mxu0 %v6846
    %6864 = vmatprep.subr.bf16.mxu0 0
    %6865 = vmatpush2.bf16.xpose.msra.mxu0 0
    %6866 = vmatprep.subr.bf16.mxu0 0
    %6867 = vmatpush2.bf16.xpose.msra.mxu0 0
    %6868 = vmatprep.subr.bf16.mxu0 0
    %6869 = vmatpush2.bf16.xpose.msra.mxu0 0
    %6870 = vmatprep.subr.bf16.mxu0 0
    %6871 = vmatpush2.bf16.xpose.msra.mxu0 0
    %6872 = vmatprep.subr.bf16.mxu0 0
    %6873 = vmatpush2.bf16.xpose.msra.mxu0 0
    %6874 = vmatprep.subr.bf16.mxu0 0
    %6875 = vmatpush2.bf16.xpose.msra.mxu0 0
    %6876 = vmatprep.subr.bf16.mxu0 0
    %6877 = vmatpush2.bf16.xpose.msra.mxu0 0
    %6878 = vmatprep.subr.bf16.mxu0 0
    %6879 = vmatpush2.bf16.xpose.msra.mxu0 0
    %6880 = vmatprep.mubr.bf16.mxu0 0
    %6881 = vmatmul.mubr.bf16.gmra.mxu0 %v6843
    %v6882 = vpop.f32.mrf.mxu0
    %v6883 = vadd.f32 0.0, %v6882
    %v6884 = vpop.f32.mrf.mxu0
    %v6885 = vpop.f32.mrf.mxu0
    %v6886 = vpop.f32.mrf.mxu0
    %6887 = vdwg.mxu0
    %v6889 = vsel %vm2196, %v6659, 0
    %v6892 = vsel %vm2196, %v6692, 0
    %6894 = vmatprep.subr.bf16.mxu0 0
    %6895 = vmatpush1.bf16.xpose.msra.mxu0 0
    %6896 = vmatprep.subr.bf16.mxu0 0
    %6897 = vmatpush1.bf16.xpose.msra.mxu0 0
    %6898 = vmatprep.subr.bf16.mxu0 0
    %6899 = vmatpush1.bf16.xpose.msra.mxu0 0
    %6900 = vmatprep.subr.bf16.mxu0 0
    %6901 = vmatpush1.bf16.xpose.msra.mxu0 0
    %6902 = vmatprep.subr.bf16.mxu0 0
    %6903 = vmatpush1.bf16.xpose.msra.mxu0 0
    %6904 = vmatprep.subr.bf16.mxu0 0
    %6905 = vmatpush1.bf16.xpose.msra.mxu0 0
    %6906 = vmatprep.subr.bf16.mxu0 0
    %6907 = vmatpush1.bf16.xpose.msra.mxu0 0
    %6908 = vmatprep.subr.bf16.mxu0 0
    %6909 = vmatpush1.bf16.xpose.msra.mxu0 %v6892
    %6910 = vmatprep.subr.bf16.mxu0 0
    %6911 = vmatpush2.bf16.xpose.msra.mxu0 0
    %6912 = vmatprep.subr.bf16.mxu0 0
    %6913 = vmatpush2.bf16.xpose.msra.mxu0 0
    %6914 = vmatprep.subr.bf16.mxu0 0
    %6915 = vmatpush2.bf16.xpose.msra.mxu0 0
    %6916 = vmatprep.subr.bf16.mxu0 0
    %6917 = vmatpush2.bf16.xpose.msra.mxu0 0
    %6918 = vmatprep.subr.bf16.mxu0 0
    %6919 = vmatpush2.bf16.xpose.msra.mxu0 0
    %6920 = vmatprep.subr.bf16.mxu0 0
    %6921 = vmatpush2.bf16.xpose.msra.mxu0 0
    %6922 = vmatprep.subr.bf16.mxu0 0
    %6923 = vmatpush2.bf16.xpose.msra.mxu0 0
    %6924 = vmatprep.subr.bf16.mxu0 0
    %6925 = vmatpush2.bf16.xpose.msra.mxu0 0
    %6926 = vmatprep.mubr.bf16.mxu0 0
    %6927 = vmatmul.mubr.bf16.gmra.mxu0 %v6889
    %v6928 = vpop.f32.mrf.mxu0
    %v6929 = vadd.f32 0.0, %v6928
    %v6930 = vpop.f32.mrf.mxu0
    %v6931 = vpop.f32.mrf.mxu0
    %v6932 = vpop.f32.mrf.mxu0
    %6933 = vdwg.mxu0
    %v6935 = vsel %vm2196, %v6661, 0
    %v6938 = vsel %vm2196, %v6694, 0
    %6940 = vmatprep.subr.bf16.mxu0 0
    %6941 = vmatpush1.bf16.xpose.msra.mxu0 0
    %6942 = vmatprep.subr.bf16.mxu0 0
    %6943 = vmatpush1.bf16.xpose.msra.mxu0 0
    %6944 = vmatprep.subr.bf16.mxu0 0
    %6945 = vmatpush1.bf16.xpose.msra.mxu0 0
    %6946 = vmatprep.subr.bf16.mxu0 0
    %6947 = vmatpush1.bf16.xpose.msra.mxu0 0
    %6948 = vmatprep.subr.bf16.mxu0 0
    %6949 = vmatpush1.bf16.xpose.msra.mxu0 0
    %6950 = vmatprep.subr.bf16.mxu0 0
    %6951 = vmatpush1.bf16.xpose.msra.mxu0 0
    %6952 = vmatprep.subr.bf16.mxu0 0
    %6953 = vmatpush1.bf16.xpose.msra.mxu0 0
    %6954 = vmatprep.subr.bf16.mxu0 0
    %6955 = vmatpush1.bf16.xpose.msra.mxu0 %v6938
    %6956 = vmatprep.subr.bf16.mxu0 0
    %6957 = vmatpush2.bf16.xpose.msra.mxu0 0
    %6958 = vmatprep.subr.bf16.mxu0 0
    %6959 = vmatpush2.bf16.xpose.msra.mxu0 0
    %6960 = vmatprep.subr.bf16.mxu0 0
    %6961 = vmatpush2.bf16.xpose.msra.mxu0 0
    %6962 = vmatprep.subr.bf16.mxu0 0
    %6963 = vmatpush2.bf16.xpose.msra.mxu0 0
    %6964 = vmatprep.subr.bf16.mxu0 0
    %6965 = vmatpush2.bf16.xpose.msra.mxu0 0
    %6966 = vmatprep.subr.bf16.mxu0 0
    %6967 = vmatpush2.bf16.xpose.msra.mxu0 0
    %6968 = vmatprep.subr.bf16.mxu0 0
    %6969 = vmatpush2.bf16.xpose.msra.mxu0 0
    %6970 = vmatprep.subr.bf16.mxu0 0
    %6971 = vmatpush2.bf16.xpose.msra.mxu0 0
    %6972 = vmatprep.mubr.bf16.mxu0 0
    %6973 = vmatmul.mubr.bf16.gmra.mxu0 %v6935
    %v6974 = vpop.f32.mrf.mxu0
    %v6975 = vadd.f32 0.0, %v6974
    %v6976 = vpop.f32.mrf.mxu0
    %v6977 = vpop.f32.mrf.mxu0
    %v6978 = vpop.f32.mrf.mxu0
    %6979 = vdwg.mxu0
    %v6981 = vsel %vm2196, %v6663, 0
    %v6984 = vsel %vm2196, %v6696, 0
    %6986 = vmatprep.subr.bf16.mxu0 0
    %6987 = vmatpush1.bf16.xpose.msra.mxu0 0
    %6988 = vmatprep.subr.bf16.mxu0 0
    %6989 = vmatpush1.bf16.xpose.msra.mxu0 0
    %6990 = vmatprep.subr.bf16.mxu0 0
    %6991 = vmatpush1.bf16.xpose.msra.mxu0 0
    %6992 = vmatprep.subr.bf16.mxu0 0
    %6993 = vmatpush1.bf16.xpose.msra.mxu0 0
    %6994 = vmatprep.subr.bf16.mxu0 0
    %6995 = vmatpush1.bf16.xpose.msra.mxu0 0
    %6996 = vmatprep.subr.bf16.mxu0 0
    %6997 = vmatpush1.bf16.xpose.msra.mxu0 0
    %6998 = vmatprep.subr.bf16.mxu0 0
    %6999 = vmatpush1.bf16.xpose.msra.mxu0 0
    %7000 = vmatprep.subr.bf16.mxu0 0
    %7001 = vmatpush1.bf16.xpose.msra.mxu0 %v6984
    %7002 = vmatprep.subr.bf16.mxu0 0
    %7003 = vmatpush2.bf16.xpose.msra.mxu0 0
    %7004 = vmatprep.subr.bf16.mxu0 0
    %7005 = vmatpush2.bf16.xpose.msra.mxu0 0
    %7006 = vmatprep.subr.bf16.mxu0 0
    %7007 = vmatpush2.bf16.xpose.msra.mxu0 0
    %7008 = vmatprep.subr.bf16.mxu0 0
    %7009 = vmatpush2.bf16.xpose.msra.mxu0 0
    %7010 = vmatprep.subr.bf16.mxu0 0
    %7011 = vmatpush2.bf16.xpose.msra.mxu0 0
    %7012 = vmatprep.subr.bf16.mxu0 0
    %7013 = vmatpush2.bf16.xpose.msra.mxu0 0
    %7014 = vmatprep.subr.bf16.mxu0 0
    %7015 = vmatpush2.bf16.xpose.msra.mxu0 0
    %7016 = vmatprep.subr.bf16.mxu0 0
    %7017 = vmatpush2.bf16.xpose.msra.mxu0 0
    %7018 = vmatprep.mubr.bf16.mxu0 0
    %7019 = vmatmul.mubr.bf16.gmra.mxu0 %v6981
    %v7020 = vpop.f32.mrf.mxu0
    %v7021 = vadd.f32 0.0, %v7020
    %v7022 = vpop.f32.mrf.mxu0
    %v7023 = vpop.f32.mrf.mxu0
    %v7024 = vpop.f32.mrf.mxu0
    %7025 = vdwg.mxu0
    %v7027 = vsel %vm2196, %v6665, 0
    %v7030 = vsel %vm2196, %v6698, 0
    %7032 = vmatprep.subr.bf16.mxu0 0
    %7033 = vmatpush1.bf16.xpose.msra.mxu0 0
    %7034 = vmatprep.subr.bf16.mxu0 0
    %7035 = vmatpush1.bf16.xpose.msra.mxu0 0
    %7036 = vmatprep.subr.bf16.mxu0 0
    %7037 = vmatpush1.bf16.xpose.msra.mxu0 0
    %7038 = vmatprep.subr.bf16.mxu0 0
    %7039 = vmatpush1.bf16.xpose.msra.mxu0 0
    %7040 = vmatprep.subr.bf16.mxu0 0
    %7041 = vmatpush1.bf16.xpose.msra.mxu0 0
    %7042 = vmatprep.subr.bf16.mxu0 0
    %7043 = vmatpush1.bf16.xpose.msra.mxu0 0
    %7044 = vmatprep.subr.bf16.mxu0 0
    %7045 = vmatpush1.bf16.xpose.msra.mxu0 0
    %7046 = vmatprep.subr.bf16.mxu0 0
    %7047 = vmatpush1.bf16.xpose.msra.mxu0 %v7030
    %7048 = vmatprep.subr.bf16.mxu0 0
    %7049 = vmatpush2.bf16.xpose.msra.mxu0 0
    %7050 = vmatprep.subr.bf16.mxu0 0
    %7051 = vmatpush2.bf16.xpose.msra.mxu0 0
    %7052 = vmatprep.subr.bf16.mxu0 0
    %7053 = vmatpush2.bf16.xpose.msra.mxu0 0
    %7054 = vmatprep.subr.bf16.mxu0 0
    %7055 = vmatpush2.bf16.xpose.msra.mxu0 0
    %7056 = vmatprep.subr.bf16.mxu0 0
    %7057 = vmatpush2.bf16.xpose.msra.mxu0 0
    %7058 = vmatprep.subr.bf16.mxu0 0
    %7059 = vmatpush2.bf16.xpose.msra.mxu0 0
    %7060 = vmatprep.subr.bf16.mxu0 0
    %7061 = vmatpush2.bf16.xpose.msra.mxu0 0
    %7062 = vmatprep.subr.bf16.mxu0 0
    %7063 = vmatpush2.bf16.xpose.msra.mxu0 0
    %7064 = vmatprep.mubr.bf16.mxu0 0
    %7065 = vmatmul.mubr.bf16.gmra.mxu0 %v7027
    %v7066 = vpop.f32.mrf.mxu0
    %v7067 = vadd.f32 0.0, %v7066
    %v7068 = vpop.f32.mrf.mxu0
    %v7069 = vpop.f32.mrf.mxu0
    %v7070 = vpop.f32.mrf.mxu0
    %7071 = vdwg.mxu0
    %v7073 = vsel %vm2196, %v6667, 0
    %v7076 = vsel %vm2196, %v6700, 0
    %7078 = vmatprep.subr.bf16.mxu0 0
    %7079 = vmatpush1.bf16.xpose.msra.mxu0 0
    %7080 = vmatprep.subr.bf16.mxu0 0
    %7081 = vmatpush1.bf16.xpose.msra.mxu0 0
    %7082 = vmatprep.subr.bf16.mxu0 0
    %7083 = vmatpush1.bf16.xpose.msra.mxu0 0
    %7084 = vmatprep.subr.bf16.mxu0 0
    %7085 = vmatpush1.bf16.xpose.msra.mxu0 0
    %7086 = vmatprep.subr.bf16.mxu0 0
    %7087 = vmatpush1.bf16.xpose.msra.mxu0 0
    %7088 = vmatprep.subr.bf16.mxu0 0
    %7089 = vmatpush1.bf16.xpose.msra.mxu0 0
    %7090 = vmatprep.subr.bf16.mxu0 0
    %7091 = vmatpush1.bf16.xpose.msra.mxu0 0
    %7092 = vmatprep.subr.bf16.mxu0 0
    %7093 = vmatpush1.bf16.xpose.msra.mxu0 %v7076
    %7094 = vmatprep.subr.bf16.mxu0 0
    %7095 = vmatpush2.bf16.xpose.msra.mxu0 0
    %7096 = vmatprep.subr.bf16.mxu0 0
    %7097 = vmatpush2.bf16.xpose.msra.mxu0 0
    %7098 = vmatprep.subr.bf16.mxu0 0
    %7099 = vmatpush2.bf16.xpose.msra.mxu0 0
    %7100 = vmatprep.subr.bf16.mxu0 0
    %7101 = vmatpush2.bf16.xpose.msra.mxu0 0
    %7102 = vmatprep.subr.bf16.mxu0 0
    %7103 = vmatpush2.bf16.xpose.msra.mxu0 0
    %7104 = vmatprep.subr.bf16.mxu0 0
    %7105 = vmatpush2.bf16.xpose.msra.mxu0 0
    %7106 = vmatprep.subr.bf16.mxu0 0
    %7107 = vmatpush2.bf16.xpose.msra.mxu0 0
    %7108 = vmatprep.subr.bf16.mxu0 0
    %7109 = vmatpush2.bf16.xpose.msra.mxu0 0
    %7110 = vmatprep.mubr.bf16.mxu0 0
    %7111 = vmatmul.mubr.bf16.gmra.mxu0 %v7073
    %v7112 = vpop.f32.mrf.mxu0
    %v7113 = vadd.f32 0.0, %v7112
    %v7114 = vpop.f32.mrf.mxu0
    %v7115 = vpop.f32.mrf.mxu0
    %v7116 = vpop.f32.mrf.mxu0
    %7117 = vdwg.mxu0
    %v7119 = vsel %vm2196, %v6669, 0
    %v7122 = vsel %vm2196, %v6702, 0
    %7124 = vmatprep.subr.bf16.mxu0 0
    %7125 = vmatpush1.bf16.xpose.msra.mxu0 0
    %7126 = vmatprep.subr.bf16.mxu0 0
    %7127 = vmatpush1.bf16.xpose.msra.mxu0 0
    %7128 = vmatprep.subr.bf16.mxu0 0
    %7129 = vmatpush1.bf16.xpose.msra.mxu0 0
    %7130 = vmatprep.subr.bf16.mxu0 0
    %7131 = vmatpush1.bf16.xpose.msra.mxu0 0
    %7132 = vmatprep.subr.bf16.mxu0 0
    %7133 = vmatpush1.bf16.xpose.msra.mxu0 0
    %7134 = vmatprep.subr.bf16.mxu0 0
    %7135 = vmatpush1.bf16.xpose.msra.mxu0 0
    %7136 = vmatprep.subr.bf16.mxu0 0
    %7137 = vmatpush1.bf16.xpose.msra.mxu0 0
    %7138 = vmatprep.subr.bf16.mxu0 0
    %7139 = vmatpush1.bf16.xpose.msra.mxu0 %v7122
    %7140 = vmatprep.subr.bf16.mxu0 0
    %7141 = vmatpush2.bf16.xpose.msra.mxu0 0
    %7142 = vmatprep.subr.bf16.mxu0 0
    %7143 = vmatpush2.bf16.xpose.msra.mxu0 0
    %7144 = vmatprep.subr.bf16.mxu0 0
    %7145 = vmatpush2.bf16.xpose.msra.mxu0 0
    %7146 = vmatprep.subr.bf16.mxu0 0
    %7147 = vmatpush2.bf16.xpose.msra.mxu0 0
    %7148 = vmatprep.subr.bf16.mxu0 0
    %7149 = vmatpush2.bf16.xpose.msra.mxu0 0
    %7150 = vmatprep.subr.bf16.mxu0 0
    %7151 = vmatpush2.bf16.xpose.msra.mxu0 0
    %7152 = vmatprep.subr.bf16.mxu0 0
    %7153 = vmatpush2.bf16.xpose.msra.mxu0 0
    %7154 = vmatprep.subr.bf16.mxu0 0
    %7155 = vmatpush2.bf16.xpose.msra.mxu0 0
    %7156 = vmatprep.mubr.bf16.mxu0 0
    %7157 = vmatmul.mubr.bf16.gmra.mxu0 %v7119
    %v7158 = vpop.f32.mrf.mxu0
    %v7159 = vadd.f32 0.0, %v7158
    %v7160 = vpop.f32.mrf.mxu0
    %v7161 = vpop.f32.mrf.mxu0
    %v7162 = vpop.f32.mrf.mxu0
    %7163 = vdwg.mxu0
    %v7165 = vsel %vm2196, %v6671, 0
    %v7168 = vsel %vm2196, %v6704, 0
    %7170 = vmatprep.subr.bf16.mxu0 0
    %7171 = vmatpush1.bf16.xpose.msra.mxu0 0
    %7172 = vmatprep.subr.bf16.mxu0 0
    %7173 = vmatpush1.bf16.xpose.msra.mxu0 0
    %7174 = vmatprep.subr.bf16.mxu0 0
    %7175 = vmatpush1.bf16.xpose.msra.mxu0 0
    %7176 = vmatprep.subr.bf16.mxu0 0
    %7177 = vmatpush1.bf16.xpose.msra.mxu0 0
    %7178 = vmatprep.subr.bf16.mxu0 0
    %7179 = vmatpush1.bf16.xpose.msra.mxu0 0
    %7180 = vmatprep.subr.bf16.mxu0 0
    %7181 = vmatpush1.bf16.xpose.msra.mxu0 0
    %7182 = vmatprep.subr.bf16.mxu0 0
    %7183 = vmatpush1.bf16.xpose.msra.mxu0 0
    %7184 = vmatprep.subr.bf16.mxu0 0
    %7185 = vmatpush1.bf16.xpose.msra.mxu0 %v7168
    %7186 = vmatprep.subr.bf16.mxu0 0
    %7187 = vmatpush2.bf16.xpose.msra.mxu0 0
    %7188 = vmatprep.subr.bf16.mxu0 0
    %7189 = vmatpush2.bf16.xpose.msra.mxu0 0
    %7190 = vmatprep.subr.bf16.mxu0 0
    %7191 = vmatpush2.bf16.xpose.msra.mxu0 0
    %7192 = vmatprep.subr.bf16.mxu0 0
    %7193 = vmatpush2.bf16.xpose.msra.mxu0 0
    %7194 = vmatprep.subr.bf16.mxu0 0
    %7195 = vmatpush2.bf16.xpose.msra.mxu0 0
    %7196 = vmatprep.subr.bf16.mxu0 0
    %7197 = vmatpush2.bf16.xpose.msra.mxu0 0
    %7198 = vmatprep.subr.bf16.mxu0 0
    %7199 = vmatpush2.bf16.xpose.msra.mxu0 0
    %7200 = vmatprep.subr.bf16.mxu0 0
    %7201 = vmatpush2.bf16.xpose.msra.mxu0 0
    %7202 = vmatprep.mubr.bf16.mxu0 0
    %7203 = vmatmul.mubr.bf16.gmra.mxu0 %v7165
    %v7204 = vpop.f32.mrf.mxu0
    %v7205 = vadd.f32 0.0, %v7204
    %v7206 = vpop.f32.mrf.mxu0
    %v7207 = vpop.f32.mrf.mxu0
    %v7208 = vpop.f32.mrf.mxu0
    %7209 = vdwg.mxu0
    %v7211 = vsel %vm2196, %v6673, 0
    %v7214 = vsel %vm2196, %v6706, 0
    %7216 = vmatprep.subr.bf16.mxu0 0
    %7217 = vmatpush1.bf16.xpose.msra.mxu0 0
    %7218 = vmatprep.subr.bf16.mxu0 0
    %7219 = vmatpush1.bf16.xpose.msra.mxu0 0
    %7220 = vmatprep.subr.bf16.mxu0 0
    %7221 = vmatpush1.bf16.xpose.msra.mxu0 0
    %7222 = vmatprep.subr.bf16.mxu0 0
    %7223 = vmatpush1.bf16.xpose.msra.mxu0 0
    %7224 = vmatprep.subr.bf16.mxu0 0
    %7225 = vmatpush1.bf16.xpose.msra.mxu0 0
    %7226 = vmatprep.subr.bf16.mxu0 0
    %7227 = vmatpush1.bf16.xpose.msra.mxu0 0
    %7228 = vmatprep.subr.bf16.mxu0 0
    %7229 = vmatpush1.bf16.xpose.msra.mxu0 0
    %7230 = vmatprep.subr.bf16.mxu0 0
    %7231 = vmatpush1.bf16.xpose.msra.mxu0 %v7214
    %7232 = vmatprep.subr.bf16.mxu0 0
    %7233 = vmatpush2.bf16.xpose.msra.mxu0 0
    %7234 = vmatprep.subr.bf16.mxu0 0
    %7235 = vmatpush2.bf16.xpose.msra.mxu0 0
    %7236 = vmatprep.subr.bf16.mxu0 0
    %7237 = vmatpush2.bf16.xpose.msra.mxu0 0
    %7238 = vmatprep.subr.bf16.mxu0 0
    %7239 = vmatpush2.bf16.xpose.msra.mxu0 0
    %7240 = vmatprep.subr.bf16.mxu0 0
    %7241 = vmatpush2.bf16.xpose.msra.mxu0 0
    %7242 = vmatprep.subr.bf16.mxu0 0
    %7243 = vmatpush2.bf16.xpose.msra.mxu0 0
    %7244 = vmatprep.subr.bf16.mxu0 0
    %7245 = vmatpush2.bf16.xpose.msra.mxu0 0
    %7246 = vmatprep.subr.bf16.mxu0 0
    %7247 = vmatpush2.bf16.xpose.msra.mxu0 0
    %7248 = vmatprep.mubr.bf16.mxu0 0
    %7249 = vmatmul.mubr.bf16.gmra.mxu0 %v7211
    %v7250 = vpop.f32.mrf.mxu0
    %v7251 = vadd.f32 0.0, %v7250
    %v7252 = vpop.f32.mrf.mxu0
    %v7253 = vpop.f32.mrf.mxu0
    %v7254 = vpop.f32.mrf.mxu0
    %7255 = vdwg.mxu0
    %v7257 = vsel %vm2196, %v6675, 0
    %v7260 = vsel %vm2196, %v6708, 0
    %7262 = vmatprep.subr.bf16.mxu0 0
    %7263 = vmatpush1.bf16.xpose.msra.mxu0 0
    %7264 = vmatprep.subr.bf16.mxu0 0
    %7265 = vmatpush1.bf16.xpose.msra.mxu0 0
    %7266 = vmatprep.subr.bf16.mxu0 0
    %7267 = vmatpush1.bf16.xpose.msra.mxu0 0
    %7268 = vmatprep.subr.bf16.mxu0 0
    %7269 = vmatpush1.bf16.xpose.msra.mxu0 0
    %7270 = vmatprep.subr.bf16.mxu0 0
    %7271 = vmatpush1.bf16.xpose.msra.mxu0 0
    %7272 = vmatprep.subr.bf16.mxu0 0
    %7273 = vmatpush1.bf16.xpose.msra.mxu0 0
    %7274 = vmatprep.subr.bf16.mxu0 0
    %7275 = vmatpush1.bf16.xpose.msra.mxu0 0
    %7276 = vmatprep.subr.bf16.mxu0 0
    %7277 = vmatpush1.bf16.xpose.msra.mxu0 %v7260
    %7278 = vmatprep.subr.bf16.mxu0 0
    %7279 = vmatpush2.bf16.xpose.msra.mxu0 0
    %7280 = vmatprep.subr.bf16.mxu0 0
    %7281 = vmatpush2.bf16.xpose.msra.mxu0 0
    %7282 = vmatprep.subr.bf16.mxu0 0
    %7283 = vmatpush2.bf16.xpose.msra.mxu0 0
    %7284 = vmatprep.subr.bf16.mxu0 0
    %7285 = vmatpush2.bf16.xpose.msra.mxu0 0
    %7286 = vmatprep.subr.bf16.mxu0 0
    %7287 = vmatpush2.bf16.xpose.msra.mxu0 0
    %7288 = vmatprep.subr.bf16.mxu0 0
    %7289 = vmatpush2.bf16.xpose.msra.mxu0 0
    %7290 = vmatprep.subr.bf16.mxu0 0
    %7291 = vmatpush2.bf16.xpose.msra.mxu0 0
    %7292 = vmatprep.subr.bf16.mxu0 0
    %7293 = vmatpush2.bf16.xpose.msra.mxu0 0
    %7294 = vmatprep.mubr.bf16.mxu0 0
    %7295 = vmatmul.mubr.bf16.gmra.mxu0 %v7257
    %v7296 = vpop.f32.mrf.mxu0
    %v7297 = vadd.f32 0.0, %v7296
    %v7298 = vpop.f32.mrf.mxu0
    %v7299 = vpop.f32.mrf.mxu0
    %v7300 = vpop.f32.mrf.mxu0
    %7301 = vdwg.mxu0
    %v7303 = vsel %vm2196, %v6677, 0
    %v7306 = vsel %vm2196, %v6710, 0
    %7308 = vmatprep.subr.bf16.mxu0 0
    %7309 = vmatpush1.bf16.xpose.msra.mxu0 0
    %7310 = vmatprep.subr.bf16.mxu0 0
    %7311 = vmatpush1.bf16.xpose.msra.mxu0 0
    %7312 = vmatprep.subr.bf16.mxu0 0
    %7313 = vmatpush1.bf16.xpose.msra.mxu0 0
    %7314 = vmatprep.subr.bf16.mxu0 0
    %7315 = vmatpush1.bf16.xpose.msra.mxu0 0
    %7316 = vmatprep.subr.bf16.mxu0 0
    %7317 = vmatpush1.bf16.xpose.msra.mxu0 0
    %7318 = vmatprep.subr.bf16.mxu0 0
    %7319 = vmatpush1.bf16.xpose.msra.mxu0 0
    %7320 = vmatprep.subr.bf16.mxu0 0
    %7321 = vmatpush1.bf16.xpose.msra.mxu0 0
    %7322 = vmatprep.subr.bf16.mxu0 0
    %7323 = vmatpush1.bf16.xpose.msra.mxu0 %v7306
    %7324 = vmatprep.subr.bf16.mxu0 0
    %7325 = vmatpush2.bf16.xpose.msra.mxu0 0
    %7326 = vmatprep.subr.bf16.mxu0 0
    %7327 = vmatpush2.bf16.xpose.msra.mxu0 0
    %7328 = vmatprep.subr.bf16.mxu0 0
    %7329 = vmatpush2.bf16.xpose.msra.mxu0 0
    %7330 = vmatprep.subr.bf16.mxu0 0
    %7331 = vmatpush2.bf16.xpose.msra.mxu0 0
    %7332 = vmatprep.subr.bf16.mxu0 0
    %7333 = vmatpush2.bf16.xpose.msra.mxu0 0
    %7334 = vmatprep.subr.bf16.mxu0 0
    %7335 = vmatpush2.bf16.xpose.msra.mxu0 0
    %7336 = vmatprep.subr.bf16.mxu0 0
    %7337 = vmatpush2.bf16.xpose.msra.mxu0 0
    %7338 = vmatprep.subr.bf16.mxu0 0
    %7339 = vmatpush2.bf16.xpose.msra.mxu0 0
    %7340 = vmatprep.mubr.bf16.mxu0 0
    %7341 = vmatmul.mubr.bf16.gmra.mxu0 %v7303
    %v7342 = vpop.f32.mrf.mxu0
    %v7343 = vadd.f32 0.0, %v7342
    %v7344 = vpop.f32.mrf.mxu0
    %v7345 = vpop.f32.mrf.mxu0
    %v7346 = vpop.f32.mrf.mxu0
    %7347 = vdwg.mxu0
    %v7349 = vsel %vm2196, %v6679, 0
    %v7352 = vsel %vm2196, %v6712, 0
    %7354 = vmatprep.subr.bf16.mxu0 0
    %7355 = vmatpush1.bf16.xpose.msra.mxu0 0
    %7356 = vmatprep.subr.bf16.mxu0 0
    %7357 = vmatpush1.bf16.xpose.msra.mxu0 0
    %7358 = vmatprep.subr.bf16.mxu0 0
    %7359 = vmatpush1.bf16.xpose.msra.mxu0 0
    %7360 = vmatprep.subr.bf16.mxu0 0
    %7361 = vmatpush1.bf16.xpose.msra.mxu0 0
    %7362 = vmatprep.subr.bf16.mxu0 0
    %7363 = vmatpush1.bf16.xpose.msra.mxu0 0
    %7364 = vmatprep.subr.bf16.mxu0 0
    %7365 = vmatpush1.bf16.xpose.msra.mxu0 0
    %7366 = vmatprep.subr.bf16.mxu0 0
    %7367 = vmatpush1.bf16.xpose.msra.mxu0 0
    %7368 = vmatprep.subr.bf16.mxu0 0
    %7369 = vmatpush1.bf16.xpose.msra.mxu0 %v7352
    %7370 = vmatprep.subr.bf16.mxu0 0
    %7371 = vmatpush2.bf16.xpose.msra.mxu0 0
    %7372 = vmatprep.subr.bf16.mxu0 0
    %7373 = vmatpush2.bf16.xpose.msra.mxu0 0
    %7374 = vmatprep.subr.bf16.mxu0 0
    %7375 = vmatpush2.bf16.xpose.msra.mxu0 0
    %7376 = vmatprep.subr.bf16.mxu0 0
    %7377 = vmatpush2.bf16.xpose.msra.mxu0 0
    %7378 = vmatprep.subr.bf16.mxu0 0
    %7379 = vmatpush2.bf16.xpose.msra.mxu0 0
    %7380 = vmatprep.subr.bf16.mxu0 0
    %7381 = vmatpush2.bf16.xpose.msra.mxu0 0
    %7382 = vmatprep.subr.bf16.mxu0 0
    %7383 = vmatpush2.bf16.xpose.msra.mxu0 0
    %7384 = vmatprep.subr.bf16.mxu0 0
    %7385 = vmatpush2.bf16.xpose.msra.mxu0 0
    %7386 = vmatprep.mubr.bf16.mxu0 0
    %7387 = vmatmul.mubr.bf16.gmra.mxu0 %v7349
    %v7388 = vpop.f32.mrf.mxu0
    %v7389 = vadd.f32 0.0, %v7388
    %v7390 = vpop.f32.mrf.mxu0
    %v7391 = vpop.f32.mrf.mxu0
    %v7392 = vpop.f32.mrf.mxu0
    %7393 = vdwg.mxu0
    %v7395 = vsel %vm2196, %v6681, 0
    %v7398 = vsel %vm2196, %v6714, 0
    %7400 = vmatprep.subr.bf16.mxu0 0
    %7401 = vmatpush1.bf16.xpose.msra.mxu0 0
    %7402 = vmatprep.subr.bf16.mxu0 0
    %7403 = vmatpush1.bf16.xpose.msra.mxu0 0
    %7404 = vmatprep.subr.bf16.mxu0 0
    %7405 = vmatpush1.bf16.xpose.msra.mxu0 0
    %7406 = vmatprep.subr.bf16.mxu0 0
    %7407 = vmatpush1.bf16.xpose.msra.mxu0 0
    %7408 = vmatprep.subr.bf16.mxu0 0
    %7409 = vmatpush1.bf16.xpose.msra.mxu0 0
    %7410 = vmatprep.subr.bf16.mxu0 0
    %7411 = vmatpush1.bf16.xpose.msra.mxu0 0
    %7412 = vmatprep.subr.bf16.mxu0 0
    %7413 = vmatpush1.bf16.xpose.msra.mxu0 0
    %7414 = vmatprep.subr.bf16.mxu0 0
    %7415 = vmatpush1.bf16.xpose.msra.mxu0 %v7398
    %7416 = vmatprep.subr.bf16.mxu0 0
    %7417 = vmatpush2.bf16.xpose.msra.mxu0 0
    %7418 = vmatprep.subr.bf16.mxu0 0
    %7419 = vmatpush2.bf16.xpose.msra.mxu0 0
    %7420 = vmatprep.subr.bf16.mxu0 0
    %7421 = vmatpush2.bf16.xpose.msra.mxu0 0
    %7422 = vmatprep.subr.bf16.mxu0 0
    %7423 = vmatpush2.bf16.xpose.msra.mxu0 0
    %7424 = vmatprep.subr.bf16.mxu0 0
    %7425 = vmatpush2.bf16.xpose.msra.mxu0 0
    %7426 = vmatprep.subr.bf16.mxu0 0
    %7427 = vmatpush2.bf16.xpose.msra.mxu0 0
    %7428 = vmatprep.subr.bf16.mxu0 0
    %7429 = vmatpush2.bf16.xpose.msra.mxu0 0
    %7430 = vmatprep.subr.bf16.mxu0 0
    %7431 = vmatpush2.bf16.xpose.msra.mxu0 0
    %7432 = vmatprep.mubr.bf16.mxu0 0
    %7433 = vmatmul.mubr.bf16.gmra.mxu0 %v7395
    %v7434 = vpop.f32.mrf.mxu0
    %v7435 = vadd.f32 0.0, %v7434
    %v7436 = vpop.f32.mrf.mxu0
    %v7437 = vpop.f32.mrf.mxu0
    %v7438 = vpop.f32.mrf.mxu0
    %7439 = vdwg.mxu0
    %v7441 = vsel %vm2196, %v6683, 0
    %v7444 = vsel %vm2196, %v6716, 0
    %7446 = vmatprep.subr.bf16.mxu0 0
    %7447 = vmatpush1.bf16.xpose.msra.mxu0 0
    %7448 = vmatprep.subr.bf16.mxu0 0
    %7449 = vmatpush1.bf16.xpose.msra.mxu0 0
    %7450 = vmatprep.subr.bf16.mxu0 0
    %7451 = vmatpush1.bf16.xpose.msra.mxu0 0
    %7452 = vmatprep.subr.bf16.mxu0 0
    %7453 = vmatpush1.bf16.xpose.msra.mxu0 0
    %7454 = vmatprep.subr.bf16.mxu0 0
    %7455 = vmatpush1.bf16.xpose.msra.mxu0 0
    %7456 = vmatprep.subr.bf16.mxu0 0
    %7457 = vmatpush1.bf16.xpose.msra.mxu0 0
    %7458 = vmatprep.subr.bf16.mxu0 0
    %7459 = vmatpush1.bf16.xpose.msra.mxu0 0
    %7460 = vmatprep.subr.bf16.mxu0 0
    %7461 = vmatpush1.bf16.xpose.msra.mxu0 %v7444
    %7462 = vmatprep.subr.bf16.mxu0 0
    %7463 = vmatpush2.bf16.xpose.msra.mxu0 0
    %7464 = vmatprep.subr.bf16.mxu0 0
    %7465 = vmatpush2.bf16.xpose.msra.mxu0 0
    %7466 = vmatprep.subr.bf16.mxu0 0
    %7467 = vmatpush2.bf16.xpose.msra.mxu0 0
    %7468 = vmatprep.subr.bf16.mxu0 0
    %7469 = vmatpush2.bf16.xpose.msra.mxu0 0
    %7470 = vmatprep.subr.bf16.mxu0 0
    %7471 = vmatpush2.bf16.xpose.msra.mxu0 0
    %7472 = vmatprep.subr.bf16.mxu0 0
    %7473 = vmatpush2.bf16.xpose.msra.mxu0 0
    %7474 = vmatprep.subr.bf16.mxu0 0
    %7475 = vmatpush2.bf16.xpose.msra.mxu0 0
    %7476 = vmatprep.subr.bf16.mxu0 0
    %7477 = vmatpush2.bf16.xpose.msra.mxu0 0
    %7478 = vmatprep.mubr.bf16.mxu0 0
    %7479 = vmatmul.mubr.bf16.gmra.mxu0 %v7441
    %v7480 = vpop.f32.mrf.mxu0
    %v7481 = vadd.f32 0.0, %v7480
    %v7482 = vpop.f32.mrf.mxu0
    %v7483 = vpop.f32.mrf.mxu0
    %v7484 = vpop.f32.mrf.mxu0
    %7485 = vdwg.mxu0
    %v7486 = vmul.f32 %v6791, 0.25
    %v7487 = vmul.f32 %v6837, 0.25
    %v7488 = vmul.f32 %v6883, 0.25
    %v7489 = vmul.f32 %v6929, 0.25
    %v7490 = vmul.f32 %v6975, 0.25
    %v7491 = vmul.f32 %v7021, 0.25
    %v7492 = vmul.f32 %v7067, 0.25
    %v7493 = vmul.f32 %v7113, 0.25
    %v7494 = vmul.f32 %v7159, 0.25
    %v7495 = vmul.f32 %v7205, 0.25
    %v7496 = vmul.f32 %v7251, 0.25
    %v7497 = vmul.f32 %v7297, 0.25
    %v7498 = vmul.f32 %v7343, 0.25
    %v7499 = vmul.f32 %v7389, 0.25
    %v7500 = vmul.f32 %v7435, 0.25
    %v7501 = vmul.f32 %v7481, 0.25
    %v7502 = vsel %vm2949, %v7486, -inf
    %7503 = vmax.xlane.f32.xlu0 %v7502
    %v7504 = vpop.xlane.xlu0 %7503
    %v7505 = vsel %vm2949, %v7487, -inf
    %7506 = vmax.xlane.f32.xlu0 %v7505
    %v7507 = vpop.xlane.xlu0 %7506
    %v7508 = vsel %vm2949, %v7488, -inf
    %7509 = vmax.xlane.f32.xlu0 %v7508
    %v7510 = vpop.xlane.xlu0 %7509
    %v7511 = vsel %vm2949, %v7489, -inf
    %7512 = vmax.xlane.f32.xlu0 %v7511
    %v7513 = vpop.xlane.xlu0 %7512
    %v7514 = vsel %vm2949, %v7490, -inf
    %7515 = vmax.xlane.f32.xlu0 %v7514
    %v7516 = vpop.xlane.xlu0 %7515
    %v7517 = vsel %vm2949, %v7491, -inf
    %7518 = vmax.xlane.f32.xlu0 %v7517
    %v7519 = vpop.xlane.xlu0 %7518
    %v7520 = vsel %vm2949, %v7492, -inf
    %7521 = vmax.xlane.f32.xlu0 %v7520
    %v7522 = vpop.xlane.xlu0 %7521
    %v7523 = vsel %vm2949, %v7493, -inf
    %7524 = vmax.xlane.f32.xlu0 %v7523
    %v7525 = vpop.xlane.xlu0 %7524
    %v7526 = vsel %vm2949, %v7494, -inf
    %7527 = vmax.xlane.f32.xlu0 %v7526
    %v7528 = vpop.xlane.xlu0 %7527
    %v7529 = vsel %vm2949, %v7495, -inf
    %7530 = vmax.xlane.f32.xlu0 %v7529
    %v7531 = vpop.xlane.xlu0 %7530
    %v7532 = vsel %vm2949, %v7496, -inf
    %7533 = vmax.xlane.f32.xlu0 %v7532
    %v7534 = vpop.xlane.xlu0 %7533
    %v7535 = vsel %vm2949, %v7497, -inf
    %7536 = vmax.xlane.f32.xlu0 %v7535
    %v7537 = vpop.xlane.xlu0 %7536
    %v7538 = vsel %vm2949, %v7498, -inf
    %7539 = vmax.xlane.f32.xlu0 %v7538
    %v7540 = vpop.xlane.xlu0 %7539
    %v7541 = vsel %vm2949, %v7499, -inf
    %7542 = vmax.xlane.f32.xlu0 %v7541
    %v7543 = vpop.xlane.xlu0 %7542
    %v7544 = vsel %vm2949, %v7500, -inf
    %7545 = vmax.xlane.f32.xlu0 %v7544
    %v7546 = vpop.xlane.xlu0 %7545
    %v7547 = vsel %vm2949, %v7501, -inf
    %7548 = vmax.xlane.f32.xlu0 %v7547
    %v7549 = vpop.xlane.xlu0 %7548
    %v7550 = vsub.f32 %v7486, %v7504
    %v7551 = vsub.f32 %v7487, %v7507
    %v7552 = vsub.f32 %v7488, %v7510
    %v7553 = vsub.f32 %v7489, %v7513
    %v7554 = vsub.f32 %v7490, %v7516
    %v7555 = vsub.f32 %v7491, %v7519
    %v7556 = vsub.f32 %v7492, %v7522
    %v7557 = vsub.f32 %v7493, %v7525
    %v7558 = vsub.f32 %v7494, %v7528
    %v7559 = vsub.f32 %v7495, %v7531
    %v7560 = vsub.f32 %v7496, %v7534
    %v7561 = vsub.f32 %v7497, %v7537
    %v7562 = vsub.f32 %v7498, %v7540
    %v7563 = vsub.f32 %v7499, %v7543
    %v7564 = vsub.f32 %v7500, %v7546
    %v7565 = vsub.f32 %v7501, %v7549
    %v7566 = vmul.f32 %v7550, 1.442695
    %v7567 = vpow.pop %v7566
    %v7568 = vmul.f32 %v7551, 1.442695
    %v7569 = vpow.pop %v7568
    %v7570 = vmul.f32 %v7552, 1.442695
    %v7571 = vpow.pop %v7570
    %v7572 = vmul.f32 %v7553, 1.442695
    %v7573 = vpow.pop %v7572
    %v7574 = vmul.f32 %v7554, 1.442695
    %v7575 = vpow.pop %v7574
    %v7576 = vmul.f32 %v7555, 1.442695
    %v7577 = vpow.pop %v7576
    %v7578 = vmul.f32 %v7556, 1.442695
    %v7579 = vpow.pop %v7578
    %v7580 = vmul.f32 %v7557, 1.442695
    %v7581 = vpow.pop %v7580
    %v7582 = vmul.f32 %v7558, 1.442695
    %v7583 = vpow.pop %v7582
    %v7584 = vmul.f32 %v7559, 1.442695
    %v7585 = vpow.pop %v7584
    %v7586 = vmul.f32 %v7560, 1.442695
    %v7587 = vpow.pop %v7586
    %v7588 = vmul.f32 %v7561, 1.442695
    %v7589 = vpow.pop %v7588
    %v7590 = vmul.f32 %v7562, 1.442695
    %v7591 = vpow.pop %v7590
    %v7592 = vmul.f32 %v7563, 1.442695
    %v7593 = vpow.pop %v7592
    %v7594 = vmul.f32 %v7564, 1.442695
    %v7595 = vpow.pop %v7594
    %v7596 = vmul.f32 %v7565, 1.442695
    %v7597 = vpow.pop %v7596
    %v7598 = vsel %vm2949, %v7567, 0.0
    %7599 = vadd.xlane.f32.xlu0 %v7598
    %v7600 = vpop.xlane.xlu0 %7599
    %v7601 = vsel %vm2949, %v7569, 0.0
    %7602 = vadd.xlane.f32.xlu0 %v7601
    %v7603 = vpop.xlane.xlu0 %7602
    %v7604 = vsel %vm2949, %v7571, 0.0
    %7605 = vadd.xlane.f32.xlu0 %v7604
    %v7606 = vpop.xlane.xlu0 %7605
    %v7607 = vsel %vm2949, %v7573, 0.0
    %7608 = vadd.xlane.f32.xlu0 %v7607
    %v7609 = vpop.xlane.xlu0 %7608
    %v7610 = vsel %vm2949, %v7575, 0.0
    %7611 = vadd.xlane.f32.xlu0 %v7610
    %v7612 = vpop.xlane.xlu0 %7611
    %v7613 = vsel %vm2949, %v7577, 0.0
    %7614 = vadd.xlane.f32.xlu0 %v7613
    %v7615 = vpop.xlane.xlu0 %7614
    %v7616 = vsel %vm2949, %v7579, 0.0
    %7617 = vadd.xlane.f32.xlu0 %v7616
    %v7618 = vpop.xlane.xlu0 %7617
    %v7619 = vsel %vm2949, %v7581, 0.0
    %7620 = vadd.xlane.f32.xlu0 %v7619
    %v7621 = vpop.xlane.xlu0 %7620
    %v7622 = vsel %vm2949, %v7583, 0.0
    %7623 = vadd.xlane.f32.xlu0 %v7622
    %v7624 = vpop.xlane.xlu0 %7623
    %v7625 = vsel %vm2949, %v7585, 0.0
    %7626 = vadd.xlane.f32.xlu0 %v7625
    %v7627 = vpop.xlane.xlu0 %7626
    %v7628 = vsel %vm2949, %v7587, 0.0
    %7629 = vadd.xlane.f32.xlu0 %v7628
    %v7630 = vpop.xlane.xlu0 %7629
    %v7631 = vsel %vm2949, %v7589, 0.0
    %7632 = vadd.xlane.f32.xlu0 %v7631
    %v7633 = vpop.xlane.xlu0 %7632
    %v7634 = vsel %vm2949, %v7591, 0.0
    %7635 = vadd.xlane.f32.xlu0 %v7634
    %v7636 = vpop.xlane.xlu0 %7635
    %v7637 = vsel %vm2949, %v7593, 0.0
    %7638 = vadd.xlane.f32.xlu0 %v7637
    %v7639 = vpop.xlane.xlu0 %7638
    %v7640 = vsel %vm2949, %v7595, 0.0
    %7641 = vadd.xlane.f32.xlu0 %v7640
    %v7642 = vpop.xlane.xlu0 %7641
    %v7643 = vsel %vm2949, %v7597, 0.0
    %7644 = vadd.xlane.f32.xlu0 %v7643
    %v7645 = vpop.xlane.xlu0 %7644
    %v7646 = vrcp.pop %v7600
    %v7647 = vrcp.pop %v7603
    %v7648 = vrcp.pop %v7606
    %v7649 = vrcp.pop %v7609
    %v7650 = vrcp.pop %v7612
    %v7651 = vrcp.pop %v7615
    %v7652 = vrcp.pop %v7618
    %v7653 = vrcp.pop %v7621
    %v7654 = vrcp.pop %v7624
    %v7655 = vrcp.pop %v7627
    %v7656 = vrcp.pop %v7630
    %v7657 = vrcp.pop %v7633
    %v7658 = vrcp.pop %v7636
    %v7659 = vrcp.pop %v7639
    %v7660 = vrcp.pop %v7642
    %v7661 = vrcp.pop %v7645
    %v7662 = vmul.f32 %v7567, %v7646
    %v7663 = vmul.f32 %v7569, %v7647
    %v7664 = vmul.f32 %v7571, %v7648
    %v7665 = vmul.f32 %v7573, %v7649
    %v7666 = vmul.f32 %v7575, %v7650
    %v7667 = vmul.f32 %v7577, %v7651
    %v7668 = vmul.f32 %v7579, %v7652
    %v7669 = vmul.f32 %v7581, %v7653
    %v7670 = vmul.f32 %v7583, %v7654
    %v7671 = vmul.f32 %v7585, %v7655
    %v7672 = vmul.f32 %v7587, %v7656
    %v7673 = vmul.f32 %v7589, %v7657
    %v7674 = vmul.f32 %v7591, %v7658
    %v7675 = vmul.f32 %v7593, %v7659
    %v7676 = vmul.f32 %v7595, %v7660
    %v7677 = vmul.f32 %v7597, %v7661
    %v7678 = vpack.c.bf16 %v7662, %v7662
    %v7679 = vpack.c.bf16 %v7663, %v7663
    %v7680 = vpack.c.bf16 %v7664, %v7664
    %v7681 = vpack.c.bf16 %v7665, %v7665
    %v7682 = vpack.c.bf16 %v7666, %v7666
    %v7683 = vpack.c.bf16 %v7667, %v7667
    %v7684 = vpack.c.bf16 %v7668, %v7668
    %v7685 = vpack.c.bf16 %v7669, %v7669
    %v7686 = vpack.c.bf16 %v7670, %v7670
    %v7687 = vpack.c.bf16 %v7671, %v7671
    %v7688 = vpack.c.bf16 %v7672, %v7672
    %v7689 = vpack.c.bf16 %v7673, %v7673
    %v7690 = vpack.c.bf16 %v7674, %v7674
    %v7691 = vpack.c.bf16 %v7675, %v7675
    %v7692 = vpack.c.bf16 %v7676, %v7676
    %v7693 = vpack.c.bf16 %v7677, %v7677
    %v7695 = vsel %vm2949, %v7678, 0
    %v7698 = vsel %vm3145, %v6720, 0
    %7700 = vmatprep.subr.bf16.mxu0 0
    %7701 = vmatpush1.bf16.msra.mxu0 0
    %7702 = vmatprep.subr.bf16.mxu0 0
    %7703 = vmatpush1.bf16.msra.mxu0 0
    %7704 = vmatprep.subr.bf16.mxu0 0
    %7705 = vmatpush1.bf16.msra.mxu0 0
    %7706 = vmatprep.subr.bf16.mxu0 0
    %7707 = vmatpush1.bf16.msra.mxu0 0
    %7708 = vmatprep.subr.bf16.mxu0 0
    %7709 = vmatpush1.bf16.msra.mxu0 0
    %7710 = vmatprep.subr.bf16.mxu0 0
    %7711 = vmatpush1.bf16.msra.mxu0 0
    %7712 = vmatprep.subr.bf16.mxu0 0
    %7713 = vmatpush1.bf16.msra.mxu0 0
    %7714 = vmatprep.subr.bf16.mxu0 0
    %7715 = vmatpush1.bf16.msra.mxu0 %v7698
    %7716 = vmatprep.subr.bf16.mxu0 0
    %7717 = vmatpush2.bf16.msra.mxu0 0
    %7718 = vmatprep.subr.bf16.mxu0 0
    %7719 = vmatpush2.bf16.msra.mxu0 0
    %7720 = vmatprep.subr.bf16.mxu0 0
    %7721 = vmatpush2.bf16.msra.mxu0 0
    %7722 = vmatprep.subr.bf16.mxu0 0
    %7723 = vmatpush2.bf16.msra.mxu0 0
    %7724 = vmatprep.subr.bf16.mxu0 0
    %7725 = vmatpush2.bf16.msra.mxu0 0
    %7726 = vmatprep.subr.bf16.mxu0 0
    %7727 = vmatpush2.bf16.msra.mxu0 0
    %7728 = vmatprep.subr.bf16.mxu0 0
    %7729 = vmatpush2.bf16.msra.mxu0 0
    %7730 = vmatprep.subr.bf16.mxu0 0
    %7731 = vmatpush2.bf16.msra.mxu0 0
    %7732 = vmatprep.mubr.bf16.mxu0 0
    %7733 = vmatmul.mubr.bf16.gmra.mxu0 %v7695
    %v7734 = vpop.f32.mrf.mxu0
    %v7735 = vadd.f32 0.0, %v7734
    %v7736 = vpop.f32.mrf.mxu0
    %v7737 = vpop.f32.mrf.mxu0
    %v7738 = vpop.f32.mrf.mxu0
    %7739 = vdwg.mxu0
    %v7741 = vsel %vm2949, %v7679, 0
    %v7744 = vsel %vm3145, %v6721, 0
    %7746 = vmatprep.subr.bf16.mxu0 0
    %7747 = vmatpush1.bf16.msra.mxu0 0
    %7748 = vmatprep.subr.bf16.mxu0 0
    %7749 = vmatpush1.bf16.msra.mxu0 0
    %7750 = vmatprep.subr.bf16.mxu0 0
    %7751 = vmatpush1.bf16.msra.mxu0 0
    %7752 = vmatprep.subr.bf16.mxu0 0
    %7753 = vmatpush1.bf16.msra.mxu0 0
    %7754 = vmatprep.subr.bf16.mxu0 0
    %7755 = vmatpush1.bf16.msra.mxu0 0
    %7756 = vmatprep.subr.bf16.mxu0 0
    %7757 = vmatpush1.bf16.msra.mxu0 0
    %7758 = vmatprep.subr.bf16.mxu0 0
    %7759 = vmatpush1.bf16.msra.mxu0 0
    %7760 = vmatprep.subr.bf16.mxu0 0
    %7761 = vmatpush1.bf16.msra.mxu0 %v7744
    %7762 = vmatprep.subr.bf16.mxu0 0
    %7763 = vmatpush2.bf16.msra.mxu0 0
    %7764 = vmatprep.subr.bf16.mxu0 0
    %7765 = vmatpush2.bf16.msra.mxu0 0
    %7766 = vmatprep.subr.bf16.mxu0 0
    %7767 = vmatpush2.bf16.msra.mxu0 0
    %7768 = vmatprep.subr.bf16.mxu0 0
    %7769 = vmatpush2.bf16.msra.mxu0 0
    %7770 = vmatprep.subr.bf16.mxu0 0
    %7771 = vmatpush2.bf16.msra.mxu0 0
    %7772 = vmatprep.subr.bf16.mxu0 0
    %7773 = vmatpush2.bf16.msra.mxu0 0
    %7774 = vmatprep.subr.bf16.mxu0 0
    %7775 = vmatpush2.bf16.msra.mxu0 0
    %7776 = vmatprep.subr.bf16.mxu0 0
    %7777 = vmatpush2.bf16.msra.mxu0 0
    %7778 = vmatprep.mubr.bf16.mxu0 0
    %7779 = vmatmul.mubr.bf16.gmra.mxu0 %v7741
    %v7780 = vpop.f32.mrf.mxu0
    %v7781 = vadd.f32 0.0, %v7780
    %v7782 = vpop.f32.mrf.mxu0
    %v7783 = vpop.f32.mrf.mxu0
    %v7784 = vpop.f32.mrf.mxu0
    %7785 = vdwg.mxu0
    %v7787 = vsel %vm2949, %v7680, 0
    %v7790 = vsel %vm3145, %v6723, 0
    %7792 = vmatprep.subr.bf16.mxu0 0
    %7793 = vmatpush1.bf16.msra.mxu0 0
    %7794 = vmatprep.subr.bf16.mxu0 0
    %7795 = vmatpush1.bf16.msra.mxu0 0
    %7796 = vmatprep.subr.bf16.mxu0 0
    %7797 = vmatpush1.bf16.msra.mxu0 0
    %7798 = vmatprep.subr.bf16.mxu0 0
    %7799 = vmatpush1.bf16.msra.mxu0 0
    %7800 = vmatprep.subr.bf16.mxu0 0
    %7801 = vmatpush1.bf16.msra.mxu0 0
    %7802 = vmatprep.subr.bf16.mxu0 0
    %7803 = vmatpush1.bf16.msra.mxu0 0
    %7804 = vmatprep.subr.bf16.mxu0 0
    %7805 = vmatpush1.bf16.msra.mxu0 0
    %7806 = vmatprep.subr.bf16.mxu0 0
    %7807 = vmatpush1.bf16.msra.mxu0 %v7790
    %7808 = vmatprep.subr.bf16.mxu0 0
    %7809 = vmatpush2.bf16.msra.mxu0 0
    %7810 = vmatprep.subr.bf16.mxu0 0
    %7811 = vmatpush2.bf16.msra.mxu0 0
    %7812 = vmatprep.subr.bf16.mxu0 0
    %7813 = vmatpush2.bf16.msra.mxu0 0
    %7814 = vmatprep.subr.bf16.mxu0 0
    %7815 = vmatpush2.bf16.msra.mxu0 0
    %7816 = vmatprep.subr.bf16.mxu0 0
    %7817 = vmatpush2.bf16.msra.mxu0 0
    %7818 = vmatprep.subr.bf16.mxu0 0
    %7819 = vmatpush2.bf16.msra.mxu0 0
    %7820 = vmatprep.subr.bf16.mxu0 0
    %7821 = vmatpush2.bf16.msra.mxu0 0
    %7822 = vmatprep.subr.bf16.mxu0 0
    %7823 = vmatpush2.bf16.msra.mxu0 0
    %7824 = vmatprep.mubr.bf16.mxu0 0
    %7825 = vmatmul.mubr.bf16.gmra.mxu0 %v7787
    %v7826 = vpop.f32.mrf.mxu0
    %v7827 = vadd.f32 0.0, %v7826
    %v7828 = vpop.f32.mrf.mxu0
    %v7829 = vpop.f32.mrf.mxu0
    %v7830 = vpop.f32.mrf.mxu0
    %7831 = vdwg.mxu0
    %v7833 = vsel %vm2949, %v7681, 0
    %v7836 = vsel %vm3145, %v6725, 0
    %7838 = vmatprep.subr.bf16.mxu0 0
    %7839 = vmatpush1.bf16.msra.mxu0 0
    %7840 = vmatprep.subr.bf16.mxu0 0
    %7841 = vmatpush1.bf16.msra.mxu0 0
    %7842 = vmatprep.subr.bf16.mxu0 0
    %7843 = vmatpush1.bf16.msra.mxu0 0
    %7844 = vmatprep.subr.bf16.mxu0 0
    %7845 = vmatpush1.bf16.msra.mxu0 0
    %7846 = vmatprep.subr.bf16.mxu0 0
    %7847 = vmatpush1.bf16.msra.mxu0 0
    %7848 = vmatprep.subr.bf16.mxu0 0
    %7849 = vmatpush1.bf16.msra.mxu0 0
    %7850 = vmatprep.subr.bf16.mxu0 0
    %7851 = vmatpush1.bf16.msra.mxu0 0
    %7852 = vmatprep.subr.bf16.mxu0 0
    %7853 = vmatpush1.bf16.msra.mxu0 %v7836
    %7854 = vmatprep.subr.bf16.mxu0 0
    %7855 = vmatpush2.bf16.msra.mxu0 0
    %7856 = vmatprep.subr.bf16.mxu0 0
    %7857 = vmatpush2.bf16.msra.mxu0 0
    %7858 = vmatprep.subr.bf16.mxu0 0
    %7859 = vmatpush2.bf16.msra.mxu0 0
    %7860 = vmatprep.subr.bf16.mxu0 0
    %7861 = vmatpush2.bf16.msra.mxu0 0
    %7862 = vmatprep.subr.bf16.mxu0 0
    %7863 = vmatpush2.bf16.msra.mxu0 0
    %7864 = vmatprep.subr.bf16.mxu0 0
    %7865 = vmatpush2.bf16.msra.mxu0 0
    %7866 = vmatprep.subr.bf16.mxu0 0
    %7867 = vmatpush2.bf16.msra.mxu0 0
    %7868 = vmatprep.subr.bf16.mxu0 0
    %7869 = vmatpush2.bf16.msra.mxu0 0
    %7870 = vmatprep.mubr.bf16.mxu0 0
    %7871 = vmatmul.mubr.bf16.gmra.mxu0 %v7833
    %v7872 = vpop.f32.mrf.mxu0
    %v7873 = vadd.f32 0.0, %v7872
    %v7874 = vpop.f32.mrf.mxu0
    %v7875 = vpop.f32.mrf.mxu0
    %v7876 = vpop.f32.mrf.mxu0
    %7877 = vdwg.mxu0
    %v7879 = vsel %vm2949, %v7682, 0
    %v7882 = vsel %vm3145, %v6727, 0
    %7884 = vmatprep.subr.bf16.mxu0 0
    %7885 = vmatpush1.bf16.msra.mxu0 0
    %7886 = vmatprep.subr.bf16.mxu0 0
    %7887 = vmatpush1.bf16.msra.mxu0 0
    %7888 = vmatprep.subr.bf16.mxu0 0
    %7889 = vmatpush1.bf16.msra.mxu0 0
    %7890 = vmatprep.subr.bf16.mxu0 0
    %7891 = vmatpush1.bf16.msra.mxu0 0
    %7892 = vmatprep.subr.bf16.mxu0 0
    %7893 = vmatpush1.bf16.msra.mxu0 0
    %7894 = vmatprep.subr.bf16.mxu0 0
    %7895 = vmatpush1.bf16.msra.mxu0 0
    %7896 = vmatprep.subr.bf16.mxu0 0
    %7897 = vmatpush1.bf16.msra.mxu0 0
    %7898 = vmatprep.subr.bf16.mxu0 0
    %7899 = vmatpush1.bf16.msra.mxu0 %v7882
    %7900 = vmatprep.subr.bf16.mxu0 0
    %7901 = vmatpush2.bf16.msra.mxu0 0
    %7902 = vmatprep.subr.bf16.mxu0 0
    %7903 = vmatpush2.bf16.msra.mxu0 0
    %7904 = vmatprep.subr.bf16.mxu0 0
    %7905 = vmatpush2.bf16.msra.mxu0 0
    %7906 = vmatprep.subr.bf16.mxu0 0
    %7907 = vmatpush2.bf16.msra.mxu0 0
    %7908 = vmatprep.subr.bf16.mxu0 0
    %7909 = vmatpush2.bf16.msra.mxu0 0
    %7910 = vmatprep.subr.bf16.mxu0 0
    %7911 = vmatpush2.bf16.msra.mxu0 0
    %7912 = vmatprep.subr.bf16.mxu0 0
    %7913 = vmatpush2.bf16.msra.mxu0 0
    %7914 = vmatprep.subr.bf16.mxu0 0
    %7915 = vmatpush2.bf16.msra.mxu0 0
    %7916 = vmatprep.mubr.bf16.mxu0 0
    %7917 = vmatmul.mubr.bf16.gmra.mxu0 %v7879
    %v7918 = vpop.f32.mrf.mxu0
    %v7919 = vadd.f32 0.0, %v7918
    %v7920 = vpop.f32.mrf.mxu0
    %v7921 = vpop.f32.mrf.mxu0
    %v7922 = vpop.f32.mrf.mxu0
    %7923 = vdwg.mxu0
    %v7925 = vsel %vm2949, %v7683, 0
    %v7928 = vsel %vm3145, %v6729, 0
    %7930 = vmatprep.subr.bf16.mxu0 0
    %7931 = vmatpush1.bf16.msra.mxu0 0
    %7932 = vmatprep.subr.bf16.mxu0 0
    %7933 = vmatpush1.bf16.msra.mxu0 0
    %7934 = vmatprep.subr.bf16.mxu0 0
    %7935 = vmatpush1.bf16.msra.mxu0 0
    %7936 = vmatprep.subr.bf16.mxu0 0
    %7937 = vmatpush1.bf16.msra.mxu0 0
    %7938 = vmatprep.subr.bf16.mxu0 0
    %7939 = vmatpush1.bf16.msra.mxu0 0
    %7940 = vmatprep.subr.bf16.mxu0 0
    %7941 = vmatpush1.bf16.msra.mxu0 0
    %7942 = vmatprep.subr.bf16.mxu0 0
    %7943 = vmatpush1.bf16.msra.mxu0 0
    %7944 = vmatprep.subr.bf16.mxu0 0
    %7945 = vmatpush1.bf16.msra.mxu0 %v7928
    %7946 = vmatprep.subr.bf16.mxu0 0
    %7947 = vmatpush2.bf16.msra.mxu0 0
    %7948 = vmatprep.subr.bf16.mxu0 0
    %7949 = vmatpush2.bf16.msra.mxu0 0
    %7950 = vmatprep.subr.bf16.mxu0 0
    %7951 = vmatpush2.bf16.msra.mxu0 0
    %7952 = vmatprep.subr.bf16.mxu0 0
    %7953 = vmatpush2.bf16.msra.mxu0 0
    %7954 = vmatprep.subr.bf16.mxu0 0
    %7955 = vmatpush2.bf16.msra.mxu0 0
    %7956 = vmatprep.subr.bf16.mxu0 0
    %7957 = vmatpush2.bf16.msra.mxu0 0
    %7958 = vmatprep.subr.bf16.mxu0 0
    %7959 = vmatpush2.bf16.msra.mxu0 0
    %7960 = vmatprep.subr.bf16.mxu0 0
    %7961 = vmatpush2.bf16.msra.mxu0 0
    %7962 = vmatprep.mubr.bf16.mxu0 0
    %7963 = vmatmul.mubr.bf16.gmra.mxu0 %v7925
    %v7964 = vpop.f32.mrf.mxu0
    %v7965 = vadd.f32 0.0, %v7964
    %v7966 = vpop.f32.mrf.mxu0
    %v7967 = vpop.f32.mrf.mxu0
    %v7968 = vpop.f32.mrf.mxu0
    %7969 = vdwg.mxu0
    %v7971 = vsel %vm2949, %v7684, 0
    %v7974 = vsel %vm3145, %v6731, 0
    %7976 = vmatprep.subr.bf16.mxu0 0
    %7977 = vmatpush1.bf16.msra.mxu0 0
    %7978 = vmatprep.subr.bf16.mxu0 0
    %7979 = vmatpush1.bf16.msra.mxu0 0
    %7980 = vmatprep.subr.bf16.mxu0 0
    %7981 = vmatpush1.bf16.msra.mxu0 0
    %7982 = vmatprep.subr.bf16.mxu0 0
    %7983 = vmatpush1.bf16.msra.mxu0 0
    %7984 = vmatprep.subr.bf16.mxu0 0
    %7985 = vmatpush1.bf16.msra.mxu0 0
    %7986 = vmatprep.subr.bf16.mxu0 0
    %7987 = vmatpush1.bf16.msra.mxu0 0
    %7988 = vmatprep.subr.bf16.mxu0 0
    %7989 = vmatpush1.bf16.msra.mxu0 0
    %7990 = vmatprep.subr.bf16.mxu0 0
    %7991 = vmatpush1.bf16.msra.mxu0 %v7974
    %7992 = vmatprep.subr.bf16.mxu0 0
    %7993 = vmatpush2.bf16.msra.mxu0 0
    %7994 = vmatprep.subr.bf16.mxu0 0
    %7995 = vmatpush2.bf16.msra.mxu0 0
    %7996 = vmatprep.subr.bf16.mxu0 0
    %7997 = vmatpush2.bf16.msra.mxu0 0
    %7998 = vmatprep.subr.bf16.mxu0 0
    %7999 = vmatpush2.bf16.msra.mxu0 0
    %8000 = vmatprep.subr.bf16.mxu0 0
    %8001 = vmatpush2.bf16.msra.mxu0 0
    %8002 = vmatprep.subr.bf16.mxu0 0
    %8003 = vmatpush2.bf16.msra.mxu0 0
    %8004 = vmatprep.subr.bf16.mxu0 0
    %8005 = vmatpush2.bf16.msra.mxu0 0
    %8006 = vmatprep.subr.bf16.mxu0 0
    %8007 = vmatpush2.bf16.msra.mxu0 0
    %8008 = vmatprep.mubr.bf16.mxu0 0
    %8009 = vmatmul.mubr.bf16.gmra.mxu0 %v7971
    %v8010 = vpop.f32.mrf.mxu0
    %v8011 = vadd.f32 0.0, %v8010
    %v8012 = vpop.f32.mrf.mxu0
    %v8013 = vpop.f32.mrf.mxu0
    %v8014 = vpop.f32.mrf.mxu0
    %8015 = vdwg.mxu0
    %v8017 = vsel %vm2949, %v7685, 0
    %v8020 = vsel %vm3145, %v6733, 0
    %8022 = vmatprep.subr.bf16.mxu0 0
    %8023 = vmatpush1.bf16.msra.mxu0 0
    %8024 = vmatprep.subr.bf16.mxu0 0
    %8025 = vmatpush1.bf16.msra.mxu0 0
    %8026 = vmatprep.subr.bf16.mxu0 0
    %8027 = vmatpush1.bf16.msra.mxu0 0
    %8028 = vmatprep.subr.bf16.mxu0 0
    %8029 = vmatpush1.bf16.msra.mxu0 0
    %8030 = vmatprep.subr.bf16.mxu0 0
    %8031 = vmatpush1.bf16.msra.mxu0 0
    %8032 = vmatprep.subr.bf16.mxu0 0
    %8033 = vmatpush1.bf16.msra.mxu0 0
    %8034 = vmatprep.subr.bf16.mxu0 0
    %8035 = vmatpush1.bf16.msra.mxu0 0
    %8036 = vmatprep.subr.bf16.mxu0 0
    %8037 = vmatpush1.bf16.msra.mxu0 %v8020
    %8038 = vmatprep.subr.bf16.mxu0 0
    %8039 = vmatpush2.bf16.msra.mxu0 0
    %8040 = vmatprep.subr.bf16.mxu0 0
    %8041 = vmatpush2.bf16.msra.mxu0 0
    %8042 = vmatprep.subr.bf16.mxu0 0
    %8043 = vmatpush2.bf16.msra.mxu0 0
    %8044 = vmatprep.subr.bf16.mxu0 0
    %8045 = vmatpush2.bf16.msra.mxu0 0
    %8046 = vmatprep.subr.bf16.mxu0 0
    %8047 = vmatpush2.bf16.msra.mxu0 0
    %8048 = vmatprep.subr.bf16.mxu0 0
    %8049 = vmatpush2.bf16.msra.mxu0 0
    %8050 = vmatprep.subr.bf16.mxu0 0
    %8051 = vmatpush2.bf16.msra.mxu0 0
    %8052 = vmatprep.subr.bf16.mxu0 0
    %8053 = vmatpush2.bf16.msra.mxu0 0
    %8054 = vmatprep.mubr.bf16.mxu0 0
    %8055 = vmatmul.mubr.bf16.gmra.mxu0 %v8017
    %v8056 = vpop.f32.mrf.mxu0
    %v8057 = vadd.f32 0.0, %v8056
    %v8058 = vpop.f32.mrf.mxu0
    %v8059 = vpop.f32.mrf.mxu0
    %v8060 = vpop.f32.mrf.mxu0
    %8061 = vdwg.mxu0
    %v8063 = vsel %vm2949, %v7686, 0
    %v8066 = vsel %vm3145, %v6735, 0
    %8068 = vmatprep.subr.bf16.mxu0 0
    %8069 = vmatpush1.bf16.msra.mxu0 0
    %8070 = vmatprep.subr.bf16.mxu0 0
    %8071 = vmatpush1.bf16.msra.mxu0 0
    %8072 = vmatprep.subr.bf16.mxu0 0
    %8073 = vmatpush1.bf16.msra.mxu0 0
    %8074 = vmatprep.subr.bf16.mxu0 0
    %8075 = vmatpush1.bf16.msra.mxu0 0
    %8076 = vmatprep.subr.bf16.mxu0 0
    %8077 = vmatpush1.bf16.msra.mxu0 0
    %8078 = vmatprep.subr.bf16.mxu0 0
    %8079 = vmatpush1.bf16.msra.mxu0 0
    %8080 = vmatprep.subr.bf16.mxu0 0
    %8081 = vmatpush1.bf16.msra.mxu0 0
    %8082 = vmatprep.subr.bf16.mxu0 0
    %8083 = vmatpush1.bf16.msra.mxu0 %v8066
    %8084 = vmatprep.subr.bf16.mxu0 0
    %8085 = vmatpush2.bf16.msra.mxu0 0
    %8086 = vmatprep.subr.bf16.mxu0 0
    %8087 = vmatpush2.bf16.msra.mxu0 0
    %8088 = vmatprep.subr.bf16.mxu0 0
    %8089 = vmatpush2.bf16.msra.mxu0 0
    %8090 = vmatprep.subr.bf16.mxu0 0
    %8091 = vmatpush2.bf16.msra.mxu0 0
    %8092 = vmatprep.subr.bf16.mxu0 0
    %8093 = vmatpush2.bf16.msra.mxu0 0
    %8094 = vmatprep.subr.bf16.mxu0 0
    %8095 = vmatpush2.bf16.msra.mxu0 0
    %8096 = vmatprep.subr.bf16.mxu0 0
    %8097 = vmatpush2.bf16.msra.mxu0 0
    %8098 = vmatprep.subr.bf16.mxu0 0
    %8099 = vmatpush2.bf16.msra.mxu0 0
    %8100 = vmatprep.mubr.bf16.mxu0 0
    %8101 = vmatmul.mubr.bf16.gmra.mxu0 %v8063
    %v8102 = vpop.f32.mrf.mxu0
    %v8103 = vadd.f32 0.0, %v8102
    %v8104 = vpop.f32.mrf.mxu0
    %v8105 = vpop.f32.mrf.mxu0
    %v8106 = vpop.f32.mrf.mxu0
    %8107 = vdwg.mxu0
    %v8109 = vsel %vm2949, %v7687, 0
    %v8112 = vsel %vm3145, %v6737, 0
    %8114 = vmatprep.subr.bf16.mxu0 0
    %8115 = vmatpush1.bf16.msra.mxu0 0
    %8116 = vmatprep.subr.bf16.mxu0 0
    %8117 = vmatpush1.bf16.msra.mxu0 0
    %8118 = vmatprep.subr.bf16.mxu0 0
    %8119 = vmatpush1.bf16.msra.mxu0 0
    %8120 = vmatprep.subr.bf16.mxu0 0
    %8121 = vmatpush1.bf16.msra.mxu0 0
    %8122 = vmatprep.subr.bf16.mxu0 0
    %8123 = vmatpush1.bf16.msra.mxu0 0
    %8124 = vmatprep.subr.bf16.mxu0 0
    %8125 = vmatpush1.bf16.msra.mxu0 0
    %8126 = vmatprep.subr.bf16.mxu0 0
    %8127 = vmatpush1.bf16.msra.mxu0 0
    %8128 = vmatprep.subr.bf16.mxu0 0
    %8129 = vmatpush1.bf16.msra.mxu0 %v8112
    %8130 = vmatprep.subr.bf16.mxu0 0
    %8131 = vmatpush2.bf16.msra.mxu0 0
    %8132 = vmatprep.subr.bf16.mxu0 0
    %8133 = vmatpush2.bf16.msra.mxu0 0
    %8134 = vmatprep.subr.bf16.mxu0 0
    %8135 = vmatpush2.bf16.msra.mxu0 0
    %8136 = vmatprep.subr.bf16.mxu0 0
    %8137 = vmatpush2.bf16.msra.mxu0 0
    %8138 = vmatprep.subr.bf16.mxu0 0
    %8139 = vmatpush2.bf16.msra.mxu0 0
    %8140 = vmatprep.subr.bf16.mxu0 0
    %8141 = vmatpush2.bf16.msra.mxu0 0
    %8142 = vmatprep.subr.bf16.mxu0 0
    %8143 = vmatpush2.bf16.msra.mxu0 0
    %8144 = vmatprep.subr.bf16.mxu0 0
    %8145 = vmatpush2.bf16.msra.mxu0 0
    %8146 = vmatprep.mubr.bf16.mxu0 0
    %8147 = vmatmul.mubr.bf16.gmra.mxu0 %v8109
    %v8148 = vpop.f32.mrf.mxu0
    %v8149 = vadd.f32 0.0, %v8148
    %v8150 = vpop.f32.mrf.mxu0
    %v8151 = vpop.f32.mrf.mxu0
    %v8152 = vpop.f32.mrf.mxu0
    %8153 = vdwg.mxu0
    %v8155 = vsel %vm2949, %v7688, 0
    %v8158 = vsel %vm3145, %v6739, 0
    %8160 = vmatprep.subr.bf16.mxu0 0
    %8161 = vmatpush1.bf16.msra.mxu0 0
    %8162 = vmatprep.subr.bf16.mxu0 0
    %8163 = vmatpush1.bf16.msra.mxu0 0
    %8164 = vmatprep.subr.bf16.mxu0 0
    %8165 = vmatpush1.bf16.msra.mxu0 0
    %8166 = vmatprep.subr.bf16.mxu0 0
    %8167 = vmatpush1.bf16.msra.mxu0 0
    %8168 = vmatprep.subr.bf16.mxu0 0
    %8169 = vmatpush1.bf16.msra.mxu0 0
    %8170 = vmatprep.subr.bf16.mxu0 0
    %8171 = vmatpush1.bf16.msra.mxu0 0
    %8172 = vmatprep.subr.bf16.mxu0 0
    %8173 = vmatpush1.bf16.msra.mxu0 0
    %8174 = vmatprep.subr.bf16.mxu0 0
    %8175 = vmatpush1.bf16.msra.mxu0 %v8158
    %8176 = vmatprep.subr.bf16.mxu0 0
    %8177 = vmatpush2.bf16.msra.mxu0 0
    %8178 = vmatprep.subr.bf16.mxu0 0
    %8179 = vmatpush2.bf16.msra.mxu0 0
    %8180 = vmatprep.subr.bf16.mxu0 0
    %8181 = vmatpush2.bf16.msra.mxu0 0
    %8182 = vmatprep.subr.bf16.mxu0 0
    %8183 = vmatpush2.bf16.msra.mxu0 0
    %8184 = vmatprep.subr.bf16.mxu0 0
    %8185 = vmatpush2.bf16.msra.mxu0 0
    %8186 = vmatprep.subr.bf16.mxu0 0
    %8187 = vmatpush2.bf16.msra.mxu0 0
    %8188 = vmatprep.subr.bf16.mxu0 0
    %8189 = vmatpush2.bf16.msra.mxu0 0
    %8190 = vmatprep.subr.bf16.mxu0 0
    %8191 = vmatpush2.bf16.msra.mxu0 0
    %8192 = vmatprep.mubr.bf16.mxu0 0
    %8193 = vmatmul.mubr.bf16.gmra.mxu0 %v8155
    %v8194 = vpop.f32.mrf.mxu0
    %v8195 = vadd.f32 0.0, %v8194
    %v8196 = vpop.f32.mrf.mxu0
    %v8197 = vpop.f32.mrf.mxu0
    %v8198 = vpop.f32.mrf.mxu0
    %8199 = vdwg.mxu0
    %v8201 = vsel %vm2949, %v7689, 0
    %v8204 = vsel %vm3145, %v6741, 0
    %8206 = vmatprep.subr.bf16.mxu0 0
    %8207 = vmatpush1.bf16.msra.mxu0 0
    %8208 = vmatprep.subr.bf16.mxu0 0
    %8209 = vmatpush1.bf16.msra.mxu0 0
    %8210 = vmatprep.subr.bf16.mxu0 0
    %8211 = vmatpush1.bf16.msra.mxu0 0
    %8212 = vmatprep.subr.bf16.mxu0 0
    %8213 = vmatpush1.bf16.msra.mxu0 0
    %8214 = vmatprep.subr.bf16.mxu0 0
    %8215 = vmatpush1.bf16.msra.mxu0 0
    %8216 = vmatprep.subr.bf16.mxu0 0
    %8217 = vmatpush1.bf16.msra.mxu0 0
    %8218 = vmatprep.subr.bf16.mxu0 0
    %8219 = vmatpush1.bf16.msra.mxu0 0
    %8220 = vmatprep.subr.bf16.mxu0 0
    %8221 = vmatpush1.bf16.msra.mxu0 %v8204
    %8222 = vmatprep.subr.bf16.mxu0 0
    %8223 = vmatpush2.bf16.msra.mxu0 0
    %8224 = vmatprep.subr.bf16.mxu0 0
    %8225 = vmatpush2.bf16.msra.mxu0 0
    %8226 = vmatprep.subr.bf16.mxu0 0
    %8227 = vmatpush2.bf16.msra.mxu0 0
    %8228 = vmatprep.subr.bf16.mxu0 0
    %8229 = vmatpush2.bf16.msra.mxu0 0
    %8230 = vmatprep.subr.bf16.mxu0 0
    %8231 = vmatpush2.bf16.msra.mxu0 0
    %8232 = vmatprep.subr.bf16.mxu0 0
    %8233 = vmatpush2.bf16.msra.mxu0 0
    %8234 = vmatprep.subr.bf16.mxu0 0
    %8235 = vmatpush2.bf16.msra.mxu0 0
    %8236 = vmatprep.subr.bf16.mxu0 0
    %8237 = vmatpush2.bf16.msra.mxu0 0
    %8238 = vmatprep.mubr.bf16.mxu0 0
    %8239 = vmatmul.mubr.bf16.gmra.mxu0 %v8201
    %v8240 = vpop.f32.mrf.mxu0
    %v8241 = vadd.f32 0.0, %v8240
    %v8242 = vpop.f32.mrf.mxu0
    %v8243 = vpop.f32.mrf.mxu0
    %v8244 = vpop.f32.mrf.mxu0
    %8245 = vdwg.mxu0
    %v8247 = vsel %vm2949, %v7690, 0
    %v8250 = vsel %vm3145, %v6743, 0
    %8252 = vmatprep.subr.bf16.mxu0 0
    %8253 = vmatpush1.bf16.msra.mxu0 0
    %8254 = vmatprep.subr.bf16.mxu0 0
    %8255 = vmatpush1.bf16.msra.mxu0 0
    %8256 = vmatprep.subr.bf16.mxu0 0
    %8257 = vmatpush1.bf16.msra.mxu0 0
    %8258 = vmatprep.subr.bf16.mxu0 0
    %8259 = vmatpush1.bf16.msra.mxu0 0
    %8260 = vmatprep.subr.bf16.mxu0 0
    %8261 = vmatpush1.bf16.msra.mxu0 0
    %8262 = vmatprep.subr.bf16.mxu0 0
    %8263 = vmatpush1.bf16.msra.mxu0 0
    %8264 = vmatprep.subr.bf16.mxu0 0
    %8265 = vmatpush1.bf16.msra.mxu0 0
    %8266 = vmatprep.subr.bf16.mxu0 0
    %8267 = vmatpush1.bf16.msra.mxu0 %v8250
    %8268 = vmatprep.subr.bf16.mxu0 0
    %8269 = vmatpush2.bf16.msra.mxu0 0
    %8270 = vmatprep.subr.bf16.mxu0 0
    %8271 = vmatpush2.bf16.msra.mxu0 0
    %8272 = vmatprep.subr.bf16.mxu0 0
    %8273 = vmatpush2.bf16.msra.mxu0 0
    %8274 = vmatprep.subr.bf16.mxu0 0
    %8275 = vmatpush2.bf16.msra.mxu0 0
    %8276 = vmatprep.subr.bf16.mxu0 0
    %8277 = vmatpush2.bf16.msra.mxu0 0
    %8278 = vmatprep.subr.bf16.mxu0 0
    %8279 = vmatpush2.bf16.msra.mxu0 0
    %8280 = vmatprep.subr.bf16.mxu0 0
    %8281 = vmatpush2.bf16.msra.mxu0 0
    %8282 = vmatprep.subr.bf16.mxu0 0
    %8283 = vmatpush2.bf16.msra.mxu0 0
    %8284 = vmatprep.mubr.bf16.mxu0 0
    %8285 = vmatmul.mubr.bf16.gmra.mxu0 %v8247
    %v8286 = vpop.f32.mrf.mxu0
    %v8287 = vadd.f32 0.0, %v8286
    %v8288 = vpop.f32.mrf.mxu0
    %v8289 = vpop.f32.mrf.mxu0
    %v8290 = vpop.f32.mrf.mxu0
    %8291 = vdwg.mxu0
    %v8293 = vsel %vm2949, %v7691, 0
    %v8296 = vsel %vm3145, %v6745, 0
    %8298 = vmatprep.subr.bf16.mxu0 0
    %8299 = vmatpush1.bf16.msra.mxu0 0
    %8300 = vmatprep.subr.bf16.mxu0 0
    %8301 = vmatpush1.bf16.msra.mxu0 0
    %8302 = vmatprep.subr.bf16.mxu0 0
    %8303 = vmatpush1.bf16.msra.mxu0 0
    %8304 = vmatprep.subr.bf16.mxu0 0
    %8305 = vmatpush1.bf16.msra.mxu0 0
    %8306 = vmatprep.subr.bf16.mxu0 0
    %8307 = vmatpush1.bf16.msra.mxu0 0
    %8308 = vmatprep.subr.bf16.mxu0 0
    %8309 = vmatpush1.bf16.msra.mxu0 0
    %8310 = vmatprep.subr.bf16.mxu0 0
    %8311 = vmatpush1.bf16.msra.mxu0 0
    %8312 = vmatprep.subr.bf16.mxu0 0
    %8313 = vmatpush1.bf16.msra.mxu0 %v8296
    %8314 = vmatprep.subr.bf16.mxu0 0
    %8315 = vmatpush2.bf16.msra.mxu0 0
    %8316 = vmatprep.subr.bf16.mxu0 0
    %8317 = vmatpush2.bf16.msra.mxu0 0
    %8318 = vmatprep.subr.bf16.mxu0 0
    %8319 = vmatpush2.bf16.msra.mxu0 0
    %8320 = vmatprep.subr.bf16.mxu0 0
    %8321 = vmatpush2.bf16.msra.mxu0 0
    %8322 = vmatprep.subr.bf16.mxu0 0
    %8323 = vmatpush2.bf16.msra.mxu0 0
    %8324 = vmatprep.subr.bf16.mxu0 0
    %8325 = vmatpush2.bf16.msra.mxu0 0
    %8326 = vmatprep.subr.bf16.mxu0 0
    %8327 = vmatpush2.bf16.msra.mxu0 0
    %8328 = vmatprep.subr.bf16.mxu0 0
    %8329 = vmatpush2.bf16.msra.mxu0 0
    %8330 = vmatprep.mubr.bf16.mxu0 0
    %8331 = vmatmul.mubr.bf16.gmra.mxu0 %v8293
    %v8332 = vpop.f32.mrf.mxu0
    %v8333 = vadd.f32 0.0, %v8332
    %v8334 = vpop.f32.mrf.mxu0
    %v8335 = vpop.f32.mrf.mxu0
    %v8336 = vpop.f32.mrf.mxu0
    %8337 = vdwg.mxu0
    %v8339 = vsel %vm2949, %v7692, 0
    %v8342 = vsel %vm3145, %v6747, 0
    %8344 = vmatprep.subr.bf16.mxu0 0
    %8345 = vmatpush1.bf16.msra.mxu0 0
    %8346 = vmatprep.subr.bf16.mxu0 0
    %8347 = vmatpush1.bf16.msra.mxu0 0
    %8348 = vmatprep.subr.bf16.mxu0 0
    %8349 = vmatpush1.bf16.msra.mxu0 0
    %8350 = vmatprep.subr.bf16.mxu0 0
    %8351 = vmatpush1.bf16.msra.mxu0 0
    %8352 = vmatprep.subr.bf16.mxu0 0
    %8353 = vmatpush1.bf16.msra.mxu0 0
    %8354 = vmatprep.subr.bf16.mxu0 0
    %8355 = vmatpush1.bf16.msra.mxu0 0
    %8356 = vmatprep.subr.bf16.mxu0 0
    %8357 = vmatpush1.bf16.msra.mxu0 0
    %8358 = vmatprep.subr.bf16.mxu0 0
    %8359 = vmatpush1.bf16.msra.mxu0 %v8342
    %8360 = vmatprep.subr.bf16.mxu0 0
    %8361 = vmatpush2.bf16.msra.mxu0 0
    %8362 = vmatprep.subr.bf16.mxu0 0
    %8363 = vmatpush2.bf16.msra.mxu0 0
    %8364 = vmatprep.subr.bf16.mxu0 0
    %8365 = vmatpush2.bf16.msra.mxu0 0
    %8366 = vmatprep.subr.bf16.mxu0 0
    %8367 = vmatpush2.bf16.msra.mxu0 0
    %8368 = vmatprep.subr.bf16.mxu0 0
    %8369 = vmatpush2.bf16.msra.mxu0 0
    %8370 = vmatprep.subr.bf16.mxu0 0
    %8371 = vmatpush2.bf16.msra.mxu0 0
    %8372 = vmatprep.subr.bf16.mxu0 0
    %8373 = vmatpush2.bf16.msra.mxu0 0
    %8374 = vmatprep.subr.bf16.mxu0 0
    %8375 = vmatpush2.bf16.msra.mxu0 0
    %8376 = vmatprep.mubr.bf16.mxu0 0
    %8377 = vmatmul.mubr.bf16.gmra.mxu0 %v8339
    %v8378 = vpop.f32.mrf.mxu0
    %v8379 = vadd.f32 0.0, %v8378
    %v8380 = vpop.f32.mrf.mxu0
    %v8381 = vpop.f32.mrf.mxu0
    %v8382 = vpop.f32.mrf.mxu0
    %8383 = vdwg.mxu0
    %v8385 = vsel %vm2949, %v7693, 0
    %v8388 = vsel %vm3145, %v6749, 0
    %8390 = vmatprep.subr.bf16.mxu0 0
    %8391 = vmatpush1.bf16.msra.mxu0 0
    %8392 = vmatprep.subr.bf16.mxu0 0
    %8393 = vmatpush1.bf16.msra.mxu0 0
    %8394 = vmatprep.subr.bf16.mxu0 0
    %8395 = vmatpush1.bf16.msra.mxu0 0
    %8396 = vmatprep.subr.bf16.mxu0 0
    %8397 = vmatpush1.bf16.msra.mxu0 0
    %8398 = vmatprep.subr.bf16.mxu0 0
    %8399 = vmatpush1.bf16.msra.mxu0 0
    %8400 = vmatprep.subr.bf16.mxu0 0
    %8401 = vmatpush1.bf16.msra.mxu0 0
    %8402 = vmatprep.subr.bf16.mxu0 0
    %8403 = vmatpush1.bf16.msra.mxu0 0
    %8404 = vmatprep.subr.bf16.mxu0 0
    %8405 = vmatpush1.bf16.msra.mxu0 %v8388
    %8406 = vmatprep.subr.bf16.mxu0 0
    %8407 = vmatpush2.bf16.msra.mxu0 0
    %8408 = vmatprep.subr.bf16.mxu0 0
    %8409 = vmatpush2.bf16.msra.mxu0 0
    %8410 = vmatprep.subr.bf16.mxu0 0
    %8411 = vmatpush2.bf16.msra.mxu0 0
    %8412 = vmatprep.subr.bf16.mxu0 0
    %8413 = vmatpush2.bf16.msra.mxu0 0
    %8414 = vmatprep.subr.bf16.mxu0 0
    %8415 = vmatpush2.bf16.msra.mxu0 0
    %8416 = vmatprep.subr.bf16.mxu0 0
    %8417 = vmatpush2.bf16.msra.mxu0 0
    %8418 = vmatprep.subr.bf16.mxu0 0
    %8419 = vmatpush2.bf16.msra.mxu0 0
    %8420 = vmatprep.subr.bf16.mxu0 0
    %8421 = vmatpush2.bf16.msra.mxu0 0
    %8422 = vmatprep.mubr.bf16.mxu0 0
    %8423 = vmatmul.mubr.bf16.gmra.mxu0 %v8385
    %v8424 = vpop.f32.mrf.mxu0
    %v8425 = vadd.f32 0.0, %v8424
    %v8426 = vpop.f32.mrf.mxu0
    %v8427 = vpop.f32.mrf.mxu0
    %v8428 = vpop.f32.mrf.mxu0
    %8429 = vdwg.mxu0
    %8432 = vrot.lane.b32.xlu0 %v7827, 16
    %v8433 = vpop.permute.xlu0 %8432
    %8434 = vrot.lane.b32.xlu0 %v7873, 16
    %v8435 = vpop.permute.xlu0 %8434
    %8440 = vrot.lane.b32.xlu0 %v7919, 32
    %v8441 = vpop.permute.xlu0 %8440
    %8442 = vrot.lane.b32.xlu0 %v7965, 32
    %v8443 = vpop.permute.xlu0 %8442
    %8448 = vrot.lane.b32.xlu0 %v8011, 48
    %v8449 = vpop.permute.xlu0 %8448
    %8450 = vrot.lane.b32.xlu0 %v8057, 48
    %v8451 = vpop.permute.xlu0 %8450
    %8456 = vrot.lane.b32.xlu0 %v8103, 64
    %v8457 = vpop.permute.xlu0 %8456
    %8458 = vrot.lane.b32.xlu0 %v8149, 64
    %v8459 = vpop.permute.xlu0 %8458
    %8464 = vrot.lane.b32.xlu0 %v8195, 80
    %v8465 = vpop.permute.xlu0 %8464
    %8466 = vrot.lane.b32.xlu0 %v8241, 80
    %v8467 = vpop.permute.xlu0 %8466
    %8472 = vrot.lane.b32.xlu0 %v8287, 96
    %v8473 = vpop.permute.xlu0 %8472
    %8474 = vrot.lane.b32.xlu0 %v8333, 96
    %v8475 = vpop.permute.xlu0 %8474
    %8480 = vrot.lane.b32.xlu0 %v8379, 112
    %v8481 = vpop.permute.xlu0 %8480
    %8482 = vrot.lane.b32.xlu0 %v8425, 112
    %v8483 = vpop.permute.xlu0 %8482
    %v8486 = vsel %vm2196, %v7735, %v8433
    %v8487 = vsel %vm2196, %v7781, %v8435
    %v8488 = vsel %vm3937, %v8486, %v8441
    %v8489 = vsel %vm3937, %v8487, %v8443
    %v8490 = vsel %vm3940, %v8488, %v8449
    %v8491 = vsel %vm3940, %v8489, %v8451
    %v8492 = vsel %vm546, %v8490, %v8457
    %v8493 = vsel %vm546, %v8491, %v8459
    %v8494 = vsel %vm3945, %v8492, %v8465
    %v8495 = vsel %vm3945, %v8493, %v8467
    %v8496 = vsel %vm1829, %v8494, %v8473
    %v8497 = vsel %vm1829, %v8495, %v8475
    %v8498 = vsel %vm3950, %v8496, %v8481
    %v8499 = vsel %vm3950, %v8497, %v8483
    %s8500 = scalar_lea.vmem %s31, 128
    %v8501 = vld [vmem:[%s8500] sm:$0xf]
    %v8502 = vld [vmem:[%s8500 + $0x4] sm:$0xf]
    %v8503 = vld [vmem:[%s8500 + $0x8] sm:$0xf]
    %v8504 = vld [vmem:[%s8500 + $0xc] sm:$0xf]
    %v8505 = vld [vmem:[%s8500 + $0x10] sm:$0xf]
    %v8506 = vld [vmem:[%s8500 + $0x14] sm:$0xf]
    %v8507 = vld [vmem:[%s8500 + $0x18] sm:$0xf]
    %v8508 = vld [vmem:[%s8500 + $0x1c] sm:$0xf]
    %v8509 = vld [vmem:[%s8500 + $0x20] sm:$0xf]
    %v8510 = vld [vmem:[%s8500 + $0x24] sm:$0xf]
    %v8511 = vld [vmem:[%s8500 + $0x28] sm:$0xf]
    %v8512 = vld [vmem:[%s8500 + $0x2c] sm:$0xf]
    %v8513 = vld [vmem:[%s8500 + $0x30] sm:$0xf]
    %v8514 = vld [vmem:[%s8500 + $0x34] sm:$0xf]
    %v8515 = vld [vmem:[%s8500 + $0x38] sm:$0xf]
    %v8516 = vld [vmem:[%s8500 + $0x3c] sm:$0xf]
    %v8517 = vpack.c.bf16 %v8499, %v8498
    %s8518 = scalar_lea.vmem [#allocation23], 2
    %v8519 = vld [vmem:[%s8518] sm:$0x1]
    %v8521 = vlaneseq
    %v8522 = vshrl.u32 %v8521, 7
    %v8523 = vsub.s32 0, %v8522
    %v8524 = vrot.slane %v8519, %v8523
    %v8542 = vunpack.c.l.b16 %v8501
    %v8543 = vunpack.c.l.b16 %v8502
    %v8544 = vunpack.c.l.b16 %v8503
    %v8545 = vunpack.c.l.b16 %v8504
    %v8546 = vunpack.c.l.b16 %v8505
    %v8547 = vunpack.c.l.b16 %v8506
    %v8548 = vunpack.c.l.b16 %v8507
    %v8549 = vunpack.c.l.b16 %v8508
    %v8550 = vunpack.c.l.b16 %v8509
    %v8551 = vunpack.c.l.b16 %v8510
    %v8552 = vunpack.c.l.b16 %v8511
    %v8553 = vunpack.c.l.b16 %v8512
    %v8554 = vunpack.c.l.b16 %v8513
    %v8555 = vunpack.c.l.b16 %v8514
    %v8556 = vunpack.c.l.b16 %v8515
    %v8557 = vunpack.c.l.b16 %v8516
    %v8558 = vpack.c.b16 %v8543, %v8542
    %v8559 = vpack.c.b16 %v8545, %v8544
    %v8560 = vpack.c.b16 %v8547, %v8546
    %v8561 = vpack.c.b16 %v8549, %v8548
    %v8562 = vpack.c.b16 %v8551, %v8550
    %v8563 = vpack.c.b16 %v8553, %v8552
    %v8564 = vpack.c.b16 %v8555, %v8554
    %v8565 = vpack.c.b16 %v8557, %v8556
    %8574 = vmatprep.subr.bf16.mxu0 0
    %8575 = vmatpush1.bf16.msra.mxu0 %v8565
    %8576 = vmatprep.subr.bf16.mxu0 0
    %8577 = vmatpush1.bf16.msra.mxu0 %v8564
    %8578 = vmatprep.subr.bf16.mxu0 0
    %8579 = vmatpush1.bf16.msra.mxu0 %v8563
    %8580 = vmatprep.subr.bf16.mxu0 0
    %8581 = vmatpush1.bf16.msra.mxu0 %v8562
    %8582 = vmatprep.subr.bf16.mxu0 0
    %8583 = vmatpush1.bf16.msra.mxu0 %v8561
    %8584 = vmatprep.subr.bf16.mxu0 0
    %8585 = vmatpush1.bf16.msra.mxu0 %v8560
    %8586 = vmatprep.subr.bf16.mxu0 0
    %8587 = vmatpush1.bf16.msra.mxu0 %v8559
    %8588 = vmatprep.subr.bf16.mxu0 0
    %8589 = vmatpush1.bf16.msra.mxu0 %v8558
    %8590 = vmatprep.subr.bf16.mxu0 0
    %8591 = vmatpush2.bf16.msra.mxu0 0
    %8592 = vmatprep.subr.bf16.mxu0 0
    %8593 = vmatpush2.bf16.msra.mxu0 0
    %8594 = vmatprep.subr.bf16.mxu0 0
    %8595 = vmatpush2.bf16.msra.mxu0 0
    %8596 = vmatprep.subr.bf16.mxu0 0
    %8597 = vmatpush2.bf16.msra.mxu0 0
    %8598 = vmatprep.subr.bf16.mxu0 0
    %8599 = vmatpush2.bf16.msra.mxu0 0
    %8600 = vmatprep.subr.bf16.mxu0 0
    %8601 = vmatpush2.bf16.msra.mxu0 0
    %8602 = vmatprep.subr.bf16.mxu0 0
    %8603 = vmatpush2.bf16.msra.mxu0 0
    %8604 = vmatprep.subr.bf16.mxu0 0
    %8605 = vmatpush2.bf16.msra.mxu0 0
    %8606 = vmatprep.mubr.bf16.mxu0 0
    %8607 = vmatmul.mubr.bf16.gmra.mxu0 %v8517
    %v8608 = vpop.f32.mrf.mxu0
    %v8609 = vadd.f32 %v8524, %v8608
    %v8610 = vpop.f32.mrf.mxu0
    %v8611 = vpop.f32.mrf.mxu0
    %v8612 = vadd.f32 %v8524, %v8611
    %v8613 = vpop.f32.mrf.mxu0
    %8614 = vdwg.mxu0
    %v8615 = vadd.f32 %v6382, %v8609
    %v8616 = vadd.f32 %v6383, %v8612
    %s8617 = scalar_lea.vmem [#allocation24], 2
    %v8618 = vld [vmem:[%s8617] sm:$0x1]
    %s8619 = scalar_lea.vmem [#allocation26], 2
    %v8620 = vld [vmem:[%s8619] sm:$0x1]
    %8621 = vadd.xlane.f32.xlu0 %v8615
    %v8622 = vpop.xlane.xlu0 %8621
    %8623 = vadd.xlane.f32.xlu0 %v8616
    %v8624 = vpop.xlane.xlu0 %8623
    %v8625 = vmul.f32 %v8622, %v4074
    %v8626 = vmul.f32 %v8624, %v4074
    %v8627 = vsub.f32 %v8615, %v8625
    %v8628 = vsub.f32 %v8616, %v8626
    %v8629 = vmul.f32 %v8627, %v8627
    %v8630 = vmul.f32 %v8628, %v8628
    %8631 = vadd.xlane.f32.xlu0 %v8629
    %v8632 = vpop.xlane.xlu0 %8631
    %8633 = vadd.xlane.f32.xlu0 %v8630
    %v8634 = vpop.xlane.xlu0 %8633
    %v8635 = vmul.f32 %v8632, %v4074
    %v8636 = vmul.f32 %v8634, %v4074
    %v8637 = vadd.f32 %v8635, 1e-05
    %v8638 = vadd.f32 %v8636, 1e-05
    %v8639 = vrsqrt.pop %v8637
    %v8640 = vrsqrt.pop %v8638
    %v8641 = vmul.f32 %v8627, %v8639
    %v8642 = vmul.f32 %v8628, %v8640
    %v8644 = vlaneseq
    %v8645 = vshrl.u32 %v8644, 7
    %v8646 = vsub.s32 0, %v8645
    %v8647 = vrot.slane %v8618, %v8646
    %v8649 = vmul.f32 %v8641, %v8647
    %v8650 = vmul.f32 %v8642, %v8647
    %v8652 = vlaneseq
    %v8653 = vshrl.u32 %v8652, 7
    %v8654 = vsub.s32 0, %v8653
    %v8655 = vrot.slane %v8620, %v8654
    %v8657 = vadd.f32 %v8649, %v8655
    %v8658 = vadd.f32 %v8650, %v8655
    %v8659 = vrot.slane %v8657, 4
    %v8660 = vadd.f32 %v8657, %v8659
    %v8661 = vrot.slane %v8660, 2
    %v8662 = vadd.f32 %v8660, %v8661
    %v8663 = vrot.slane %v8662, 1
    %v8664 = vadd.f32 %v8662, %v8663
    %v8665 = vrot.slane %v8658, 4
    %v8666 = vadd.f32 %v8658, %v8665
    %v8667 = vrot.slane %v8666, 2
    %v8668 = vadd.f32 %v8666, %v8667
    %v8669 = vrot.slane %v8668, 1
    %v8670 = vadd.f32 %v8668, %v8669
    %v8671 = vrcp.pop 8.0
    %v8672 = vmul.f32 %v8664, %v8671
    %v8673 = vmul.f32 %v8670, %v8671
    %v8674 = vld [vmem:[#allocation27] sm:$0xff]
    %v8675 = vld [vmem:[#allocation27 + $0x8] sm:$0xff]
    %v8676 = vld [vmem:[#allocation27 + $0x10] sm:$0xff]
    %v8677 = vld [vmem:[#allocation27 + $0x18] sm:$0xff]
    %v8678 = vld [vmem:[#allocation27 + $0x20] sm:$0xff]
    %v8679 = vld [vmem:[#allocation27 + $0x28] sm:$0xff]
    %v8680 = vld [vmem:[#allocation27 + $0x30] sm:$0xff]
    %v8681 = vld [vmem:[#allocation27 + $0x38] sm:$0xff]
    %v8682 = vld [vmem:[#allocation27 + $0x40] sm:$0xff]
    %v8683 = vld [vmem:[#allocation27 + $0x48] sm:$0xff]
    %v8684 = vld [vmem:[#allocation27 + $0x50] sm:$0xff]
    %v8685 = vld [vmem:[#allocation27 + $0x58] sm:$0xff]
    %v8686 = vld [vmem:[#allocation27 + $0x60] sm:$0xff]
    %v8687 = vld [vmem:[#allocation27 + $0x68] sm:$0xff]
    %v8688 = vld [vmem:[#allocation27 + $0x70] sm:$0xff]
    %v8689 = vld [vmem:[#allocation27 + $0x78] sm:$0xff]
    %v8690 = vld [vmem:[#allocation27 + $0x80] sm:$0xff]
    %v8691 = vld [vmem:[#allocation27 + $0x88] sm:$0xff]
    %v8692 = vld [vmem:[#allocation27 + $0x90] sm:$0xff]
    %v8693 = vld [vmem:[#allocation27 + $0x98] sm:$0xff]
    %v8694 = vld [vmem:[#allocation27 + $0xa0] sm:$0xff]
    %v8695 = vld [vmem:[#allocation27 + $0xa8] sm:$0xff]
    %v8696 = vld [vmem:[#allocation27 + $0xb0] sm:$0xff]
    %v8697 = vld [vmem:[#allocation27 + $0xb8] sm:$0xff]
    %v8698 = vld [vmem:[#allocation27 + $0xc0] sm:$0xff]
    %v8699 = vld [vmem:[#allocation27 + $0xc8] sm:$0xff]
    %v8700 = vld [vmem:[#allocation27 + $0xd0] sm:$0xff]
    %v8701 = vld [vmem:[#allocation27 + $0xd8] sm:$0xff]
    %v8702 = vld [vmem:[#allocation27 + $0xe0] sm:$0xff]
    %v8703 = vld [vmem:[#allocation27 + $0xe8] sm:$0xff]
    %v8704 = vld [vmem:[#allocation27 + $0xf0] sm:$0xff]
    %v8705 = vld [vmem:[#allocation27 + $0xf8] sm:$0xff]
    %v8706 = vpack.c.bf16 %v8672, %v8672
    %v8707 = vpack.c.bf16 %v8673, %v8673
    %v8708 = vld [vmem:[#allocation6] sm:$0x3]
    %v8709 = vld [vmem:[%s41] sm:$0xff]
    %v8710 = vpack.c.bf16 %v8708, %v8708
    %v8712 = vcombine.high %v8709, %v8709
    %v8714 = vunpack.c.l.s4 1983009808
    %v8715 = vunpack.c.0.s8 %v8714
    %v8716 = vlaneseq
    %v8717 = vshrl.u32 %v8716, 7
    %v8718 = vsub.s32 %v8715, %v8717
    %v8719 = vrot.slane %v8709, %v8718
    %v8721 = vunpack.c.l.s4 1983009808
    %v8722 = vunpack.c.0.s8 %v8721
    %v8723 = vlaneseq
    %v8724 = vshrl.u32 %v8723, 7
    %v8725 = vsub.s32 %v8722, %v8724
    %v8726 = vrot.slane %v8712, %v8725
    %v8727 = vcombine.high %v8719, %v8719
    %v8728 = vcombine.high %v8726, %v8726
    %v8730 = vsel %vm1729, %v8710, 0
    %v8733 = vsel %vm394, %v8719, 0
    %v8736 = vsel %vm394, %v8727, 0
    %v8739 = vsel %vm394, %v8726, 0
    %v8742 = vsel %vm394, %v8728, 0
    %8744 = vmatprep.subr.bf16.mxu0 0
    %8745 = vmatpush1.bf16.msra.mxu0 0
    %8746 = vmatprep.subr.bf16.mxu0 0
    %8747 = vmatpush1.bf16.msra.mxu0 0
    %8748 = vmatprep.subr.bf16.mxu0 0
    %8749 = vmatpush1.bf16.msra.mxu0 0
    %8750 = vmatprep.subr.bf16.mxu0 0
    %8751 = vmatpush1.bf16.msra.mxu0 0
    %8752 = vmatprep.subr.bf16.mxu0 0
    %8753 = vmatpush1.bf16.msra.mxu0 0
    %8754 = vmatprep.subr.bf16.mxu0 0
    %8755 = vmatpush1.bf16.msra.mxu0 0
    %8756 = vmatprep.subr.bf16.mxu0 0
    %8757 = vmatpush1.bf16.msra.mxu0 0
    %8758 = vmatprep.subr.bf16.mxu0 %v8736
    %8759 = vmatpush1.bf16.msra.mxu0 %v8733
    %8760 = vmatprep.subr.bf16.mxu0 0
    %8761 = vmatpush2.bf16.msra.mxu0 0
    %8762 = vmatprep.subr.bf16.mxu0 0
    %8763 = vmatpush2.bf16.msra.mxu0 0
    %8764 = vmatprep.subr.bf16.mxu0 0
    %8765 = vmatpush2.bf16.msra.mxu0 0
    %8766 = vmatprep.subr.bf16.mxu0 0
    %8767 = vmatpush2.bf16.msra.mxu0 0
    %8768 = vmatprep.subr.bf16.mxu0 0
    %8769 = vmatpush2.bf16.msra.mxu0 0
    %8770 = vmatprep.subr.bf16.mxu0 0
    %8771 = vmatpush2.bf16.msra.mxu0 0
    %8772 = vmatprep.subr.bf16.mxu0 0
    %8773 = vmatpush2.bf16.msra.mxu0 0
    %8774 = vmatprep.subr.bf16.mxu0 0
    %8775 = vmatpush2.bf16.msra.mxu0 0
    %8776 = vmatprep.mubr.bf16.mxu0 0
    %8777 = vmatmul.mubr.bf16.gmra.mxu0 %v8730
    %v8778 = vpop.f32.mrf.mxu0
    %v8779 = vadd.f32 0.0, %v8778
    %v8780 = vpop.f32.mrf.mxu0
    %v8781 = vadd.f32 0.0, %v8780
    %v8782 = vpop.f32.mrf.mxu0
    %v8783 = vpop.f32.mrf.mxu0
    %8784 = vdwg.mxu0
    %8785 = vmatprep.subr.bf16.mxu0 0
    %8786 = vmatpush1.bf16.msra.mxu0 0
    %8787 = vmatprep.subr.bf16.mxu0 0
    %8788 = vmatpush1.bf16.msra.mxu0 0
    %8789 = vmatprep.subr.bf16.mxu0 0
    %8790 = vmatpush1.bf16.msra.mxu0 0
    %8791 = vmatprep.subr.bf16.mxu0 0
    %8792 = vmatpush1.bf16.msra.mxu0 0
    %8793 = vmatprep.subr.bf16.mxu0 0
    %8794 = vmatpush1.bf16.msra.mxu0 0
    %8795 = vmatprep.subr.bf16.mxu0 0
    %8796 = vmatpush1.bf16.msra.mxu0 0
    %8797 = vmatprep.subr.bf16.mxu0 0
    %8798 = vmatpush1.bf16.msra.mxu0 0
    %8799 = vmatprep.subr.bf16.mxu0 %v8742
    %8800 = vmatpush1.bf16.msra.mxu0 %v8739
    %8801 = vmatprep.subr.bf16.mxu0 0
    %8802 = vmatpush2.bf16.msra.mxu0 0
    %8803 = vmatprep.subr.bf16.mxu0 0
    %8804 = vmatpush2.bf16.msra.mxu0 0
    %8805 = vmatprep.subr.bf16.mxu0 0
    %8806 = vmatpush2.bf16.msra.mxu0 0
    %8807 = vmatprep.subr.bf16.mxu0 0
    %8808 = vmatpush2.bf16.msra.mxu0 0
    %8809 = vmatprep.subr.bf16.mxu0 0
    %8810 = vmatpush2.bf16.msra.mxu0 0
    %8811 = vmatprep.subr.bf16.mxu0 0
    %8812 = vmatpush2.bf16.msra.mxu0 0
    %8813 = vmatprep.subr.bf16.mxu0 0
    %8814 = vmatpush2.bf16.msra.mxu0 0
    %8815 = vmatprep.subr.bf16.mxu0 0
    %8816 = vmatpush2.bf16.msra.mxu0 0
    %8817 = vmatprep.mubr.bf16.mxu0 0
    %8818 = vmatmul.mubr.bf16.gmra.mxu0 %v8730
    %v8819 = vpop.f32.mrf.mxu0
    %v8820 = vadd.f32 0.0, %v8819
    %v8821 = vpop.f32.mrf.mxu0
    %v8822 = vadd.f32 0.0, %v8821
    %v8823 = vpop.f32.mrf.mxu0
    %v8824 = vpop.f32.mrf.mxu0
    %8825 = vdwg.mxu0
    %v8828 = vunpack.c.l.b16 %v8706
    %v8829 = vunpack.c.l.b16 %v8707
    %v8830 = vsel %vm767, %v8829, %v8828
    %v8831 = vpack.c.b16 %v8830, %v8830
    %v8865 = vunpack.c.l.b16 %v8674
    %v8866 = vunpack.c.h.b16 %v8674
    %v8867 = vunpack.c.l.b16 %v8675
    %v8868 = vunpack.c.h.b16 %v8675
    %v8869 = vunpack.c.l.b16 %v8676
    %v8870 = vunpack.c.h.b16 %v8676
    %v8871 = vunpack.c.l.b16 %v8677
    %v8872 = vunpack.c.h.b16 %v8677
    %v8873 = vunpack.c.l.b16 %v8678
    %v8874 = vunpack.c.h.b16 %v8678
    %v8875 = vunpack.c.l.b16 %v8679
    %v8876 = vunpack.c.h.b16 %v8679
    %v8877 = vunpack.c.l.b16 %v8680
    %v8878 = vunpack.c.h.b16 %v8680
    %v8879 = vunpack.c.l.b16 %v8681
    %v8880 = vunpack.c.h.b16 %v8681
    %v8881 = vunpack.c.l.b16 %v8682
    %v8882 = vunpack.c.h.b16 %v8682
    %v8883 = vunpack.c.l.b16 %v8683
    %v8884 = vunpack.c.h.b16 %v8683
    %v8885 = vunpack.c.l.b16 %v8684
    %v8886 = vunpack.c.h.b16 %v8684
    %v8887 = vunpack.c.l.b16 %v8685
    %v8888 = vunpack.c.h.b16 %v8685
    %v8889 = vunpack.c.l.b16 %v8686
    %v8890 = vunpack.c.h.b16 %v8686
    %v8891 = vunpack.c.l.b16 %v8687
    %v8892 = vunpack.c.h.b16 %v8687
    %v8893 = vunpack.c.l.b16 %v8688
    %v8894 = vunpack.c.h.b16 %v8688
    %v8895 = vunpack.c.l.b16 %v8689
    %v8896 = vunpack.c.h.b16 %v8689
    %v8897 = vunpack.c.l.b16 %v8690
    %v8898 = vunpack.c.h.b16 %v8690
    %v8899 = vunpack.c.l.b16 %v8691
    %v8900 = vunpack.c.h.b16 %v8691
    %v8901 = vunpack.c.l.b16 %v8692
    %v8902 = vunpack.c.h.b16 %v8692
    %v8903 = vunpack.c.l.b16 %v8693
    %v8904 = vunpack.c.h.b16 %v8693
    %v8905 = vunpack.c.l.b16 %v8694
    %v8906 = vunpack.c.h.b16 %v8694
    %v8907 = vunpack.c.l.b16 %v8695
    %v8908 = vunpack.c.h.b16 %v8695
    %v8909 = vunpack.c.l.b16 %v8696
    %v8910 = vunpack.c.h.b16 %v8696
    %v8911 = vunpack.c.l.b16 %v8697
    %v8912 = vunpack.c.h.b16 %v8697
    %v8913 = vunpack.c.l.b16 %v8698
    %v8914 = vunpack.c.h.b16 %v8698
    %v8915 = vunpack.c.l.b16 %v8699
    %v8916 = vunpack.c.h.b16 %v8699
    %v8917 = vunpack.c.l.b16 %v8700
    %v8918 = vunpack.c.h.b16 %v8700
    %v8919 = vunpack.c.l.b16 %v8701
    %v8920 = vunpack.c.h.b16 %v8701
    %v8921 = vunpack.c.l.b16 %v8702
    %v8922 = vunpack.c.h.b16 %v8702
    %v8923 = vunpack.c.l.b16 %v8703
    %v8924 = vunpack.c.h.b16 %v8703
    %v8925 = vunpack.c.l.b16 %v8704
    %v8926 = vunpack.c.h.b16 %v8704
    %v8927 = vunpack.c.l.b16 %v8705
    %v8928 = vunpack.c.h.b16 %v8705
    %v8929 = vpack.c.b16 %v8869, %v8865
    %v8930 = vpack.c.b16 %v8870, %v8866
    %v8931 = vpack.c.b16 %v8871, %v8867
    %v8932 = vpack.c.b16 %v8872, %v8868
    %v8933 = vpack.c.b16 %v8877, %v8873
    %v8934 = vpack.c.b16 %v8878, %v8874
    %v8935 = vpack.c.b16 %v8879, %v8875
    %v8936 = vpack.c.b16 %v8880, %v8876
    %v8937 = vpack.c.b16 %v8885, %v8881
    %v8938 = vpack.c.b16 %v8886, %v8882
    %v8939 = vpack.c.b16 %v8887, %v8883
    %v8940 = vpack.c.b16 %v8888, %v8884
    %v8941 = vpack.c.b16 %v8893, %v8889
    %v8942 = vpack.c.b16 %v8894, %v8890
    %v8943 = vpack.c.b16 %v8895, %v8891
    %v8944 = vpack.c.b16 %v8896, %v8892
    %v8945 = vpack.c.b16 %v8901, %v8897
    %v8946 = vpack.c.b16 %v8902, %v8898
    %v8947 = vpack.c.b16 %v8903, %v8899
    %v8948 = vpack.c.b16 %v8904, %v8900
    %v8949 = vpack.c.b16 %v8909, %v8905
    %v8950 = vpack.c.b16 %v8910, %v8906
    %v8951 = vpack.c.b16 %v8911, %v8907
    %v8952 = vpack.c.b16 %v8912, %v8908
    %v8953 = vpack.c.b16 %v8917, %v8913
    %v8954 = vpack.c.b16 %v8918, %v8914
    %v8955 = vpack.c.b16 %v8919, %v8915
    %v8956 = vpack.c.b16 %v8920, %v8916
    %v8957 = vpack.c.b16 %v8925, %v8921
    %v8958 = vpack.c.b16 %v8926, %v8922
    %v8959 = vpack.c.b16 %v8927, %v8923
    %v8960 = vpack.c.b16 %v8928, %v8924
    %8993 = vmatprep.subr.bf16.mxu0 %v8958
    %8994 = vmatpush1.bf16.msra.mxu0 %v8957
    %8995 = vmatprep.subr.bf16.mxu0 %v8954
    %8996 = vmatpush1.bf16.msra.mxu0 %v8953
    %8997 = vmatprep.subr.bf16.mxu0 %v8950
    %8998 = vmatpush1.bf16.msra.mxu0 %v8949
    %8999 = vmatprep.subr.bf16.mxu0 %v8946
    %9000 = vmatpush1.bf16.msra.mxu0 %v8945
    %9001 = vmatprep.subr.bf16.mxu0 %v8942
    %9002 = vmatpush1.bf16.msra.mxu0 %v8941
    %9003 = vmatprep.subr.bf16.mxu0 %v8938
    %9004 = vmatpush1.bf16.msra.mxu0 %v8937
    %9005 = vmatprep.subr.bf16.mxu0 %v8934
    %9006 = vmatpush1.bf16.msra.mxu0 %v8933
    %9007 = vmatprep.subr.bf16.mxu0 %v8930
    %9008 = vmatpush1.bf16.msra.mxu0 %v8929
    %9009 = vmatprep.subr.bf16.mxu0 0
    %9010 = vmatpush2.bf16.msra.mxu0 0
    %9011 = vmatprep.subr.bf16.mxu0 0
    %9012 = vmatpush2.bf16.msra.mxu0 0
    %9013 = vmatprep.subr.bf16.mxu0 0
    %9014 = vmatpush2.bf16.msra.mxu0 0
    %9015 = vmatprep.subr.bf16.mxu0 0
    %9016 = vmatpush2.bf16.msra.mxu0 0
    %9017 = vmatprep.subr.bf16.mxu0 0
    %9018 = vmatpush2.bf16.msra.mxu0 0
    %9019 = vmatprep.subr.bf16.mxu0 0
    %9020 = vmatpush2.bf16.msra.mxu0 0
    %9021 = vmatprep.subr.bf16.mxu0 0
    %9022 = vmatpush2.bf16.msra.mxu0 0
    %9023 = vmatprep.subr.bf16.mxu0 0
    %9024 = vmatpush2.bf16.msra.mxu0 0
    %9025 = vmatprep.mubr.bf16.mxu0 0
    %9026 = vmatmul.mubr.bf16.gmra.mxu0 %v8831
    %v9027 = vpop.f32.mrf.mxu0
    %v9028 = vadd.f32 %v8779, %v9027
    %v9029 = vpop.f32.mrf.mxu0
    %v9030 = vadd.f32 %v8781, %v9029
    %v9031 = vpop.f32.mrf.mxu0
    %v9032 = vpop.f32.mrf.mxu0
    %9033 = vdwg.mxu0
    %9034 = vmatprep.subr.bf16.mxu0 %v8960
    %9035 = vmatpush1.bf16.msra.mxu0 %v8959
    %9036 = vmatprep.subr.bf16.mxu0 %v8956
    %9037 = vmatpush1.bf16.msra.mxu0 %v8955
    %9038 = vmatprep.subr.bf16.mxu0 %v8952
    %9039 = vmatpush1.bf16.msra.mxu0 %v8951
    %9040 = vmatprep.subr.bf16.mxu0 %v8948
    %9041 = vmatpush1.bf16.msra.mxu0 %v8947
    %9042 = vmatprep.subr.bf16.mxu0 %v8944
    %9043 = vmatpush1.bf16.msra.mxu0 %v8943
    %9044 = vmatprep.subr.bf16.mxu0 %v8940
    %9045 = vmatpush1.bf16.msra.mxu0 %v8939
    %9046 = vmatprep.subr.bf16.mxu0 %v8936
    %9047 = vmatpush1.bf16.msra.mxu0 %v8935
    %9048 = vmatprep.subr.bf16.mxu0 %v8932
    %9049 = vmatpush1.bf16.msra.mxu0 %v8931
    %9050 = vmatprep.subr.bf16.mxu0 0
    %9051 = vmatpush2.bf16.msra.mxu0 0
    %9052 = vmatprep.subr.bf16.mxu0 0
    %9053 = vmatpush2.bf16.msra.mxu0 0
    %9054 = vmatprep.subr.bf16.mxu0 0
    %9055 = vmatpush2.bf16.msra.mxu0 0
    %9056 = vmatprep.subr.bf16.mxu0 0
    %9057 = vmatpush2.bf16.msra.mxu0 0
    %9058 = vmatprep.subr.bf16.mxu0 0
    %9059 = vmatpush2.bf16.msra.mxu0 0
    %9060 = vmatprep.subr.bf16.mxu0 0
    %9061 = vmatpush2.bf16.msra.mxu0 0
    %9062 = vmatprep.subr.bf16.mxu0 0
    %9063 = vmatpush2.bf16.msra.mxu0 0
    %9064 = vmatprep.subr.bf16.mxu0 0
    %9065 = vmatpush2.bf16.msra.mxu0 0
    %9066 = vmatprep.mubr.bf16.mxu0 0
    %9067 = vmatmul.mubr.bf16.gmra.mxu0 %v8831
    %v9068 = vpop.f32.mrf.mxu0
    %v9069 = vadd.f32 %v8820, %v9068
    %v9070 = vpop.f32.mrf.mxu0
    %v9071 = vadd.f32 %v8822, %v9070
    %v9072 = vpop.f32.mrf.mxu0
    %v9073 = vpop.f32.mrf.mxu0
    %9074 = vdwg.mxu0
    %v9075 = vld [vmem:[#allocation29] sm:$0xf]
    %v9077 = vlaneseq
    %v9078 = vshrl.u32 %v9077, 7
    %v9079 = vsub.s32 0, %v9078
    %v9080 = vrot.slane %v9075, %v9079
    %v9081 = vlaneseq
    %v9082 = vshrl.u32 %v9081, 7
    %v9083 = vsub.s32 1, %v9082
    %v9084 = vrot.slane %v9075, %v9083
    %v9085 = vlaneseq
    %v9086 = vshrl.u32 %v9085, 7
    %v9087 = vsub.s32 2, %v9086
    %v9088 = vrot.slane %v9075, %v9087
    %v9089 = vlaneseq
    %v9090 = vshrl.u32 %v9089, 7
    %v9091 = vsub.s32 3, %v9090
    %v9092 = vrot.slane %v9075, %v9091
    %v9097 = vadd.f32 %v9028, %v9080
    %v9098 = vadd.f32 %v9030, %v9084
    %v9099 = vadd.f32 %v9069, %v9088
    %v9100 = vadd.f32 %v9071, %v9092
    %v9101 = vld [vmem:[%s45] sm:$0x3]
    %v9102 = vld [vmem:[%s45 + $0x2] sm:$0x3]
    %v9103 = vld [vmem:[#allocation30] sm:$0x3]
    %v9104 = vld [vmem:[#allocation30 + $0x2] sm:$0x3]
    %v9105 = vsel %vm394, %v9097, 0.0
    %v9106 = vsel %vm394, %v9098, 0.0
    %v9107 = vadd.f32 %v9105, %v9106
    %9108 = vadd.xlane.f32.xlu0 %v9107
    %v9109 = vpop.xlane.xlu0 %9108
    %v9110 = vsel %vm394, %v9099, 0.0
    %v9111 = vsel %vm394, %v9100, 0.0
    %v9112 = vadd.f32 %v9110, %v9111
    %9113 = vadd.xlane.f32.xlu0 %v9112
    %v9114 = vpop.xlane.xlu0 %9113
    %v9115 = vrcp.pop 256.0
    %v9116 = vmul.f32 %v9109, %v9115
    %v9117 = vmul.f32 %v9114, %v9115
    %v9118 = vsub.f32 %v9097, %v9116
    %v9119 = vsub.f32 %v9098, %v9116
    %v9120 = vsub.f32 %v9099, %v9117
    %v9121 = vsub.f32 %v9100, %v9117
    %v9122 = vmul.f32 %v9118, %v9118
    %v9123 = vmul.f32 %v9119, %v9119
    %v9124 = vmul.f32 %v9120, %v9120
    %v9125 = vmul.f32 %v9121, %v9121
    %v9126 = vsel %vm394, %v9122, 0.0
    %v9127 = vsel %vm394, %v9123, 0.0
    %v9128 = vadd.f32 %v9126, %v9127
    %9129 = vadd.xlane.f32.xlu0 %v9128
    %v9130 = vpop.xlane.xlu0 %9129
    %v9131 = vsel %vm394, %v9124, 0.0
    %v9132 = vsel %vm394, %v9125, 0.0
    %v9133 = vadd.f32 %v9131, %v9132
    %9134 = vadd.xlane.f32.xlu0 %v9133
    %v9135 = vpop.xlane.xlu0 %9134
    %v9136 = vmul.f32 %v9130, %v9115
    %v9137 = vmul.f32 %v9135, %v9115
    %v9138 = vadd.f32 %v9136, 1e-05
    %v9139 = vadd.f32 %v9137, 1e-05
    %v9140 = vrsqrt.pop %v9138
    %v9141 = vrsqrt.pop %v9139
    %v9142 = vmul.f32 %v9118, %v9140
    %v9143 = vmul.f32 %v9119, %v9140
    %v9144 = vmul.f32 %v9120, %v9141
    %v9145 = vmul.f32 %v9121, %v9141
    %v9148 = vlaneseq
    %v9149 = vshrl.u32 %v9148, 7
    %v9150 = vsub.s32 0, %v9149
    %v9151 = vrot.slane %v9101, %v9150
    %v9152 = vlaneseq
    %v9153 = vshrl.u32 %v9152, 7
    %v9154 = vsub.s32 1, %v9153
    %v9155 = vrot.slane %v9101, %v9154
    %v9156 = vlaneseq
    %v9157 = vshrl.u32 %v9156, 7
    %v9158 = vsub.s32 0, %v9157
    %v9159 = vrot.slane %v9102, %v9158
    %v9160 = vlaneseq
    %v9161 = vshrl.u32 %v9160, 7
    %v9162 = vsub.s32 1, %v9161
    %v9163 = vrot.slane %v9102, %v9162
    %v9168 = vmul.f32 %v9142, %v9151
    %v9169 = vmul.f32 %v9143, %v9155
    %v9170 = vmul.f32 %v9144, %v9159
    %v9171 = vmul.f32 %v9145, %v9163
    %v9174 = vlaneseq
    %v9175 = vshrl.u32 %v9174, 7
    %v9176 = vsub.s32 0, %v9175
    %v9177 = vrot.slane %v9103, %v9176
    %v9178 = vlaneseq
    %v9179 = vshrl.u32 %v9178, 7
    %v9180 = vsub.s32 1, %v9179
    %v9181 = vrot.slane %v9103, %v9180
    %v9182 = vlaneseq
    %v9183 = vshrl.u32 %v9182, 7
    %v9184 = vsub.s32 0, %v9183
    %v9185 = vrot.slane %v9104, %v9184
    %v9186 = vlaneseq
    %v9187 = vshrl.u32 %v9186, 7
    %v9188 = vsub.s32 1, %v9187
    %v9189 = vrot.slane %v9104, %v9188
    %v9194 = vadd.f32 %v9168, %v9177
    %v9195 = vadd.f32 %v9169, %v9181
    %v9196 = vadd.f32 %v9170, %v9185
    %v9197 = vadd.f32 %v9171, %v9189
    %v9198 = vmax.f32 %v9194, 0.0
    %v9199 = vmax.f32 %v9195, 0.0
    %v9200 = vmax.f32 %v9196, 0.0
    %v9201 = vmax.f32 %v9197, 0.0
    %v9202 = vpack.c.bf16 %v9198, %v9198
    %v9203 = vpack.c.bf16 %v9199, %v9199
    %v9204 = vpack.c.bf16 %v9200, %v9200
    %v9205 = vpack.c.bf16 %v9201, %v9201
    %v9206 = vld [vmem:[#allocation32] sm:$0xf]
    %v9207 = vld [vmem:[#allocation32 + $0x4] sm:$0xf]
    %v9208 = vld [vmem:[#allocation32 + $0x8] sm:$0xf]
    %v9209 = vld [vmem:[#allocation32 + $0xc] sm:$0xf]
    %v9210 = vld [vmem:[#allocation32 + $0x10] sm:$0xf]
    %v9211 = vld [vmem:[#allocation32 + $0x14] sm:$0xf]
    %v9212 = vld [vmem:[#allocation32 + $0x18] sm:$0xf]
    %v9213 = vld [vmem:[#allocation32 + $0x1c] sm:$0xf]
    %v9214 = vld [vmem:[#allocation32 + $0x20] sm:$0xf]
    %v9215 = vld [vmem:[#allocation32 + $0x24] sm:$0xf]
    %v9216 = vld [vmem:[#allocation32 + $0x28] sm:$0xf]
    %v9217 = vld [vmem:[#allocation32 + $0x2c] sm:$0xf]
    %v9218 = vld [vmem:[#allocation32 + $0x30] sm:$0xf]
    %v9219 = vld [vmem:[#allocation32 + $0x34] sm:$0xf]
    %v9220 = vld [vmem:[#allocation32 + $0x38] sm:$0xf]
    %v9221 = vld [vmem:[#allocation32 + $0x3c] sm:$0xf]
    %v9222 = vld [vmem:[#allocation32 + $0x40] sm:$0xf]
    %v9223 = vld [vmem:[#allocation32 + $0x44] sm:$0xf]
    %v9224 = vld [vmem:[#allocation32 + $0x48] sm:$0xf]
    %v9225 = vld [vmem:[#allocation32 + $0x4c] sm:$0xf]
    %v9226 = vld [vmem:[#allocation32 + $0x50] sm:$0xf]
    %v9227 = vld [vmem:[#allocation32 + $0x54] sm:$0xf]
    %v9228 = vld [vmem:[#allocation32 + $0x58] sm:$0xf]
    %v9229 = vld [vmem:[#allocation32 + $0x5c] sm:$0xf]
    %v9230 = vld [vmem:[#allocation32 + $0x60] sm:$0xf]
    %v9231 = vld [vmem:[#allocation32 + $0x64] sm:$0xf]
    %v9232 = vld [vmem:[#allocation32 + $0x68] sm:$0xf]
    %v9233 = vld [vmem:[#allocation32 + $0x6c] sm:$0xf]
    %v9234 = vld [vmem:[#allocation32 + $0x70] sm:$0xf]
    %v9235 = vld [vmem:[#allocation32 + $0x74] sm:$0xf]
    %v9236 = vld [vmem:[#allocation32 + $0x78] sm:$0xf]
    %v9237 = vld [vmem:[#allocation32 + $0x7c] sm:$0xf]
    %v9238 = vld [vmem:[#allocation32 + $0x80] sm:$0xf]
    %v9239 = vld [vmem:[#allocation32 + $0x84] sm:$0xf]
    %v9240 = vld [vmem:[#allocation32 + $0x88] sm:$0xf]
    %v9241 = vld [vmem:[#allocation32 + $0x8c] sm:$0xf]
    %v9242 = vld [vmem:[#allocation32 + $0x90] sm:$0xf]
    %v9243 = vld [vmem:[#allocation32 + $0x94] sm:$0xf]
    %v9244 = vld [vmem:[#allocation32 + $0x98] sm:$0xf]
    %v9245 = vld [vmem:[#allocation32 + $0x9c] sm:$0xf]
    %v9246 = vld [vmem:[#allocation32 + $0xa0] sm:$0xf]
    %v9247 = vld [vmem:[#allocation32 + $0xa4] sm:$0xf]
    %v9248 = vld [vmem:[#allocation32 + $0xa8] sm:$0xf]
    %v9249 = vld [vmem:[#allocation32 + $0xac] sm:$0xf]
    %v9250 = vld [vmem:[#allocation32 + $0xb0] sm:$0xf]
    %v9251 = vld [vmem:[#allocation32 + $0xb4] sm:$0xf]
    %v9252 = vld [vmem:[#allocation32 + $0xb8] sm:$0xf]
    %v9253 = vld [vmem:[#allocation32 + $0xbc] sm:$0xf]
    %v9254 = vld [vmem:[#allocation32 + $0xc0] sm:$0xf]
    %v9255 = vld [vmem:[#allocation32 + $0xc4] sm:$0xf]
    %v9256 = vld [vmem:[#allocation32 + $0xc8] sm:$0xf]
    %v9257 = vld [vmem:[#allocation32 + $0xcc] sm:$0xf]
    %v9258 = vld [vmem:[#allocation32 + $0xd0] sm:$0xf]
    %v9259 = vld [vmem:[#allocation32 + $0xd4] sm:$0xf]
    %v9260 = vld [vmem:[#allocation32 + $0xd8] sm:$0xf]
    %v9261 = vld [vmem:[#allocation32 + $0xdc] sm:$0xf]
    %v9262 = vld [vmem:[#allocation32 + $0xe0] sm:$0xf]
    %v9263 = vld [vmem:[#allocation32 + $0xe4] sm:$0xf]
    %v9264 = vld [vmem:[#allocation32 + $0xe8] sm:$0xf]
    %v9265 = vld [vmem:[#allocation32 + $0xec] sm:$0xf]
    %v9266 = vld [vmem:[#allocation32 + $0xf0] sm:$0xf]
    %v9267 = vld [vmem:[#allocation32 + $0xf4] sm:$0xf]
    %v9268 = vld [vmem:[#allocation32 + $0xf8] sm:$0xf]
    %v9269 = vld [vmem:[#allocation32 + $0xfc] sm:$0xf]
    %v9270 = vld [vmem:[%s51] sm:$0x1]
    %v9271 = vld [vmem:[%s51 + $0x1] sm:$0x1]
    %v9274 = vlaneseq
    %v9275 = vshrl.u32 %v9274, 7
    %v9276 = vsub.s32 0, %v9275
    %v9277 = vrot.slane %v9270, %v9276
    %v9278 = vlaneseq
    %v9279 = vshrl.u32 %v9278, 7
    %v9280 = vsub.s32 0, %v9279
    %v9281 = vrot.slane %v9271, %v9280
    %v9316 = vunpack.c.l.b16 %v9206
    %v9317 = vunpack.c.l.b16 %v9207
    %v9318 = vunpack.c.l.b16 %v9208
    %v9319 = vunpack.c.l.b16 %v9209
    %v9320 = vunpack.c.l.b16 %v9210
    %v9321 = vunpack.c.l.b16 %v9211
    %v9322 = vunpack.c.l.b16 %v9212
    %v9323 = vunpack.c.l.b16 %v9213
    %v9324 = vunpack.c.l.b16 %v9214
    %v9325 = vunpack.c.l.b16 %v9215
    %v9326 = vunpack.c.l.b16 %v9216
    %v9327 = vunpack.c.l.b16 %v9217
    %v9328 = vunpack.c.l.b16 %v9218
    %v9329 = vunpack.c.l.b16 %v9219
    %v9330 = vunpack.c.l.b16 %v9220
    %v9331 = vunpack.c.l.b16 %v9221
    %v9332 = vunpack.c.l.b16 %v9222
    %v9333 = vunpack.c.l.b16 %v9223
    %v9334 = vunpack.c.l.b16 %v9224
    %v9335 = vunpack.c.l.b16 %v9225
    %v9336 = vunpack.c.l.b16 %v9226
    %v9337 = vunpack.c.l.b16 %v9227
    %v9338 = vunpack.c.l.b16 %v9228
    %v9339 = vunpack.c.l.b16 %v9229
    %v9340 = vunpack.c.l.b16 %v9230
    %v9341 = vunpack.c.l.b16 %v9231
    %v9342 = vunpack.c.l.b16 %v9232
    %v9343 = vunpack.c.l.b16 %v9233
    %v9344 = vunpack.c.l.b16 %v9234
    %v9345 = vunpack.c.l.b16 %v9235
    %v9346 = vunpack.c.l.b16 %v9236
    %v9347 = vunpack.c.l.b16 %v9237
    %v9348 = vpack.c.b16 %v9317, %v9316
    %v9349 = vpack.c.b16 %v9319, %v9318
    %v9350 = vpack.c.b16 %v9321, %v9320
    %v9351 = vpack.c.b16 %v9323, %v9322
    %v9352 = vpack.c.b16 %v9325, %v9324
    %v9353 = vpack.c.b16 %v9327, %v9326
    %v9354 = vpack.c.b16 %v9329, %v9328
    %v9355 = vpack.c.b16 %v9331, %v9330
    %v9356 = vpack.c.b16 %v9333, %v9332
    %v9357 = vpack.c.b16 %v9335, %v9334
    %v9358 = vpack.c.b16 %v9337, %v9336
    %v9359 = vpack.c.b16 %v9339, %v9338
    %v9360 = vpack.c.b16 %v9341, %v9340
    %v9361 = vpack.c.b16 %v9343, %v9342
    %v9362 = vpack.c.b16 %v9345, %v9344
    %v9363 = vpack.c.b16 %v9347, %v9346
    %9380 = vmatprep.subr.bf16.mxu0 0
    %9381 = vmatpush1.bf16.msra.mxu0 %v9355
    %9382 = vmatprep.subr.bf16.mxu0 0
    %9383 = vmatpush1.bf16.msra.mxu0 %v9354
    %9384 = vmatprep.subr.bf16.mxu0 0
    %9385 = vmatpush1.bf16.msra.mxu0 %v9353
    %9386 = vmatprep.subr.bf16.mxu0 0
    %9387 = vmatpush1.bf16.msra.mxu0 %v9352
    %9388 = vmatprep.subr.bf16.mxu0 0
    %9389 = vmatpush1.bf16.msra.mxu0 %v9351
    %9390 = vmatprep.subr.bf16.mxu0 0
    %9391 = vmatpush1.bf16.msra.mxu0 %v9350
    %9392 = vmatprep.subr.bf16.mxu0 0
    %9393 = vmatpush1.bf16.msra.mxu0 %v9349
    %9394 = vmatprep.subr.bf16.mxu0 0
    %9395 = vmatpush1.bf16.msra.mxu0 %v9348
    %9396 = vmatprep.subr.bf16.mxu0 0
    %9397 = vmatpush2.bf16.msra.mxu0 %v9363
    %9398 = vmatprep.subr.bf16.mxu0 0
    %9399 = vmatpush2.bf16.msra.mxu0 %v9362
    %9400 = vmatprep.subr.bf16.mxu0 0
    %9401 = vmatpush2.bf16.msra.mxu0 %v9361
    %9402 = vmatprep.subr.bf16.mxu0 0
    %9403 = vmatpush2.bf16.msra.mxu0 %v9360
    %9404 = vmatprep.subr.bf16.mxu0 0
    %9405 = vmatpush2.bf16.msra.mxu0 %v9359
    %9406 = vmatprep.subr.bf16.mxu0 0
    %9407 = vmatpush2.bf16.msra.mxu0 %v9358
    %9408 = vmatprep.subr.bf16.mxu0 0
    %9409 = vmatpush2.bf16.msra.mxu0 %v9357
    %9410 = vmatprep.subr.bf16.mxu0 0
    %9411 = vmatpush2.bf16.msra.mxu0 %v9356
    %9412 = vmatprep.mubr.bf16.mxu0 %v9203
    %9413 = vmatmul.mubr.bf16.gmra.mxu0 %v9202
    %v9414 = vpop.f32.mrf.mxu0
    %v9415 = vadd.f32 %v9277, %v9414
    %v9416 = vpop.f32.mrf.mxu0
    %v9417 = vpop.f32.mrf.mxu0
    %v9418 = vpop.f32.mrf.mxu0
    %9419 = vdwg.mxu0
    %v9452 = vunpack.c.l.b16 %v9238
    %v9453 = vunpack.c.l.b16 %v9239
    %v9454 = vunpack.c.l.b16 %v9240
    %v9455 = vunpack.c.l.b16 %v9241
    %v9456 = vunpack.c.l.b16 %v9242
    %v9457 = vunpack.c.l.b16 %v9243
    %v9458 = vunpack.c.l.b16 %v9244
    %v9459 = vunpack.c.l.b16 %v9245
    %v9460 = vunpack.c.l.b16 %v9246
    %v9461 = vunpack.c.l.b16 %v9247
    %v9462 = vunpack.c.l.b16 %v9248
    %v9463 = vunpack.c.l.b16 %v9249
    %v9464 = vunpack.c.l.b16 %v9250
    %v9465 = vunpack.c.l.b16 %v9251
    %v9466 = vunpack.c.l.b16 %v9252
    %v9467 = vunpack.c.l.b16 %v9253
    %v9468 = vunpack.c.l.b16 %v9254
    %v9469 = vunpack.c.l.b16 %v9255
    %v9470 = vunpack.c.l.b16 %v9256
    %v9471 = vunpack.c.l.b16 %v9257
    %v9472 = vunpack.c.l.b16 %v9258
    %v9473 = vunpack.c.l.b16 %v9259
    %v9474 = vunpack.c.l.b16 %v9260
    %v9475 = vunpack.c.l.b16 %v9261
    %v9476 = vunpack.c.l.b16 %v9262
    %v9477 = vunpack.c.l.b16 %v9263
    %v9478 = vunpack.c.l.b16 %v9264
    %v9479 = vunpack.c.l.b16 %v9265
    %v9480 = vunpack.c.l.b16 %v9266
    %v9481 = vunpack.c.l.b16 %v9267
    %v9482 = vunpack.c.l.b16 %v9268
    %v9483 = vunpack.c.l.b16 %v9269
    %v9484 = vpack.c.b16 %v9453, %v9452
    %v9485 = vpack.c.b16 %v9455, %v9454
    %v9486 = vpack.c.b16 %v9457, %v9456
    %v9487 = vpack.c.b16 %v9459, %v9458
    %v9488 = vpack.c.b16 %v9461, %v9460
    %v9489 = vpack.c.b16 %v9463, %v9462
    %v9490 = vpack.c.b16 %v9465, %v9464
    %v9491 = vpack.c.b16 %v9467, %v9466
    %v9492 = vpack.c.b16 %v9469, %v9468
    %v9493 = vpack.c.b16 %v9471, %v9470
    %v9494 = vpack.c.b16 %v9473, %v9472
    %v9495 = vpack.c.b16 %v9475, %v9474
    %v9496 = vpack.c.b16 %v9477, %v9476
    %v9497 = vpack.c.b16 %v9479, %v9478
    %v9498 = vpack.c.b16 %v9481, %v9480
    %v9499 = vpack.c.b16 %v9483, %v9482
    %9516 = vmatprep.subr.bf16.mxu0 0
    %9517 = vmatpush1.bf16.msra.mxu0 %v9491
    %9518 = vmatprep.subr.bf16.mxu0 0
    %9519 = vmatpush1.bf16.msra.mxu0 %v9490
    %9520 = vmatprep.subr.bf16.mxu0 0
    %9521 = vmatpush1.bf16.msra.mxu0 %v9489
    %9522 = vmatprep.subr.bf16.mxu0 0
    %9523 = vmatpush1.bf16.msra.mxu0 %v9488
    %9524 = vmatprep.subr.bf16.mxu0 0
    %9525 = vmatpush1.bf16.msra.mxu0 %v9487
    %9526 = vmatprep.subr.bf16.mxu0 0
    %9527 = vmatpush1.bf16.msra.mxu0 %v9486
    %9528 = vmatprep.subr.bf16.mxu0 0
    %9529 = vmatpush1.bf16.msra.mxu0 %v9485
    %9530 = vmatprep.subr.bf16.mxu0 0
    %9531 = vmatpush1.bf16.msra.mxu0 %v9484
    %9532 = vmatprep.subr.bf16.mxu0 0
    %9533 = vmatpush2.bf16.msra.mxu0 %v9499
    %9534 = vmatprep.subr.bf16.mxu0 0
    %9535 = vmatpush2.bf16.msra.mxu0 %v9498
    %9536 = vmatprep.subr.bf16.mxu0 0
    %9537 = vmatpush2.bf16.msra.mxu0 %v9497
    %9538 = vmatprep.subr.bf16.mxu0 0
    %9539 = vmatpush2.bf16.msra.mxu0 %v9496
    %9540 = vmatprep.subr.bf16.mxu0 0
    %9541 = vmatpush2.bf16.msra.mxu0 %v9495
    %9542 = vmatprep.subr.bf16.mxu0 0
    %9543 = vmatpush2.bf16.msra.mxu0 %v9494
    %9544 = vmatprep.subr.bf16.mxu0 0
    %9545 = vmatpush2.bf16.msra.mxu0 %v9493
    %9546 = vmatprep.subr.bf16.mxu0 0
    %9547 = vmatpush2.bf16.msra.mxu0 %v9492
    %9548 = vmatprep.mubr.bf16.mxu0 %v9205
    %9549 = vmatmul.mubr.bf16.gmra.mxu0 %v9204
    %v9550 = vpop.f32.mrf.mxu0
    %v9551 = vadd.f32 %v9281, %v9550
    %v9552 = vpop.f32.mrf.mxu0
    %v9553 = vpop.f32.mrf.mxu0
    %v9554 = vpop.f32.mrf.mxu0
    %9555 = vdwg.mxu0
    %v9556 = vld [vmem:[%s53] sm:$0x1]
    %v9557 = vld [vmem:[%s53 + $0x1] sm:$0x1]
    %v9558 = vld [vmem:[%s55] sm:$0x1]
    %v9559 = vld [vmem:[%s55 + $0x1] sm:$0x1]
    %v9560 = vsel %vm394, %v9415, 0.0
    %9561 = vadd.xlane.f32.xlu0 %v9560
    %v9562 = vpop.xlane.xlu0 %9561
    %v9563 = vsel %vm394, %v9551, 0.0
    %9564 = vadd.xlane.f32.xlu0 %v9563
    %v9565 = vpop.xlane.xlu0 %9564
    %v9566 = vmul.f32 %v9562, %v4074
    %v9567 = vmul.f32 %v9565, %v4074
    %v9568 = vsub.f32 %v9415, %v9566
    %v9569 = vsub.f32 %v9551, %v9567
    %v9570 = vmul.f32 %v9568, %v9568
    %v9571 = vmul.f32 %v9569, %v9569
    %v9572 = vsel %vm394, %v9570, 0.0
    %9573 = vadd.xlane.f32.xlu0 %v9572
    %v9574 = vpop.xlane.xlu0 %9573
    %v9575 = vsel %vm394, %v9571, 0.0
    %9576 = vadd.xlane.f32.xlu0 %v9575
    %v9577 = vpop.xlane.xlu0 %9576
    %v9578 = vmul.f32 %v9574, %v4074
    %v9579 = vmul.f32 %v9577, %v4074
    %v9580 = vadd.f32 %v9578, 1e-05
    %v9581 = vadd.f32 %v9579, 1e-05
    %v9582 = vrsqrt.pop %v9580
    %v9583 = vrsqrt.pop %v9581
    %v9584 = vmul.f32 %v9568, %v9582
    %v9585 = vmul.f32 %v9569, %v9583
    %v9588 = vlaneseq
    %v9589 = vshrl.u32 %v9588, 7
    %v9590 = vsub.s32 0, %v9589
    %v9591 = vrot.slane %v9556, %v9590
    %v9592 = vlaneseq
    %v9593 = vshrl.u32 %v9592, 7
    %v9594 = vsub.s32 0, %v9593
    %v9595 = vrot.slane %v9557, %v9594
    %v9598 = vmul.f32 %v9584, %v9591
    %v9599 = vmul.f32 %v9585, %v9595
    %v9602 = vlaneseq
    %v9603 = vshrl.u32 %v9602, 7
    %v9604 = vsub.s32 0, %v9603
    %v9605 = vrot.slane %v9558, %v9604
    %v9606 = vlaneseq
    %v9607 = vshrl.u32 %v9606, 7
    %v9608 = vsub.s32 0, %v9607
    %v9609 = vrot.slane %v9559, %v9608
    %v9612 = vadd.f32 %v9598, %v9605
    %v9613 = vadd.f32 %v9599, %v9609
    %v9614 = vmax.f32 %v9612, 0.0
    %v9615 = vmax.f32 %v9613, 0.0
    %v9616 = vpack.c.bf16 %v9614, %v9614
    %v9617 = vpack.c.bf16 %v9615, %v9615
    %v9618 = vld [vmem:[%s57] sm:$0xf]
    %v9619 = vld [vmem:[%s57 + $0x4] sm:$0xf]
    %v9620 = vld [vmem:[%s57 + $0x8] sm:$0xf]
    %v9621 = vld [vmem:[%s57 + $0xc] sm:$0xf]
    %v9622 = vld [vmem:[%s57 + $0x10] sm:$0xf]
    %v9623 = vld [vmem:[%s57 + $0x14] sm:$0xf]
    %v9624 = vld [vmem:[%s57 + $0x18] sm:$0xf]
    %v9625 = vld [vmem:[%s57 + $0x1c] sm:$0xf]
    %v9626 = vld [vmem:[%s57 + $0x20] sm:$0xf]
    %v9627 = vld [vmem:[%s57 + $0x24] sm:$0xf]
    %v9628 = vld [vmem:[%s57 + $0x28] sm:$0xf]
    %v9629 = vld [vmem:[%s57 + $0x2c] sm:$0xf]
    %v9630 = vld [vmem:[%s57 + $0x30] sm:$0xf]
    %v9631 = vld [vmem:[%s57 + $0x34] sm:$0xf]
    %v9632 = vld [vmem:[%s57 + $0x38] sm:$0xf]
    %v9633 = vld [vmem:[%s57 + $0x3c] sm:$0xf]
    %v9634 = vld [vmem:[%s57 + $0x40] sm:$0xf]
    %v9635 = vld [vmem:[%s57 + $0x44] sm:$0xf]
    %v9636 = vld [vmem:[%s57 + $0x48] sm:$0xf]
    %v9637 = vld [vmem:[%s57 + $0x4c] sm:$0xf]
    %v9638 = vld [vmem:[%s57 + $0x50] sm:$0xf]
    %v9639 = vld [vmem:[%s57 + $0x54] sm:$0xf]
    %v9640 = vld [vmem:[%s57 + $0x58] sm:$0xf]
    %v9641 = vld [vmem:[%s57 + $0x5c] sm:$0xf]
    %v9642 = vld [vmem:[%s57 + $0x60] sm:$0xf]
    %v9643 = vld [vmem:[%s57 + $0x64] sm:$0xf]
    %v9644 = vld [vmem:[%s57 + $0x68] sm:$0xf]
    %v9645 = vld [vmem:[%s57 + $0x6c] sm:$0xf]
    %v9646 = vld [vmem:[%s57 + $0x70] sm:$0xf]
    %v9647 = vld [vmem:[%s57 + $0x74] sm:$0xf]
    %v9648 = vld [vmem:[%s57 + $0x78] sm:$0xf]
    %v9649 = vld [vmem:[%s57 + $0x7c] sm:$0xf]
    %v9650 = vld [vmem:[%s59] sm:$0x1]
    %v9651 = vld [vmem:[%s59 + $0x1] sm:$0x1]
    %v9654 = vlaneseq
    %v9655 = vshrl.u32 %v9654, 7
    %v9656 = vsub.s32 0, %v9655
    %v9657 = vrot.slane %v9650, %v9656
    %v9658 = vlaneseq
    %v9659 = vshrl.u32 %v9658, 7
    %v9660 = vsub.s32 0, %v9659
    %v9661 = vrot.slane %v9651, %v9660
    %v9680 = vunpack.c.l.b16 %v9618
    %v9681 = vunpack.c.l.b16 %v9619
    %v9682 = vunpack.c.l.b16 %v9620
    %v9683 = vunpack.c.l.b16 %v9621
    %v9684 = vunpack.c.l.b16 %v9622
    %v9685 = vunpack.c.l.b16 %v9623
    %v9686 = vunpack.c.l.b16 %v9624
    %v9687 = vunpack.c.l.b16 %v9625
    %v9688 = vunpack.c.l.b16 %v9626
    %v9689 = vunpack.c.l.b16 %v9627
    %v9690 = vunpack.c.l.b16 %v9628
    %v9691 = vunpack.c.l.b16 %v9629
    %v9692 = vunpack.c.l.b16 %v9630
    %v9693 = vunpack.c.l.b16 %v9631
    %v9694 = vunpack.c.l.b16 %v9632
    %v9695 = vunpack.c.l.b16 %v9633
    %v9696 = vpack.c.b16 %v9681, %v9680
    %v9697 = vpack.c.b16 %v9683, %v9682
    %v9698 = vpack.c.b16 %v9685, %v9684
    %v9699 = vpack.c.b16 %v9687, %v9686
    %v9700 = vpack.c.b16 %v9689, %v9688
    %v9701 = vpack.c.b16 %v9691, %v9690
    %v9702 = vpack.c.b16 %v9693, %v9692
    %v9703 = vpack.c.b16 %v9695, %v9694
    %9712 = vmatprep.subr.bf16.mxu0 0
    %9713 = vmatpush1.bf16.msra.mxu0 %v9703
    %9714 = vmatprep.subr.bf16.mxu0 0
    %9715 = vmatpush1.bf16.msra.mxu0 %v9702
    %9716 = vmatprep.subr.bf16.mxu0 0
    %9717 = vmatpush1.bf16.msra.mxu0 %v9701
    %9718 = vmatprep.subr.bf16.mxu0 0
    %9719 = vmatpush1.bf16.msra.mxu0 %v9700
    %9720 = vmatprep.subr.bf16.mxu0 0
    %9721 = vmatpush1.bf16.msra.mxu0 %v9699
    %9722 = vmatprep.subr.bf16.mxu0 0
    %9723 = vmatpush1.bf16.msra.mxu0 %v9698
    %9724 = vmatprep.subr.bf16.mxu0 0
    %9725 = vmatpush1.bf16.msra.mxu0 %v9697
    %9726 = vmatprep.subr.bf16.mxu0 0
    %9727 = vmatpush1.bf16.msra.mxu0 %v9696
    %9728 = vmatprep.subr.bf16.mxu0 0
    %9729 = vmatpush2.bf16.msra.mxu0 0
    %9730 = vmatprep.subr.bf16.mxu0 0
    %9731 = vmatpush2.bf16.msra.mxu0 0
    %9732 = vmatprep.subr.bf16.mxu0 0
    %9733 = vmatpush2.bf16.msra.mxu0 0
    %9734 = vmatprep.subr.bf16.mxu0 0
    %9735 = vmatpush2.bf16.msra.mxu0 0
    %9736 = vmatprep.subr.bf16.mxu0 0
    %9737 = vmatpush2.bf16.msra.mxu0 0
    %9738 = vmatprep.subr.bf16.mxu0 0
    %9739 = vmatpush2.bf16.msra.mxu0 0
    %9740 = vmatprep.subr.bf16.mxu0 0
    %9741 = vmatpush2.bf16.msra.mxu0 0
    %9742 = vmatprep.subr.bf16.mxu0 0
    %9743 = vmatpush2.bf16.msra.mxu0 0
    %9744 = vmatprep.mubr.bf16.mxu0 0
    %9745 = vmatmul.mubr.bf16.gmra.mxu0 %v9616
    %v9746 = vpop.f32.mrf.mxu0
    %v9747 = vadd.f32 %v9657, %v9746
    %v9748 = vpop.f32.mrf.mxu0
    %v9749 = vpop.f32.mrf.mxu0
    %v9750 = vpop.f32.mrf.mxu0
    %9751 = vdwg.mxu0
    %v9768 = vunpack.c.l.b16 %v9634
    %v9769 = vunpack.c.l.b16 %v9635
    %v9770 = vunpack.c.l.b16 %v9636
    %v9771 = vunpack.c.l.b16 %v9637
    %v9772 = vunpack.c.l.b16 %v9638
    %v9773 = vunpack.c.l.b16 %v9639
    %v9774 = vunpack.c.l.b16 %v9640
    %v9775 = vunpack.c.l.b16 %v9641
    %v9776 = vunpack.c.l.b16 %v9642
    %v9777 = vunpack.c.l.b16 %v9643
    %v9778 = vunpack.c.l.b16 %v9644
    %v9779 = vunpack.c.l.b16 %v9645
    %v9780 = vunpack.c.l.b16 %v9646
    %v9781 = vunpack.c.l.b16 %v9647
    %v9782 = vunpack.c.l.b16 %v9648
    %v9783 = vunpack.c.l.b16 %v9649
    %v9784 = vpack.c.b16 %v9769, %v9768
    %v9785 = vpack.c.b16 %v9771, %v9770
    %v9786 = vpack.c.b16 %v9773, %v9772
    %v9787 = vpack.c.b16 %v9775, %v9774
    %v9788 = vpack.c.b16 %v9777, %v9776
    %v9789 = vpack.c.b16 %v9779, %v9778
    %v9790 = vpack.c.b16 %v9781, %v9780
    %v9791 = vpack.c.b16 %v9783, %v9782
    %9800 = vmatprep.subr.bf16.mxu0 0
    %9801 = vmatpush1.bf16.msra.mxu0 %v9791
    %9802 = vmatprep.subr.bf16.mxu0 0
    %9803 = vmatpush1.bf16.msra.mxu0 %v9790
    %9804 = vmatprep.subr.bf16.mxu0 0
    %9805 = vmatpush1.bf16.msra.mxu0 %v9789
    %9806 = vmatprep.subr.bf16.mxu0 0
    %9807 = vmatpush1.bf16.msra.mxu0 %v9788
    %9808 = vmatprep.subr.bf16.mxu0 0
    %9809 = vmatpush1.bf16.msra.mxu0 %v9787
    %9810 = vmatprep.subr.bf16.mxu0 0
    %9811 = vmatpush1.bf16.msra.mxu0 %v9786
    %9812 = vmatprep.subr.bf16.mxu0 0
    %9813 = vmatpush1.bf16.msra.mxu0 %v9785
    %9814 = vmatprep.subr.bf16.mxu0 0
    %9815 = vmatpush1.bf16.msra.mxu0 %v9784
    %9816 = vmatprep.subr.bf16.mxu0 0
    %9817 = vmatpush2.bf16.msra.mxu0 0
    %9818 = vmatprep.subr.bf16.mxu0 0
    %9819 = vmatpush2.bf16.msra.mxu0 0
    %9820 = vmatprep.subr.bf16.mxu0 0
    %9821 = vmatpush2.bf16.msra.mxu0 0
    %9822 = vmatprep.subr.bf16.mxu0 0
    %9823 = vmatpush2.bf16.msra.mxu0 0
    %9824 = vmatprep.subr.bf16.mxu0 0
    %9825 = vmatpush2.bf16.msra.mxu0 0
    %9826 = vmatprep.subr.bf16.mxu0 0
    %9827 = vmatpush2.bf16.msra.mxu0 0
    %9828 = vmatprep.subr.bf16.mxu0 0
    %9829 = vmatpush2.bf16.msra.mxu0 0
    %9830 = vmatprep.subr.bf16.mxu0 0
    %9831 = vmatpush2.bf16.msra.mxu0 0
    %9832 = vmatprep.mubr.bf16.mxu0 0
    %9833 = vmatmul.mubr.bf16.gmra.mxu0 %v9617
    %v9834 = vpop.f32.mrf.mxu0
    %v9835 = vadd.f32 %v9661, %v9834
    %v9836 = vpop.f32.mrf.mxu0
    %v9837 = vpop.f32.mrf.mxu0
    %v9838 = vpop.f32.mrf.mxu0
    %9839 = vdwg.mxu0
    %9841 = vrot.lane.b32.xlu0 %v9835, 1
    %v9842 = vpop.permute.xlu0 %9841
    %vm9844 = vcmask 7168
    %v9845 = vsel %vm9844, %v9747, %v9842
    %vm9846 = vcmask 9216
    %9847 = vst.msk [vmem:[#allocation33] sm:$0x3] %vm9846, %v9845
    // Predicated region
    $region198: #{tpu_custom_call.1} parent=1 // pred_check
      _
    $region199: #{tpu_custom_call.1} parent=1 // pred_check_branch
      %9849 = sbr.rel (0) target = $region201
    $region200: #{tpu_custom_call.1} parent=1 // pred_region
      %s9851 = ssub.s32 32, 32
      %9852 = vsyncadd [#allocation5], %s9851
      %s9854 = sshll.u32 [#allocation33], 4
      %s9855 = int_to_ptr.vmem [resolvable:$true] %s9854
      %9857 = dma.vmem_to_hbm [thread:$0]  %s9855, 32, %s61, [#allocation5]
    $region201: #{tpu_custom_call.1} parent=1 // pred_fallthru
      _
    // Predicated region
    $region202: #{tpu_custom_call.1} parent=1 // pred_check
      _
    $region203: #{tpu_custom_call.1} parent=1 // pred_check_branch
      %9859 = sbr.rel (0) target = $region205
    $region204: #{tpu_custom_call.1} parent=1 // pred_region
      %9860 = dma.done [#allocation5], 32
    $region205: #{tpu_custom_call.1} parent=1 // pred_fallthru
      _
    %9861 = vsyncpa [#allocation4], 1
    %9862 = vsyncpa [#allocation7], 1
    %9863 = vsyncpa [#allocation10], 1
    %9864 = vsyncpa [#allocation13], 1
    %9865 = vsyncpa [#allocation16], 1
    %9866 = vsyncpa [#allocation19], 1
    %9867 = vsyncpa [#allocation22], 1
    %9868 = vsyncpa [#allocation25], 1
    %9869 = vsyncpa [#allocation28], 1
    %9870 = vsyncpa [#allocation31], 1
    %9871 = vsyncpa [#allocation5], 1

</llo_original>
